<compile_context>
chip_gen: v5e
topology: v5e:2x2
jax: 0.10.0
libtpu: 0.0.40
codegen_flags: <defaults>
</compile_context>

<pallas_src>
import jax
import jax.numpy as jnp
import numpy as np
from jax import lax
from jax.experimental import pallas as pl
from jax.experimental.pallas import tpu as pltpu

jax.config.update("jax_default_matmul_precision", "highest")

# ----------------------------- model dimensions -----------------------------
L_IN = 146
K1, S1, C1_OUT = 4, 2, 8
L1 = (L_IN - K1) // S1 + 1          # 72  (conv1 output length)
T1 = (L1 - 2) // 2 + 1              # 36  (after MaxPool(2,2))
# TODO(synk): the original module declares Conv1d(6, 10, 5) but feeds it the
# 8-channel output of conv1 (PyTorch would raise); we use in_channels=8 so the
# forward pass is actually runnable.  pool1 (MaxPool1d(4,2)) is declared but
# never used in forward(), so it is not implemented.
C2_IN, C2_OUT, K2 = 8, 10, 5
L2 = T1 - K2 + 1                    # 32  (conv2 output length)
T2 = L2 // 2                        # 16  (after MaxPool(2,2))
F1 = T1 * C1_OUT                    # 288  pooled1 features, col = t*8 + c
F2 = T2 * C2_OUT                    # 160  pooled2 features, col = s*10 + c2
FLAT = F2                           # 160 = 4*4*10
HID, OUT = 56, 10
OUT_PAD = 128                       # lane-dense output width (sliced to 10)


# ------------------------------- Pallas kernel -------------------------------
def cnn1_fused_kernel(x_ref, w1e_ref, w1o_ref, b1_ref, w2e_ref, w2o_ref,
                      b2_ref, fw1_ref, fb1_ref, fw2_ref, fb2_ref, o_ref):
    x = x_ref[...]                                                 # (tb, 146)

    # conv1(1->8, k=4, s=2) + MaxPool1d(2,2): dense matmuls for the even / odd
    # conv1 position of every pool window, then element-wise max + bias.
    p1 = jnp.maximum(
        jnp.dot(x, w1e_ref[...], preferred_element_type=jnp.float32),
        jnp.dot(x, w1o_ref[...], preferred_element_type=jnp.float32),
    ) + b1_ref[...]                                                # (tb, 288)

    # conv2(8->10, k=5) + MaxPool1d(2,2): same trick on the pooled1 features
    # (the 5-tap loop is already folded into the dense contraction).
    p2 = jnp.maximum(
        jnp.dot(p1, w2e_ref[...], preferred_element_type=jnp.float32),
        jnp.dot(p1, w2o_ref[...], preferred_element_type=jnp.float32),
    ) + b2_ref[...]                                                # (tb, 160)

    # ff1 + ReLU (fw1 rows pre-permuted to the in-kernel s*10+c feature order).
    h = jnp.maximum(
        jnp.dot(p2, fw1_ref[...], preferred_element_type=jnp.float32)
        + fb1_ref[...], 0.0)                                       # (tb, 56)

    # ff2 + Sigmoid (exp lands on the EUP slot).  fw2/fb2 are zero-padded to
    # 128 lanes so this store is unmasked and lane-dense; padded lanes hold
    # sigmoid(0)=0.5 and are sliced away in the wrapper.
    z = jnp.dot(h, fw2_ref[...], preferred_element_type=jnp.float32) + fb2_ref[...]
    o_ref[...] = 1.0 / (1.0 + jnp.exp(-z))                         # (tb, 128)


# --------------------------- one-time weight prep ----------------------------
def prepare_kernel_params(params):
    """Fold conv+pool into dense even/odd matrices (one-time, batch-independent)."""
    w1, b1, w2, b2, fw1, fb1, fw2, fb2 = params

    # conv1 -> dense (L_IN, F1): W1e[i, t*8+c] = w1[c,0,k] iff i == 4t + k
    # (conv1 position 2t, the even slot of pool window t); W1o uses 4t + 2 + k.
    i_ = np.arange(L_IN)[:, None, None]
    t_ = np.arange(T1)[None, :, None]
    k_ = np.arange(K1)[None, None, :]
    s1e = (i_ == 4 * t_ + k_).astype(np.float32)             # (146, 36, 4)
    s1o = (i_ == 4 * t_ + 2 + k_).astype(np.float32)
    w1k = jnp.transpose(w1[:, 0, :], (1, 0))                  # (4, 8)  [k, c]
    W1e = jnp.einsum('itk,kc->itc', s1e, w1k).reshape(L_IN, F1)
    W1o = jnp.einsum('itk,kc->itc', s1o, w1k).reshape(L_IN, F1)
    b1t = jnp.tile(b1, T1).reshape(1, F1)

    # conv2 -> dense (F1, F2): W2e[p*8+c, s*10+d] = w2[d,c,k] iff p == 2s + k
    # (conv2 position 2s, even slot of pool window s); W2o uses 2s + 1 + k.
    p_ = np.arange(T1)[:, None, None]
    s_ = np.arange(T2)[None, :, None]
    k2_ = np.arange(K2)[None, None, :]
    s2e = (p_ == 2 * s_ + k2_).astype(np.float32)             # (36, 16, 5)
    s2o = (p_ == 2 * s_ + 1 + k2_).astype(np.float32)
    w2k = jnp.transpose(w2, (2, 1, 0))                        # (5, 8, 10) [k, c, d]
    W2e = jnp.einsum('psk,kcd->pcsd', s2e, w2k).reshape(F1, F2)
    W2o = jnp.einsum('psk,kcd->pcsd', s2o, w2k).reshape(F1, F2)
    b2t = jnp.tile(b2, T2).reshape(1, F2)

    # ff1: permute the 160 input rows so torch's channel-major view(-1, 160)
    # order (c*16 + s) matches the kernel's s*10 + c order.  Free at prep time.
    fw1p = jnp.transpose(fw1.reshape(HID, C2_OUT, T2), (2, 1, 0)).reshape(FLAT, HID)

    # ff2: transpose + zero-pad output lanes to 128 for an unmasked final store.
    fw2p = jnp.pad(fw2.T, ((0, 0), (0, OUT_PAD - OUT)))        # (56, 128)
    fb2p = jnp.pad(fb2.reshape(1, OUT), ((0, 0), (0, OUT_PAD - OUT)))

    return (W1e, W1o, b1t, W2e, W2o, b2t,
            fw1p, fb1.reshape(1, HID), fw2p, fb2p)


# --------------------------------- wrapper -----------------------------------
def _round_up(n, m):
    return ((n + m - 1) // m) * m


def cnn1_forward(x, kparams, tile_b=256):
    """x: (B, 1, L_IN) float32, kparams from prepare_kernel_params."""
    W1e, W1o, b1t, W2e, W2o, b2t, fw1p, fb1r, fw2p, fb2p = kparams
    B = x.shape[0]
    tb = min(tile_b, _round_up(B, 8))            # sublane-aligned batch tile
    b_pad = _round_up(B, tb)
    x2d = x[:, 0, :]                             # contiguous (B, 146) slab
    if b_pad != B:
        x2d = jnp.pad(x2d, ((0, b_pad - B), (0, 0)))

    n_weight_elems = (2 * L_IN * F1 + 2 * F1 * F2 + FLAT * HID + HID * OUT_PAD
                      + F1 + F2 + HID + OUT_PAD)
    cost = pl.CostEstimate(
        flops=b_pad * (2 * 2 * L_IN * F1 + 2 * 2 * F1 * F2
                       + 2 * FLAT * HID + 2 * HID * OUT_PAD),
        transcendentals=b_pad * OUT_PAD,
        bytes_accessed=4 * (b_pad * (L_IN + OUT_PAD) + n_weight_elems),
    )

    const = lambda i: (0, 0)                     # weights stay VMEM-resident
    out = pl.pallas_call(
        cnn1_fused_kernel,
        out_shape=jax.ShapeDtypeStruct((b_pad, OUT_PAD), jnp.float32),
        grid=(b_pad // tb,),
        in_specs=[
            pl.BlockSpec((tb, L_IN), lambda i: (i, 0)),
            pl.BlockSpec((L_IN, F1), const),
            pl.BlockSpec((L_IN, F1), const),
            pl.BlockSpec((1, F1), const),
            pl.BlockSpec((F1, F2), const),
            pl.BlockSpec((F1, F2), const),
            pl.BlockSpec((1, F2), const),
            pl.BlockSpec((FLAT, HID), const),
            pl.BlockSpec((1, HID), const),
            pl.BlockSpec((HID, OUT_PAD), const),
            pl.BlockSpec((1, OUT_PAD), const),
        ],
        out_specs=pl.BlockSpec((tb, OUT_PAD), lambda i: (i, 0)),
        compiler_params=pltpu.CompilerParams(
            dimension_semantics=("parallel",)),  # v7x: batch tiles across TCs
        cost_estimate=cost,
    )(x2d, W1e, W1o, b1t, W2e, W2o, b2t, fw1p, fb1r, fw2p, fb2p)
    return out[:B, :OUT]


# ------------------------- pure-JAX reference (check) ------------------------
def reference_forward(x, params):
    w1, b1, w2, b2, fw1, fb1, fw2, fb2 = params
    dn = ("NCH", "OIH", "NCH")
    y = lax.conv_general_dilated(x, w1, (S1,), "VALID", dimension_numbers=dn)
    y = y + b1[None, :, None]
    y = lax.reduce_window(y, -jnp.inf, lax.max, (1, 1, 2), (1, 1, 2), "VALID")
    y = lax.conv_general_dilated(y, w2, (1,), "VALID", dimension_numbers=dn)
    y = y + b2[None, :, None]
    y = lax.reduce_window(y, -jnp.inf, lax.max, (1, 1, 2), (1, 1, 2), "VALID")
    y = y.reshape(y.shape[0], -1)
    h = jnp.maximum(y @ fw1.T + fb1, 0.0)
    return jax.nn.sigmoid(h @ fw2.T + fb2)


# ----------------------------------- main ------------------------------------
if __name__ == "__main__":
    B = 2
    key = jax.random.PRNGKey(0)
    ks = jax.random.split(key, 9)

    def u(k, shape, fan_in):
        bound = 1.0 / float(np.sqrt(fan_in))
        return jax.random.uniform(k, shape, jnp.float32, -bound, bound)

    w1 = u(ks[0], (C1_OUT, 1, K1), 1 * K1)
    b1 = u(ks[1], (C1_OUT,), 1 * K1)
    w2 = u(ks[2], (C2_OUT, C2_IN, K2), C2_IN * K2)
    b2 = u(ks[3], (C2_OUT,), C2_IN * K2)
    fw1 = u(ks[4], (HID, FLAT), FLAT)
    fb1 = u(ks[5], (HID,), FLAT)
    fw2 = u(ks[6], (OUT, HID), HID)
    fb2 = u(ks[7], (OUT,), HID)
    params = (w1, b1, w2, b2, fw1, fb1, fw2, fb2)

    x = jax.random.normal(ks[8], (B, 1, L_IN), jnp.float32)

    kparams = prepare_kernel_params(params)
    out = jax.block_until_ready(cnn1_forward(x, kparams))
    ref = jax.block_until_ready(reference_forward(x, params))
    np.testing.assert_allclose(np.asarray(out), np.asarray(ref), rtol=1e-4, atol=1e-4)
    assert out.shape == (B, OUT)
    print("KERNEL_OK")
</pallas_src>

<mosaic_0001>
module attributes {stable_mosaic.version = 11 : i64} {
  func.func @cnn1_fused_kernel(%arg0: i32, %arg1: memref<8x146xf32, #tpu.memory_space<vmem>>, %arg2: memref<146x288xf32, #tpu.memory_space<vmem>>, %arg3: memref<146x288xf32, #tpu.memory_space<vmem>>, %arg4: memref<1x288xf32, #tpu.memory_space<vmem>>, %arg5: memref<288x160xf32, #tpu.memory_space<vmem>>, %arg6: memref<288x160xf32, #tpu.memory_space<vmem>>, %arg7: memref<1x160xf32, #tpu.memory_space<vmem>>, %arg8: memref<160x56xf32, #tpu.memory_space<vmem>>, %arg9: memref<1x56xf32, #tpu.memory_space<vmem>>, %arg10: memref<56x128xf32, #tpu.memory_space<vmem>>, %arg11: memref<1x128xf32, #tpu.memory_space<vmem>>, %arg12: memref<8x128xf32, #tpu.memory_space<vmem>>) attributes {dimension_semantics = [#tpu.dimension_semantics<parallel>], iteration_bounds = array<i64: 1>, scalar_prefetch = 0 : i64, scratch_operands = 0 : i64, tpu.core_type = #tpu.core_type<tc>, window_params = [{transform_indices = @transform_0, window_bounds = array<i64: 8, 146>}, {pipeline_mode = #tpu.pipeline_mode<synchronous>, transform_indices = @transform_1, window_bounds = array<i64: 146, 288>}, {pipeline_mode = #tpu.pipeline_mode<synchronous>, transform_indices = @transform_2, window_bounds = array<i64: 146, 288>}, {pipeline_mode = #tpu.pipeline_mode<synchronous>, transform_indices = @transform_3, window_bounds = array<i64: 1, 288>}, {pipeline_mode = #tpu.pipeline_mode<synchronous>, transform_indices = @transform_4, window_bounds = array<i64: 288, 160>}, {pipeline_mode = #tpu.pipeline_mode<synchronous>, transform_indices = @transform_5, window_bounds = array<i64: 288, 160>}, {pipeline_mode = #tpu.pipeline_mode<synchronous>, transform_indices = @transform_6, window_bounds = array<i64: 1, 160>}, {pipeline_mode = #tpu.pipeline_mode<synchronous>, transform_indices = @transform_7, window_bounds = array<i64: 160, 56>}, {pipeline_mode = #tpu.pipeline_mode<synchronous>, transform_indices = @transform_8, window_bounds = array<i64: 1, 56>}, {pipeline_mode = #tpu.pipeline_mode<synchronous>, transform_indices = @transform_9, window_bounds = array<i64: 56, 128>}, {pipeline_mode = #tpu.pipeline_mode<synchronous>, transform_indices = @transform_10, window_bounds = array<i64: 1, 128>}, {transform_indices = @transform_11, window_bounds = array<i64: 8, 128>}]} {
    %c0 = arith.constant 0 : index
    %c0_0 = arith.constant 0 : index
    %0 = vector.load %arg1[%c0, %c0_0] : memref<8x146xf32, #tpu.memory_space<vmem>>, vector<8x146xf32>
    %c0_1 = arith.constant 0 : index
    %c0_2 = arith.constant 0 : index
    %1 = vector.load %arg2[%c0_1, %c0_2] : memref<146x288xf32, #tpu.memory_space<vmem>>, vector<146x288xf32>
    %cst = arith.constant dense<0.000000e+00> : vector<8x288xf32>
    %2 = tpu.matmul %0, %1, %cst {dimension_numbers = #tpu.dot_dimension_numbers<[1], [0], [0], [1], [0, 0, 1, 1], [], []>, precision = #tpu.contract_precision<fp32>} : vector<8x146xf32>, vector<146x288xf32>, vector<8x288xf32> -> vector<8x288xf32>
    %c0_3 = arith.constant 0 : index
    %c0_4 = arith.constant 0 : index
    %3 = vector.load %arg3[%c0_3, %c0_4] : memref<146x288xf32, #tpu.memory_space<vmem>>, vector<146x288xf32>
    %cst_5 = arith.constant dense<0.000000e+00> : vector<8x288xf32>
    %4 = tpu.matmul %0, %3, %cst_5 {dimension_numbers = #tpu.dot_dimension_numbers<[1], [0], [0], [1], [0, 0, 1, 1], [], []>, precision = #tpu.contract_precision<fp32>} : vector<8x146xf32>, vector<146x288xf32>, vector<8x288xf32> -> vector<8x288xf32>
    %5 = arith.maximumf %2, %4 : vector<8x288xf32>
    %c0_6 = arith.constant 0 : index
    %c0_7 = arith.constant 0 : index
    %6 = vector.load %arg4[%c0_6, %c0_7] : memref<1x288xf32, #tpu.memory_space<vmem>>, vector<1x288xf32>
    %7 = vector.broadcast %6 : vector<1x288xf32> to vector<8x288xf32>
    %8 = arith.addf %5, %7 : vector<8x288xf32>
    %c0_8 = arith.constant 0 : index
    %c0_9 = arith.constant 0 : index
    %9 = vector.load %arg5[%c0_8, %c0_9] : memref<288x160xf32, #tpu.memory_space<vmem>>, vector<288x160xf32>
    %cst_10 = arith.constant dense<0.000000e+00> : vector<8x160xf32>
    %10 = tpu.matmul %8, %9, %cst_10 {dimension_numbers = #tpu.dot_dimension_numbers<[1], [0], [0], [1], [0, 0, 1, 1], [], []>, precision = #tpu.contract_precision<fp32>} : vector<8x288xf32>, vector<288x160xf32>, vector<8x160xf32> -> vector<8x160xf32>
    %c0_11 = arith.constant 0 : index
    %c0_12 = arith.constant 0 : index
    %11 = vector.load %arg6[%c0_11, %c0_12] : memref<288x160xf32, #tpu.memory_space<vmem>>, vector<288x160xf32>
    %cst_13 = arith.constant dense<0.000000e+00> : vector<8x160xf32>
    %12 = tpu.matmul %8, %11, %cst_13 {dimension_numbers = #tpu.dot_dimension_numbers<[1], [0], [0], [1], [0, 0, 1, 1], [], []>, precision = #tpu.contract_precision<fp32>} : vector<8x288xf32>, vector<288x160xf32>, vector<8x160xf32> -> vector<8x160xf32>
    %13 = arith.maximumf %10, %12 : vector<8x160xf32>
    %c0_14 = arith.constant 0 : index
    %c0_15 = arith.constant 0 : index
    %14 = vector.load %arg7[%c0_14, %c0_15] : memref<1x160xf32, #tpu.memory_space<vmem>>, vector<1x160xf32>
    %15 = vector.broadcast %14 : vector<1x160xf32> to vector<8x160xf32>
    %16 = arith.addf %13, %15 : vector<8x160xf32>
    %c0_16 = arith.constant 0 : index
    %c0_17 = arith.constant 0 : index
    %17 = vector.load %arg8[%c0_16, %c0_17] : memref<160x56xf32, #tpu.memory_space<vmem>>, vector<160x56xf32>
    %cst_18 = arith.constant dense<0.000000e+00> : vector<8x56xf32>
    %18 = tpu.matmul %16, %17, %cst_18 {dimension_numbers = #tpu.dot_dimension_numbers<[1], [0], [0], [1], [0, 0, 1, 1], [], []>, precision = #tpu.contract_precision<fp32>} : vector<8x160xf32>, vector<160x56xf32>, vector<8x56xf32> -> vector<8x56xf32>
    %c0_19 = arith.constant 0 : index
    %c0_20 = arith.constant 0 : index
    %19 = vector.load %arg9[%c0_19, %c0_20] : memref<1x56xf32, #tpu.memory_space<vmem>>, vector<1x56xf32>
    %20 = vector.broadcast %19 : vector<1x56xf32> to vector<8x56xf32>
    %21 = arith.addf %18, %20 : vector<8x56xf32>
    %cst_21 = arith.constant 0.000000e+00 : f32
    %22 = vector.broadcast %cst_21 : f32 to vector<8x56xf32>
    %23 = arith.maximumf %21, %22 : vector<8x56xf32>
    %c0_22 = arith.constant 0 : index
    %c0_23 = arith.constant 0 : index
    %24 = vector.load %arg10[%c0_22, %c0_23] : memref<56x128xf32, #tpu.memory_space<vmem>>, vector<56x128xf32>
    %cst_24 = arith.constant dense<0.000000e+00> : vector<8x128xf32>
    %25 = tpu.matmul %23, %24, %cst_24 {dimension_numbers = #tpu.dot_dimension_numbers<[1], [0], [0], [1], [0, 0, 1, 1], [], []>, precision = #tpu.contract_precision<fp32>} : vector<8x56xf32>, vector<56x128xf32>, vector<8x128xf32> -> vector<8x128xf32>
    %c0_25 = arith.constant 0 : index
    %c0_26 = arith.constant 0 : index
    %26 = vector.load %arg11[%c0_25, %c0_26] : memref<1x128xf32, #tpu.memory_space<vmem>>, vector<1x128xf32>
    %27 = vector.broadcast %26 : vector<1x128xf32> to vector<8x128xf32>
    %28 = arith.addf %25, %27 : vector<8x128xf32>
    %cst_27 = arith.constant 0.000000e+00 : f32
    %29 = vector.broadcast %cst_27 : f32 to vector<8x128xf32>
    %30 = arith.subf %29, %28 : vector<8x128xf32>
    %31 = math.exp %30 : vector<8x128xf32>
    %cst_28 = arith.constant 1.000000e+00 : f32
    %32 = vector.broadcast %cst_28 : f32 to vector<8x128xf32>
    %33 = arith.addf %32, %31 : vector<8x128xf32>
    %cst_29 = arith.constant 1.000000e+00 : f32
    %34 = vector.broadcast %cst_29 : f32 to vector<8x128xf32>
    %35 = arith.divf %34, %33 : vector<8x128xf32>
    %c0_30 = arith.constant 0 : index
    %c0_31 = arith.constant 0 : index
    %36 = vector.load %arg12[%c0_30, %c0_31] : memref<8x128xf32, #tpu.memory_space<vmem>>, vector<8x128xf32>
    tpu.vector_store %arg12[%c0_30, %c0_31], %35 {strides = array<i32>} : memref<8x128xf32, #tpu.memory_space<vmem>>, vector<8x128xf32>,
    return
  }
  func.func @transform_0(%arg0: i32) -> (i32, i32) {
    %c0_i32 = arith.constant 0 : i32
    %c0_i32_0 = arith.constant 0 : i32
    return %arg0, %c0_i32 : i32, i32
  }
  func.func @transform_1(%arg0: i32) -> (i32, i32) {
    %c0_i32 = arith.constant 0 : i32
    %c0_i32_0 = arith.constant 0 : i32
    %c0_i32_1 = arith.constant 0 : i32
    return %c0_i32, %c0_i32_0 : i32, i32
  }
  func.func @transform_2(%arg0: i32) -> (i32, i32) {
    %c0_i32 = arith.constant 0 : i32
    %c0_i32_0 = arith.constant 0 : i32
    %c0_i32_1 = arith.constant 0 : i32
    return %c0_i32, %c0_i32_0 : i32, i32
  }
  func.func @transform_3(%arg0: i32) -> (i32, i32) {
    %c0_i32 = arith.constant 0 : i32
    %c0_i32_0 = arith.constant 0 : i32
    %c0_i32_1 = arith.constant 0 : i32
    return %c0_i32, %c0_i32_0 : i32, i32
  }
  func.func @transform_4(%arg0: i32) -> (i32, i32) {
    %c0_i32 = arith.constant 0 : i32
    %c0_i32_0 = arith.constant 0 : i32
    %c0_i32_1 = arith.constant 0 : i32
    return %c0_i32, %c0_i32_0 : i32, i32
  }
  func.func @transform_5(%arg0: i32) -> (i32, i32) {
    %c0_i32 = arith.constant 0 : i32
    %c0_i32_0 = arith.constant 0 : i32
    %c0_i32_1 = arith.constant 0 : i32
    return %c0_i32, %c0_i32_0 : i32, i32
  }
  func.func @transform_6(%arg0: i32) -> (i32, i32) {
    %c0_i32 = arith.constant 0 : i32
    %c0_i32_0 = arith.constant 0 : i32
    %c0_i32_1 = arith.constant 0 : i32
    return %c0_i32, %c0_i32_0 : i32, i32
  }
  func.func @transform_7(%arg0: i32) -> (i32, i32) {
    %c0_i32 = arith.constant 0 : i32
    %c0_i32_0 = arith.constant 0 : i32
    %c0_i32_1 = arith.constant 0 : i32
    return %c0_i32, %c0_i32_0 : i32, i32
  }
  func.func @transform_8(%arg0: i32) -> (i32, i32) {
    %c0_i32 = arith.constant 0 : i32
    %c0_i32_0 = arith.constant 0 : i32
    %c0_i32_1 = arith.constant 0 : i32
    return %c0_i32, %c0_i32_0 : i32, i32
  }
  func.func @transform_9(%arg0: i32) -> (i32, i32) {
    %c0_i32 = arith.constant 0 : i32
    %c0_i32_0 = arith.constant 0 : i32
    %c0_i32_1 = arith.constant 0 : i32
    return %c0_i32, %c0_i32_0 : i32, i32
  }
  func.func @transform_10(%arg0: i32) -> (i32, i32) {
    %c0_i32 = arith.constant 0 : i32
    %c0_i32_0 = arith.constant 0 : i32
    %c0_i32_1 = arith.constant 0 : i32
    return %c0_i32, %c0_i32_0 : i32, i32
  }
  func.func @transform_11(%arg0: i32) -> (i32, i32) {
    %c0_i32 = arith.constant 0 : i32
    %c0_i32_0 = arith.constant 0 : i32
    return %arg0, %c0_i32 : i32, i32
  }
}

</mosaic_0001>

<llo_original>
// kernel: tpu_custom_call.1
$region0: #{tpu_custom_call.1}
  #allocation0 [shape = 'u32[]', space=smem, size = 0x4, offset = 0x4, fixed_abs, tag = 'smem constant byte address 0x4 - core index']
  #allocation1 [shape = 'u32[72,128]{1,0:T(1,128)}', space=vmem, size = 0x9000, scoped, tag = 'internal scratch']
  %s0 = inlined_call_operand.vmem [shape: f32[8,146], index: 0, kind: input, shape index: {}]
  %s1 = inlined_call_operand.vmem [shape: f32[146,288], index: 1, kind: input, shape index: {}]
  %s2 = inlined_call_operand.vmem [shape: f32[146,288], index: 2, kind: input, shape index: {}]
  %s3 = inlined_call_operand.vmem [shape: f32[1,288], index: 3, kind: input, shape index: {}]
  %s4 = inlined_call_operand.vmem [shape: f32[288,160], index: 4, kind: input, shape index: {}]
  %s5 = inlined_call_operand.vmem [shape: f32[288,160], index: 5, kind: input, shape index: {}]
  %s6 = inlined_call_operand.vmem [shape: f32[1,160], index: 6, kind: input, shape index: {}]
  %s7 = inlined_call_operand.vmem [shape: f32[160,56], index: 7, kind: input, shape index: {}]
  %s8 = inlined_call_operand.vmem [shape: f32[1,56], index: 8, kind: input, shape index: {}]
  %s9 = inlined_call_operand.vmem [shape: f32[56,128], index: 9, kind: input, shape index: {}]
  %s10 = inlined_call_operand.vmem [shape: f32[1,128], index: 10, kind: input, shape index: {}]
  %s11 = inlined_call_operand.hbm [shape: f32[8,128], index: 11, kind: output, shape index: {}]
  %s12 = sld [smem:[#allocation0]]
  $region54: #{tpu_custom_call.1} parent=0
    _
  %s14 = ssub.s32 1, %s12
  %s15 = scalar_select 0, %s14, %s12
  $region1: #{tpu_custom_call.1} parent=0
    #allocation2 [shape = 'u8[4096]{0}', space=vmem, size = 0x1000, scoped, tag = 'output window, operand 0, single buffered']
    #allocation3 [shape = 's32[1]{0}', space=sflag, size = 0x4, scoped, tag = 'scoped memory for tpu_custom_call.1']
    %16 = vsyncpa [#allocation3], 0
    // Predicated region
    $region2: #{tpu_custom_call.1} parent=1 // pred_check
      _
    $region3: #{tpu_custom_call.1} parent=1 // pred_check_branch
      %18 = sbr.rel (0) target = $region5
    $region4: #{tpu_custom_call.1} parent=1 // pred_region
      _
    $region5: #{tpu_custom_call.1} parent=1 // pred_fallthru
      _
    // Predicated region
    $region6: #{tpu_custom_call.1} parent=1 // pred_check
      _
    $region7: #{tpu_custom_call.1} parent=1 // pred_check_branch
      %20 = sbr.rel (0) target = $region9
    $region8: #{tpu_custom_call.1} parent=1 // pred_region
      _
    $region9: #{tpu_custom_call.1} parent=1 // pred_fallthru
      _
    // Predicated region
    $region10: #{tpu_custom_call.1} parent=1 // pred_check
      _
    $region11: #{tpu_custom_call.1} parent=1 // pred_check_branch
      %22 = sbr.rel (0) target = $region13
    $region12: #{tpu_custom_call.1} parent=1 // pred_region
      _
    $region13: #{tpu_custom_call.1} parent=1 // pred_fallthru
      _
    // Predicated region
    $region14: #{tpu_custom_call.1} parent=1 // pred_check
      _
    $region15: #{tpu_custom_call.1} parent=1 // pred_check_branch
      %24 = sbr.rel (0) target = $region17
    $region16: #{tpu_custom_call.1} parent=1 // pred_region
      _
    $region17: #{tpu_custom_call.1} parent=1 // pred_fallthru
      _
    // Predicated region
    $region18: #{tpu_custom_call.1} parent=1 // pred_check
      _
    $region19: #{tpu_custom_call.1} parent=1 // pred_check_branch
      %26 = sbr.rel (0) target = $region21
    $region20: #{tpu_custom_call.1} parent=1 // pred_region
      _
    $region21: #{tpu_custom_call.1} parent=1 // pred_fallthru
      _
    // Predicated region
    $region22: #{tpu_custom_call.1} parent=1 // pred_check
      _
    $region23: #{tpu_custom_call.1} parent=1 // pred_check_branch
      %28 = sbr.rel (0) target = $region25
    $region24: #{tpu_custom_call.1} parent=1 // pred_region
      _
    $region25: #{tpu_custom_call.1} parent=1 // pred_fallthru
      _
    // Predicated region
    $region26: #{tpu_custom_call.1} parent=1 // pred_check
      _
    $region27: #{tpu_custom_call.1} parent=1 // pred_check_branch
      %30 = sbr.rel (0) target = $region29
    $region28: #{tpu_custom_call.1} parent=1 // pred_region
      _
    $region29: #{tpu_custom_call.1} parent=1 // pred_fallthru
      _
    // Predicated region
    $region30: #{tpu_custom_call.1} parent=1 // pred_check
      _
    $region31: #{tpu_custom_call.1} parent=1 // pred_check_branch
      %32 = sbr.rel (0) target = $region33
    $region32: #{tpu_custom_call.1} parent=1 // pred_region
      _
    $region33: #{tpu_custom_call.1} parent=1 // pred_fallthru
      _
    // Predicated region
    $region34: #{tpu_custom_call.1} parent=1 // pred_check
      _
    $region35: #{tpu_custom_call.1} parent=1 // pred_check_branch
      %34 = sbr.rel (0) target = $region37
    $region36: #{tpu_custom_call.1} parent=1 // pred_region
      _
    $region37: #{tpu_custom_call.1} parent=1 // pred_fallthru
      _
    // Predicated region
    $region38: #{tpu_custom_call.1} parent=1 // pred_check
      _
    $region39: #{tpu_custom_call.1} parent=1 // pred_check_branch
      %36 = sbr.rel (0) target = $region41
    $region40: #{tpu_custom_call.1} parent=1 // pred_region
      _
    $region41: #{tpu_custom_call.1} parent=1 // pred_fallthru
      _
    // Predicated region
    $region42: #{tpu_custom_call.1} parent=1 // pred_check
      _
    $region43: #{tpu_custom_call.1} parent=1 // pred_check_branch
      %38 = sbr.rel (0) target = $region45
    $region44: #{tpu_custom_call.1} parent=1 // pred_region
      _
    $region45: #{tpu_custom_call.1} parent=1 // pred_fallthru
      _
    %v39 = vld [vmem:[%s0] sm:$0xff]
    %v40 = vld [vmem:[%s0 + $0x8] sm:$0xff]
    %v41 = vld [vmem:[%s1] sm:$0xff]
    %v42 = vld [vmem:[%s1 + $0x8] sm:$0xff]
    %v43 = vld [vmem:[%s1 + $0x10] sm:$0xff]
    %v44 = vld [vmem:[%s1 + $0x18] sm:$0xff]
    %v45 = vld [vmem:[%s1 + $0x20] sm:$0xff]
    %v46 = vld [vmem:[%s1 + $0x28] sm:$0xff]
    %v47 = vld [vmem:[%s1 + $0x30] sm:$0xff]
    %v48 = vld [vmem:[%s1 + $0x38] sm:$0xff]
    %v49 = vld [vmem:[%s1 + $0x40] sm:$0xff]
    %v50 = vld [vmem:[%s1 + $0x48] sm:$0xff]
    %v51 = vld [vmem:[%s1 + $0x50] sm:$0xff]
    %v52 = vld [vmem:[%s1 + $0x58] sm:$0xff]
    %v53 = vld [vmem:[%s1 + $0x60] sm:$0xff]
    %v54 = vld [vmem:[%s1 + $0x68] sm:$0xff]
    %v55 = vld [vmem:[%s1 + $0x70] sm:$0xff]
    %v56 = vld [vmem:[%s1 + $0x78] sm:$0xff]
    %v57 = vld [vmem:[%s1 + $0x80] sm:$0xff]
    %v58 = vld [vmem:[%s1 + $0x88] sm:$0xff]
    %v59 = vld [vmem:[%s1 + $0x90] sm:$0xff]
    %v60 = vld [vmem:[%s1 + $0x98] sm:$0xff]
    %v61 = vld [vmem:[%s1 + $0xa0] sm:$0xff]
    %v62 = vld [vmem:[%s1 + $0xa8] sm:$0xff]
    %v63 = vld [vmem:[%s1 + $0xb0] sm:$0xff]
    %v64 = vld [vmem:[%s1 + $0xb8] sm:$0xff]
    %v65 = vld [vmem:[%s1 + $0xc0] sm:$0xff]
    %v66 = vld [vmem:[%s1 + $0xc8] sm:$0xff]
    %v67 = vld [vmem:[%s1 + $0xd0] sm:$0xff]
    %v68 = vld [vmem:[%s1 + $0xd8] sm:$0xff]
    %v69 = vld [vmem:[%s1 + $0xe0] sm:$0xff]
    %v70 = vld [vmem:[%s1 + $0xe8] sm:$0xff]
    %v71 = vld [vmem:[%s1 + $0xf0] sm:$0xff]
    %v72 = vld [vmem:[%s1 + $0xf8] sm:$0xff]
    %v73 = vld [vmem:[%s1 + $0x100] sm:$0xff]
    %v74 = vld [vmem:[%s1 + $0x108] sm:$0xff]
    %v75 = vld [vmem:[%s1 + $0x110] sm:$0xff]
    %v76 = vld [vmem:[%s1 + $0x118] sm:$0xff]
    %v77 = vld [vmem:[%s1 + $0x120] sm:$0xff]
    %v78 = vld [vmem:[%s1 + $0x128] sm:$0xff]
    %v79 = vld [vmem:[%s1 + $0x130] sm:$0xff]
    %v80 = vld [vmem:[%s1 + $0x138] sm:$0xff]
    %v81 = vld [vmem:[%s1 + $0x140] sm:$0xff]
    %v82 = vld [vmem:[%s1 + $0x148] sm:$0xff]
    %v83 = vld [vmem:[%s1 + $0x150] sm:$0xff]
    %v84 = vld [vmem:[%s1 + $0x158] sm:$0xff]
    %v85 = vld [vmem:[%s1 + $0x160] sm:$0xff]
    %v86 = vld [vmem:[%s1 + $0x168] sm:$0xff]
    %v87 = vld [vmem:[%s1 + $0x170] sm:$0xff]
    %v88 = vld [vmem:[%s1 + $0x178] sm:$0xff]
    %v89 = vld [vmem:[%s1 + $0x180] sm:$0xff]
    %v90 = vld [vmem:[%s1 + $0x188] sm:$0xff]
    %v91 = vld [vmem:[%s1 + $0x190] sm:$0xff]
    %v92 = vld [vmem:[%s1 + $0x198] sm:$0xff]
    %v93 = vld [vmem:[%s1 + $0x1a0] sm:$0xff]
    %v94 = vld [vmem:[%s1 + $0x1a8] sm:$0xff]
    %v95 = vld [vmem:[%s1 + $0x1b0] sm:$0x3]
    %v96 = vld [vmem:[%s1 + $0x1b8] sm:$0x3]
    %v97 = vld [vmem:[%s1 + $0x1c0] sm:$0x3]
    %vm98 = vcmask 146432
    %v100 = vsel %vm98, %v40, 0
    %vm102 = vcmask 1041408
    %v104 = vsel %vm102, %v95, 0
    %v107 = vsel %vm102, %v96, 0
    %v110 = vsel %vm102, %v97, 0
    %v112 = vand.u32 %v86, 4294901760
    %113 = vmatpush.msra.mxu0 %v112
    %v114 = vand.u32 %v83, 4294901760
    %115 = vmatpush.msra.mxu0 %v114
    %v116 = vand.u32 %v80, 4294901760
    %117 = vmatpush.msra.mxu0 %v116
    %v118 = vand.u32 %v77, 4294901760
    %119 = vmatpush.msra.mxu0 %v118
    %v120 = vand.u32 %v74, 4294901760
    %121 = vmatpush.msra.mxu0 %v120
    %v122 = vand.u32 %v71, 4294901760
    %123 = vmatpush.msra.mxu0 %v122
    %v124 = vand.u32 %v68, 4294901760
    %125 = vmatpush.msra.mxu0 %v124
    %v126 = vand.u32 %v65, 4294901760
    %127 = vmatpush.msra.mxu0 %v126
    %v128 = vand.u32 %v62, 4294901760
    %129 = vmatpush.msra.mxu0 %v128
    %v130 = vand.u32 %v59, 4294901760
    %131 = vmatpush.msra.mxu0 %v130
    %v132 = vand.u32 %v56, 4294901760
    %133 = vmatpush.msra.mxu0 %v132
    %v134 = vand.u32 %v53, 4294901760
    %135 = vmatpush.msra.mxu0 %v134
    %v136 = vand.u32 %v50, 4294901760
    %137 = vmatpush.msra.mxu0 %v136
    %v138 = vand.u32 %v47, 4294901760
    %139 = vmatpush.msra.mxu0 %v138
    %v140 = vand.u32 %v44, 4294901760
    %141 = vmatpush.msra.mxu0 %v140
    %v142 = vand.u32 %v41, 4294901760
    %143 = vmatpush.msra.mxu0 %v142
    %v144 = vand.u32 %v39, 4294901760
    %v145 = vsub.f32 %v39, %v144
    %v146 = vand.u32 %v145, 4294901760
    %v147 = vsub.f32 %v145, %v146
    %v148 = vand.u32 %v147, 4294901760
    %149 = vmatmul.f32.gmra.mxu0 %v148
    %v150 = vpop.f32.mrf.mxu0
    %v151 = vadd.f32 0.0, %v150
    %152 = vdwg.mxu0
    %v153 = vand.u32 %v86, 4294901760
    %v154 = vsub.f32 %v86, %v153
    %v155 = vand.u32 %v154, 4294901760
    %v156 = vsub.f32 %v154, %v155
    %v157 = vand.u32 %v156, 4294901760
    %158 = vmatpush.msra.mxu0 %v157
    %v159 = vand.u32 %v83, 4294901760
    %v160 = vsub.f32 %v83, %v159
    %v161 = vand.u32 %v160, 4294901760
    %v162 = vsub.f32 %v160, %v161
    %v163 = vand.u32 %v162, 4294901760
    %164 = vmatpush.msra.mxu0 %v163
    %v165 = vand.u32 %v80, 4294901760
    %v166 = vsub.f32 %v80, %v165
    %v167 = vand.u32 %v166, 4294901760
    %v168 = vsub.f32 %v166, %v167
    %v169 = vand.u32 %v168, 4294901760
    %170 = vmatpush.msra.mxu0 %v169
    %v171 = vand.u32 %v77, 4294901760
    %v172 = vsub.f32 %v77, %v171
    %v173 = vand.u32 %v172, 4294901760
    %v174 = vsub.f32 %v172, %v173
    %v175 = vand.u32 %v174, 4294901760
    %176 = vmatpush.msra.mxu0 %v175
    %v177 = vand.u32 %v74, 4294901760
    %v178 = vsub.f32 %v74, %v177
    %v179 = vand.u32 %v178, 4294901760
    %v180 = vsub.f32 %v178, %v179
    %v181 = vand.u32 %v180, 4294901760
    %182 = vmatpush.msra.mxu0 %v181
    %v183 = vand.u32 %v71, 4294901760
    %v184 = vsub.f32 %v71, %v183
    %v185 = vand.u32 %v184, 4294901760
    %v186 = vsub.f32 %v184, %v185
    %v187 = vand.u32 %v186, 4294901760
    %188 = vmatpush.msra.mxu0 %v187
    %v189 = vand.u32 %v68, 4294901760
    %v190 = vsub.f32 %v68, %v189
    %v191 = vand.u32 %v190, 4294901760
    %v192 = vsub.f32 %v190, %v191
    %v193 = vand.u32 %v192, 4294901760
    %194 = vmatpush.msra.mxu0 %v193
    %v195 = vand.u32 %v65, 4294901760
    %v196 = vsub.f32 %v65, %v195
    %v197 = vand.u32 %v196, 4294901760
    %v198 = vsub.f32 %v196, %v197
    %v199 = vand.u32 %v198, 4294901760
    %200 = vmatpush.msra.mxu0 %v199
    %v201 = vand.u32 %v62, 4294901760
    %v202 = vsub.f32 %v62, %v201
    %v203 = vand.u32 %v202, 4294901760
    %v204 = vsub.f32 %v202, %v203
    %v205 = vand.u32 %v204, 4294901760
    %206 = vmatpush.msra.mxu0 %v205
    %v207 = vand.u32 %v59, 4294901760
    %v208 = vsub.f32 %v59, %v207
    %v209 = vand.u32 %v208, 4294901760
    %v210 = vsub.f32 %v208, %v209
    %v211 = vand.u32 %v210, 4294901760
    %212 = vmatpush.msra.mxu0 %v211
    %v213 = vand.u32 %v56, 4294901760
    %v214 = vsub.f32 %v56, %v213
    %v215 = vand.u32 %v214, 4294901760
    %v216 = vsub.f32 %v214, %v215
    %v217 = vand.u32 %v216, 4294901760
    %218 = vmatpush.msra.mxu0 %v217
    %v219 = vand.u32 %v53, 4294901760
    %v220 = vsub.f32 %v53, %v219
    %v221 = vand.u32 %v220, 4294901760
    %v222 = vsub.f32 %v220, %v221
    %v223 = vand.u32 %v222, 4294901760
    %224 = vmatpush.msra.mxu0 %v223
    %v225 = vand.u32 %v50, 4294901760
    %v226 = vsub.f32 %v50, %v225
    %v227 = vand.u32 %v226, 4294901760
    %v228 = vsub.f32 %v226, %v227
    %v229 = vand.u32 %v228, 4294901760
    %230 = vmatpush.msra.mxu0 %v229
    %v231 = vand.u32 %v47, 4294901760
    %v232 = vsub.f32 %v47, %v231
    %v233 = vand.u32 %v232, 4294901760
    %v234 = vsub.f32 %v232, %v233
    %v235 = vand.u32 %v234, 4294901760
    %236 = vmatpush.msra.mxu0 %v235
    %v237 = vand.u32 %v44, 4294901760
    %v238 = vsub.f32 %v44, %v237
    %v239 = vand.u32 %v238, 4294901760
    %v240 = vsub.f32 %v238, %v239
    %v241 = vand.u32 %v240, 4294901760
    %242 = vmatpush.msra.mxu0 %v241
    %v243 = vand.u32 %v41, 4294901760
    %v244 = vsub.f32 %v41, %v243
    %v245 = vand.u32 %v244, 4294901760
    %v246 = vsub.f32 %v244, %v245
    %v247 = vand.u32 %v246, 4294901760
    %248 = vmatpush.msra.mxu0 %v247
    %v249 = vand.u32 %v39, 4294901760
    %250 = vmatmul.f32.gmra.mxu0 %v249
    %v251 = vpop.f32.mrf.mxu0
    %v252 = vadd.f32 %v151, %v251
    %253 = vdwg.mxu0
    %v254 = vand.u32 %v86, 4294901760
    %v255 = vsub.f32 %v86, %v254
    %256 = vmatpush.msra.mxu0 %v255
    %v257 = vand.u32 %v83, 4294901760
    %v258 = vsub.f32 %v83, %v257
    %259 = vmatpush.msra.mxu0 %v258
    %v260 = vand.u32 %v80, 4294901760
    %v261 = vsub.f32 %v80, %v260
    %262 = vmatpush.msra.mxu0 %v261
    %v263 = vand.u32 %v77, 4294901760
    %v264 = vsub.f32 %v77, %v263
    %265 = vmatpush.msra.mxu0 %v264
    %v266 = vand.u32 %v74, 4294901760
    %v267 = vsub.f32 %v74, %v266
    %268 = vmatpush.msra.mxu0 %v267
    %v269 = vand.u32 %v71, 4294901760
    %v270 = vsub.f32 %v71, %v269
    %271 = vmatpush.msra.mxu0 %v270
    %v272 = vand.u32 %v68, 4294901760
    %v273 = vsub.f32 %v68, %v272
    %274 = vmatpush.msra.mxu0 %v273
    %v275 = vand.u32 %v65, 4294901760
    %v276 = vsub.f32 %v65, %v275
    %277 = vmatpush.msra.mxu0 %v276
    %v278 = vand.u32 %v62, 4294901760
    %v279 = vsub.f32 %v62, %v278
    %280 = vmatpush.msra.mxu0 %v279
    %v281 = vand.u32 %v59, 4294901760
    %v282 = vsub.f32 %v59, %v281
    %283 = vmatpush.msra.mxu0 %v282
    %v284 = vand.u32 %v56, 4294901760
    %v285 = vsub.f32 %v56, %v284
    %286 = vmatpush.msra.mxu0 %v285
    %v287 = vand.u32 %v53, 4294901760
    %v288 = vsub.f32 %v53, %v287
    %289 = vmatpush.msra.mxu0 %v288
    %v290 = vand.u32 %v50, 4294901760
    %v291 = vsub.f32 %v50, %v290
    %292 = vmatpush.msra.mxu0 %v291
    %v293 = vand.u32 %v47, 4294901760
    %v294 = vsub.f32 %v47, %v293
    %295 = vmatpush.msra.mxu0 %v294
    %v296 = vand.u32 %v44, 4294901760
    %v297 = vsub.f32 %v44, %v296
    %298 = vmatpush.msra.mxu0 %v297
    %v299 = vand.u32 %v41, 4294901760
    %v300 = vsub.f32 %v41, %v299
    %301 = vmatpush.msra.mxu0 %v300
    %v302 = vand.u32 %v39, 4294901760
    %v303 = vsub.f32 %v39, %v302
    %304 = vmatmul.f32.gmra.mxu0 %v303
    %v305 = vpop.f32.mrf.mxu0
    %v306 = vadd.f32 %v252, %v305
    %307 = vdwg.mxu0
    %v308 = vand.u32 %v86, 4294901760
    %309 = vmatpush.msra.mxu0 %v308
    %v310 = vand.u32 %v83, 4294901760
    %311 = vmatpush.msra.mxu0 %v310
    %v312 = vand.u32 %v80, 4294901760
    %313 = vmatpush.msra.mxu0 %v312
    %v314 = vand.u32 %v77, 4294901760
    %315 = vmatpush.msra.mxu0 %v314
    %v316 = vand.u32 %v74, 4294901760
    %317 = vmatpush.msra.mxu0 %v316
    %v318 = vand.u32 %v71, 4294901760
    %319 = vmatpush.msra.mxu0 %v318
    %v320 = vand.u32 %v68, 4294901760
    %321 = vmatpush.msra.mxu0 %v320
    %v322 = vand.u32 %v65, 4294901760
    %323 = vmatpush.msra.mxu0 %v322
    %v324 = vand.u32 %v62, 4294901760
    %325 = vmatpush.msra.mxu0 %v324
    %v326 = vand.u32 %v59, 4294901760
    %327 = vmatpush.msra.mxu0 %v326
    %v328 = vand.u32 %v56, 4294901760
    %329 = vmatpush.msra.mxu0 %v328
    %v330 = vand.u32 %v53, 4294901760
    %331 = vmatpush.msra.mxu0 %v330
    %v332 = vand.u32 %v50, 4294901760
    %333 = vmatpush.msra.mxu0 %v332
    %v334 = vand.u32 %v47, 4294901760
    %335 = vmatpush.msra.mxu0 %v334
    %v336 = vand.u32 %v44, 4294901760
    %337 = vmatpush.msra.mxu0 %v336
    %v338 = vand.u32 %v41, 4294901760
    %339 = vmatpush.msra.mxu0 %v338
    %v340 = vand.u32 %v39, 4294901760
    %v341 = vsub.f32 %v39, %v340
    %v342 = vand.u32 %v341, 4294901760
    %343 = vmatmul.f32.gmra.mxu0 %v342
    %v344 = vpop.f32.mrf.mxu0
    %v345 = vadd.f32 %v306, %v344
    %346 = vdwg.mxu0
    %v347 = vand.u32 %v86, 4294901760
    %v348 = vsub.f32 %v86, %v347
    %v349 = vand.u32 %v348, 4294901760
    %350 = vmatpush.msra.mxu0 %v349
    %v351 = vand.u32 %v83, 4294901760
    %v352 = vsub.f32 %v83, %v351
    %v353 = vand.u32 %v352, 4294901760
    %354 = vmatpush.msra.mxu0 %v353
    %v355 = vand.u32 %v80, 4294901760
    %v356 = vsub.f32 %v80, %v355
    %v357 = vand.u32 %v356, 4294901760
    %358 = vmatpush.msra.mxu0 %v357
    %v359 = vand.u32 %v77, 4294901760
    %v360 = vsub.f32 %v77, %v359
    %v361 = vand.u32 %v360, 4294901760
    %362 = vmatpush.msra.mxu0 %v361
    %v363 = vand.u32 %v74, 4294901760
    %v364 = vsub.f32 %v74, %v363
    %v365 = vand.u32 %v364, 4294901760
    %366 = vmatpush.msra.mxu0 %v365
    %v367 = vand.u32 %v71, 4294901760
    %v368 = vsub.f32 %v71, %v367
    %v369 = vand.u32 %v368, 4294901760
    %370 = vmatpush.msra.mxu0 %v369
    %v371 = vand.u32 %v68, 4294901760
    %v372 = vsub.f32 %v68, %v371
    %v373 = vand.u32 %v372, 4294901760
    %374 = vmatpush.msra.mxu0 %v373
    %v375 = vand.u32 %v65, 4294901760
    %v376 = vsub.f32 %v65, %v375
    %v377 = vand.u32 %v376, 4294901760
    %378 = vmatpush.msra.mxu0 %v377
    %v379 = vand.u32 %v62, 4294901760
    %v380 = vsub.f32 %v62, %v379
    %v381 = vand.u32 %v380, 4294901760
    %382 = vmatpush.msra.mxu0 %v381
    %v383 = vand.u32 %v59, 4294901760
    %v384 = vsub.f32 %v59, %v383
    %v385 = vand.u32 %v384, 4294901760
    %386 = vmatpush.msra.mxu0 %v385
    %v387 = vand.u32 %v56, 4294901760
    %v388 = vsub.f32 %v56, %v387
    %v389 = vand.u32 %v388, 4294901760
    %390 = vmatpush.msra.mxu0 %v389
    %v391 = vand.u32 %v53, 4294901760
    %v392 = vsub.f32 %v53, %v391
    %v393 = vand.u32 %v392, 4294901760
    %394 = vmatpush.msra.mxu0 %v393
    %v395 = vand.u32 %v50, 4294901760
    %v396 = vsub.f32 %v50, %v395
    %v397 = vand.u32 %v396, 4294901760
    %398 = vmatpush.msra.mxu0 %v397
    %v399 = vand.u32 %v47, 4294901760
    %v400 = vsub.f32 %v47, %v399
    %v401 = vand.u32 %v400, 4294901760
    %402 = vmatpush.msra.mxu0 %v401
    %v403 = vand.u32 %v44, 4294901760
    %v404 = vsub.f32 %v44, %v403
    %v405 = vand.u32 %v404, 4294901760
    %406 = vmatpush.msra.mxu0 %v405
    %v407 = vand.u32 %v41, 4294901760
    %v408 = vsub.f32 %v41, %v407
    %v409 = vand.u32 %v408, 4294901760
    %410 = vmatpush.msra.mxu0 %v409
    %v411 = vand.u32 %v39, 4294901760
    %412 = vmatmul.f32.gmra.mxu0 %v411
    %v413 = vpop.f32.mrf.mxu0
    %v414 = vadd.f32 %v345, %v413
    %415 = vdwg.mxu0
    %v416 = vand.u32 %v86, 4294901760
    %417 = vmatpush.msra.mxu0 %v416
    %v418 = vand.u32 %v83, 4294901760
    %419 = vmatpush.msra.mxu0 %v418
    %v420 = vand.u32 %v80, 4294901760
    %421 = vmatpush.msra.mxu0 %v420
    %v422 = vand.u32 %v77, 4294901760
    %423 = vmatpush.msra.mxu0 %v422
    %v424 = vand.u32 %v74, 4294901760
    %425 = vmatpush.msra.mxu0 %v424
    %v426 = vand.u32 %v71, 4294901760
    %427 = vmatpush.msra.mxu0 %v426
    %v428 = vand.u32 %v68, 4294901760
    %429 = vmatpush.msra.mxu0 %v428
    %v430 = vand.u32 %v65, 4294901760
    %431 = vmatpush.msra.mxu0 %v430
    %v432 = vand.u32 %v62, 4294901760
    %433 = vmatpush.msra.mxu0 %v432
    %v434 = vand.u32 %v59, 4294901760
    %435 = vmatpush.msra.mxu0 %v434
    %v436 = vand.u32 %v56, 4294901760
    %437 = vmatpush.msra.mxu0 %v436
    %v438 = vand.u32 %v53, 4294901760
    %439 = vmatpush.msra.mxu0 %v438
    %v440 = vand.u32 %v50, 4294901760
    %441 = vmatpush.msra.mxu0 %v440
    %v442 = vand.u32 %v47, 4294901760
    %443 = vmatpush.msra.mxu0 %v442
    %v444 = vand.u32 %v44, 4294901760
    %445 = vmatpush.msra.mxu0 %v444
    %v446 = vand.u32 %v41, 4294901760
    %447 = vmatpush.msra.mxu0 %v446
    %v448 = vand.u32 %v39, 4294901760
    %449 = vmatmul.f32.gmra.mxu0 %v448
    %v450 = vpop.f32.mrf.mxu0
    %v451 = vadd.f32 %v414, %v450
    %452 = vdwg.mxu0
    %453 = vmatpush.msra.mxu0 0.0
    %454 = vmatpush.msra.mxu0 0.0
    %455 = vmatpush.msra.mxu0 0.0
    %456 = vmatpush.msra.mxu0 0.0
    %457 = vmatpush.msra.mxu0 0.0
    %458 = vmatpush.msra.mxu0 0.0
    %459 = vmatpush.msra.mxu0 0.0
    %460 = vmatpush.msra.mxu0 0.0
    %461 = vmatpush.msra.mxu0 0.0
    %462 = vmatpush.msra.mxu0 0.0
    %463 = vmatpush.msra.mxu0 0.0
    %464 = vmatpush.msra.mxu0 0.0
    %465 = vmatpush.msra.mxu0 0.0
    %v466 = vand.u32 %v104, 4294901760
    %467 = vmatpush.msra.mxu0 %v466
    %v468 = vand.u32 %v92, 4294901760
    %469 = vmatpush.msra.mxu0 %v468
    %v470 = vand.u32 %v89, 4294901760
    %471 = vmatpush.msra.mxu0 %v470
    %v472 = vand.u32 %v100, 4294901760
    %v473 = vsub.f32 %v100, %v472
    %v474 = vand.u32 %v473, 4294901760
    %v475 = vsub.f32 %v473, %v474
    %v476 = vand.u32 %v475, 4294901760
    %477 = vmatmul.f32.gmra.mxu0 %v476
    %v478 = vpop.f32.mrf.mxu0
    %v479 = vadd.f32 %v451, %v478
    %480 = vdwg.mxu0
    %481 = vmatpush.msra.mxu0 0.0
    %482 = vmatpush.msra.mxu0 0.0
    %483 = vmatpush.msra.mxu0 0.0
    %484 = vmatpush.msra.mxu0 0.0
    %485 = vmatpush.msra.mxu0 0.0
    %486 = vmatpush.msra.mxu0 0.0
    %487 = vmatpush.msra.mxu0 0.0
    %488 = vmatpush.msra.mxu0 0.0
    %489 = vmatpush.msra.mxu0 0.0
    %490 = vmatpush.msra.mxu0 0.0
    %491 = vmatpush.msra.mxu0 0.0
    %492 = vmatpush.msra.mxu0 0.0
    %493 = vmatpush.msra.mxu0 0.0
    %v494 = vand.u32 %v104, 4294901760
    %v495 = vsub.f32 %v104, %v494
    %v496 = vand.u32 %v495, 4294901760
    %v497 = vsub.f32 %v495, %v496
    %v498 = vand.u32 %v497, 4294901760
    %499 = vmatpush.msra.mxu0 %v498
    %v500 = vand.u32 %v92, 4294901760
    %v501 = vsub.f32 %v92, %v500
    %v502 = vand.u32 %v501, 4294901760
    %v503 = vsub.f32 %v501, %v502
    %v504 = vand.u32 %v503, 4294901760
    %505 = vmatpush.msra.mxu0 %v504
    %v506 = vand.u32 %v89, 4294901760
    %v507 = vsub.f32 %v89, %v506
    %v508 = vand.u32 %v507, 4294901760
    %v509 = vsub.f32 %v507, %v508
    %v510 = vand.u32 %v509, 4294901760
    %511 = vmatpush.msra.mxu0 %v510
    %v512 = vand.u32 %v100, 4294901760
    %513 = vmatmul.f32.gmra.mxu0 %v512
    %v514 = vpop.f32.mrf.mxu0
    %v515 = vadd.f32 %v479, %v514
    %516 = vdwg.mxu0
    %517 = vmatpush.msra.mxu0 0.0
    %518 = vmatpush.msra.mxu0 0.0
    %519 = vmatpush.msra.mxu0 0.0
    %520 = vmatpush.msra.mxu0 0.0
    %521 = vmatpush.msra.mxu0 0.0
    %522 = vmatpush.msra.mxu0 0.0
    %523 = vmatpush.msra.mxu0 0.0
    %524 = vmatpush.msra.mxu0 0.0
    %525 = vmatpush.msra.mxu0 0.0
    %526 = vmatpush.msra.mxu0 0.0
    %527 = vmatpush.msra.mxu0 0.0
    %528 = vmatpush.msra.mxu0 0.0
    %529 = vmatpush.msra.mxu0 0.0
    %v530 = vand.u32 %v104, 4294901760
    %v531 = vsub.f32 %v104, %v530
    %532 = vmatpush.msra.mxu0 %v531
    %v533 = vand.u32 %v92, 4294901760
    %v534 = vsub.f32 %v92, %v533
    %535 = vmatpush.msra.mxu0 %v534
    %v536 = vand.u32 %v89, 4294901760
    %v537 = vsub.f32 %v89, %v536
    %538 = vmatpush.msra.mxu0 %v537
    %v539 = vand.u32 %v100, 4294901760
    %v540 = vsub.f32 %v100, %v539
    %541 = vmatmul.f32.gmra.mxu0 %v540
    %v542 = vpop.f32.mrf.mxu0
    %v543 = vadd.f32 %v515, %v542
    %544 = vdwg.mxu0
    %545 = vmatpush.msra.mxu0 0.0
    %546 = vmatpush.msra.mxu0 0.0
    %547 = vmatpush.msra.mxu0 0.0
    %548 = vmatpush.msra.mxu0 0.0
    %549 = vmatpush.msra.mxu0 0.0
    %550 = vmatpush.msra.mxu0 0.0
    %551 = vmatpush.msra.mxu0 0.0
    %552 = vmatpush.msra.mxu0 0.0
    %553 = vmatpush.msra.mxu0 0.0
    %554 = vmatpush.msra.mxu0 0.0
    %555 = vmatpush.msra.mxu0 0.0
    %556 = vmatpush.msra.mxu0 0.0
    %557 = vmatpush.msra.mxu0 0.0
    %v558 = vand.u32 %v104, 4294901760
    %559 = vmatpush.msra.mxu0 %v558
    %v560 = vand.u32 %v92, 4294901760
    %561 = vmatpush.msra.mxu0 %v560
    %v562 = vand.u32 %v89, 4294901760
    %563 = vmatpush.msra.mxu0 %v562
    %v564 = vand.u32 %v100, 4294901760
    %v565 = vsub.f32 %v100, %v564
    %v566 = vand.u32 %v565, 4294901760
    %567 = vmatmul.f32.gmra.mxu0 %v566
    %v568 = vpop.f32.mrf.mxu0
    %v569 = vadd.f32 %v543, %v568
    %570 = vdwg.mxu0
    %571 = vmatpush.msra.mxu0 0.0
    %572 = vmatpush.msra.mxu0 0.0
    %573 = vmatpush.msra.mxu0 0.0
    %574 = vmatpush.msra.mxu0 0.0
    %575 = vmatpush.msra.mxu0 0.0
    %576 = vmatpush.msra.mxu0 0.0
    %577 = vmatpush.msra.mxu0 0.0
    %578 = vmatpush.msra.mxu0 0.0
    %579 = vmatpush.msra.mxu0 0.0
    %580 = vmatpush.msra.mxu0 0.0
    %581 = vmatpush.msra.mxu0 0.0
    %582 = vmatpush.msra.mxu0 0.0
    %583 = vmatpush.msra.mxu0 0.0
    %v584 = vand.u32 %v104, 4294901760
    %v585 = vsub.f32 %v104, %v584
    %v586 = vand.u32 %v585, 4294901760
    %587 = vmatpush.msra.mxu0 %v586
    %v588 = vand.u32 %v92, 4294901760
    %v589 = vsub.f32 %v92, %v588
    %v590 = vand.u32 %v589, 4294901760
    %591 = vmatpush.msra.mxu0 %v590
    %v592 = vand.u32 %v89, 4294901760
    %v593 = vsub.f32 %v89, %v592
    %v594 = vand.u32 %v593, 4294901760
    %595 = vmatpush.msra.mxu0 %v594
    %v596 = vand.u32 %v100, 4294901760
    %597 = vmatmul.f32.gmra.mxu0 %v596
    %v598 = vpop.f32.mrf.mxu0
    %v599 = vadd.f32 %v569, %v598
    %600 = vdwg.mxu0
    %601 = vmatpush.msra.mxu0 0.0
    %602 = vmatpush.msra.mxu0 0.0
    %603 = vmatpush.msra.mxu0 0.0
    %604 = vmatpush.msra.mxu0 0.0
    %605 = vmatpush.msra.mxu0 0.0
    %606 = vmatpush.msra.mxu0 0.0
    %607 = vmatpush.msra.mxu0 0.0
    %608 = vmatpush.msra.mxu0 0.0
    %609 = vmatpush.msra.mxu0 0.0
    %610 = vmatpush.msra.mxu0 0.0
    %611 = vmatpush.msra.mxu0 0.0
    %612 = vmatpush.msra.mxu0 0.0
    %613 = vmatpush.msra.mxu0 0.0
    %v614 = vand.u32 %v104, 4294901760
    %615 = vmatpush.msra.mxu0 %v614
    %v616 = vand.u32 %v92, 4294901760
    %617 = vmatpush.msra.mxu0 %v616
    %v618 = vand.u32 %v89, 4294901760
    %619 = vmatpush.msra.mxu0 %v618
    %v620 = vand.u32 %v100, 4294901760
    %621 = vmatmul.f32.gmra.mxu0 %v620
    %v622 = vpop.f32.mrf.mxu0
    %v623 = vadd.f32 %v599, %v622
    %624 = vdwg.mxu0
    %v625 = vand.u32 %v87, 4294901760
    %626 = vmatpush.msra.mxu0 %v625
    %v627 = vand.u32 %v84, 4294901760
    %628 = vmatpush.msra.mxu0 %v627
    %v629 = vand.u32 %v81, 4294901760
    %630 = vmatpush.msra.mxu0 %v629
    %v631 = vand.u32 %v78, 4294901760
    %632 = vmatpush.msra.mxu0 %v631
    %v633 = vand.u32 %v75, 4294901760
    %634 = vmatpush.msra.mxu0 %v633
    %v635 = vand.u32 %v72, 4294901760
    %636 = vmatpush.msra.mxu0 %v635
    %v637 = vand.u32 %v69, 4294901760
    %638 = vmatpush.msra.mxu0 %v637
    %v639 = vand.u32 %v66, 4294901760
    %640 = vmatpush.msra.mxu0 %v639
    %v641 = vand.u32 %v63, 4294901760
    %642 = vmatpush.msra.mxu0 %v641
    %v643 = vand.u32 %v60, 4294901760
    %644 = vmatpush.msra.mxu0 %v643
    %v645 = vand.u32 %v57, 4294901760
    %646 = vmatpush.msra.mxu0 %v645
    %v647 = vand.u32 %v54, 4294901760
    %648 = vmatpush.msra.mxu0 %v647
    %v649 = vand.u32 %v51, 4294901760
    %650 = vmatpush.msra.mxu0 %v649
    %v651 = vand.u32 %v48, 4294901760
    %652 = vmatpush.msra.mxu0 %v651
    %v653 = vand.u32 %v45, 4294901760
    %654 = vmatpush.msra.mxu0 %v653
    %v655 = vand.u32 %v42, 4294901760
    %656 = vmatpush.msra.mxu0 %v655
    %v657 = vand.u32 %v39, 4294901760
    %v658 = vsub.f32 %v39, %v657
    %v659 = vand.u32 %v658, 4294901760
    %v660 = vsub.f32 %v658, %v659
    %v661 = vand.u32 %v660, 4294901760
    %662 = vmatmul.f32.gmra.mxu0 %v661
    %v663 = vpop.f32.mrf.mxu0
    %v664 = vadd.f32 0.0, %v663
    %665 = vdwg.mxu0
    %v666 = vand.u32 %v87, 4294901760
    %v667 = vsub.f32 %v87, %v666
    %v668 = vand.u32 %v667, 4294901760
    %v669 = vsub.f32 %v667, %v668
    %v670 = vand.u32 %v669, 4294901760
    %671 = vmatpush.msra.mxu0 %v670
    %v672 = vand.u32 %v84, 4294901760
    %v673 = vsub.f32 %v84, %v672
    %v674 = vand.u32 %v673, 4294901760
    %v675 = vsub.f32 %v673, %v674
    %v676 = vand.u32 %v675, 4294901760
    %677 = vmatpush.msra.mxu0 %v676
    %v678 = vand.u32 %v81, 4294901760
    %v679 = vsub.f32 %v81, %v678
    %v680 = vand.u32 %v679, 4294901760
    %v681 = vsub.f32 %v679, %v680
    %v682 = vand.u32 %v681, 4294901760
    %683 = vmatpush.msra.mxu0 %v682
    %v684 = vand.u32 %v78, 4294901760
    %v685 = vsub.f32 %v78, %v684
    %v686 = vand.u32 %v685, 4294901760
    %v687 = vsub.f32 %v685, %v686
    %v688 = vand.u32 %v687, 4294901760
    %689 = vmatpush.msra.mxu0 %v688
    %v690 = vand.u32 %v75, 4294901760
    %v691 = vsub.f32 %v75, %v690
    %v692 = vand.u32 %v691, 4294901760
    %v693 = vsub.f32 %v691, %v692
    %v694 = vand.u32 %v693, 4294901760
    %695 = vmatpush.msra.mxu0 %v694
    %v696 = vand.u32 %v72, 4294901760
    %v697 = vsub.f32 %v72, %v696
    %v698 = vand.u32 %v697, 4294901760
    %v699 = vsub.f32 %v697, %v698
    %v700 = vand.u32 %v699, 4294901760
    %701 = vmatpush.msra.mxu0 %v700
    %v702 = vand.u32 %v69, 4294901760
    %v703 = vsub.f32 %v69, %v702
    %v704 = vand.u32 %v703, 4294901760
    %v705 = vsub.f32 %v703, %v704
    %v706 = vand.u32 %v705, 4294901760
    %707 = vmatpush.msra.mxu0 %v706
    %v708 = vand.u32 %v66, 4294901760
    %v709 = vsub.f32 %v66, %v708
    %v710 = vand.u32 %v709, 4294901760
    %v711 = vsub.f32 %v709, %v710
    %v712 = vand.u32 %v711, 4294901760
    %713 = vmatpush.msra.mxu0 %v712
    %v714 = vand.u32 %v63, 4294901760
    %v715 = vsub.f32 %v63, %v714
    %v716 = vand.u32 %v715, 4294901760
    %v717 = vsub.f32 %v715, %v716
    %v718 = vand.u32 %v717, 4294901760
    %719 = vmatpush.msra.mxu0 %v718
    %v720 = vand.u32 %v60, 4294901760
    %v721 = vsub.f32 %v60, %v720
    %v722 = vand.u32 %v721, 4294901760
    %v723 = vsub.f32 %v721, %v722
    %v724 = vand.u32 %v723, 4294901760
    %725 = vmatpush.msra.mxu0 %v724
    %v726 = vand.u32 %v57, 4294901760
    %v727 = vsub.f32 %v57, %v726
    %v728 = vand.u32 %v727, 4294901760
    %v729 = vsub.f32 %v727, %v728
    %v730 = vand.u32 %v729, 4294901760
    %731 = vmatpush.msra.mxu0 %v730
    %v732 = vand.u32 %v54, 4294901760
    %v733 = vsub.f32 %v54, %v732
    %v734 = vand.u32 %v733, 4294901760
    %v735 = vsub.f32 %v733, %v734
    %v736 = vand.u32 %v735, 4294901760
    %737 = vmatpush.msra.mxu0 %v736
    %v738 = vand.u32 %v51, 4294901760
    %v739 = vsub.f32 %v51, %v738
    %v740 = vand.u32 %v739, 4294901760
    %v741 = vsub.f32 %v739, %v740
    %v742 = vand.u32 %v741, 4294901760
    %743 = vmatpush.msra.mxu0 %v742
    %v744 = vand.u32 %v48, 4294901760
    %v745 = vsub.f32 %v48, %v744
    %v746 = vand.u32 %v745, 4294901760
    %v747 = vsub.f32 %v745, %v746
    %v748 = vand.u32 %v747, 4294901760
    %749 = vmatpush.msra.mxu0 %v748
    %v750 = vand.u32 %v45, 4294901760
    %v751 = vsub.f32 %v45, %v750
    %v752 = vand.u32 %v751, 4294901760
    %v753 = vsub.f32 %v751, %v752
    %v754 = vand.u32 %v753, 4294901760
    %755 = vmatpush.msra.mxu0 %v754
    %v756 = vand.u32 %v42, 4294901760
    %v757 = vsub.f32 %v42, %v756
    %v758 = vand.u32 %v757, 4294901760
    %v759 = vsub.f32 %v757, %v758
    %v760 = vand.u32 %v759, 4294901760
    %761 = vmatpush.msra.mxu0 %v760
    %v762 = vand.u32 %v39, 4294901760
    %763 = vmatmul.f32.gmra.mxu0 %v762
    %v764 = vpop.f32.mrf.mxu0
    %v765 = vadd.f32 %v664, %v764
    %766 = vdwg.mxu0
    %v767 = vand.u32 %v87, 4294901760
    %v768 = vsub.f32 %v87, %v767
    %769 = vmatpush.msra.mxu0 %v768
    %v770 = vand.u32 %v84, 4294901760
    %v771 = vsub.f32 %v84, %v770
    %772 = vmatpush.msra.mxu0 %v771
    %v773 = vand.u32 %v81, 4294901760
    %v774 = vsub.f32 %v81, %v773
    %775 = vmatpush.msra.mxu0 %v774
    %v776 = vand.u32 %v78, 4294901760
    %v777 = vsub.f32 %v78, %v776
    %778 = vmatpush.msra.mxu0 %v777
    %v779 = vand.u32 %v75, 4294901760
    %v780 = vsub.f32 %v75, %v779
    %781 = vmatpush.msra.mxu0 %v780
    %v782 = vand.u32 %v72, 4294901760
    %v783 = vsub.f32 %v72, %v782
    %784 = vmatpush.msra.mxu0 %v783
    %v785 = vand.u32 %v69, 4294901760
    %v786 = vsub.f32 %v69, %v785
    %787 = vmatpush.msra.mxu0 %v786
    %v788 = vand.u32 %v66, 4294901760
    %v789 = vsub.f32 %v66, %v788
    %790 = vmatpush.msra.mxu0 %v789
    %v791 = vand.u32 %v63, 4294901760
    %v792 = vsub.f32 %v63, %v791
    %793 = vmatpush.msra.mxu0 %v792
    %v794 = vand.u32 %v60, 4294901760
    %v795 = vsub.f32 %v60, %v794
    %796 = vmatpush.msra.mxu0 %v795
    %v797 = vand.u32 %v57, 4294901760
    %v798 = vsub.f32 %v57, %v797
    %799 = vmatpush.msra.mxu0 %v798
    %v800 = vand.u32 %v54, 4294901760
    %v801 = vsub.f32 %v54, %v800
    %802 = vmatpush.msra.mxu0 %v801
    %v803 = vand.u32 %v51, 4294901760
    %v804 = vsub.f32 %v51, %v803
    %805 = vmatpush.msra.mxu0 %v804
    %v806 = vand.u32 %v48, 4294901760
    %v807 = vsub.f32 %v48, %v806
    %808 = vmatpush.msra.mxu0 %v807
    %v809 = vand.u32 %v45, 4294901760
    %v810 = vsub.f32 %v45, %v809
    %811 = vmatpush.msra.mxu0 %v810
    %v812 = vand.u32 %v42, 4294901760
    %v813 = vsub.f32 %v42, %v812
    %814 = vmatpush.msra.mxu0 %v813
    %v815 = vand.u32 %v39, 4294901760
    %v816 = vsub.f32 %v39, %v815
    %817 = vmatmul.f32.gmra.mxu0 %v816
    %v818 = vpop.f32.mrf.mxu0
    %v819 = vadd.f32 %v765, %v818
    %820 = vdwg.mxu0
    %v821 = vand.u32 %v87, 4294901760
    %822 = vmatpush.msra.mxu0 %v821
    %v823 = vand.u32 %v84, 4294901760
    %824 = vmatpush.msra.mxu0 %v823
    %v825 = vand.u32 %v81, 4294901760
    %826 = vmatpush.msra.mxu0 %v825
    %v827 = vand.u32 %v78, 4294901760
    %828 = vmatpush.msra.mxu0 %v827
    %v829 = vand.u32 %v75, 4294901760
    %830 = vmatpush.msra.mxu0 %v829
    %v831 = vand.u32 %v72, 4294901760
    %832 = vmatpush.msra.mxu0 %v831
    %v833 = vand.u32 %v69, 4294901760
    %834 = vmatpush.msra.mxu0 %v833
    %v835 = vand.u32 %v66, 4294901760
    %836 = vmatpush.msra.mxu0 %v835
    %v837 = vand.u32 %v63, 4294901760
    %838 = vmatpush.msra.mxu0 %v837
    %v839 = vand.u32 %v60, 4294901760
    %840 = vmatpush.msra.mxu0 %v839
    %v841 = vand.u32 %v57, 4294901760
    %842 = vmatpush.msra.mxu0 %v841
    %v843 = vand.u32 %v54, 4294901760
    %844 = vmatpush.msra.mxu0 %v843
    %v845 = vand.u32 %v51, 4294901760
    %846 = vmatpush.msra.mxu0 %v845
    %v847 = vand.u32 %v48, 4294901760
    %848 = vmatpush.msra.mxu0 %v847
    %v849 = vand.u32 %v45, 4294901760
    %850 = vmatpush.msra.mxu0 %v849
    %v851 = vand.u32 %v42, 4294901760
    %852 = vmatpush.msra.mxu0 %v851
    %v853 = vand.u32 %v39, 4294901760
    %v854 = vsub.f32 %v39, %v853
    %v855 = vand.u32 %v854, 4294901760
    %856 = vmatmul.f32.gmra.mxu0 %v855
    %v857 = vpop.f32.mrf.mxu0
    %v858 = vadd.f32 %v819, %v857
    %859 = vdwg.mxu0
    %v860 = vand.u32 %v87, 4294901760
    %v861 = vsub.f32 %v87, %v860
    %v862 = vand.u32 %v861, 4294901760
    %863 = vmatpush.msra.mxu0 %v862
    %v864 = vand.u32 %v84, 4294901760
    %v865 = vsub.f32 %v84, %v864
    %v866 = vand.u32 %v865, 4294901760
    %867 = vmatpush.msra.mxu0 %v866
    %v868 = vand.u32 %v81, 4294901760
    %v869 = vsub.f32 %v81, %v868
    %v870 = vand.u32 %v869, 4294901760
    %871 = vmatpush.msra.mxu0 %v870
    %v872 = vand.u32 %v78, 4294901760
    %v873 = vsub.f32 %v78, %v872
    %v874 = vand.u32 %v873, 4294901760
    %875 = vmatpush.msra.mxu0 %v874
    %v876 = vand.u32 %v75, 4294901760
    %v877 = vsub.f32 %v75, %v876
    %v878 = vand.u32 %v877, 4294901760
    %879 = vmatpush.msra.mxu0 %v878
    %v880 = vand.u32 %v72, 4294901760
    %v881 = vsub.f32 %v72, %v880
    %v882 = vand.u32 %v881, 4294901760
    %883 = vmatpush.msra.mxu0 %v882
    %v884 = vand.u32 %v69, 4294901760
    %v885 = vsub.f32 %v69, %v884
    %v886 = vand.u32 %v885, 4294901760
    %887 = vmatpush.msra.mxu0 %v886
    %v888 = vand.u32 %v66, 4294901760
    %v889 = vsub.f32 %v66, %v888
    %v890 = vand.u32 %v889, 4294901760
    %891 = vmatpush.msra.mxu0 %v890
    %v892 = vand.u32 %v63, 4294901760
    %v893 = vsub.f32 %v63, %v892
    %v894 = vand.u32 %v893, 4294901760
    %895 = vmatpush.msra.mxu0 %v894
    %v896 = vand.u32 %v60, 4294901760
    %v897 = vsub.f32 %v60, %v896
    %v898 = vand.u32 %v897, 4294901760
    %899 = vmatpush.msra.mxu0 %v898
    %v900 = vand.u32 %v57, 4294901760
    %v901 = vsub.f32 %v57, %v900
    %v902 = vand.u32 %v901, 4294901760
    %903 = vmatpush.msra.mxu0 %v902
    %v904 = vand.u32 %v54, 4294901760
    %v905 = vsub.f32 %v54, %v904
    %v906 = vand.u32 %v905, 4294901760
    %907 = vmatpush.msra.mxu0 %v906
    %v908 = vand.u32 %v51, 4294901760
    %v909 = vsub.f32 %v51, %v908
    %v910 = vand.u32 %v909, 4294901760
    %911 = vmatpush.msra.mxu0 %v910
    %v912 = vand.u32 %v48, 4294901760
    %v913 = vsub.f32 %v48, %v912
    %v914 = vand.u32 %v913, 4294901760
    %915 = vmatpush.msra.mxu0 %v914
    %v916 = vand.u32 %v45, 4294901760
    %v917 = vsub.f32 %v45, %v916
    %v918 = vand.u32 %v917, 4294901760
    %919 = vmatpush.msra.mxu0 %v918
    %v920 = vand.u32 %v42, 4294901760
    %v921 = vsub.f32 %v42, %v920
    %v922 = vand.u32 %v921, 4294901760
    %923 = vmatpush.msra.mxu0 %v922
    %v924 = vand.u32 %v39, 4294901760
    %925 = vmatmul.f32.gmra.mxu0 %v924
    %v926 = vpop.f32.mrf.mxu0
    %v927 = vadd.f32 %v858, %v926
    %928 = vdwg.mxu0
    %v929 = vand.u32 %v87, 4294901760
    %930 = vmatpush.msra.mxu0 %v929
    %v931 = vand.u32 %v84, 4294901760
    %932 = vmatpush.msra.mxu0 %v931
    %v933 = vand.u32 %v81, 4294901760
    %934 = vmatpush.msra.mxu0 %v933
    %v935 = vand.u32 %v78, 4294901760
    %936 = vmatpush.msra.mxu0 %v935
    %v937 = vand.u32 %v75, 4294901760
    %938 = vmatpush.msra.mxu0 %v937
    %v939 = vand.u32 %v72, 4294901760
    %940 = vmatpush.msra.mxu0 %v939
    %v941 = vand.u32 %v69, 4294901760
    %942 = vmatpush.msra.mxu0 %v941
    %v943 = vand.u32 %v66, 4294901760
    %944 = vmatpush.msra.mxu0 %v943
    %v945 = vand.u32 %v63, 4294901760
    %946 = vmatpush.msra.mxu0 %v945
    %v947 = vand.u32 %v60, 4294901760
    %948 = vmatpush.msra.mxu0 %v947
    %v949 = vand.u32 %v57, 4294901760
    %950 = vmatpush.msra.mxu0 %v949
    %v951 = vand.u32 %v54, 4294901760
    %952 = vmatpush.msra.mxu0 %v951
    %v953 = vand.u32 %v51, 4294901760
    %954 = vmatpush.msra.mxu0 %v953
    %v955 = vand.u32 %v48, 4294901760
    %956 = vmatpush.msra.mxu0 %v955
    %v957 = vand.u32 %v45, 4294901760
    %958 = vmatpush.msra.mxu0 %v957
    %v959 = vand.u32 %v42, 4294901760
    %960 = vmatpush.msra.mxu0 %v959
    %v961 = vand.u32 %v39, 4294901760
    %962 = vmatmul.f32.gmra.mxu0 %v961
    %v963 = vpop.f32.mrf.mxu0
    %v964 = vadd.f32 %v927, %v963
    %965 = vdwg.mxu0
    %966 = vmatpush.msra.mxu0 0.0
    %967 = vmatpush.msra.mxu0 0.0
    %968 = vmatpush.msra.mxu0 0.0
    %969 = vmatpush.msra.mxu0 0.0
    %970 = vmatpush.msra.mxu0 0.0
    %971 = vmatpush.msra.mxu0 0.0
    %972 = vmatpush.msra.mxu0 0.0
    %973 = vmatpush.msra.mxu0 0.0
    %974 = vmatpush.msra.mxu0 0.0
    %975 = vmatpush.msra.mxu0 0.0
    %976 = vmatpush.msra.mxu0 0.0
    %977 = vmatpush.msra.mxu0 0.0
    %978 = vmatpush.msra.mxu0 0.0
    %v979 = vand.u32 %v107, 4294901760
    %980 = vmatpush.msra.mxu0 %v979
    %v981 = vand.u32 %v93, 4294901760
    %982 = vmatpush.msra.mxu0 %v981
    %v983 = vand.u32 %v90, 4294901760
    %984 = vmatpush.msra.mxu0 %v983
    %v985 = vand.u32 %v100, 4294901760
    %v986 = vsub.f32 %v100, %v985
    %v987 = vand.u32 %v986, 4294901760
    %v988 = vsub.f32 %v986, %v987
    %v989 = vand.u32 %v988, 4294901760
    %990 = vmatmul.f32.gmra.mxu0 %v989
    %v991 = vpop.f32.mrf.mxu0
    %v992 = vadd.f32 %v964, %v991
    %993 = vdwg.mxu0
    %994 = vmatpush.msra.mxu0 0.0
    %995 = vmatpush.msra.mxu0 0.0
    %996 = vmatpush.msra.mxu0 0.0
    %997 = vmatpush.msra.mxu0 0.0
    %998 = vmatpush.msra.mxu0 0.0
    %999 = vmatpush.msra.mxu0 0.0
    %1000 = vmatpush.msra.mxu0 0.0
    %1001 = vmatpush.msra.mxu0 0.0
    %1002 = vmatpush.msra.mxu0 0.0
    %1003 = vmatpush.msra.mxu0 0.0
    %1004 = vmatpush.msra.mxu0 0.0
    %1005 = vmatpush.msra.mxu0 0.0
    %1006 = vmatpush.msra.mxu0 0.0
    %v1007 = vand.u32 %v107, 4294901760
    %v1008 = vsub.f32 %v107, %v1007
    %v1009 = vand.u32 %v1008, 4294901760
    %v1010 = vsub.f32 %v1008, %v1009
    %v1011 = vand.u32 %v1010, 4294901760
    %1012 = vmatpush.msra.mxu0 %v1011
    %v1013 = vand.u32 %v93, 4294901760
    %v1014 = vsub.f32 %v93, %v1013
    %v1015 = vand.u32 %v1014, 4294901760
    %v1016 = vsub.f32 %v1014, %v1015
    %v1017 = vand.u32 %v1016, 4294901760
    %1018 = vmatpush.msra.mxu0 %v1017
    %v1019 = vand.u32 %v90, 4294901760
    %v1020 = vsub.f32 %v90, %v1019
    %v1021 = vand.u32 %v1020, 4294901760
    %v1022 = vsub.f32 %v1020, %v1021
    %v1023 = vand.u32 %v1022, 4294901760
    %1024 = vmatpush.msra.mxu0 %v1023
    %v1025 = vand.u32 %v100, 4294901760
    %1026 = vmatmul.f32.gmra.mxu0 %v1025
    %v1027 = vpop.f32.mrf.mxu0
    %v1028 = vadd.f32 %v992, %v1027
    %1029 = vdwg.mxu0
    %1030 = vmatpush.msra.mxu0 0.0
    %1031 = vmatpush.msra.mxu0 0.0
    %1032 = vmatpush.msra.mxu0 0.0
    %1033 = vmatpush.msra.mxu0 0.0
    %1034 = vmatpush.msra.mxu0 0.0
    %1035 = vmatpush.msra.mxu0 0.0
    %1036 = vmatpush.msra.mxu0 0.0
    %1037 = vmatpush.msra.mxu0 0.0
    %1038 = vmatpush.msra.mxu0 0.0
    %1039 = vmatpush.msra.mxu0 0.0
    %1040 = vmatpush.msra.mxu0 0.0
    %1041 = vmatpush.msra.mxu0 0.0
    %1042 = vmatpush.msra.mxu0 0.0
    %v1043 = vand.u32 %v107, 4294901760
    %v1044 = vsub.f32 %v107, %v1043
    %1045 = vmatpush.msra.mxu0 %v1044
    %v1046 = vand.u32 %v93, 4294901760
    %v1047 = vsub.f32 %v93, %v1046
    %1048 = vmatpush.msra.mxu0 %v1047
    %v1049 = vand.u32 %v90, 4294901760
    %v1050 = vsub.f32 %v90, %v1049
    %1051 = vmatpush.msra.mxu0 %v1050
    %v1052 = vand.u32 %v100, 4294901760
    %v1053 = vsub.f32 %v100, %v1052
    %1054 = vmatmul.f32.gmra.mxu0 %v1053
    %v1055 = vpop.f32.mrf.mxu0
    %v1056 = vadd.f32 %v1028, %v1055
    %1057 = vdwg.mxu0
    %1058 = vmatpush.msra.mxu0 0.0
    %1059 = vmatpush.msra.mxu0 0.0
    %1060 = vmatpush.msra.mxu0 0.0
    %1061 = vmatpush.msra.mxu0 0.0
    %1062 = vmatpush.msra.mxu0 0.0
    %1063 = vmatpush.msra.mxu0 0.0
    %1064 = vmatpush.msra.mxu0 0.0
    %1065 = vmatpush.msra.mxu0 0.0
    %1066 = vmatpush.msra.mxu0 0.0
    %1067 = vmatpush.msra.mxu0 0.0
    %1068 = vmatpush.msra.mxu0 0.0
    %1069 = vmatpush.msra.mxu0 0.0
    %1070 = vmatpush.msra.mxu0 0.0
    %v1071 = vand.u32 %v107, 4294901760
    %1072 = vmatpush.msra.mxu0 %v1071
    %v1073 = vand.u32 %v93, 4294901760
    %1074 = vmatpush.msra.mxu0 %v1073
    %v1075 = vand.u32 %v90, 4294901760
    %1076 = vmatpush.msra.mxu0 %v1075
    %v1077 = vand.u32 %v100, 4294901760
    %v1078 = vsub.f32 %v100, %v1077
    %v1079 = vand.u32 %v1078, 4294901760
    %1080 = vmatmul.f32.gmra.mxu0 %v1079
    %v1081 = vpop.f32.mrf.mxu0
    %v1082 = vadd.f32 %v1056, %v1081
    %1083 = vdwg.mxu0
    %1084 = vmatpush.msra.mxu0 0.0
    %1085 = vmatpush.msra.mxu0 0.0
    %1086 = vmatpush.msra.mxu0 0.0
    %1087 = vmatpush.msra.mxu0 0.0
    %1088 = vmatpush.msra.mxu0 0.0
    %1089 = vmatpush.msra.mxu0 0.0
    %1090 = vmatpush.msra.mxu0 0.0
    %1091 = vmatpush.msra.mxu0 0.0
    %1092 = vmatpush.msra.mxu0 0.0
    %1093 = vmatpush.msra.mxu0 0.0
    %1094 = vmatpush.msra.mxu0 0.0
    %1095 = vmatpush.msra.mxu0 0.0
    %1096 = vmatpush.msra.mxu0 0.0
    %v1097 = vand.u32 %v107, 4294901760
    %v1098 = vsub.f32 %v107, %v1097
    %v1099 = vand.u32 %v1098, 4294901760
    %1100 = vmatpush.msra.mxu0 %v1099
    %v1101 = vand.u32 %v93, 4294901760
    %v1102 = vsub.f32 %v93, %v1101
    %v1103 = vand.u32 %v1102, 4294901760
    %1104 = vmatpush.msra.mxu0 %v1103
    %v1105 = vand.u32 %v90, 4294901760
    %v1106 = vsub.f32 %v90, %v1105
    %v1107 = vand.u32 %v1106, 4294901760
    %1108 = vmatpush.msra.mxu0 %v1107
    %v1109 = vand.u32 %v100, 4294901760
    %1110 = vmatmul.f32.gmra.mxu0 %v1109
    %v1111 = vpop.f32.mrf.mxu0
    %v1112 = vadd.f32 %v1082, %v1111
    %1113 = vdwg.mxu0
    %1114 = vmatpush.msra.mxu0 0.0
    %1115 = vmatpush.msra.mxu0 0.0
    %1116 = vmatpush.msra.mxu0 0.0
    %1117 = vmatpush.msra.mxu0 0.0
    %1118 = vmatpush.msra.mxu0 0.0
    %1119 = vmatpush.msra.mxu0 0.0
    %1120 = vmatpush.msra.mxu0 0.0
    %1121 = vmatpush.msra.mxu0 0.0
    %1122 = vmatpush.msra.mxu0 0.0
    %1123 = vmatpush.msra.mxu0 0.0
    %1124 = vmatpush.msra.mxu0 0.0
    %1125 = vmatpush.msra.mxu0 0.0
    %1126 = vmatpush.msra.mxu0 0.0
    %v1127 = vand.u32 %v107, 4294901760
    %1128 = vmatpush.msra.mxu0 %v1127
    %v1129 = vand.u32 %v93, 4294901760
    %1130 = vmatpush.msra.mxu0 %v1129
    %v1131 = vand.u32 %v90, 4294901760
    %1132 = vmatpush.msra.mxu0 %v1131
    %v1133 = vand.u32 %v100, 4294901760
    %1134 = vmatmul.f32.gmra.mxu0 %v1133
    %v1135 = vpop.f32.mrf.mxu0
    %v1136 = vadd.f32 %v1112, %v1135
    %1137 = vdwg.mxu0
    %v1138 = vand.u32 %v88, 4294901760
    %1139 = vmatpush.msra.mxu0 %v1138
    %v1140 = vand.u32 %v85, 4294901760
    %1141 = vmatpush.msra.mxu0 %v1140
    %v1142 = vand.u32 %v82, 4294901760
    %1143 = vmatpush.msra.mxu0 %v1142
    %v1144 = vand.u32 %v79, 4294901760
    %1145 = vmatpush.msra.mxu0 %v1144
    %v1146 = vand.u32 %v76, 4294901760
    %1147 = vmatpush.msra.mxu0 %v1146
    %v1148 = vand.u32 %v73, 4294901760
    %1149 = vmatpush.msra.mxu0 %v1148
    %v1150 = vand.u32 %v70, 4294901760
    %1151 = vmatpush.msra.mxu0 %v1150
    %v1152 = vand.u32 %v67, 4294901760
    %1153 = vmatpush.msra.mxu0 %v1152
    %v1154 = vand.u32 %v64, 4294901760
    %1155 = vmatpush.msra.mxu0 %v1154
    %v1156 = vand.u32 %v61, 4294901760
    %1157 = vmatpush.msra.mxu0 %v1156
    %v1158 = vand.u32 %v58, 4294901760
    %1159 = vmatpush.msra.mxu0 %v1158
    %v1160 = vand.u32 %v55, 4294901760
    %1161 = vmatpush.msra.mxu0 %v1160
    %v1162 = vand.u32 %v52, 4294901760
    %1163 = vmatpush.msra.mxu0 %v1162
    %v1164 = vand.u32 %v49, 4294901760
    %1165 = vmatpush.msra.mxu0 %v1164
    %v1166 = vand.u32 %v46, 4294901760
    %1167 = vmatpush.msra.mxu0 %v1166
    %v1168 = vand.u32 %v43, 4294901760
    %1169 = vmatpush.msra.mxu0 %v1168
    %v1170 = vand.u32 %v39, 4294901760
    %v1171 = vsub.f32 %v39, %v1170
    %v1172 = vand.u32 %v1171, 4294901760
    %v1173 = vsub.f32 %v1171, %v1172
    %v1174 = vand.u32 %v1173, 4294901760
    %1175 = vmatmul.f32.gmra.mxu0 %v1174
    %v1176 = vpop.f32.mrf.mxu0
    %v1177 = vadd.f32 0.0, %v1176
    %1178 = vdwg.mxu0
    %v1179 = vand.u32 %v88, 4294901760
    %v1180 = vsub.f32 %v88, %v1179
    %v1181 = vand.u32 %v1180, 4294901760
    %v1182 = vsub.f32 %v1180, %v1181
    %v1183 = vand.u32 %v1182, 4294901760
    %1184 = vmatpush.msra.mxu0 %v1183
    %v1185 = vand.u32 %v85, 4294901760
    %v1186 = vsub.f32 %v85, %v1185
    %v1187 = vand.u32 %v1186, 4294901760
    %v1188 = vsub.f32 %v1186, %v1187
    %v1189 = vand.u32 %v1188, 4294901760
    %1190 = vmatpush.msra.mxu0 %v1189
    %v1191 = vand.u32 %v82, 4294901760
    %v1192 = vsub.f32 %v82, %v1191
    %v1193 = vand.u32 %v1192, 4294901760
    %v1194 = vsub.f32 %v1192, %v1193
    %v1195 = vand.u32 %v1194, 4294901760
    %1196 = vmatpush.msra.mxu0 %v1195
    %v1197 = vand.u32 %v79, 4294901760
    %v1198 = vsub.f32 %v79, %v1197
    %v1199 = vand.u32 %v1198, 4294901760
    %v1200 = vsub.f32 %v1198, %v1199
    %v1201 = vand.u32 %v1200, 4294901760
    %1202 = vmatpush.msra.mxu0 %v1201
    %v1203 = vand.u32 %v76, 4294901760
    %v1204 = vsub.f32 %v76, %v1203
    %v1205 = vand.u32 %v1204, 4294901760
    %v1206 = vsub.f32 %v1204, %v1205
    %v1207 = vand.u32 %v1206, 4294901760
    %1208 = vmatpush.msra.mxu0 %v1207
    %v1209 = vand.u32 %v73, 4294901760
    %v1210 = vsub.f32 %v73, %v1209
    %v1211 = vand.u32 %v1210, 4294901760
    %v1212 = vsub.f32 %v1210, %v1211
    %v1213 = vand.u32 %v1212, 4294901760
    %1214 = vmatpush.msra.mxu0 %v1213
    %v1215 = vand.u32 %v70, 4294901760
    %v1216 = vsub.f32 %v70, %v1215
    %v1217 = vand.u32 %v1216, 4294901760
    %v1218 = vsub.f32 %v1216, %v1217
    %v1219 = vand.u32 %v1218, 4294901760
    %1220 = vmatpush.msra.mxu0 %v1219
    %v1221 = vand.u32 %v67, 4294901760
    %v1222 = vsub.f32 %v67, %v1221
    %v1223 = vand.u32 %v1222, 4294901760
    %v1224 = vsub.f32 %v1222, %v1223
    %v1225 = vand.u32 %v1224, 4294901760
    %1226 = vmatpush.msra.mxu0 %v1225
    %v1227 = vand.u32 %v64, 4294901760
    %v1228 = vsub.f32 %v64, %v1227
    %v1229 = vand.u32 %v1228, 4294901760
    %v1230 = vsub.f32 %v1228, %v1229
    %v1231 = vand.u32 %v1230, 4294901760
    %1232 = vmatpush.msra.mxu0 %v1231
    %v1233 = vand.u32 %v61, 4294901760
    %v1234 = vsub.f32 %v61, %v1233
    %v1235 = vand.u32 %v1234, 4294901760
    %v1236 = vsub.f32 %v1234, %v1235
    %v1237 = vand.u32 %v1236, 4294901760
    %1238 = vmatpush.msra.mxu0 %v1237
    %v1239 = vand.u32 %v58, 4294901760
    %v1240 = vsub.f32 %v58, %v1239
    %v1241 = vand.u32 %v1240, 4294901760
    %v1242 = vsub.f32 %v1240, %v1241
    %v1243 = vand.u32 %v1242, 4294901760
    %1244 = vmatpush.msra.mxu0 %v1243
    %v1245 = vand.u32 %v55, 4294901760
    %v1246 = vsub.f32 %v55, %v1245
    %v1247 = vand.u32 %v1246, 4294901760
    %v1248 = vsub.f32 %v1246, %v1247
    %v1249 = vand.u32 %v1248, 4294901760
    %1250 = vmatpush.msra.mxu0 %v1249
    %v1251 = vand.u32 %v52, 4294901760
    %v1252 = vsub.f32 %v52, %v1251
    %v1253 = vand.u32 %v1252, 4294901760
    %v1254 = vsub.f32 %v1252, %v1253
    %v1255 = vand.u32 %v1254, 4294901760
    %1256 = vmatpush.msra.mxu0 %v1255
    %v1257 = vand.u32 %v49, 4294901760
    %v1258 = vsub.f32 %v49, %v1257
    %v1259 = vand.u32 %v1258, 4294901760
    %v1260 = vsub.f32 %v1258, %v1259
    %v1261 = vand.u32 %v1260, 4294901760
    %1262 = vmatpush.msra.mxu0 %v1261
    %v1263 = vand.u32 %v46, 4294901760
    %v1264 = vsub.f32 %v46, %v1263
    %v1265 = vand.u32 %v1264, 4294901760
    %v1266 = vsub.f32 %v1264, %v1265
    %v1267 = vand.u32 %v1266, 4294901760
    %1268 = vmatpush.msra.mxu0 %v1267
    %v1269 = vand.u32 %v43, 4294901760
    %v1270 = vsub.f32 %v43, %v1269
    %v1271 = vand.u32 %v1270, 4294901760
    %v1272 = vsub.f32 %v1270, %v1271
    %v1273 = vand.u32 %v1272, 4294901760
    %1274 = vmatpush.msra.mxu0 %v1273
    %v1275 = vand.u32 %v39, 4294901760
    %1276 = vmatmul.f32.gmra.mxu0 %v1275
    %v1277 = vpop.f32.mrf.mxu0
    %v1278 = vadd.f32 %v1177, %v1277
    %1279 = vdwg.mxu0
    %v1280 = vand.u32 %v88, 4294901760
    %v1281 = vsub.f32 %v88, %v1280
    %1282 = vmatpush.msra.mxu0 %v1281
    %v1283 = vand.u32 %v85, 4294901760
    %v1284 = vsub.f32 %v85, %v1283
    %1285 = vmatpush.msra.mxu0 %v1284
    %v1286 = vand.u32 %v82, 4294901760
    %v1287 = vsub.f32 %v82, %v1286
    %1288 = vmatpush.msra.mxu0 %v1287
    %v1289 = vand.u32 %v79, 4294901760
    %v1290 = vsub.f32 %v79, %v1289
    %1291 = vmatpush.msra.mxu0 %v1290
    %v1292 = vand.u32 %v76, 4294901760
    %v1293 = vsub.f32 %v76, %v1292
    %1294 = vmatpush.msra.mxu0 %v1293
    %v1295 = vand.u32 %v73, 4294901760
    %v1296 = vsub.f32 %v73, %v1295
    %1297 = vmatpush.msra.mxu0 %v1296
    %v1298 = vand.u32 %v70, 4294901760
    %v1299 = vsub.f32 %v70, %v1298
    %1300 = vmatpush.msra.mxu0 %v1299
    %v1301 = vand.u32 %v67, 4294901760
    %v1302 = vsub.f32 %v67, %v1301
    %1303 = vmatpush.msra.mxu0 %v1302
    %v1304 = vand.u32 %v64, 4294901760
    %v1305 = vsub.f32 %v64, %v1304
    %1306 = vmatpush.msra.mxu0 %v1305
    %v1307 = vand.u32 %v61, 4294901760
    %v1308 = vsub.f32 %v61, %v1307
    %1309 = vmatpush.msra.mxu0 %v1308
    %v1310 = vand.u32 %v58, 4294901760
    %v1311 = vsub.f32 %v58, %v1310
    %1312 = vmatpush.msra.mxu0 %v1311
    %v1313 = vand.u32 %v55, 4294901760
    %v1314 = vsub.f32 %v55, %v1313
    %1315 = vmatpush.msra.mxu0 %v1314
    %v1316 = vand.u32 %v52, 4294901760
    %v1317 = vsub.f32 %v52, %v1316
    %1318 = vmatpush.msra.mxu0 %v1317
    %v1319 = vand.u32 %v49, 4294901760
    %v1320 = vsub.f32 %v49, %v1319
    %1321 = vmatpush.msra.mxu0 %v1320
    %v1322 = vand.u32 %v46, 4294901760
    %v1323 = vsub.f32 %v46, %v1322
    %1324 = vmatpush.msra.mxu0 %v1323
    %v1325 = vand.u32 %v43, 4294901760
    %v1326 = vsub.f32 %v43, %v1325
    %1327 = vmatpush.msra.mxu0 %v1326
    %v1328 = vand.u32 %v39, 4294901760
    %v1329 = vsub.f32 %v39, %v1328
    %1330 = vmatmul.f32.gmra.mxu0 %v1329
    %v1331 = vpop.f32.mrf.mxu0
    %v1332 = vadd.f32 %v1278, %v1331
    %1333 = vdwg.mxu0
    %v1334 = vand.u32 %v88, 4294901760
    %1335 = vmatpush.msra.mxu0 %v1334
    %v1336 = vand.u32 %v85, 4294901760
    %1337 = vmatpush.msra.mxu0 %v1336
    %v1338 = vand.u32 %v82, 4294901760
    %1339 = vmatpush.msra.mxu0 %v1338
    %v1340 = vand.u32 %v79, 4294901760
    %1341 = vmatpush.msra.mxu0 %v1340
    %v1342 = vand.u32 %v76, 4294901760
    %1343 = vmatpush.msra.mxu0 %v1342
    %v1344 = vand.u32 %v73, 4294901760
    %1345 = vmatpush.msra.mxu0 %v1344
    %v1346 = vand.u32 %v70, 4294901760
    %1347 = vmatpush.msra.mxu0 %v1346
    %v1348 = vand.u32 %v67, 4294901760
    %1349 = vmatpush.msra.mxu0 %v1348
    %v1350 = vand.u32 %v64, 4294901760
    %1351 = vmatpush.msra.mxu0 %v1350
    %v1352 = vand.u32 %v61, 4294901760
    %1353 = vmatpush.msra.mxu0 %v1352
    %v1354 = vand.u32 %v58, 4294901760
    %1355 = vmatpush.msra.mxu0 %v1354
    %v1356 = vand.u32 %v55, 4294901760
    %1357 = vmatpush.msra.mxu0 %v1356
    %v1358 = vand.u32 %v52, 4294901760
    %1359 = vmatpush.msra.mxu0 %v1358
    %v1360 = vand.u32 %v49, 4294901760
    %1361 = vmatpush.msra.mxu0 %v1360
    %v1362 = vand.u32 %v46, 4294901760
    %1363 = vmatpush.msra.mxu0 %v1362
    %v1364 = vand.u32 %v43, 4294901760
    %1365 = vmatpush.msra.mxu0 %v1364
    %v1366 = vand.u32 %v39, 4294901760
    %v1367 = vsub.f32 %v39, %v1366
    %v1368 = vand.u32 %v1367, 4294901760
    %1369 = vmatmul.f32.gmra.mxu0 %v1368
    %v1370 = vpop.f32.mrf.mxu0
    %v1371 = vadd.f32 %v1332, %v1370
    %1372 = vdwg.mxu0
    %v1373 = vand.u32 %v88, 4294901760
    %v1374 = vsub.f32 %v88, %v1373
    %v1375 = vand.u32 %v1374, 4294901760
    %1376 = vmatpush.msra.mxu0 %v1375
    %v1377 = vand.u32 %v85, 4294901760
    %v1378 = vsub.f32 %v85, %v1377
    %v1379 = vand.u32 %v1378, 4294901760
    %1380 = vmatpush.msra.mxu0 %v1379
    %v1381 = vand.u32 %v82, 4294901760
    %v1382 = vsub.f32 %v82, %v1381
    %v1383 = vand.u32 %v1382, 4294901760
    %1384 = vmatpush.msra.mxu0 %v1383
    %v1385 = vand.u32 %v79, 4294901760
    %v1386 = vsub.f32 %v79, %v1385
    %v1387 = vand.u32 %v1386, 4294901760
    %1388 = vmatpush.msra.mxu0 %v1387
    %v1389 = vand.u32 %v76, 4294901760
    %v1390 = vsub.f32 %v76, %v1389
    %v1391 = vand.u32 %v1390, 4294901760
    %1392 = vmatpush.msra.mxu0 %v1391
    %v1393 = vand.u32 %v73, 4294901760
    %v1394 = vsub.f32 %v73, %v1393
    %v1395 = vand.u32 %v1394, 4294901760
    %1396 = vmatpush.msra.mxu0 %v1395
    %v1397 = vand.u32 %v70, 4294901760
    %v1398 = vsub.f32 %v70, %v1397
    %v1399 = vand.u32 %v1398, 4294901760
    %1400 = vmatpush.msra.mxu0 %v1399
    %v1401 = vand.u32 %v67, 4294901760
    %v1402 = vsub.f32 %v67, %v1401
    %v1403 = vand.u32 %v1402, 4294901760
    %1404 = vmatpush.msra.mxu0 %v1403
    %v1405 = vand.u32 %v64, 4294901760
    %v1406 = vsub.f32 %v64, %v1405
    %v1407 = vand.u32 %v1406, 4294901760
    %1408 = vmatpush.msra.mxu0 %v1407
    %v1409 = vand.u32 %v61, 4294901760
    %v1410 = vsub.f32 %v61, %v1409
    %v1411 = vand.u32 %v1410, 4294901760
    %1412 = vmatpush.msra.mxu0 %v1411
    %v1413 = vand.u32 %v58, 4294901760
    %v1414 = vsub.f32 %v58, %v1413
    %v1415 = vand.u32 %v1414, 4294901760
    %1416 = vmatpush.msra.mxu0 %v1415
    %v1417 = vand.u32 %v55, 4294901760
    %v1418 = vsub.f32 %v55, %v1417
    %v1419 = vand.u32 %v1418, 4294901760
    %1420 = vmatpush.msra.mxu0 %v1419
    %v1421 = vand.u32 %v52, 4294901760
    %v1422 = vsub.f32 %v52, %v1421
    %v1423 = vand.u32 %v1422, 4294901760
    %1424 = vmatpush.msra.mxu0 %v1423
    %v1425 = vand.u32 %v49, 4294901760
    %v1426 = vsub.f32 %v49, %v1425
    %v1427 = vand.u32 %v1426, 4294901760
    %1428 = vmatpush.msra.mxu0 %v1427
    %v1429 = vand.u32 %v46, 4294901760
    %v1430 = vsub.f32 %v46, %v1429
    %v1431 = vand.u32 %v1430, 4294901760
    %1432 = vmatpush.msra.mxu0 %v1431
    %v1433 = vand.u32 %v43, 4294901760
    %v1434 = vsub.f32 %v43, %v1433
    %v1435 = vand.u32 %v1434, 4294901760
    %1436 = vmatpush.msra.mxu0 %v1435
    %v1437 = vand.u32 %v39, 4294901760
    %1438 = vmatmul.f32.gmra.mxu0 %v1437
    %v1439 = vpop.f32.mrf.mxu0
    %v1440 = vadd.f32 %v1371, %v1439
    %1441 = vdwg.mxu0
    %v1442 = vand.u32 %v88, 4294901760
    %1443 = vmatpush.msra.mxu0 %v1442
    %v1444 = vand.u32 %v85, 4294901760
    %1445 = vmatpush.msra.mxu0 %v1444
    %v1446 = vand.u32 %v82, 4294901760
    %1447 = vmatpush.msra.mxu0 %v1446
    %v1448 = vand.u32 %v79, 4294901760
    %1449 = vmatpush.msra.mxu0 %v1448
    %v1450 = vand.u32 %v76, 4294901760
    %1451 = vmatpush.msra.mxu0 %v1450
    %v1452 = vand.u32 %v73, 4294901760
    %1453 = vmatpush.msra.mxu0 %v1452
    %v1454 = vand.u32 %v70, 4294901760
    %1455 = vmatpush.msra.mxu0 %v1454
    %v1456 = vand.u32 %v67, 4294901760
    %1457 = vmatpush.msra.mxu0 %v1456
    %v1458 = vand.u32 %v64, 4294901760
    %1459 = vmatpush.msra.mxu0 %v1458
    %v1460 = vand.u32 %v61, 4294901760
    %1461 = vmatpush.msra.mxu0 %v1460
    %v1462 = vand.u32 %v58, 4294901760
    %1463 = vmatpush.msra.mxu0 %v1462
    %v1464 = vand.u32 %v55, 4294901760
    %1465 = vmatpush.msra.mxu0 %v1464
    %v1466 = vand.u32 %v52, 4294901760
    %1467 = vmatpush.msra.mxu0 %v1466
    %v1468 = vand.u32 %v49, 4294901760
    %1469 = vmatpush.msra.mxu0 %v1468
    %v1470 = vand.u32 %v46, 4294901760
    %1471 = vmatpush.msra.mxu0 %v1470
    %v1472 = vand.u32 %v43, 4294901760
    %1473 = vmatpush.msra.mxu0 %v1472
    %v1474 = vand.u32 %v39, 4294901760
    %1475 = vmatmul.f32.gmra.mxu0 %v1474
    %v1476 = vpop.f32.mrf.mxu0
    %v1477 = vadd.f32 %v1440, %v1476
    %1478 = vdwg.mxu0
    %1479 = vmatpush.msra.mxu0 0.0
    %1480 = vmatpush.msra.mxu0 0.0
    %1481 = vmatpush.msra.mxu0 0.0
    %1482 = vmatpush.msra.mxu0 0.0
    %1483 = vmatpush.msra.mxu0 0.0
    %1484 = vmatpush.msra.mxu0 0.0
    %1485 = vmatpush.msra.mxu0 0.0
    %1486 = vmatpush.msra.mxu0 0.0
    %1487 = vmatpush.msra.mxu0 0.0
    %1488 = vmatpush.msra.mxu0 0.0
    %1489 = vmatpush.msra.mxu0 0.0
    %1490 = vmatpush.msra.mxu0 0.0
    %1491 = vmatpush.msra.mxu0 0.0
    %v1492 = vand.u32 %v110, 4294901760
    %1493 = vmatpush.msra.mxu0 %v1492
    %v1494 = vand.u32 %v94, 4294901760
    %1495 = vmatpush.msra.mxu0 %v1494
    %v1496 = vand.u32 %v91, 4294901760
    %1497 = vmatpush.msra.mxu0 %v1496
    %v1498 = vand.u32 %v100, 4294901760
    %v1499 = vsub.f32 %v100, %v1498
    %v1500 = vand.u32 %v1499, 4294901760
    %v1501 = vsub.f32 %v1499, %v1500
    %v1502 = vand.u32 %v1501, 4294901760
    %1503 = vmatmul.f32.gmra.mxu0 %v1502
    %v1504 = vpop.f32.mrf.mxu0
    %v1505 = vadd.f32 %v1477, %v1504
    %1506 = vdwg.mxu0
    %1507 = vmatpush.msra.mxu0 0.0
    %1508 = vmatpush.msra.mxu0 0.0
    %1509 = vmatpush.msra.mxu0 0.0
    %1510 = vmatpush.msra.mxu0 0.0
    %1511 = vmatpush.msra.mxu0 0.0
    %1512 = vmatpush.msra.mxu0 0.0
    %1513 = vmatpush.msra.mxu0 0.0
    %1514 = vmatpush.msra.mxu0 0.0
    %1515 = vmatpush.msra.mxu0 0.0
    %1516 = vmatpush.msra.mxu0 0.0
    %1517 = vmatpush.msra.mxu0 0.0
    %1518 = vmatpush.msra.mxu0 0.0
    %1519 = vmatpush.msra.mxu0 0.0
    %v1520 = vand.u32 %v110, 4294901760
    %v1521 = vsub.f32 %v110, %v1520
    %v1522 = vand.u32 %v1521, 4294901760
    %v1523 = vsub.f32 %v1521, %v1522
    %v1524 = vand.u32 %v1523, 4294901760
    %1525 = vmatpush.msra.mxu0 %v1524
    %v1526 = vand.u32 %v94, 4294901760
    %v1527 = vsub.f32 %v94, %v1526
    %v1528 = vand.u32 %v1527, 4294901760
    %v1529 = vsub.f32 %v1527, %v1528
    %v1530 = vand.u32 %v1529, 4294901760
    %1531 = vmatpush.msra.mxu0 %v1530
    %v1532 = vand.u32 %v91, 4294901760
    %v1533 = vsub.f32 %v91, %v1532
    %v1534 = vand.u32 %v1533, 4294901760
    %v1535 = vsub.f32 %v1533, %v1534
    %v1536 = vand.u32 %v1535, 4294901760
    %1537 = vmatpush.msra.mxu0 %v1536
    %v1538 = vand.u32 %v100, 4294901760
    %1539 = vmatmul.f32.gmra.mxu0 %v1538
    %v1540 = vpop.f32.mrf.mxu0
    %v1541 = vadd.f32 %v1505, %v1540
    %1542 = vdwg.mxu0
    %1543 = vmatpush.msra.mxu0 0.0
    %1544 = vmatpush.msra.mxu0 0.0
    %1545 = vmatpush.msra.mxu0 0.0
    %1546 = vmatpush.msra.mxu0 0.0
    %1547 = vmatpush.msra.mxu0 0.0
    %1548 = vmatpush.msra.mxu0 0.0
    %1549 = vmatpush.msra.mxu0 0.0
    %1550 = vmatpush.msra.mxu0 0.0
    %1551 = vmatpush.msra.mxu0 0.0
    %1552 = vmatpush.msra.mxu0 0.0
    %1553 = vmatpush.msra.mxu0 0.0
    %1554 = vmatpush.msra.mxu0 0.0
    %1555 = vmatpush.msra.mxu0 0.0
    %v1556 = vand.u32 %v110, 4294901760
    %v1557 = vsub.f32 %v110, %v1556
    %1558 = vmatpush.msra.mxu0 %v1557
    %v1559 = vand.u32 %v94, 4294901760
    %v1560 = vsub.f32 %v94, %v1559
    %1561 = vmatpush.msra.mxu0 %v1560
    %v1562 = vand.u32 %v91, 4294901760
    %v1563 = vsub.f32 %v91, %v1562
    %1564 = vmatpush.msra.mxu0 %v1563
    %v1565 = vand.u32 %v100, 4294901760
    %v1566 = vsub.f32 %v100, %v1565
    %1567 = vmatmul.f32.gmra.mxu0 %v1566
    %v1568 = vpop.f32.mrf.mxu0
    %v1569 = vadd.f32 %v1541, %v1568
    %1570 = vdwg.mxu0
    %1571 = vmatpush.msra.mxu0 0.0
    %1572 = vmatpush.msra.mxu0 0.0
    %1573 = vmatpush.msra.mxu0 0.0
    %1574 = vmatpush.msra.mxu0 0.0
    %1575 = vmatpush.msra.mxu0 0.0
    %1576 = vmatpush.msra.mxu0 0.0
    %1577 = vmatpush.msra.mxu0 0.0
    %1578 = vmatpush.msra.mxu0 0.0
    %1579 = vmatpush.msra.mxu0 0.0
    %1580 = vmatpush.msra.mxu0 0.0
    %1581 = vmatpush.msra.mxu0 0.0
    %1582 = vmatpush.msra.mxu0 0.0
    %1583 = vmatpush.msra.mxu0 0.0
    %v1584 = vand.u32 %v110, 4294901760
    %1585 = vmatpush.msra.mxu0 %v1584
    %v1586 = vand.u32 %v94, 4294901760
    %1587 = vmatpush.msra.mxu0 %v1586
    %v1588 = vand.u32 %v91, 4294901760
    %1589 = vmatpush.msra.mxu0 %v1588
    %v1590 = vand.u32 %v100, 4294901760
    %v1591 = vsub.f32 %v100, %v1590
    %v1592 = vand.u32 %v1591, 4294901760
    %1593 = vmatmul.f32.gmra.mxu0 %v1592
    %v1594 = vpop.f32.mrf.mxu0
    %v1595 = vadd.f32 %v1569, %v1594
    %1596 = vdwg.mxu0
    %1597 = vmatpush.msra.mxu0 0.0
    %1598 = vmatpush.msra.mxu0 0.0
    %1599 = vmatpush.msra.mxu0 0.0
    %1600 = vmatpush.msra.mxu0 0.0
    %1601 = vmatpush.msra.mxu0 0.0
    %1602 = vmatpush.msra.mxu0 0.0
    %1603 = vmatpush.msra.mxu0 0.0
    %1604 = vmatpush.msra.mxu0 0.0
    %1605 = vmatpush.msra.mxu0 0.0
    %1606 = vmatpush.msra.mxu0 0.0
    %1607 = vmatpush.msra.mxu0 0.0
    %1608 = vmatpush.msra.mxu0 0.0
    %1609 = vmatpush.msra.mxu0 0.0
    %v1610 = vand.u32 %v110, 4294901760
    %v1611 = vsub.f32 %v110, %v1610
    %v1612 = vand.u32 %v1611, 4294901760
    %1613 = vmatpush.msra.mxu0 %v1612
    %v1614 = vand.u32 %v94, 4294901760
    %v1615 = vsub.f32 %v94, %v1614
    %v1616 = vand.u32 %v1615, 4294901760
    %1617 = vmatpush.msra.mxu0 %v1616
    %v1618 = vand.u32 %v91, 4294901760
    %v1619 = vsub.f32 %v91, %v1618
    %v1620 = vand.u32 %v1619, 4294901760
    %1621 = vmatpush.msra.mxu0 %v1620
    %v1622 = vand.u32 %v100, 4294901760
    %1623 = vmatmul.f32.gmra.mxu0 %v1622
    %v1624 = vpop.f32.mrf.mxu0
    %v1625 = vadd.f32 %v1595, %v1624
    %1626 = vdwg.mxu0
    %1627 = vmatpush.msra.mxu0 0.0
    %1628 = vmatpush.msra.mxu0 0.0
    %1629 = vmatpush.msra.mxu0 0.0
    %1630 = vmatpush.msra.mxu0 0.0
    %1631 = vmatpush.msra.mxu0 0.0
    %1632 = vmatpush.msra.mxu0 0.0
    %1633 = vmatpush.msra.mxu0 0.0
    %1634 = vmatpush.msra.mxu0 0.0
    %1635 = vmatpush.msra.mxu0 0.0
    %1636 = vmatpush.msra.mxu0 0.0
    %1637 = vmatpush.msra.mxu0 0.0
    %1638 = vmatpush.msra.mxu0 0.0
    %1639 = vmatpush.msra.mxu0 0.0
    %v1640 = vand.u32 %v110, 4294901760
    %1641 = vmatpush.msra.mxu0 %v1640
    %v1642 = vand.u32 %v94, 4294901760
    %1643 = vmatpush.msra.mxu0 %v1642
    %v1644 = vand.u32 %v91, 4294901760
    %1645 = vmatpush.msra.mxu0 %v1644
    %v1646 = vand.u32 %v100, 4294901760
    %1647 = vmatmul.f32.gmra.mxu0 %v1646
    %v1648 = vpop.f32.mrf.mxu0
    %v1649 = vadd.f32 %v1625, %v1648
    %1650 = vdwg.mxu0
    %v1651 = vld [vmem:[%s2] sm:$0xff]
    %v1652 = vld [vmem:[%s2 + $0x8] sm:$0xff]
    %v1653 = vld [vmem:[%s2 + $0x10] sm:$0xff]
    %v1654 = vld [vmem:[%s2 + $0x18] sm:$0xff]
    %v1655 = vld [vmem:[%s2 + $0x20] sm:$0xff]
    %v1656 = vld [vmem:[%s2 + $0x28] sm:$0xff]
    %v1657 = vld [vmem:[%s2 + $0x30] sm:$0xff]
    %v1658 = vld [vmem:[%s2 + $0x38] sm:$0xff]
    %v1659 = vld [vmem:[%s2 + $0x40] sm:$0xff]
    %v1660 = vld [vmem:[%s2 + $0x48] sm:$0xff]
    %v1661 = vld [vmem:[%s2 + $0x50] sm:$0xff]
    %v1662 = vld [vmem:[%s2 + $0x58] sm:$0xff]
    %v1663 = vld [vmem:[%s2 + $0x60] sm:$0xff]
    %v1664 = vld [vmem:[%s2 + $0x68] sm:$0xff]
    %v1665 = vld [vmem:[%s2 + $0x70] sm:$0xff]
    %v1666 = vld [vmem:[%s2 + $0x78] sm:$0xff]
    %v1667 = vld [vmem:[%s2 + $0x80] sm:$0xff]
    %v1668 = vld [vmem:[%s2 + $0x88] sm:$0xff]
    %v1669 = vld [vmem:[%s2 + $0x90] sm:$0xff]
    %v1670 = vld [vmem:[%s2 + $0x98] sm:$0xff]
    %v1671 = vld [vmem:[%s2 + $0xa0] sm:$0xff]
    %v1672 = vld [vmem:[%s2 + $0xa8] sm:$0xff]
    %v1673 = vld [vmem:[%s2 + $0xb0] sm:$0xff]
    %v1674 = vld [vmem:[%s2 + $0xb8] sm:$0xff]
    %v1675 = vld [vmem:[%s2 + $0xc0] sm:$0xff]
    %v1676 = vld [vmem:[%s2 + $0xc8] sm:$0xff]
    %v1677 = vld [vmem:[%s2 + $0xd0] sm:$0xff]
    %v1678 = vld [vmem:[%s2 + $0xd8] sm:$0xff]
    %v1679 = vld [vmem:[%s2 + $0xe0] sm:$0xff]
    %v1680 = vld [vmem:[%s2 + $0xe8] sm:$0xff]
    %v1681 = vld [vmem:[%s2 + $0xf0] sm:$0xff]
    %v1682 = vld [vmem:[%s2 + $0xf8] sm:$0xff]
    %v1683 = vld [vmem:[%s2 + $0x100] sm:$0xff]
    %v1684 = vld [vmem:[%s2 + $0x108] sm:$0xff]
    %v1685 = vld [vmem:[%s2 + $0x110] sm:$0xff]
    %v1686 = vld [vmem:[%s2 + $0x118] sm:$0xff]
    %v1687 = vld [vmem:[%s2 + $0x120] sm:$0xff]
    %v1688 = vld [vmem:[%s2 + $0x128] sm:$0xff]
    %v1689 = vld [vmem:[%s2 + $0x130] sm:$0xff]
    %v1690 = vld [vmem:[%s2 + $0x138] sm:$0xff]
    %v1691 = vld [vmem:[%s2 + $0x140] sm:$0xff]
    %v1692 = vld [vmem:[%s2 + $0x148] sm:$0xff]
    %v1693 = vld [vmem:[%s2 + $0x150] sm:$0xff]
    %v1694 = vld [vmem:[%s2 + $0x158] sm:$0xff]
    %v1695 = vld [vmem:[%s2 + $0x160] sm:$0xff]
    %v1696 = vld [vmem:[%s2 + $0x168] sm:$0xff]
    %v1697 = vld [vmem:[%s2 + $0x170] sm:$0xff]
    %v1698 = vld [vmem:[%s2 + $0x178] sm:$0xff]
    %v1699 = vld [vmem:[%s2 + $0x180] sm:$0xff]
    %v1700 = vld [vmem:[%s2 + $0x188] sm:$0xff]
    %v1701 = vld [vmem:[%s2 + $0x190] sm:$0xff]
    %v1702 = vld [vmem:[%s2 + $0x198] sm:$0xff]
    %v1703 = vld [vmem:[%s2 + $0x1a0] sm:$0xff]
    %v1704 = vld [vmem:[%s2 + $0x1a8] sm:$0xff]
    %v1705 = vld [vmem:[%s2 + $0x1b0] sm:$0x3]
    %v1706 = vld [vmem:[%s2 + $0x1b8] sm:$0x3]
    %v1707 = vld [vmem:[%s2 + $0x1c0] sm:$0x3]
    %v1709 = vsel %vm102, %v1705, 0
    %v1712 = vsel %vm102, %v1706, 0
    %v1715 = vsel %vm102, %v1707, 0
    %v1717 = vand.u32 %v1696, 4294901760
    %1718 = vmatpush.msra.mxu0 %v1717
    %v1719 = vand.u32 %v1693, 4294901760
    %1720 = vmatpush.msra.mxu0 %v1719
    %v1721 = vand.u32 %v1690, 4294901760
    %1722 = vmatpush.msra.mxu0 %v1721
    %v1723 = vand.u32 %v1687, 4294901760
    %1724 = vmatpush.msra.mxu0 %v1723
    %v1725 = vand.u32 %v1684, 4294901760
    %1726 = vmatpush.msra.mxu0 %v1725
    %v1727 = vand.u32 %v1681, 4294901760
    %1728 = vmatpush.msra.mxu0 %v1727
    %v1729 = vand.u32 %v1678, 4294901760
    %1730 = vmatpush.msra.mxu0 %v1729
    %v1731 = vand.u32 %v1675, 4294901760
    %1732 = vmatpush.msra.mxu0 %v1731
    %v1733 = vand.u32 %v1672, 4294901760
    %1734 = vmatpush.msra.mxu0 %v1733
    %v1735 = vand.u32 %v1669, 4294901760
    %1736 = vmatpush.msra.mxu0 %v1735
    %v1737 = vand.u32 %v1666, 4294901760
    %1738 = vmatpush.msra.mxu0 %v1737
    %v1739 = vand.u32 %v1663, 4294901760
    %1740 = vmatpush.msra.mxu0 %v1739
    %v1741 = vand.u32 %v1660, 4294901760
    %1742 = vmatpush.msra.mxu0 %v1741
    %v1743 = vand.u32 %v1657, 4294901760
    %1744 = vmatpush.msra.mxu0 %v1743
    %v1745 = vand.u32 %v1654, 4294901760
    %1746 = vmatpush.msra.mxu0 %v1745
    %v1747 = vand.u32 %v1651, 4294901760
    %1748 = vmatpush.msra.mxu0 %v1747
    %v1749 = vand.u32 %v39, 4294901760
    %v1750 = vsub.f32 %v39, %v1749
    %v1751 = vand.u32 %v1750, 4294901760
    %v1752 = vsub.f32 %v1750, %v1751
    %v1753 = vand.u32 %v1752, 4294901760
    %1754 = vmatmul.f32.gmra.mxu0 %v1753
    %v1755 = vpop.f32.mrf.mxu0
    %v1756 = vadd.f32 0.0, %v1755
    %1757 = vdwg.mxu0
    %v1758 = vand.u32 %v1696, 4294901760
    %v1759 = vsub.f32 %v1696, %v1758
    %v1760 = vand.u32 %v1759, 4294901760
    %v1761 = vsub.f32 %v1759, %v1760
    %v1762 = vand.u32 %v1761, 4294901760
    %1763 = vmatpush.msra.mxu0 %v1762
    %v1764 = vand.u32 %v1693, 4294901760
    %v1765 = vsub.f32 %v1693, %v1764
    %v1766 = vand.u32 %v1765, 4294901760
    %v1767 = vsub.f32 %v1765, %v1766
    %v1768 = vand.u32 %v1767, 4294901760
    %1769 = vmatpush.msra.mxu0 %v1768
    %v1770 = vand.u32 %v1690, 4294901760
    %v1771 = vsub.f32 %v1690, %v1770
    %v1772 = vand.u32 %v1771, 4294901760
    %v1773 = vsub.f32 %v1771, %v1772
    %v1774 = vand.u32 %v1773, 4294901760
    %1775 = vmatpush.msra.mxu0 %v1774
    %v1776 = vand.u32 %v1687, 4294901760
    %v1777 = vsub.f32 %v1687, %v1776
    %v1778 = vand.u32 %v1777, 4294901760
    %v1779 = vsub.f32 %v1777, %v1778
    %v1780 = vand.u32 %v1779, 4294901760
    %1781 = vmatpush.msra.mxu0 %v1780
    %v1782 = vand.u32 %v1684, 4294901760
    %v1783 = vsub.f32 %v1684, %v1782
    %v1784 = vand.u32 %v1783, 4294901760
    %v1785 = vsub.f32 %v1783, %v1784
    %v1786 = vand.u32 %v1785, 4294901760
    %1787 = vmatpush.msra.mxu0 %v1786
    %v1788 = vand.u32 %v1681, 4294901760
    %v1789 = vsub.f32 %v1681, %v1788
    %v1790 = vand.u32 %v1789, 4294901760
    %v1791 = vsub.f32 %v1789, %v1790
    %v1792 = vand.u32 %v1791, 4294901760
    %1793 = vmatpush.msra.mxu0 %v1792
    %v1794 = vand.u32 %v1678, 4294901760
    %v1795 = vsub.f32 %v1678, %v1794
    %v1796 = vand.u32 %v1795, 4294901760
    %v1797 = vsub.f32 %v1795, %v1796
    %v1798 = vand.u32 %v1797, 4294901760
    %1799 = vmatpush.msra.mxu0 %v1798
    %v1800 = vand.u32 %v1675, 4294901760
    %v1801 = vsub.f32 %v1675, %v1800
    %v1802 = vand.u32 %v1801, 4294901760
    %v1803 = vsub.f32 %v1801, %v1802
    %v1804 = vand.u32 %v1803, 4294901760
    %1805 = vmatpush.msra.mxu0 %v1804
    %v1806 = vand.u32 %v1672, 4294901760
    %v1807 = vsub.f32 %v1672, %v1806
    %v1808 = vand.u32 %v1807, 4294901760
    %v1809 = vsub.f32 %v1807, %v1808
    %v1810 = vand.u32 %v1809, 4294901760
    %1811 = vmatpush.msra.mxu0 %v1810
    %v1812 = vand.u32 %v1669, 4294901760
    %v1813 = vsub.f32 %v1669, %v1812
    %v1814 = vand.u32 %v1813, 4294901760
    %v1815 = vsub.f32 %v1813, %v1814
    %v1816 = vand.u32 %v1815, 4294901760
    %1817 = vmatpush.msra.mxu0 %v1816
    %v1818 = vand.u32 %v1666, 4294901760
    %v1819 = vsub.f32 %v1666, %v1818
    %v1820 = vand.u32 %v1819, 4294901760
    %v1821 = vsub.f32 %v1819, %v1820
    %v1822 = vand.u32 %v1821, 4294901760
    %1823 = vmatpush.msra.mxu0 %v1822
    %v1824 = vand.u32 %v1663, 4294901760
    %v1825 = vsub.f32 %v1663, %v1824
    %v1826 = vand.u32 %v1825, 4294901760
    %v1827 = vsub.f32 %v1825, %v1826
    %v1828 = vand.u32 %v1827, 4294901760
    %1829 = vmatpush.msra.mxu0 %v1828
    %v1830 = vand.u32 %v1660, 4294901760
    %v1831 = vsub.f32 %v1660, %v1830
    %v1832 = vand.u32 %v1831, 4294901760
    %v1833 = vsub.f32 %v1831, %v1832
    %v1834 = vand.u32 %v1833, 4294901760
    %1835 = vmatpush.msra.mxu0 %v1834
    %v1836 = vand.u32 %v1657, 4294901760
    %v1837 = vsub.f32 %v1657, %v1836
    %v1838 = vand.u32 %v1837, 4294901760
    %v1839 = vsub.f32 %v1837, %v1838
    %v1840 = vand.u32 %v1839, 4294901760
    %1841 = vmatpush.msra.mxu0 %v1840
    %v1842 = vand.u32 %v1654, 4294901760
    %v1843 = vsub.f32 %v1654, %v1842
    %v1844 = vand.u32 %v1843, 4294901760
    %v1845 = vsub.f32 %v1843, %v1844
    %v1846 = vand.u32 %v1845, 4294901760
    %1847 = vmatpush.msra.mxu0 %v1846
    %v1848 = vand.u32 %v1651, 4294901760
    %v1849 = vsub.f32 %v1651, %v1848
    %v1850 = vand.u32 %v1849, 4294901760
    %v1851 = vsub.f32 %v1849, %v1850
    %v1852 = vand.u32 %v1851, 4294901760
    %1853 = vmatpush.msra.mxu0 %v1852
    %v1854 = vand.u32 %v39, 4294901760
    %1855 = vmatmul.f32.gmra.mxu0 %v1854
    %v1856 = vpop.f32.mrf.mxu0
    %v1857 = vadd.f32 %v1756, %v1856
    %1858 = vdwg.mxu0
    %v1859 = vand.u32 %v1696, 4294901760
    %v1860 = vsub.f32 %v1696, %v1859
    %1861 = vmatpush.msra.mxu0 %v1860
    %v1862 = vand.u32 %v1693, 4294901760
    %v1863 = vsub.f32 %v1693, %v1862
    %1864 = vmatpush.msra.mxu0 %v1863
    %v1865 = vand.u32 %v1690, 4294901760
    %v1866 = vsub.f32 %v1690, %v1865
    %1867 = vmatpush.msra.mxu0 %v1866
    %v1868 = vand.u32 %v1687, 4294901760
    %v1869 = vsub.f32 %v1687, %v1868
    %1870 = vmatpush.msra.mxu0 %v1869
    %v1871 = vand.u32 %v1684, 4294901760
    %v1872 = vsub.f32 %v1684, %v1871
    %1873 = vmatpush.msra.mxu0 %v1872
    %v1874 = vand.u32 %v1681, 4294901760
    %v1875 = vsub.f32 %v1681, %v1874
    %1876 = vmatpush.msra.mxu0 %v1875
    %v1877 = vand.u32 %v1678, 4294901760
    %v1878 = vsub.f32 %v1678, %v1877
    %1879 = vmatpush.msra.mxu0 %v1878
    %v1880 = vand.u32 %v1675, 4294901760
    %v1881 = vsub.f32 %v1675, %v1880
    %1882 = vmatpush.msra.mxu0 %v1881
    %v1883 = vand.u32 %v1672, 4294901760
    %v1884 = vsub.f32 %v1672, %v1883
    %1885 = vmatpush.msra.mxu0 %v1884
    %v1886 = vand.u32 %v1669, 4294901760
    %v1887 = vsub.f32 %v1669, %v1886
    %1888 = vmatpush.msra.mxu0 %v1887
    %v1889 = vand.u32 %v1666, 4294901760
    %v1890 = vsub.f32 %v1666, %v1889
    %1891 = vmatpush.msra.mxu0 %v1890
    %v1892 = vand.u32 %v1663, 4294901760
    %v1893 = vsub.f32 %v1663, %v1892
    %1894 = vmatpush.msra.mxu0 %v1893
    %v1895 = vand.u32 %v1660, 4294901760
    %v1896 = vsub.f32 %v1660, %v1895
    %1897 = vmatpush.msra.mxu0 %v1896
    %v1898 = vand.u32 %v1657, 4294901760
    %v1899 = vsub.f32 %v1657, %v1898
    %1900 = vmatpush.msra.mxu0 %v1899
    %v1901 = vand.u32 %v1654, 4294901760
    %v1902 = vsub.f32 %v1654, %v1901
    %1903 = vmatpush.msra.mxu0 %v1902
    %v1904 = vand.u32 %v1651, 4294901760
    %v1905 = vsub.f32 %v1651, %v1904
    %1906 = vmatpush.msra.mxu0 %v1905
    %v1907 = vand.u32 %v39, 4294901760
    %v1908 = vsub.f32 %v39, %v1907
    %1909 = vmatmul.f32.gmra.mxu0 %v1908
    %v1910 = vpop.f32.mrf.mxu0
    %v1911 = vadd.f32 %v1857, %v1910
    %1912 = vdwg.mxu0
    %v1913 = vand.u32 %v1696, 4294901760
    %1914 = vmatpush.msra.mxu0 %v1913
    %v1915 = vand.u32 %v1693, 4294901760
    %1916 = vmatpush.msra.mxu0 %v1915
    %v1917 = vand.u32 %v1690, 4294901760
    %1918 = vmatpush.msra.mxu0 %v1917
    %v1919 = vand.u32 %v1687, 4294901760
    %1920 = vmatpush.msra.mxu0 %v1919
    %v1921 = vand.u32 %v1684, 4294901760
    %1922 = vmatpush.msra.mxu0 %v1921
    %v1923 = vand.u32 %v1681, 4294901760
    %1924 = vmatpush.msra.mxu0 %v1923
    %v1925 = vand.u32 %v1678, 4294901760
    %1926 = vmatpush.msra.mxu0 %v1925
    %v1927 = vand.u32 %v1675, 4294901760
    %1928 = vmatpush.msra.mxu0 %v1927
    %v1929 = vand.u32 %v1672, 4294901760
    %1930 = vmatpush.msra.mxu0 %v1929
    %v1931 = vand.u32 %v1669, 4294901760
    %1932 = vmatpush.msra.mxu0 %v1931
    %v1933 = vand.u32 %v1666, 4294901760
    %1934 = vmatpush.msra.mxu0 %v1933
    %v1935 = vand.u32 %v1663, 4294901760
    %1936 = vmatpush.msra.mxu0 %v1935
    %v1937 = vand.u32 %v1660, 4294901760
    %1938 = vmatpush.msra.mxu0 %v1937
    %v1939 = vand.u32 %v1657, 4294901760
    %1940 = vmatpush.msra.mxu0 %v1939
    %v1941 = vand.u32 %v1654, 4294901760
    %1942 = vmatpush.msra.mxu0 %v1941
    %v1943 = vand.u32 %v1651, 4294901760
    %1944 = vmatpush.msra.mxu0 %v1943
    %v1945 = vand.u32 %v39, 4294901760
    %v1946 = vsub.f32 %v39, %v1945
    %v1947 = vand.u32 %v1946, 4294901760
    %1948 = vmatmul.f32.gmra.mxu0 %v1947
    %v1949 = vpop.f32.mrf.mxu0
    %v1950 = vadd.f32 %v1911, %v1949
    %1951 = vdwg.mxu0
    %v1952 = vand.u32 %v1696, 4294901760
    %v1953 = vsub.f32 %v1696, %v1952
    %v1954 = vand.u32 %v1953, 4294901760
    %1955 = vmatpush.msra.mxu0 %v1954
    %v1956 = vand.u32 %v1693, 4294901760
    %v1957 = vsub.f32 %v1693, %v1956
    %v1958 = vand.u32 %v1957, 4294901760
    %1959 = vmatpush.msra.mxu0 %v1958
    %v1960 = vand.u32 %v1690, 4294901760
    %v1961 = vsub.f32 %v1690, %v1960
    %v1962 = vand.u32 %v1961, 4294901760
    %1963 = vmatpush.msra.mxu0 %v1962
    %v1964 = vand.u32 %v1687, 4294901760
    %v1965 = vsub.f32 %v1687, %v1964
    %v1966 = vand.u32 %v1965, 4294901760
    %1967 = vmatpush.msra.mxu0 %v1966
    %v1968 = vand.u32 %v1684, 4294901760
    %v1969 = vsub.f32 %v1684, %v1968
    %v1970 = vand.u32 %v1969, 4294901760
    %1971 = vmatpush.msra.mxu0 %v1970
    %v1972 = vand.u32 %v1681, 4294901760
    %v1973 = vsub.f32 %v1681, %v1972
    %v1974 = vand.u32 %v1973, 4294901760
    %1975 = vmatpush.msra.mxu0 %v1974
    %v1976 = vand.u32 %v1678, 4294901760
    %v1977 = vsub.f32 %v1678, %v1976
    %v1978 = vand.u32 %v1977, 4294901760
    %1979 = vmatpush.msra.mxu0 %v1978
    %v1980 = vand.u32 %v1675, 4294901760
    %v1981 = vsub.f32 %v1675, %v1980
    %v1982 = vand.u32 %v1981, 4294901760
    %1983 = vmatpush.msra.mxu0 %v1982
    %v1984 = vand.u32 %v1672, 4294901760
    %v1985 = vsub.f32 %v1672, %v1984
    %v1986 = vand.u32 %v1985, 4294901760
    %1987 = vmatpush.msra.mxu0 %v1986
    %v1988 = vand.u32 %v1669, 4294901760
    %v1989 = vsub.f32 %v1669, %v1988
    %v1990 = vand.u32 %v1989, 4294901760
    %1991 = vmatpush.msra.mxu0 %v1990
    %v1992 = vand.u32 %v1666, 4294901760
    %v1993 = vsub.f32 %v1666, %v1992
    %v1994 = vand.u32 %v1993, 4294901760
    %1995 = vmatpush.msra.mxu0 %v1994
    %v1996 = vand.u32 %v1663, 4294901760
    %v1997 = vsub.f32 %v1663, %v1996
    %v1998 = vand.u32 %v1997, 4294901760
    %1999 = vmatpush.msra.mxu0 %v1998
    %v2000 = vand.u32 %v1660, 4294901760
    %v2001 = vsub.f32 %v1660, %v2000
    %v2002 = vand.u32 %v2001, 4294901760
    %2003 = vmatpush.msra.mxu0 %v2002
    %v2004 = vand.u32 %v1657, 4294901760
    %v2005 = vsub.f32 %v1657, %v2004
    %v2006 = vand.u32 %v2005, 4294901760
    %2007 = vmatpush.msra.mxu0 %v2006
    %v2008 = vand.u32 %v1654, 4294901760
    %v2009 = vsub.f32 %v1654, %v2008
    %v2010 = vand.u32 %v2009, 4294901760
    %2011 = vmatpush.msra.mxu0 %v2010
    %v2012 = vand.u32 %v1651, 4294901760
    %v2013 = vsub.f32 %v1651, %v2012
    %v2014 = vand.u32 %v2013, 4294901760
    %2015 = vmatpush.msra.mxu0 %v2014
    %v2016 = vand.u32 %v39, 4294901760
    %2017 = vmatmul.f32.gmra.mxu0 %v2016
    %v2018 = vpop.f32.mrf.mxu0
    %v2019 = vadd.f32 %v1950, %v2018
    %2020 = vdwg.mxu0
    %v2021 = vand.u32 %v1696, 4294901760
    %2022 = vmatpush.msra.mxu0 %v2021
    %v2023 = vand.u32 %v1693, 4294901760
    %2024 = vmatpush.msra.mxu0 %v2023
    %v2025 = vand.u32 %v1690, 4294901760
    %2026 = vmatpush.msra.mxu0 %v2025
    %v2027 = vand.u32 %v1687, 4294901760
    %2028 = vmatpush.msra.mxu0 %v2027
    %v2029 = vand.u32 %v1684, 4294901760
    %2030 = vmatpush.msra.mxu0 %v2029
    %v2031 = vand.u32 %v1681, 4294901760
    %2032 = vmatpush.msra.mxu0 %v2031
    %v2033 = vand.u32 %v1678, 4294901760
    %2034 = vmatpush.msra.mxu0 %v2033
    %v2035 = vand.u32 %v1675, 4294901760
    %2036 = vmatpush.msra.mxu0 %v2035
    %v2037 = vand.u32 %v1672, 4294901760
    %2038 = vmatpush.msra.mxu0 %v2037
    %v2039 = vand.u32 %v1669, 4294901760
    %2040 = vmatpush.msra.mxu0 %v2039
    %v2041 = vand.u32 %v1666, 4294901760
    %2042 = vmatpush.msra.mxu0 %v2041
    %v2043 = vand.u32 %v1663, 4294901760
    %2044 = vmatpush.msra.mxu0 %v2043
    %v2045 = vand.u32 %v1660, 4294901760
    %2046 = vmatpush.msra.mxu0 %v2045
    %v2047 = vand.u32 %v1657, 4294901760
    %2048 = vmatpush.msra.mxu0 %v2047
    %v2049 = vand.u32 %v1654, 4294901760
    %2050 = vmatpush.msra.mxu0 %v2049
    %v2051 = vand.u32 %v1651, 4294901760
    %2052 = vmatpush.msra.mxu0 %v2051
    %v2053 = vand.u32 %v39, 4294901760
    %2054 = vmatmul.f32.gmra.mxu0 %v2053
    %v2055 = vpop.f32.mrf.mxu0
    %v2056 = vadd.f32 %v2019, %v2055
    %2057 = vdwg.mxu0
    %2058 = vmatpush.msra.mxu0 0.0
    %2059 = vmatpush.msra.mxu0 0.0
    %2060 = vmatpush.msra.mxu0 0.0
    %2061 = vmatpush.msra.mxu0 0.0
    %2062 = vmatpush.msra.mxu0 0.0
    %2063 = vmatpush.msra.mxu0 0.0
    %2064 = vmatpush.msra.mxu0 0.0
    %2065 = vmatpush.msra.mxu0 0.0
    %2066 = vmatpush.msra.mxu0 0.0
    %2067 = vmatpush.msra.mxu0 0.0
    %2068 = vmatpush.msra.mxu0 0.0
    %2069 = vmatpush.msra.mxu0 0.0
    %2070 = vmatpush.msra.mxu0 0.0
    %v2071 = vand.u32 %v1709, 4294901760
    %2072 = vmatpush.msra.mxu0 %v2071
    %v2073 = vand.u32 %v1702, 4294901760
    %2074 = vmatpush.msra.mxu0 %v2073
    %v2075 = vand.u32 %v1699, 4294901760
    %2076 = vmatpush.msra.mxu0 %v2075
    %v2077 = vand.u32 %v100, 4294901760
    %v2078 = vsub.f32 %v100, %v2077
    %v2079 = vand.u32 %v2078, 4294901760
    %v2080 = vsub.f32 %v2078, %v2079
    %v2081 = vand.u32 %v2080, 4294901760
    %2082 = vmatmul.f32.gmra.mxu0 %v2081
    %v2083 = vpop.f32.mrf.mxu0
    %v2084 = vadd.f32 %v2056, %v2083
    %2085 = vdwg.mxu0
    %2086 = vmatpush.msra.mxu0 0.0
    %2087 = vmatpush.msra.mxu0 0.0
    %2088 = vmatpush.msra.mxu0 0.0
    %2089 = vmatpush.msra.mxu0 0.0
    %2090 = vmatpush.msra.mxu0 0.0
    %2091 = vmatpush.msra.mxu0 0.0
    %2092 = vmatpush.msra.mxu0 0.0
    %2093 = vmatpush.msra.mxu0 0.0
    %2094 = vmatpush.msra.mxu0 0.0
    %2095 = vmatpush.msra.mxu0 0.0
    %2096 = vmatpush.msra.mxu0 0.0
    %2097 = vmatpush.msra.mxu0 0.0
    %2098 = vmatpush.msra.mxu0 0.0
    %v2099 = vand.u32 %v1709, 4294901760
    %v2100 = vsub.f32 %v1709, %v2099
    %v2101 = vand.u32 %v2100, 4294901760
    %v2102 = vsub.f32 %v2100, %v2101
    %v2103 = vand.u32 %v2102, 4294901760
    %2104 = vmatpush.msra.mxu0 %v2103
    %v2105 = vand.u32 %v1702, 4294901760
    %v2106 = vsub.f32 %v1702, %v2105
    %v2107 = vand.u32 %v2106, 4294901760
    %v2108 = vsub.f32 %v2106, %v2107
    %v2109 = vand.u32 %v2108, 4294901760
    %2110 = vmatpush.msra.mxu0 %v2109
    %v2111 = vand.u32 %v1699, 4294901760
    %v2112 = vsub.f32 %v1699, %v2111
    %v2113 = vand.u32 %v2112, 4294901760
    %v2114 = vsub.f32 %v2112, %v2113
    %v2115 = vand.u32 %v2114, 4294901760
    %2116 = vmatpush.msra.mxu0 %v2115
    %v2117 = vand.u32 %v100, 4294901760
    %2118 = vmatmul.f32.gmra.mxu0 %v2117
    %v2119 = vpop.f32.mrf.mxu0
    %v2120 = vadd.f32 %v2084, %v2119
    %2121 = vdwg.mxu0
    %2122 = vmatpush.msra.mxu0 0.0
    %2123 = vmatpush.msra.mxu0 0.0
    %2124 = vmatpush.msra.mxu0 0.0
    %2125 = vmatpush.msra.mxu0 0.0
    %2126 = vmatpush.msra.mxu0 0.0
    %2127 = vmatpush.msra.mxu0 0.0
    %2128 = vmatpush.msra.mxu0 0.0
    %2129 = vmatpush.msra.mxu0 0.0
    %2130 = vmatpush.msra.mxu0 0.0
    %2131 = vmatpush.msra.mxu0 0.0
    %2132 = vmatpush.msra.mxu0 0.0
    %2133 = vmatpush.msra.mxu0 0.0
    %2134 = vmatpush.msra.mxu0 0.0
    %v2135 = vand.u32 %v1709, 4294901760
    %v2136 = vsub.f32 %v1709, %v2135
    %2137 = vmatpush.msra.mxu0 %v2136
    %v2138 = vand.u32 %v1702, 4294901760
    %v2139 = vsub.f32 %v1702, %v2138
    %2140 = vmatpush.msra.mxu0 %v2139
    %v2141 = vand.u32 %v1699, 4294901760
    %v2142 = vsub.f32 %v1699, %v2141
    %2143 = vmatpush.msra.mxu0 %v2142
    %v2144 = vand.u32 %v100, 4294901760
    %v2145 = vsub.f32 %v100, %v2144
    %2146 = vmatmul.f32.gmra.mxu0 %v2145
    %v2147 = vpop.f32.mrf.mxu0
    %v2148 = vadd.f32 %v2120, %v2147
    %2149 = vdwg.mxu0
    %2150 = vmatpush.msra.mxu0 0.0
    %2151 = vmatpush.msra.mxu0 0.0
    %2152 = vmatpush.msra.mxu0 0.0
    %2153 = vmatpush.msra.mxu0 0.0
    %2154 = vmatpush.msra.mxu0 0.0
    %2155 = vmatpush.msra.mxu0 0.0
    %2156 = vmatpush.msra.mxu0 0.0
    %2157 = vmatpush.msra.mxu0 0.0
    %2158 = vmatpush.msra.mxu0 0.0
    %2159 = vmatpush.msra.mxu0 0.0
    %2160 = vmatpush.msra.mxu0 0.0
    %2161 = vmatpush.msra.mxu0 0.0
    %2162 = vmatpush.msra.mxu0 0.0
    %v2163 = vand.u32 %v1709, 4294901760
    %2164 = vmatpush.msra.mxu0 %v2163
    %v2165 = vand.u32 %v1702, 4294901760
    %2166 = vmatpush.msra.mxu0 %v2165
    %v2167 = vand.u32 %v1699, 4294901760
    %2168 = vmatpush.msra.mxu0 %v2167
    %v2169 = vand.u32 %v100, 4294901760
    %v2170 = vsub.f32 %v100, %v2169
    %v2171 = vand.u32 %v2170, 4294901760
    %2172 = vmatmul.f32.gmra.mxu0 %v2171
    %v2173 = vpop.f32.mrf.mxu0
    %v2174 = vadd.f32 %v2148, %v2173
    %2175 = vdwg.mxu0
    %2176 = vmatpush.msra.mxu0 0.0
    %2177 = vmatpush.msra.mxu0 0.0
    %2178 = vmatpush.msra.mxu0 0.0
    %2179 = vmatpush.msra.mxu0 0.0
    %2180 = vmatpush.msra.mxu0 0.0
    %2181 = vmatpush.msra.mxu0 0.0
    %2182 = vmatpush.msra.mxu0 0.0
    %2183 = vmatpush.msra.mxu0 0.0
    %2184 = vmatpush.msra.mxu0 0.0
    %2185 = vmatpush.msra.mxu0 0.0
    %2186 = vmatpush.msra.mxu0 0.0
    %2187 = vmatpush.msra.mxu0 0.0
    %2188 = vmatpush.msra.mxu0 0.0
    %v2189 = vand.u32 %v1709, 4294901760
    %v2190 = vsub.f32 %v1709, %v2189
    %v2191 = vand.u32 %v2190, 4294901760
    %2192 = vmatpush.msra.mxu0 %v2191
    %v2193 = vand.u32 %v1702, 4294901760
    %v2194 = vsub.f32 %v1702, %v2193
    %v2195 = vand.u32 %v2194, 4294901760
    %2196 = vmatpush.msra.mxu0 %v2195
    %v2197 = vand.u32 %v1699, 4294901760
    %v2198 = vsub.f32 %v1699, %v2197
    %v2199 = vand.u32 %v2198, 4294901760
    %2200 = vmatpush.msra.mxu0 %v2199
    %v2201 = vand.u32 %v100, 4294901760
    %2202 = vmatmul.f32.gmra.mxu0 %v2201
    %v2203 = vpop.f32.mrf.mxu0
    %v2204 = vadd.f32 %v2174, %v2203
    %2205 = vdwg.mxu0
    %2206 = vmatpush.msra.mxu0 0.0
    %2207 = vmatpush.msra.mxu0 0.0
    %2208 = vmatpush.msra.mxu0 0.0
    %2209 = vmatpush.msra.mxu0 0.0
    %2210 = vmatpush.msra.mxu0 0.0
    %2211 = vmatpush.msra.mxu0 0.0
    %2212 = vmatpush.msra.mxu0 0.0
    %2213 = vmatpush.msra.mxu0 0.0
    %2214 = vmatpush.msra.mxu0 0.0
    %2215 = vmatpush.msra.mxu0 0.0
    %2216 = vmatpush.msra.mxu0 0.0
    %2217 = vmatpush.msra.mxu0 0.0
    %2218 = vmatpush.msra.mxu0 0.0
    %v2219 = vand.u32 %v1709, 4294901760
    %2220 = vmatpush.msra.mxu0 %v2219
    %v2221 = vand.u32 %v1702, 4294901760
    %2222 = vmatpush.msra.mxu0 %v2221
    %v2223 = vand.u32 %v1699, 4294901760
    %2224 = vmatpush.msra.mxu0 %v2223
    %v2225 = vand.u32 %v100, 4294901760
    %2226 = vmatmul.f32.gmra.mxu0 %v2225
    %v2227 = vpop.f32.mrf.mxu0
    %v2228 = vadd.f32 %v2204, %v2227
    %2229 = vdwg.mxu0
    %v2230 = vand.u32 %v1697, 4294901760
    %2231 = vmatpush.msra.mxu0 %v2230
    %v2232 = vand.u32 %v1694, 4294901760
    %2233 = vmatpush.msra.mxu0 %v2232
    %v2234 = vand.u32 %v1691, 4294901760
    %2235 = vmatpush.msra.mxu0 %v2234
    %v2236 = vand.u32 %v1688, 4294901760
    %2237 = vmatpush.msra.mxu0 %v2236
    %v2238 = vand.u32 %v1685, 4294901760
    %2239 = vmatpush.msra.mxu0 %v2238
    %v2240 = vand.u32 %v1682, 4294901760
    %2241 = vmatpush.msra.mxu0 %v2240
    %v2242 = vand.u32 %v1679, 4294901760
    %2243 = vmatpush.msra.mxu0 %v2242
    %v2244 = vand.u32 %v1676, 4294901760
    %2245 = vmatpush.msra.mxu0 %v2244
    %v2246 = vand.u32 %v1673, 4294901760
    %2247 = vmatpush.msra.mxu0 %v2246
    %v2248 = vand.u32 %v1670, 4294901760
    %2249 = vmatpush.msra.mxu0 %v2248
    %v2250 = vand.u32 %v1667, 4294901760
    %2251 = vmatpush.msra.mxu0 %v2250
    %v2252 = vand.u32 %v1664, 4294901760
    %2253 = vmatpush.msra.mxu0 %v2252
    %v2254 = vand.u32 %v1661, 4294901760
    %2255 = vmatpush.msra.mxu0 %v2254
    %v2256 = vand.u32 %v1658, 4294901760
    %2257 = vmatpush.msra.mxu0 %v2256
    %v2258 = vand.u32 %v1655, 4294901760
    %2259 = vmatpush.msra.mxu0 %v2258
    %v2260 = vand.u32 %v1652, 4294901760
    %2261 = vmatpush.msra.mxu0 %v2260
    %v2262 = vand.u32 %v39, 4294901760
    %v2263 = vsub.f32 %v39, %v2262
    %v2264 = vand.u32 %v2263, 4294901760
    %v2265 = vsub.f32 %v2263, %v2264
    %v2266 = vand.u32 %v2265, 4294901760
    %2267 = vmatmul.f32.gmra.mxu0 %v2266
    %v2268 = vpop.f32.mrf.mxu0
    %v2269 = vadd.f32 0.0, %v2268
    %2270 = vdwg.mxu0
    %v2271 = vand.u32 %v1697, 4294901760
    %v2272 = vsub.f32 %v1697, %v2271
    %v2273 = vand.u32 %v2272, 4294901760
    %v2274 = vsub.f32 %v2272, %v2273
    %v2275 = vand.u32 %v2274, 4294901760
    %2276 = vmatpush.msra.mxu0 %v2275
    %v2277 = vand.u32 %v1694, 4294901760
    %v2278 = vsub.f32 %v1694, %v2277
    %v2279 = vand.u32 %v2278, 4294901760
    %v2280 = vsub.f32 %v2278, %v2279
    %v2281 = vand.u32 %v2280, 4294901760
    %2282 = vmatpush.msra.mxu0 %v2281
    %v2283 = vand.u32 %v1691, 4294901760
    %v2284 = vsub.f32 %v1691, %v2283
    %v2285 = vand.u32 %v2284, 4294901760
    %v2286 = vsub.f32 %v2284, %v2285
    %v2287 = vand.u32 %v2286, 4294901760
    %2288 = vmatpush.msra.mxu0 %v2287
    %v2289 = vand.u32 %v1688, 4294901760
    %v2290 = vsub.f32 %v1688, %v2289
    %v2291 = vand.u32 %v2290, 4294901760
    %v2292 = vsub.f32 %v2290, %v2291
    %v2293 = vand.u32 %v2292, 4294901760
    %2294 = vmatpush.msra.mxu0 %v2293
    %v2295 = vand.u32 %v1685, 4294901760
    %v2296 = vsub.f32 %v1685, %v2295
    %v2297 = vand.u32 %v2296, 4294901760
    %v2298 = vsub.f32 %v2296, %v2297
    %v2299 = vand.u32 %v2298, 4294901760
    %2300 = vmatpush.msra.mxu0 %v2299
    %v2301 = vand.u32 %v1682, 4294901760
    %v2302 = vsub.f32 %v1682, %v2301
    %v2303 = vand.u32 %v2302, 4294901760
    %v2304 = vsub.f32 %v2302, %v2303
    %v2305 = vand.u32 %v2304, 4294901760
    %2306 = vmatpush.msra.mxu0 %v2305
    %v2307 = vand.u32 %v1679, 4294901760
    %v2308 = vsub.f32 %v1679, %v2307
    %v2309 = vand.u32 %v2308, 4294901760
    %v2310 = vsub.f32 %v2308, %v2309
    %v2311 = vand.u32 %v2310, 4294901760
    %2312 = vmatpush.msra.mxu0 %v2311
    %v2313 = vand.u32 %v1676, 4294901760
    %v2314 = vsub.f32 %v1676, %v2313
    %v2315 = vand.u32 %v2314, 4294901760
    %v2316 = vsub.f32 %v2314, %v2315
    %v2317 = vand.u32 %v2316, 4294901760
    %2318 = vmatpush.msra.mxu0 %v2317
    %v2319 = vand.u32 %v1673, 4294901760
    %v2320 = vsub.f32 %v1673, %v2319
    %v2321 = vand.u32 %v2320, 4294901760
    %v2322 = vsub.f32 %v2320, %v2321
    %v2323 = vand.u32 %v2322, 4294901760
    %2324 = vmatpush.msra.mxu0 %v2323
    %v2325 = vand.u32 %v1670, 4294901760
    %v2326 = vsub.f32 %v1670, %v2325
    %v2327 = vand.u32 %v2326, 4294901760
    %v2328 = vsub.f32 %v2326, %v2327
    %v2329 = vand.u32 %v2328, 4294901760
    %2330 = vmatpush.msra.mxu0 %v2329
    %v2331 = vand.u32 %v1667, 4294901760
    %v2332 = vsub.f32 %v1667, %v2331
    %v2333 = vand.u32 %v2332, 4294901760
    %v2334 = vsub.f32 %v2332, %v2333
    %v2335 = vand.u32 %v2334, 4294901760
    %2336 = vmatpush.msra.mxu0 %v2335
    %v2337 = vand.u32 %v1664, 4294901760
    %v2338 = vsub.f32 %v1664, %v2337
    %v2339 = vand.u32 %v2338, 4294901760
    %v2340 = vsub.f32 %v2338, %v2339
    %v2341 = vand.u32 %v2340, 4294901760
    %2342 = vmatpush.msra.mxu0 %v2341
    %v2343 = vand.u32 %v1661, 4294901760
    %v2344 = vsub.f32 %v1661, %v2343
    %v2345 = vand.u32 %v2344, 4294901760
    %v2346 = vsub.f32 %v2344, %v2345
    %v2347 = vand.u32 %v2346, 4294901760
    %2348 = vmatpush.msra.mxu0 %v2347
    %v2349 = vand.u32 %v1658, 4294901760
    %v2350 = vsub.f32 %v1658, %v2349
    %v2351 = vand.u32 %v2350, 4294901760
    %v2352 = vsub.f32 %v2350, %v2351
    %v2353 = vand.u32 %v2352, 4294901760
    %2354 = vmatpush.msra.mxu0 %v2353
    %v2355 = vand.u32 %v1655, 4294901760
    %v2356 = vsub.f32 %v1655, %v2355
    %v2357 = vand.u32 %v2356, 4294901760
    %v2358 = vsub.f32 %v2356, %v2357
    %v2359 = vand.u32 %v2358, 4294901760
    %2360 = vmatpush.msra.mxu0 %v2359
    %v2361 = vand.u32 %v1652, 4294901760
    %v2362 = vsub.f32 %v1652, %v2361
    %v2363 = vand.u32 %v2362, 4294901760
    %v2364 = vsub.f32 %v2362, %v2363
    %v2365 = vand.u32 %v2364, 4294901760
    %2366 = vmatpush.msra.mxu0 %v2365
    %v2367 = vand.u32 %v39, 4294901760
    %2368 = vmatmul.f32.gmra.mxu0 %v2367
    %v2369 = vpop.f32.mrf.mxu0
    %v2370 = vadd.f32 %v2269, %v2369
    %2371 = vdwg.mxu0
    %v2372 = vand.u32 %v1697, 4294901760
    %v2373 = vsub.f32 %v1697, %v2372
    %2374 = vmatpush.msra.mxu0 %v2373
    %v2375 = vand.u32 %v1694, 4294901760
    %v2376 = vsub.f32 %v1694, %v2375
    %2377 = vmatpush.msra.mxu0 %v2376
    %v2378 = vand.u32 %v1691, 4294901760
    %v2379 = vsub.f32 %v1691, %v2378
    %2380 = vmatpush.msra.mxu0 %v2379
    %v2381 = vand.u32 %v1688, 4294901760
    %v2382 = vsub.f32 %v1688, %v2381
    %2383 = vmatpush.msra.mxu0 %v2382
    %v2384 = vand.u32 %v1685, 4294901760
    %v2385 = vsub.f32 %v1685, %v2384
    %2386 = vmatpush.msra.mxu0 %v2385
    %v2387 = vand.u32 %v1682, 4294901760
    %v2388 = vsub.f32 %v1682, %v2387
    %2389 = vmatpush.msra.mxu0 %v2388
    %v2390 = vand.u32 %v1679, 4294901760
    %v2391 = vsub.f32 %v1679, %v2390
    %2392 = vmatpush.msra.mxu0 %v2391
    %v2393 = vand.u32 %v1676, 4294901760
    %v2394 = vsub.f32 %v1676, %v2393
    %2395 = vmatpush.msra.mxu0 %v2394
    %v2396 = vand.u32 %v1673, 4294901760
    %v2397 = vsub.f32 %v1673, %v2396
    %2398 = vmatpush.msra.mxu0 %v2397
    %v2399 = vand.u32 %v1670, 4294901760
    %v2400 = vsub.f32 %v1670, %v2399
    %2401 = vmatpush.msra.mxu0 %v2400
    %v2402 = vand.u32 %v1667, 4294901760
    %v2403 = vsub.f32 %v1667, %v2402
    %2404 = vmatpush.msra.mxu0 %v2403
    %v2405 = vand.u32 %v1664, 4294901760
    %v2406 = vsub.f32 %v1664, %v2405
    %2407 = vmatpush.msra.mxu0 %v2406
    %v2408 = vand.u32 %v1661, 4294901760
    %v2409 = vsub.f32 %v1661, %v2408
    %2410 = vmatpush.msra.mxu0 %v2409
    %v2411 = vand.u32 %v1658, 4294901760
    %v2412 = vsub.f32 %v1658, %v2411
    %2413 = vmatpush.msra.mxu0 %v2412
    %v2414 = vand.u32 %v1655, 4294901760
    %v2415 = vsub.f32 %v1655, %v2414
    %2416 = vmatpush.msra.mxu0 %v2415
    %v2417 = vand.u32 %v1652, 4294901760
    %v2418 = vsub.f32 %v1652, %v2417
    %2419 = vmatpush.msra.mxu0 %v2418
    %v2420 = vand.u32 %v39, 4294901760
    %v2421 = vsub.f32 %v39, %v2420
    %2422 = vmatmul.f32.gmra.mxu0 %v2421
    %v2423 = vpop.f32.mrf.mxu0
    %v2424 = vadd.f32 %v2370, %v2423
    %2425 = vdwg.mxu0
    %v2426 = vand.u32 %v1697, 4294901760
    %2427 = vmatpush.msra.mxu0 %v2426
    %v2428 = vand.u32 %v1694, 4294901760
    %2429 = vmatpush.msra.mxu0 %v2428
    %v2430 = vand.u32 %v1691, 4294901760
    %2431 = vmatpush.msra.mxu0 %v2430
    %v2432 = vand.u32 %v1688, 4294901760
    %2433 = vmatpush.msra.mxu0 %v2432
    %v2434 = vand.u32 %v1685, 4294901760
    %2435 = vmatpush.msra.mxu0 %v2434
    %v2436 = vand.u32 %v1682, 4294901760
    %2437 = vmatpush.msra.mxu0 %v2436
    %v2438 = vand.u32 %v1679, 4294901760
    %2439 = vmatpush.msra.mxu0 %v2438
    %v2440 = vand.u32 %v1676, 4294901760
    %2441 = vmatpush.msra.mxu0 %v2440
    %v2442 = vand.u32 %v1673, 4294901760
    %2443 = vmatpush.msra.mxu0 %v2442
    %v2444 = vand.u32 %v1670, 4294901760
    %2445 = vmatpush.msra.mxu0 %v2444
    %v2446 = vand.u32 %v1667, 4294901760
    %2447 = vmatpush.msra.mxu0 %v2446
    %v2448 = vand.u32 %v1664, 4294901760
    %2449 = vmatpush.msra.mxu0 %v2448
    %v2450 = vand.u32 %v1661, 4294901760
    %2451 = vmatpush.msra.mxu0 %v2450
    %v2452 = vand.u32 %v1658, 4294901760
    %2453 = vmatpush.msra.mxu0 %v2452
    %v2454 = vand.u32 %v1655, 4294901760
    %2455 = vmatpush.msra.mxu0 %v2454
    %v2456 = vand.u32 %v1652, 4294901760
    %2457 = vmatpush.msra.mxu0 %v2456
    %v2458 = vand.u32 %v39, 4294901760
    %v2459 = vsub.f32 %v39, %v2458
    %v2460 = vand.u32 %v2459, 4294901760
    %2461 = vmatmul.f32.gmra.mxu0 %v2460
    %v2462 = vpop.f32.mrf.mxu0
    %v2463 = vadd.f32 %v2424, %v2462
    %2464 = vdwg.mxu0
    %v2465 = vand.u32 %v1697, 4294901760
    %v2466 = vsub.f32 %v1697, %v2465
    %v2467 = vand.u32 %v2466, 4294901760
    %2468 = vmatpush.msra.mxu0 %v2467
    %v2469 = vand.u32 %v1694, 4294901760
    %v2470 = vsub.f32 %v1694, %v2469
    %v2471 = vand.u32 %v2470, 4294901760
    %2472 = vmatpush.msra.mxu0 %v2471
    %v2473 = vand.u32 %v1691, 4294901760
    %v2474 = vsub.f32 %v1691, %v2473
    %v2475 = vand.u32 %v2474, 4294901760
    %2476 = vmatpush.msra.mxu0 %v2475
    %v2477 = vand.u32 %v1688, 4294901760
    %v2478 = vsub.f32 %v1688, %v2477
    %v2479 = vand.u32 %v2478, 4294901760
    %2480 = vmatpush.msra.mxu0 %v2479
    %v2481 = vand.u32 %v1685, 4294901760
    %v2482 = vsub.f32 %v1685, %v2481
    %v2483 = vand.u32 %v2482, 4294901760
    %2484 = vmatpush.msra.mxu0 %v2483
    %v2485 = vand.u32 %v1682, 4294901760
    %v2486 = vsub.f32 %v1682, %v2485
    %v2487 = vand.u32 %v2486, 4294901760
    %2488 = vmatpush.msra.mxu0 %v2487
    %v2489 = vand.u32 %v1679, 4294901760
    %v2490 = vsub.f32 %v1679, %v2489
    %v2491 = vand.u32 %v2490, 4294901760
    %2492 = vmatpush.msra.mxu0 %v2491
    %v2493 = vand.u32 %v1676, 4294901760
    %v2494 = vsub.f32 %v1676, %v2493
    %v2495 = vand.u32 %v2494, 4294901760
    %2496 = vmatpush.msra.mxu0 %v2495
    %v2497 = vand.u32 %v1673, 4294901760
    %v2498 = vsub.f32 %v1673, %v2497
    %v2499 = vand.u32 %v2498, 4294901760
    %2500 = vmatpush.msra.mxu0 %v2499
    %v2501 = vand.u32 %v1670, 4294901760
    %v2502 = vsub.f32 %v1670, %v2501
    %v2503 = vand.u32 %v2502, 4294901760
    %2504 = vmatpush.msra.mxu0 %v2503
    %v2505 = vand.u32 %v1667, 4294901760
    %v2506 = vsub.f32 %v1667, %v2505
    %v2507 = vand.u32 %v2506, 4294901760
    %2508 = vmatpush.msra.mxu0 %v2507
    %v2509 = vand.u32 %v1664, 4294901760
    %v2510 = vsub.f32 %v1664, %v2509
    %v2511 = vand.u32 %v2510, 4294901760
    %2512 = vmatpush.msra.mxu0 %v2511
    %v2513 = vand.u32 %v1661, 4294901760
    %v2514 = vsub.f32 %v1661, %v2513
    %v2515 = vand.u32 %v2514, 4294901760
    %2516 = vmatpush.msra.mxu0 %v2515
    %v2517 = vand.u32 %v1658, 4294901760
    %v2518 = vsub.f32 %v1658, %v2517
    %v2519 = vand.u32 %v2518, 4294901760
    %2520 = vmatpush.msra.mxu0 %v2519
    %v2521 = vand.u32 %v1655, 4294901760
    %v2522 = vsub.f32 %v1655, %v2521
    %v2523 = vand.u32 %v2522, 4294901760
    %2524 = vmatpush.msra.mxu0 %v2523
    %v2525 = vand.u32 %v1652, 4294901760
    %v2526 = vsub.f32 %v1652, %v2525
    %v2527 = vand.u32 %v2526, 4294901760
    %2528 = vmatpush.msra.mxu0 %v2527
    %v2529 = vand.u32 %v39, 4294901760
    %2530 = vmatmul.f32.gmra.mxu0 %v2529
    %v2531 = vpop.f32.mrf.mxu0
    %v2532 = vadd.f32 %v2463, %v2531
    %2533 = vdwg.mxu0
    %v2534 = vand.u32 %v1697, 4294901760
    %2535 = vmatpush.msra.mxu0 %v2534
    %v2536 = vand.u32 %v1694, 4294901760
    %2537 = vmatpush.msra.mxu0 %v2536
    %v2538 = vand.u32 %v1691, 4294901760
    %2539 = vmatpush.msra.mxu0 %v2538
    %v2540 = vand.u32 %v1688, 4294901760
    %2541 = vmatpush.msra.mxu0 %v2540
    %v2542 = vand.u32 %v1685, 4294901760
    %2543 = vmatpush.msra.mxu0 %v2542
    %v2544 = vand.u32 %v1682, 4294901760
    %2545 = vmatpush.msra.mxu0 %v2544
    %v2546 = vand.u32 %v1679, 4294901760
    %2547 = vmatpush.msra.mxu0 %v2546
    %v2548 = vand.u32 %v1676, 4294901760
    %2549 = vmatpush.msra.mxu0 %v2548
    %v2550 = vand.u32 %v1673, 4294901760
    %2551 = vmatpush.msra.mxu0 %v2550
    %v2552 = vand.u32 %v1670, 4294901760
    %2553 = vmatpush.msra.mxu0 %v2552
    %v2554 = vand.u32 %v1667, 4294901760
    %2555 = vmatpush.msra.mxu0 %v2554
    %v2556 = vand.u32 %v1664, 4294901760
    %2557 = vmatpush.msra.mxu0 %v2556
    %v2558 = vand.u32 %v1661, 4294901760
    %2559 = vmatpush.msra.mxu0 %v2558
    %v2560 = vand.u32 %v1658, 4294901760
    %2561 = vmatpush.msra.mxu0 %v2560
    %v2562 = vand.u32 %v1655, 4294901760
    %2563 = vmatpush.msra.mxu0 %v2562
    %v2564 = vand.u32 %v1652, 4294901760
    %2565 = vmatpush.msra.mxu0 %v2564
    %v2566 = vand.u32 %v39, 4294901760
    %2567 = vmatmul.f32.gmra.mxu0 %v2566
    %v2568 = vpop.f32.mrf.mxu0
    %v2569 = vadd.f32 %v2532, %v2568
    %2570 = vdwg.mxu0
    %2571 = vmatpush.msra.mxu0 0.0
    %2572 = vmatpush.msra.mxu0 0.0
    %2573 = vmatpush.msra.mxu0 0.0
    %2574 = vmatpush.msra.mxu0 0.0
    %2575 = vmatpush.msra.mxu0 0.0
    %2576 = vmatpush.msra.mxu0 0.0
    %2577 = vmatpush.msra.mxu0 0.0
    %2578 = vmatpush.msra.mxu0 0.0
    %2579 = vmatpush.msra.mxu0 0.0
    %2580 = vmatpush.msra.mxu0 0.0
    %2581 = vmatpush.msra.mxu0 0.0
    %2582 = vmatpush.msra.mxu0 0.0
    %2583 = vmatpush.msra.mxu0 0.0
    %v2584 = vand.u32 %v1712, 4294901760
    %2585 = vmatpush.msra.mxu0 %v2584
    %v2586 = vand.u32 %v1703, 4294901760
    %2587 = vmatpush.msra.mxu0 %v2586
    %v2588 = vand.u32 %v1700, 4294901760
    %2589 = vmatpush.msra.mxu0 %v2588
    %v2590 = vand.u32 %v100, 4294901760
    %v2591 = vsub.f32 %v100, %v2590
    %v2592 = vand.u32 %v2591, 4294901760
    %v2593 = vsub.f32 %v2591, %v2592
    %v2594 = vand.u32 %v2593, 4294901760
    %2595 = vmatmul.f32.gmra.mxu0 %v2594
    %v2596 = vpop.f32.mrf.mxu0
    %v2597 = vadd.f32 %v2569, %v2596
    %2598 = vdwg.mxu0
    %2599 = vmatpush.msra.mxu0 0.0
    %2600 = vmatpush.msra.mxu0 0.0
    %2601 = vmatpush.msra.mxu0 0.0
    %2602 = vmatpush.msra.mxu0 0.0
    %2603 = vmatpush.msra.mxu0 0.0
    %2604 = vmatpush.msra.mxu0 0.0
    %2605 = vmatpush.msra.mxu0 0.0
    %2606 = vmatpush.msra.mxu0 0.0
    %2607 = vmatpush.msra.mxu0 0.0
    %2608 = vmatpush.msra.mxu0 0.0
    %2609 = vmatpush.msra.mxu0 0.0
    %2610 = vmatpush.msra.mxu0 0.0
    %2611 = vmatpush.msra.mxu0 0.0
    %v2612 = vand.u32 %v1712, 4294901760
    %v2613 = vsub.f32 %v1712, %v2612
    %v2614 = vand.u32 %v2613, 4294901760
    %v2615 = vsub.f32 %v2613, %v2614
    %v2616 = vand.u32 %v2615, 4294901760
    %2617 = vmatpush.msra.mxu0 %v2616
    %v2618 = vand.u32 %v1703, 4294901760
    %v2619 = vsub.f32 %v1703, %v2618
    %v2620 = vand.u32 %v2619, 4294901760
    %v2621 = vsub.f32 %v2619, %v2620
    %v2622 = vand.u32 %v2621, 4294901760
    %2623 = vmatpush.msra.mxu0 %v2622
    %v2624 = vand.u32 %v1700, 4294901760
    %v2625 = vsub.f32 %v1700, %v2624
    %v2626 = vand.u32 %v2625, 4294901760
    %v2627 = vsub.f32 %v2625, %v2626
    %v2628 = vand.u32 %v2627, 4294901760
    %2629 = vmatpush.msra.mxu0 %v2628
    %v2630 = vand.u32 %v100, 4294901760
    %2631 = vmatmul.f32.gmra.mxu0 %v2630
    %v2632 = vpop.f32.mrf.mxu0
    %v2633 = vadd.f32 %v2597, %v2632
    %2634 = vdwg.mxu0
    %2635 = vmatpush.msra.mxu0 0.0
    %2636 = vmatpush.msra.mxu0 0.0
    %2637 = vmatpush.msra.mxu0 0.0
    %2638 = vmatpush.msra.mxu0 0.0
    %2639 = vmatpush.msra.mxu0 0.0
    %2640 = vmatpush.msra.mxu0 0.0
    %2641 = vmatpush.msra.mxu0 0.0
    %2642 = vmatpush.msra.mxu0 0.0
    %2643 = vmatpush.msra.mxu0 0.0
    %2644 = vmatpush.msra.mxu0 0.0
    %2645 = vmatpush.msra.mxu0 0.0
    %2646 = vmatpush.msra.mxu0 0.0
    %2647 = vmatpush.msra.mxu0 0.0
    %v2648 = vand.u32 %v1712, 4294901760
    %v2649 = vsub.f32 %v1712, %v2648
    %2650 = vmatpush.msra.mxu0 %v2649
    %v2651 = vand.u32 %v1703, 4294901760
    %v2652 = vsub.f32 %v1703, %v2651
    %2653 = vmatpush.msra.mxu0 %v2652
    %v2654 = vand.u32 %v1700, 4294901760
    %v2655 = vsub.f32 %v1700, %v2654
    %2656 = vmatpush.msra.mxu0 %v2655
    %v2657 = vand.u32 %v100, 4294901760
    %v2658 = vsub.f32 %v100, %v2657
    %2659 = vmatmul.f32.gmra.mxu0 %v2658
    %v2660 = vpop.f32.mrf.mxu0
    %v2661 = vadd.f32 %v2633, %v2660
    %2662 = vdwg.mxu0
    %2663 = vmatpush.msra.mxu0 0.0
    %2664 = vmatpush.msra.mxu0 0.0
    %2665 = vmatpush.msra.mxu0 0.0
    %2666 = vmatpush.msra.mxu0 0.0
    %2667 = vmatpush.msra.mxu0 0.0
    %2668 = vmatpush.msra.mxu0 0.0
    %2669 = vmatpush.msra.mxu0 0.0
    %2670 = vmatpush.msra.mxu0 0.0
    %2671 = vmatpush.msra.mxu0 0.0
    %2672 = vmatpush.msra.mxu0 0.0
    %2673 = vmatpush.msra.mxu0 0.0
    %2674 = vmatpush.msra.mxu0 0.0
    %2675 = vmatpush.msra.mxu0 0.0
    %v2676 = vand.u32 %v1712, 4294901760
    %2677 = vmatpush.msra.mxu0 %v2676
    %v2678 = vand.u32 %v1703, 4294901760
    %2679 = vmatpush.msra.mxu0 %v2678
    %v2680 = vand.u32 %v1700, 4294901760
    %2681 = vmatpush.msra.mxu0 %v2680
    %v2682 = vand.u32 %v100, 4294901760
    %v2683 = vsub.f32 %v100, %v2682
    %v2684 = vand.u32 %v2683, 4294901760
    %2685 = vmatmul.f32.gmra.mxu0 %v2684
    %v2686 = vpop.f32.mrf.mxu0
    %v2687 = vadd.f32 %v2661, %v2686
    %2688 = vdwg.mxu0
    %2689 = vmatpush.msra.mxu0 0.0
    %2690 = vmatpush.msra.mxu0 0.0
    %2691 = vmatpush.msra.mxu0 0.0
    %2692 = vmatpush.msra.mxu0 0.0
    %2693 = vmatpush.msra.mxu0 0.0
    %2694 = vmatpush.msra.mxu0 0.0
    %2695 = vmatpush.msra.mxu0 0.0
    %2696 = vmatpush.msra.mxu0 0.0
    %2697 = vmatpush.msra.mxu0 0.0
    %2698 = vmatpush.msra.mxu0 0.0
    %2699 = vmatpush.msra.mxu0 0.0
    %2700 = vmatpush.msra.mxu0 0.0
    %2701 = vmatpush.msra.mxu0 0.0
    %v2702 = vand.u32 %v1712, 4294901760
    %v2703 = vsub.f32 %v1712, %v2702
    %v2704 = vand.u32 %v2703, 4294901760
    %2705 = vmatpush.msra.mxu0 %v2704
    %v2706 = vand.u32 %v1703, 4294901760
    %v2707 = vsub.f32 %v1703, %v2706
    %v2708 = vand.u32 %v2707, 4294901760
    %2709 = vmatpush.msra.mxu0 %v2708
    %v2710 = vand.u32 %v1700, 4294901760
    %v2711 = vsub.f32 %v1700, %v2710
    %v2712 = vand.u32 %v2711, 4294901760
    %2713 = vmatpush.msra.mxu0 %v2712
    %v2714 = vand.u32 %v100, 4294901760
    %2715 = vmatmul.f32.gmra.mxu0 %v2714
    %v2716 = vpop.f32.mrf.mxu0
    %v2717 = vadd.f32 %v2687, %v2716
    %2718 = vdwg.mxu0
    %2719 = vmatpush.msra.mxu0 0.0
    %2720 = vmatpush.msra.mxu0 0.0
    %2721 = vmatpush.msra.mxu0 0.0
    %2722 = vmatpush.msra.mxu0 0.0
    %2723 = vmatpush.msra.mxu0 0.0
    %2724 = vmatpush.msra.mxu0 0.0
    %2725 = vmatpush.msra.mxu0 0.0
    %2726 = vmatpush.msra.mxu0 0.0
    %2727 = vmatpush.msra.mxu0 0.0
    %2728 = vmatpush.msra.mxu0 0.0
    %2729 = vmatpush.msra.mxu0 0.0
    %2730 = vmatpush.msra.mxu0 0.0
    %2731 = vmatpush.msra.mxu0 0.0
    %v2732 = vand.u32 %v1712, 4294901760
    %2733 = vmatpush.msra.mxu0 %v2732
    %v2734 = vand.u32 %v1703, 4294901760
    %2735 = vmatpush.msra.mxu0 %v2734
    %v2736 = vand.u32 %v1700, 4294901760
    %2737 = vmatpush.msra.mxu0 %v2736
    %v2738 = vand.u32 %v100, 4294901760
    %2739 = vmatmul.f32.gmra.mxu0 %v2738
    %v2740 = vpop.f32.mrf.mxu0
    %v2741 = vadd.f32 %v2717, %v2740
    %2742 = vdwg.mxu0
    %v2743 = vand.u32 %v1698, 4294901760
    %2744 = vmatpush.msra.mxu0 %v2743
    %v2745 = vand.u32 %v1695, 4294901760
    %2746 = vmatpush.msra.mxu0 %v2745
    %v2747 = vand.u32 %v1692, 4294901760
    %2748 = vmatpush.msra.mxu0 %v2747
    %v2749 = vand.u32 %v1689, 4294901760
    %2750 = vmatpush.msra.mxu0 %v2749
    %v2751 = vand.u32 %v1686, 4294901760
    %2752 = vmatpush.msra.mxu0 %v2751
    %v2753 = vand.u32 %v1683, 4294901760
    %2754 = vmatpush.msra.mxu0 %v2753
    %v2755 = vand.u32 %v1680, 4294901760
    %2756 = vmatpush.msra.mxu0 %v2755
    %v2757 = vand.u32 %v1677, 4294901760
    %2758 = vmatpush.msra.mxu0 %v2757
    %v2759 = vand.u32 %v1674, 4294901760
    %2760 = vmatpush.msra.mxu0 %v2759
    %v2761 = vand.u32 %v1671, 4294901760
    %2762 = vmatpush.msra.mxu0 %v2761
    %v2763 = vand.u32 %v1668, 4294901760
    %2764 = vmatpush.msra.mxu0 %v2763
    %v2765 = vand.u32 %v1665, 4294901760
    %2766 = vmatpush.msra.mxu0 %v2765
    %v2767 = vand.u32 %v1662, 4294901760
    %2768 = vmatpush.msra.mxu0 %v2767
    %v2769 = vand.u32 %v1659, 4294901760
    %2770 = vmatpush.msra.mxu0 %v2769
    %v2771 = vand.u32 %v1656, 4294901760
    %2772 = vmatpush.msra.mxu0 %v2771
    %v2773 = vand.u32 %v1653, 4294901760
    %2774 = vmatpush.msra.mxu0 %v2773
    %v2775 = vand.u32 %v39, 4294901760
    %v2776 = vsub.f32 %v39, %v2775
    %v2777 = vand.u32 %v2776, 4294901760
    %v2778 = vsub.f32 %v2776, %v2777
    %v2779 = vand.u32 %v2778, 4294901760
    %2780 = vmatmul.f32.gmra.mxu0 %v2779
    %v2781 = vpop.f32.mrf.mxu0
    %v2782 = vadd.f32 0.0, %v2781
    %2783 = vdwg.mxu0
    %v2784 = vand.u32 %v1698, 4294901760
    %v2785 = vsub.f32 %v1698, %v2784
    %v2786 = vand.u32 %v2785, 4294901760
    %v2787 = vsub.f32 %v2785, %v2786
    %v2788 = vand.u32 %v2787, 4294901760
    %2789 = vmatpush.msra.mxu0 %v2788
    %v2790 = vand.u32 %v1695, 4294901760
    %v2791 = vsub.f32 %v1695, %v2790
    %v2792 = vand.u32 %v2791, 4294901760
    %v2793 = vsub.f32 %v2791, %v2792
    %v2794 = vand.u32 %v2793, 4294901760
    %2795 = vmatpush.msra.mxu0 %v2794
    %v2796 = vand.u32 %v1692, 4294901760
    %v2797 = vsub.f32 %v1692, %v2796
    %v2798 = vand.u32 %v2797, 4294901760
    %v2799 = vsub.f32 %v2797, %v2798
    %v2800 = vand.u32 %v2799, 4294901760
    %2801 = vmatpush.msra.mxu0 %v2800
    %v2802 = vand.u32 %v1689, 4294901760
    %v2803 = vsub.f32 %v1689, %v2802
    %v2804 = vand.u32 %v2803, 4294901760
    %v2805 = vsub.f32 %v2803, %v2804
    %v2806 = vand.u32 %v2805, 4294901760
    %2807 = vmatpush.msra.mxu0 %v2806
    %v2808 = vand.u32 %v1686, 4294901760
    %v2809 = vsub.f32 %v1686, %v2808
    %v2810 = vand.u32 %v2809, 4294901760
    %v2811 = vsub.f32 %v2809, %v2810
    %v2812 = vand.u32 %v2811, 4294901760
    %2813 = vmatpush.msra.mxu0 %v2812
    %v2814 = vand.u32 %v1683, 4294901760
    %v2815 = vsub.f32 %v1683, %v2814
    %v2816 = vand.u32 %v2815, 4294901760
    %v2817 = vsub.f32 %v2815, %v2816
    %v2818 = vand.u32 %v2817, 4294901760
    %2819 = vmatpush.msra.mxu0 %v2818
    %v2820 = vand.u32 %v1680, 4294901760
    %v2821 = vsub.f32 %v1680, %v2820
    %v2822 = vand.u32 %v2821, 4294901760
    %v2823 = vsub.f32 %v2821, %v2822
    %v2824 = vand.u32 %v2823, 4294901760
    %2825 = vmatpush.msra.mxu0 %v2824
    %v2826 = vand.u32 %v1677, 4294901760
    %v2827 = vsub.f32 %v1677, %v2826
    %v2828 = vand.u32 %v2827, 4294901760
    %v2829 = vsub.f32 %v2827, %v2828
    %v2830 = vand.u32 %v2829, 4294901760
    %2831 = vmatpush.msra.mxu0 %v2830
    %v2832 = vand.u32 %v1674, 4294901760
    %v2833 = vsub.f32 %v1674, %v2832
    %v2834 = vand.u32 %v2833, 4294901760
    %v2835 = vsub.f32 %v2833, %v2834
    %v2836 = vand.u32 %v2835, 4294901760
    %2837 = vmatpush.msra.mxu0 %v2836
    %v2838 = vand.u32 %v1671, 4294901760
    %v2839 = vsub.f32 %v1671, %v2838
    %v2840 = vand.u32 %v2839, 4294901760
    %v2841 = vsub.f32 %v2839, %v2840
    %v2842 = vand.u32 %v2841, 4294901760
    %2843 = vmatpush.msra.mxu0 %v2842
    %v2844 = vand.u32 %v1668, 4294901760
    %v2845 = vsub.f32 %v1668, %v2844
    %v2846 = vand.u32 %v2845, 4294901760
    %v2847 = vsub.f32 %v2845, %v2846
    %v2848 = vand.u32 %v2847, 4294901760
    %2849 = vmatpush.msra.mxu0 %v2848
    %v2850 = vand.u32 %v1665, 4294901760
    %v2851 = vsub.f32 %v1665, %v2850
    %v2852 = vand.u32 %v2851, 4294901760
    %v2853 = vsub.f32 %v2851, %v2852
    %v2854 = vand.u32 %v2853, 4294901760
    %2855 = vmatpush.msra.mxu0 %v2854
    %v2856 = vand.u32 %v1662, 4294901760
    %v2857 = vsub.f32 %v1662, %v2856
    %v2858 = vand.u32 %v2857, 4294901760
    %v2859 = vsub.f32 %v2857, %v2858
    %v2860 = vand.u32 %v2859, 4294901760
    %2861 = vmatpush.msra.mxu0 %v2860
    %v2862 = vand.u32 %v1659, 4294901760
    %v2863 = vsub.f32 %v1659, %v2862
    %v2864 = vand.u32 %v2863, 4294901760
    %v2865 = vsub.f32 %v2863, %v2864
    %v2866 = vand.u32 %v2865, 4294901760
    %2867 = vmatpush.msra.mxu0 %v2866
    %v2868 = vand.u32 %v1656, 4294901760
    %v2869 = vsub.f32 %v1656, %v2868
    %v2870 = vand.u32 %v2869, 4294901760
    %v2871 = vsub.f32 %v2869, %v2870
    %v2872 = vand.u32 %v2871, 4294901760
    %2873 = vmatpush.msra.mxu0 %v2872
    %v2874 = vand.u32 %v1653, 4294901760
    %v2875 = vsub.f32 %v1653, %v2874
    %v2876 = vand.u32 %v2875, 4294901760
    %v2877 = vsub.f32 %v2875, %v2876
    %v2878 = vand.u32 %v2877, 4294901760
    %2879 = vmatpush.msra.mxu0 %v2878
    %v2880 = vand.u32 %v39, 4294901760
    %2881 = vmatmul.f32.gmra.mxu0 %v2880
    %v2882 = vpop.f32.mrf.mxu0
    %v2883 = vadd.f32 %v2782, %v2882
    %2884 = vdwg.mxu0
    %v2885 = vand.u32 %v1698, 4294901760
    %v2886 = vsub.f32 %v1698, %v2885
    %2887 = vmatpush.msra.mxu0 %v2886
    %v2888 = vand.u32 %v1695, 4294901760
    %v2889 = vsub.f32 %v1695, %v2888
    %2890 = vmatpush.msra.mxu0 %v2889
    %v2891 = vand.u32 %v1692, 4294901760
    %v2892 = vsub.f32 %v1692, %v2891
    %2893 = vmatpush.msra.mxu0 %v2892
    %v2894 = vand.u32 %v1689, 4294901760
    %v2895 = vsub.f32 %v1689, %v2894
    %2896 = vmatpush.msra.mxu0 %v2895
    %v2897 = vand.u32 %v1686, 4294901760
    %v2898 = vsub.f32 %v1686, %v2897
    %2899 = vmatpush.msra.mxu0 %v2898
    %v2900 = vand.u32 %v1683, 4294901760
    %v2901 = vsub.f32 %v1683, %v2900
    %2902 = vmatpush.msra.mxu0 %v2901
    %v2903 = vand.u32 %v1680, 4294901760
    %v2904 = vsub.f32 %v1680, %v2903
    %2905 = vmatpush.msra.mxu0 %v2904
    %v2906 = vand.u32 %v1677, 4294901760
    %v2907 = vsub.f32 %v1677, %v2906
    %2908 = vmatpush.msra.mxu0 %v2907
    %v2909 = vand.u32 %v1674, 4294901760
    %v2910 = vsub.f32 %v1674, %v2909
    %2911 = vmatpush.msra.mxu0 %v2910
    %v2912 = vand.u32 %v1671, 4294901760
    %v2913 = vsub.f32 %v1671, %v2912
    %2914 = vmatpush.msra.mxu0 %v2913
    %v2915 = vand.u32 %v1668, 4294901760
    %v2916 = vsub.f32 %v1668, %v2915
    %2917 = vmatpush.msra.mxu0 %v2916
    %v2918 = vand.u32 %v1665, 4294901760
    %v2919 = vsub.f32 %v1665, %v2918
    %2920 = vmatpush.msra.mxu0 %v2919
    %v2921 = vand.u32 %v1662, 4294901760
    %v2922 = vsub.f32 %v1662, %v2921
    %2923 = vmatpush.msra.mxu0 %v2922
    %v2924 = vand.u32 %v1659, 4294901760
    %v2925 = vsub.f32 %v1659, %v2924
    %2926 = vmatpush.msra.mxu0 %v2925
    %v2927 = vand.u32 %v1656, 4294901760
    %v2928 = vsub.f32 %v1656, %v2927
    %2929 = vmatpush.msra.mxu0 %v2928
    %v2930 = vand.u32 %v1653, 4294901760
    %v2931 = vsub.f32 %v1653, %v2930
    %2932 = vmatpush.msra.mxu0 %v2931
    %v2933 = vand.u32 %v39, 4294901760
    %v2934 = vsub.f32 %v39, %v2933
    %2935 = vmatmul.f32.gmra.mxu0 %v2934
    %v2936 = vpop.f32.mrf.mxu0
    %v2937 = vadd.f32 %v2883, %v2936
    %2938 = vdwg.mxu0
    %v2939 = vand.u32 %v1698, 4294901760
    %2940 = vmatpush.msra.mxu0 %v2939
    %v2941 = vand.u32 %v1695, 4294901760
    %2942 = vmatpush.msra.mxu0 %v2941
    %v2943 = vand.u32 %v1692, 4294901760
    %2944 = vmatpush.msra.mxu0 %v2943
    %v2945 = vand.u32 %v1689, 4294901760
    %2946 = vmatpush.msra.mxu0 %v2945
    %v2947 = vand.u32 %v1686, 4294901760
    %2948 = vmatpush.msra.mxu0 %v2947
    %v2949 = vand.u32 %v1683, 4294901760
    %2950 = vmatpush.msra.mxu0 %v2949
    %v2951 = vand.u32 %v1680, 4294901760
    %2952 = vmatpush.msra.mxu0 %v2951
    %v2953 = vand.u32 %v1677, 4294901760
    %2954 = vmatpush.msra.mxu0 %v2953
    %v2955 = vand.u32 %v1674, 4294901760
    %2956 = vmatpush.msra.mxu0 %v2955
    %v2957 = vand.u32 %v1671, 4294901760
    %2958 = vmatpush.msra.mxu0 %v2957
    %v2959 = vand.u32 %v1668, 4294901760
    %2960 = vmatpush.msra.mxu0 %v2959
    %v2961 = vand.u32 %v1665, 4294901760
    %2962 = vmatpush.msra.mxu0 %v2961
    %v2963 = vand.u32 %v1662, 4294901760
    %2964 = vmatpush.msra.mxu0 %v2963
    %v2965 = vand.u32 %v1659, 4294901760
    %2966 = vmatpush.msra.mxu0 %v2965
    %v2967 = vand.u32 %v1656, 4294901760
    %2968 = vmatpush.msra.mxu0 %v2967
    %v2969 = vand.u32 %v1653, 4294901760
    %2970 = vmatpush.msra.mxu0 %v2969
    %v2971 = vand.u32 %v39, 4294901760
    %v2972 = vsub.f32 %v39, %v2971
    %v2973 = vand.u32 %v2972, 4294901760
    %2974 = vmatmul.f32.gmra.mxu0 %v2973
    %v2975 = vpop.f32.mrf.mxu0
    %v2976 = vadd.f32 %v2937, %v2975
    %2977 = vdwg.mxu0
    %v2978 = vand.u32 %v1698, 4294901760
    %v2979 = vsub.f32 %v1698, %v2978
    %v2980 = vand.u32 %v2979, 4294901760
    %2981 = vmatpush.msra.mxu0 %v2980
    %v2982 = vand.u32 %v1695, 4294901760
    %v2983 = vsub.f32 %v1695, %v2982
    %v2984 = vand.u32 %v2983, 4294901760
    %2985 = vmatpush.msra.mxu0 %v2984
    %v2986 = vand.u32 %v1692, 4294901760
    %v2987 = vsub.f32 %v1692, %v2986
    %v2988 = vand.u32 %v2987, 4294901760
    %2989 = vmatpush.msra.mxu0 %v2988
    %v2990 = vand.u32 %v1689, 4294901760
    %v2991 = vsub.f32 %v1689, %v2990
    %v2992 = vand.u32 %v2991, 4294901760
    %2993 = vmatpush.msra.mxu0 %v2992
    %v2994 = vand.u32 %v1686, 4294901760
    %v2995 = vsub.f32 %v1686, %v2994
    %v2996 = vand.u32 %v2995, 4294901760
    %2997 = vmatpush.msra.mxu0 %v2996
    %v2998 = vand.u32 %v1683, 4294901760
    %v2999 = vsub.f32 %v1683, %v2998
    %v3000 = vand.u32 %v2999, 4294901760
    %3001 = vmatpush.msra.mxu0 %v3000
    %v3002 = vand.u32 %v1680, 4294901760
    %v3003 = vsub.f32 %v1680, %v3002
    %v3004 = vand.u32 %v3003, 4294901760
    %3005 = vmatpush.msra.mxu0 %v3004
    %v3006 = vand.u32 %v1677, 4294901760
    %v3007 = vsub.f32 %v1677, %v3006
    %v3008 = vand.u32 %v3007, 4294901760
    %3009 = vmatpush.msra.mxu0 %v3008
    %v3010 = vand.u32 %v1674, 4294901760
    %v3011 = vsub.f32 %v1674, %v3010
    %v3012 = vand.u32 %v3011, 4294901760
    %3013 = vmatpush.msra.mxu0 %v3012
    %v3014 = vand.u32 %v1671, 4294901760
    %v3015 = vsub.f32 %v1671, %v3014
    %v3016 = vand.u32 %v3015, 4294901760
    %3017 = vmatpush.msra.mxu0 %v3016
    %v3018 = vand.u32 %v1668, 4294901760
    %v3019 = vsub.f32 %v1668, %v3018
    %v3020 = vand.u32 %v3019, 4294901760
    %3021 = vmatpush.msra.mxu0 %v3020
    %v3022 = vand.u32 %v1665, 4294901760
    %v3023 = vsub.f32 %v1665, %v3022
    %v3024 = vand.u32 %v3023, 4294901760
    %3025 = vmatpush.msra.mxu0 %v3024
    %v3026 = vand.u32 %v1662, 4294901760
    %v3027 = vsub.f32 %v1662, %v3026
    %v3028 = vand.u32 %v3027, 4294901760
    %3029 = vmatpush.msra.mxu0 %v3028
    %v3030 = vand.u32 %v1659, 4294901760
    %v3031 = vsub.f32 %v1659, %v3030
    %v3032 = vand.u32 %v3031, 4294901760
    %3033 = vmatpush.msra.mxu0 %v3032
    %v3034 = vand.u32 %v1656, 4294901760
    %v3035 = vsub.f32 %v1656, %v3034
    %v3036 = vand.u32 %v3035, 4294901760
    %3037 = vmatpush.msra.mxu0 %v3036
    %v3038 = vand.u32 %v1653, 4294901760
    %v3039 = vsub.f32 %v1653, %v3038
    %v3040 = vand.u32 %v3039, 4294901760
    %3041 = vmatpush.msra.mxu0 %v3040
    %v3042 = vand.u32 %v39, 4294901760
    %3043 = vmatmul.f32.gmra.mxu0 %v3042
    %v3044 = vpop.f32.mrf.mxu0
    %v3045 = vadd.f32 %v2976, %v3044
    %3046 = vdwg.mxu0
    %v3047 = vand.u32 %v1698, 4294901760
    %3048 = vmatpush.msra.mxu0 %v3047
    %v3049 = vand.u32 %v1695, 4294901760
    %3050 = vmatpush.msra.mxu0 %v3049
    %v3051 = vand.u32 %v1692, 4294901760
    %3052 = vmatpush.msra.mxu0 %v3051
    %v3053 = vand.u32 %v1689, 4294901760
    %3054 = vmatpush.msra.mxu0 %v3053
    %v3055 = vand.u32 %v1686, 4294901760
    %3056 = vmatpush.msra.mxu0 %v3055
    %v3057 = vand.u32 %v1683, 4294901760
    %3058 = vmatpush.msra.mxu0 %v3057
    %v3059 = vand.u32 %v1680, 4294901760
    %3060 = vmatpush.msra.mxu0 %v3059
    %v3061 = vand.u32 %v1677, 4294901760
    %3062 = vmatpush.msra.mxu0 %v3061
    %v3063 = vand.u32 %v1674, 4294901760
    %3064 = vmatpush.msra.mxu0 %v3063
    %v3065 = vand.u32 %v1671, 4294901760
    %3066 = vmatpush.msra.mxu0 %v3065
    %v3067 = vand.u32 %v1668, 4294901760
    %3068 = vmatpush.msra.mxu0 %v3067
    %v3069 = vand.u32 %v1665, 4294901760
    %3070 = vmatpush.msra.mxu0 %v3069
    %v3071 = vand.u32 %v1662, 4294901760
    %3072 = vmatpush.msra.mxu0 %v3071
    %v3073 = vand.u32 %v1659, 4294901760
    %3074 = vmatpush.msra.mxu0 %v3073
    %v3075 = vand.u32 %v1656, 4294901760
    %3076 = vmatpush.msra.mxu0 %v3075
    %v3077 = vand.u32 %v1653, 4294901760
    %3078 = vmatpush.msra.mxu0 %v3077
    %v3079 = vand.u32 %v39, 4294901760
    %3080 = vmatmul.f32.gmra.mxu0 %v3079
    %v3081 = vpop.f32.mrf.mxu0
    %v3082 = vadd.f32 %v3045, %v3081
    %3083 = vdwg.mxu0
    %3084 = vmatpush.msra.mxu0 0.0
    %3085 = vmatpush.msra.mxu0 0.0
    %3086 = vmatpush.msra.mxu0 0.0
    %3087 = vmatpush.msra.mxu0 0.0
    %3088 = vmatpush.msra.mxu0 0.0
    %3089 = vmatpush.msra.mxu0 0.0
    %3090 = vmatpush.msra.mxu0 0.0
    %3091 = vmatpush.msra.mxu0 0.0
    %3092 = vmatpush.msra.mxu0 0.0
    %3093 = vmatpush.msra.mxu0 0.0
    %3094 = vmatpush.msra.mxu0 0.0
    %3095 = vmatpush.msra.mxu0 0.0
    %3096 = vmatpush.msra.mxu0 0.0
    %v3097 = vand.u32 %v1715, 4294901760
    %3098 = vmatpush.msra.mxu0 %v3097
    %v3099 = vand.u32 %v1704, 4294901760
    %3100 = vmatpush.msra.mxu0 %v3099
    %v3101 = vand.u32 %v1701, 4294901760
    %3102 = vmatpush.msra.mxu0 %v3101
    %v3103 = vand.u32 %v100, 4294901760
    %v3104 = vsub.f32 %v100, %v3103
    %v3105 = vand.u32 %v3104, 4294901760
    %v3106 = vsub.f32 %v3104, %v3105
    %v3107 = vand.u32 %v3106, 4294901760
    %3108 = vmatmul.f32.gmra.mxu0 %v3107
    %v3109 = vpop.f32.mrf.mxu0
    %v3110 = vadd.f32 %v3082, %v3109
    %3111 = vdwg.mxu0
    %3112 = vmatpush.msra.mxu0 0.0
    %3113 = vmatpush.msra.mxu0 0.0
    %3114 = vmatpush.msra.mxu0 0.0
    %3115 = vmatpush.msra.mxu0 0.0
    %3116 = vmatpush.msra.mxu0 0.0
    %3117 = vmatpush.msra.mxu0 0.0
    %3118 = vmatpush.msra.mxu0 0.0
    %3119 = vmatpush.msra.mxu0 0.0
    %3120 = vmatpush.msra.mxu0 0.0
    %3121 = vmatpush.msra.mxu0 0.0
    %3122 = vmatpush.msra.mxu0 0.0
    %3123 = vmatpush.msra.mxu0 0.0
    %3124 = vmatpush.msra.mxu0 0.0
    %v3125 = vand.u32 %v1715, 4294901760
    %v3126 = vsub.f32 %v1715, %v3125
    %v3127 = vand.u32 %v3126, 4294901760
    %v3128 = vsub.f32 %v3126, %v3127
    %v3129 = vand.u32 %v3128, 4294901760
    %3130 = vmatpush.msra.mxu0 %v3129
    %v3131 = vand.u32 %v1704, 4294901760
    %v3132 = vsub.f32 %v1704, %v3131
    %v3133 = vand.u32 %v3132, 4294901760
    %v3134 = vsub.f32 %v3132, %v3133
    %v3135 = vand.u32 %v3134, 4294901760
    %3136 = vmatpush.msra.mxu0 %v3135
    %v3137 = vand.u32 %v1701, 4294901760
    %v3138 = vsub.f32 %v1701, %v3137
    %v3139 = vand.u32 %v3138, 4294901760
    %v3140 = vsub.f32 %v3138, %v3139
    %v3141 = vand.u32 %v3140, 4294901760
    %3142 = vmatpush.msra.mxu0 %v3141
    %v3143 = vand.u32 %v100, 4294901760
    %3144 = vmatmul.f32.gmra.mxu0 %v3143
    %v3145 = vpop.f32.mrf.mxu0
    %v3146 = vadd.f32 %v3110, %v3145
    %3147 = vdwg.mxu0
    %3148 = vmatpush.msra.mxu0 0.0
    %3149 = vmatpush.msra.mxu0 0.0
    %3150 = vmatpush.msra.mxu0 0.0
    %3151 = vmatpush.msra.mxu0 0.0
    %3152 = vmatpush.msra.mxu0 0.0
    %3153 = vmatpush.msra.mxu0 0.0
    %3154 = vmatpush.msra.mxu0 0.0
    %3155 = vmatpush.msra.mxu0 0.0
    %3156 = vmatpush.msra.mxu0 0.0
    %3157 = vmatpush.msra.mxu0 0.0
    %3158 = vmatpush.msra.mxu0 0.0
    %3159 = vmatpush.msra.mxu0 0.0
    %3160 = vmatpush.msra.mxu0 0.0
    %v3161 = vand.u32 %v1715, 4294901760
    %v3162 = vsub.f32 %v1715, %v3161
    %3163 = vmatpush.msra.mxu0 %v3162
    %v3164 = vand.u32 %v1704, 4294901760
    %v3165 = vsub.f32 %v1704, %v3164
    %3166 = vmatpush.msra.mxu0 %v3165
    %v3167 = vand.u32 %v1701, 4294901760
    %v3168 = vsub.f32 %v1701, %v3167
    %3169 = vmatpush.msra.mxu0 %v3168
    %v3170 = vand.u32 %v100, 4294901760
    %v3171 = vsub.f32 %v100, %v3170
    %3172 = vmatmul.f32.gmra.mxu0 %v3171
    %v3173 = vpop.f32.mrf.mxu0
    %v3174 = vadd.f32 %v3146, %v3173
    %3175 = vdwg.mxu0
    %3176 = vmatpush.msra.mxu0 0.0
    %3177 = vmatpush.msra.mxu0 0.0
    %3178 = vmatpush.msra.mxu0 0.0
    %3179 = vmatpush.msra.mxu0 0.0
    %3180 = vmatpush.msra.mxu0 0.0
    %3181 = vmatpush.msra.mxu0 0.0
    %3182 = vmatpush.msra.mxu0 0.0
    %3183 = vmatpush.msra.mxu0 0.0
    %3184 = vmatpush.msra.mxu0 0.0
    %3185 = vmatpush.msra.mxu0 0.0
    %3186 = vmatpush.msra.mxu0 0.0
    %3187 = vmatpush.msra.mxu0 0.0
    %3188 = vmatpush.msra.mxu0 0.0
    %v3189 = vand.u32 %v1715, 4294901760
    %3190 = vmatpush.msra.mxu0 %v3189
    %v3191 = vand.u32 %v1704, 4294901760
    %3192 = vmatpush.msra.mxu0 %v3191
    %v3193 = vand.u32 %v1701, 4294901760
    %3194 = vmatpush.msra.mxu0 %v3193
    %v3195 = vand.u32 %v100, 4294901760
    %v3196 = vsub.f32 %v100, %v3195
    %v3197 = vand.u32 %v3196, 4294901760
    %3198 = vmatmul.f32.gmra.mxu0 %v3197
    %v3199 = vpop.f32.mrf.mxu0
    %v3200 = vadd.f32 %v3174, %v3199
    %3201 = vdwg.mxu0
    %3202 = vmatpush.msra.mxu0 0.0
    %3203 = vmatpush.msra.mxu0 0.0
    %3204 = vmatpush.msra.mxu0 0.0
    %3205 = vmatpush.msra.mxu0 0.0
    %3206 = vmatpush.msra.mxu0 0.0
    %3207 = vmatpush.msra.mxu0 0.0
    %3208 = vmatpush.msra.mxu0 0.0
    %3209 = vmatpush.msra.mxu0 0.0
    %3210 = vmatpush.msra.mxu0 0.0
    %3211 = vmatpush.msra.mxu0 0.0
    %3212 = vmatpush.msra.mxu0 0.0
    %3213 = vmatpush.msra.mxu0 0.0
    %3214 = vmatpush.msra.mxu0 0.0
    %v3215 = vand.u32 %v1715, 4294901760
    %v3216 = vsub.f32 %v1715, %v3215
    %v3217 = vand.u32 %v3216, 4294901760
    %3218 = vmatpush.msra.mxu0 %v3217
    %v3219 = vand.u32 %v1704, 4294901760
    %v3220 = vsub.f32 %v1704, %v3219
    %v3221 = vand.u32 %v3220, 4294901760
    %3222 = vmatpush.msra.mxu0 %v3221
    %v3223 = vand.u32 %v1701, 4294901760
    %v3224 = vsub.f32 %v1701, %v3223
    %v3225 = vand.u32 %v3224, 4294901760
    %3226 = vmatpush.msra.mxu0 %v3225
    %v3227 = vand.u32 %v100, 4294901760
    %3228 = vmatmul.f32.gmra.mxu0 %v3227
    %v3229 = vpop.f32.mrf.mxu0
    %v3230 = vadd.f32 %v3200, %v3229
    %3231 = vdwg.mxu0
    %3232 = vmatpush.msra.mxu0 0.0
    %3233 = vmatpush.msra.mxu0 0.0
    %3234 = vmatpush.msra.mxu0 0.0
    %3235 = vmatpush.msra.mxu0 0.0
    %3236 = vmatpush.msra.mxu0 0.0
    %3237 = vmatpush.msra.mxu0 0.0
    %3238 = vmatpush.msra.mxu0 0.0
    %3239 = vmatpush.msra.mxu0 0.0
    %3240 = vmatpush.msra.mxu0 0.0
    %3241 = vmatpush.msra.mxu0 0.0
    %3242 = vmatpush.msra.mxu0 0.0
    %3243 = vmatpush.msra.mxu0 0.0
    %3244 = vmatpush.msra.mxu0 0.0
    %v3245 = vand.u32 %v1715, 4294901760
    %3246 = vmatpush.msra.mxu0 %v3245
    %v3247 = vand.u32 %v1704, 4294901760
    %3248 = vmatpush.msra.mxu0 %v3247
    %v3249 = vand.u32 %v1701, 4294901760
    %3250 = vmatpush.msra.mxu0 %v3249
    %v3251 = vand.u32 %v100, 4294901760
    %3252 = vmatmul.f32.gmra.mxu0 %v3251
    %v3253 = vpop.f32.mrf.mxu0
    %v3254 = vadd.f32 %v3230, %v3253
    %3255 = vdwg.mxu0
    %v3256 = vmax.f32 %v623, %v2228
    %v3257 = vmax.f32 %v1136, %v2741
    %v3258 = vmax.f32 %v1649, %v3254
    %v3259 = vld [vmem:[%s3] sm:$0x7]
    %v3261 = vperm.slane %v3259, 0
    %v3262 = vperm.slane %v3259, 1
    %v3263 = vperm.slane %v3259, 2
    %v3267 = vadd.f32 %v3256, %v3261
    %v3268 = vadd.f32 %v3257, %v3262
    %v3269 = vadd.f32 %v3258, %v3263
    %v3270 = vld [vmem:[%s4] sm:$0xff]
    %v3271 = vld [vmem:[%s4 + $0x8] sm:$0xff]
    %v3272 = vld [vmem:[%s4 + $0x10] sm:$0xff]
    %v3273 = vld [vmem:[%s4 + $0x18] sm:$0xff]
    %v3274 = vld [vmem:[%s4 + $0x20] sm:$0xff]
    %v3275 = vld [vmem:[%s4 + $0x28] sm:$0xff]
    %v3276 = vld [vmem:[%s4 + $0x30] sm:$0xff]
    %v3277 = vld [vmem:[%s4 + $0x38] sm:$0xff]
    %v3278 = vld [vmem:[%s4 + $0x40] sm:$0xff]
    %v3279 = vld [vmem:[%s4 + $0x48] sm:$0xff]
    %v3280 = vld [vmem:[%s4 + $0x50] sm:$0xff]
    %v3281 = vld [vmem:[%s4 + $0x58] sm:$0xff]
    %v3282 = vld [vmem:[%s4 + $0x60] sm:$0xff]
    %v3283 = vld [vmem:[%s4 + $0x68] sm:$0xff]
    %v3284 = vld [vmem:[%s4 + $0x70] sm:$0xff]
    %v3285 = vld [vmem:[%s4 + $0x78] sm:$0xff]
    %v3286 = vld [vmem:[%s4 + $0x80] sm:$0xff]
    %v3287 = vld [vmem:[%s4 + $0x88] sm:$0xff]
    %v3288 = vld [vmem:[%s4 + $0x90] sm:$0xff]
    %v3289 = vld [vmem:[%s4 + $0x98] sm:$0xff]
    %v3290 = vld [vmem:[%s4 + $0xa0] sm:$0xff]
    %v3291 = vld [vmem:[%s4 + $0xa8] sm:$0xff]
    %v3292 = vld [vmem:[%s4 + $0xb0] sm:$0xff]
    %v3293 = vld [vmem:[%s4 + $0xb8] sm:$0xff]
    %v3294 = vld [vmem:[%s4 + $0xc0] sm:$0xff]
    %v3295 = vld [vmem:[%s4 + $0xc8] sm:$0xff]
    %v3296 = vld [vmem:[%s4 + $0xd0] sm:$0xff]
    %v3297 = vld [vmem:[%s4 + $0xd8] sm:$0xff]
    %v3298 = vld [vmem:[%s4 + $0xe0] sm:$0xff]
    %v3299 = vld [vmem:[%s4 + $0xe8] sm:$0xff]
    %v3300 = vld [vmem:[%s4 + $0xf0] sm:$0xff]
    %v3301 = vld [vmem:[%s4 + $0xf8] sm:$0xff]
    %v3302 = vld [vmem:[%s4 + $0x100] sm:$0xff]
    %v3303 = vld [vmem:[%s4 + $0x108] sm:$0xff]
    %v3304 = vld [vmem:[%s4 + $0x110] sm:$0xff]
    %v3305 = vld [vmem:[%s4 + $0x118] sm:$0xff]
    %v3306 = vld [vmem:[%s4 + $0x120] sm:$0xff]
    %v3307 = vld [vmem:[%s4 + $0x128] sm:$0xff]
    %v3308 = vld [vmem:[%s4 + $0x130] sm:$0xff]
    %v3309 = vld [vmem:[%s4 + $0x138] sm:$0xff]
    %v3310 = vld [vmem:[%s4 + $0x140] sm:$0xff]
    %v3311 = vld [vmem:[%s4 + $0x148] sm:$0xff]
    %v3312 = vld [vmem:[%s4 + $0x150] sm:$0xff]
    %v3313 = vld [vmem:[%s4 + $0x158] sm:$0xff]
    %v3314 = vld [vmem:[%s4 + $0x160] sm:$0xff]
    %v3315 = vld [vmem:[%s4 + $0x168] sm:$0xff]
    %v3316 = vld [vmem:[%s4 + $0x170] sm:$0xff]
    %v3317 = vld [vmem:[%s4 + $0x178] sm:$0xff]
    %v3318 = vld [vmem:[%s4 + $0x180] sm:$0xff]
    %v3319 = vld [vmem:[%s4 + $0x188] sm:$0xff]
    %v3320 = vld [vmem:[%s4 + $0x190] sm:$0xff]
    %v3321 = vld [vmem:[%s4 + $0x198] sm:$0xff]
    %v3322 = vld [vmem:[%s4 + $0x1a0] sm:$0xff]
    %v3323 = vld [vmem:[%s4 + $0x1a8] sm:$0xff]
    %v3324 = vld [vmem:[%s4 + $0x1b0] sm:$0xff]
    %v3325 = vld [vmem:[%s4 + $0x1b8] sm:$0xff]
    %v3326 = vld [vmem:[%s4 + $0x1c0] sm:$0xff]
    %v3327 = vld [vmem:[%s4 + $0x1c8] sm:$0xff]
    %v3328 = vld [vmem:[%s4 + $0x1d0] sm:$0xff]
    %v3329 = vld [vmem:[%s4 + $0x1d8] sm:$0xff]
    %v3330 = vld [vmem:[%s4 + $0x1e0] sm:$0xff]
    %v3331 = vld [vmem:[%s4 + $0x1e8] sm:$0xff]
    %v3332 = vld [vmem:[%s4 + $0x1f0] sm:$0xff]
    %v3333 = vld [vmem:[%s4 + $0x1f8] sm:$0xff]
    %v3334 = vld [vmem:[%s4 + $0x200] sm:$0xff]
    %v3335 = vld [vmem:[%s4 + $0x208] sm:$0xff]
    %v3336 = vld [vmem:[%s4 + $0x210] sm:$0xff]
    %v3337 = vld [vmem:[%s4 + $0x218] sm:$0xff]
    %v3338 = vld [vmem:[%s4 + $0x220] sm:$0xff]
    %v3339 = vld [vmem:[%s4 + $0x228] sm:$0xff]
    %v3340 = vld [vmem:[%s4 + $0x230] sm:$0xff]
    %v3341 = vld [vmem:[%s4 + $0x238] sm:$0xff]
    %vm3342 = vcmask 261120
    %v3344 = vsel %vm3342, %v3269, 0
    %v3346 = vand.u32 %v3300, 4294901760
    %3347 = vmatpush.msra.mxu0 %v3346
    %v3348 = vand.u32 %v3298, 4294901760
    %3349 = vmatpush.msra.mxu0 %v3348
    %v3350 = vand.u32 %v3296, 4294901760
    %3351 = vmatpush.msra.mxu0 %v3350
    %v3352 = vand.u32 %v3294, 4294901760
    %3353 = vmatpush.msra.mxu0 %v3352
    %v3354 = vand.u32 %v3292, 4294901760
    %3355 = vmatpush.msra.mxu0 %v3354
    %v3356 = vand.u32 %v3290, 4294901760
    %3357 = vmatpush.msra.mxu0 %v3356
    %v3358 = vand.u32 %v3288, 4294901760
    %3359 = vmatpush.msra.mxu0 %v3358
    %v3360 = vand.u32 %v3286, 4294901760
    %3361 = vmatpush.msra.mxu0 %v3360
    %v3362 = vand.u32 %v3284, 4294901760
    %3363 = vmatpush.msra.mxu0 %v3362
    %v3364 = vand.u32 %v3282, 4294901760
    %3365 = vmatpush.msra.mxu0 %v3364
    %v3366 = vand.u32 %v3280, 4294901760
    %3367 = vmatpush.msra.mxu0 %v3366
    %v3368 = vand.u32 %v3278, 4294901760
    %3369 = vmatpush.msra.mxu0 %v3368
    %v3370 = vand.u32 %v3276, 4294901760
    %3371 = vmatpush.msra.mxu0 %v3370
    %v3372 = vand.u32 %v3274, 4294901760
    %3373 = vmatpush.msra.mxu0 %v3372
    %v3374 = vand.u32 %v3272, 4294901760
    %3375 = vmatpush.msra.mxu0 %v3374
    %v3376 = vand.u32 %v3270, 4294901760
    %3377 = vmatpush.msra.mxu0 %v3376
    %v3378 = vand.u32 %v3267, 4294901760
    %v3379 = vsub.f32 %v3267, %v3378
    %v3380 = vand.u32 %v3379, 4294901760
    %v3381 = vsub.f32 %v3379, %v3380
    %v3382 = vand.u32 %v3381, 4294901760
    %3383 = vmatmul.f32.gmra.mxu0 %v3382
    %v3384 = vpop.f32.mrf.mxu0
    %v3385 = vadd.f32 0.0, %v3384
    %3386 = vdwg.mxu0
    %v3387 = vand.u32 %v3300, 4294901760
    %v3388 = vsub.f32 %v3300, %v3387
    %v3389 = vand.u32 %v3388, 4294901760
    %v3390 = vsub.f32 %v3388, %v3389
    %v3391 = vand.u32 %v3390, 4294901760
    %3392 = vmatpush.msra.mxu0 %v3391
    %v3393 = vand.u32 %v3298, 4294901760
    %v3394 = vsub.f32 %v3298, %v3393
    %v3395 = vand.u32 %v3394, 4294901760
    %v3396 = vsub.f32 %v3394, %v3395
    %v3397 = vand.u32 %v3396, 4294901760
    %3398 = vmatpush.msra.mxu0 %v3397
    %v3399 = vand.u32 %v3296, 4294901760
    %v3400 = vsub.f32 %v3296, %v3399
    %v3401 = vand.u32 %v3400, 4294901760
    %v3402 = vsub.f32 %v3400, %v3401
    %v3403 = vand.u32 %v3402, 4294901760
    %3404 = vmatpush.msra.mxu0 %v3403
    %v3405 = vand.u32 %v3294, 4294901760
    %v3406 = vsub.f32 %v3294, %v3405
    %v3407 = vand.u32 %v3406, 4294901760
    %v3408 = vsub.f32 %v3406, %v3407
    %v3409 = vand.u32 %v3408, 4294901760
    %3410 = vmatpush.msra.mxu0 %v3409
    %v3411 = vand.u32 %v3292, 4294901760
    %v3412 = vsub.f32 %v3292, %v3411
    %v3413 = vand.u32 %v3412, 4294901760
    %v3414 = vsub.f32 %v3412, %v3413
    %v3415 = vand.u32 %v3414, 4294901760
    %3416 = vmatpush.msra.mxu0 %v3415
    %v3417 = vand.u32 %v3290, 4294901760
    %v3418 = vsub.f32 %v3290, %v3417
    %v3419 = vand.u32 %v3418, 4294901760
    %v3420 = vsub.f32 %v3418, %v3419
    %v3421 = vand.u32 %v3420, 4294901760
    %3422 = vmatpush.msra.mxu0 %v3421
    %v3423 = vand.u32 %v3288, 4294901760
    %v3424 = vsub.f32 %v3288, %v3423
    %v3425 = vand.u32 %v3424, 4294901760
    %v3426 = vsub.f32 %v3424, %v3425
    %v3427 = vand.u32 %v3426, 4294901760
    %3428 = vmatpush.msra.mxu0 %v3427
    %v3429 = vand.u32 %v3286, 4294901760
    %v3430 = vsub.f32 %v3286, %v3429
    %v3431 = vand.u32 %v3430, 4294901760
    %v3432 = vsub.f32 %v3430, %v3431
    %v3433 = vand.u32 %v3432, 4294901760
    %3434 = vmatpush.msra.mxu0 %v3433
    %v3435 = vand.u32 %v3284, 4294901760
    %v3436 = vsub.f32 %v3284, %v3435
    %v3437 = vand.u32 %v3436, 4294901760
    %v3438 = vsub.f32 %v3436, %v3437
    %v3439 = vand.u32 %v3438, 4294901760
    %3440 = vmatpush.msra.mxu0 %v3439
    %v3441 = vand.u32 %v3282, 4294901760
    %v3442 = vsub.f32 %v3282, %v3441
    %v3443 = vand.u32 %v3442, 4294901760
    %v3444 = vsub.f32 %v3442, %v3443
    %v3445 = vand.u32 %v3444, 4294901760
    %3446 = vmatpush.msra.mxu0 %v3445
    %v3447 = vand.u32 %v3280, 4294901760
    %v3448 = vsub.f32 %v3280, %v3447
    %v3449 = vand.u32 %v3448, 4294901760
    %v3450 = vsub.f32 %v3448, %v3449
    %v3451 = vand.u32 %v3450, 4294901760
    %3452 = vmatpush.msra.mxu0 %v3451
    %v3453 = vand.u32 %v3278, 4294901760
    %v3454 = vsub.f32 %v3278, %v3453
    %v3455 = vand.u32 %v3454, 4294901760
    %v3456 = vsub.f32 %v3454, %v3455
    %v3457 = vand.u32 %v3456, 4294901760
    %3458 = vmatpush.msra.mxu0 %v3457
    %v3459 = vand.u32 %v3276, 4294901760
    %v3460 = vsub.f32 %v3276, %v3459
    %v3461 = vand.u32 %v3460, 4294901760
    %v3462 = vsub.f32 %v3460, %v3461
    %v3463 = vand.u32 %v3462, 4294901760
    %3464 = vmatpush.msra.mxu0 %v3463
    %v3465 = vand.u32 %v3274, 4294901760
    %v3466 = vsub.f32 %v3274, %v3465
    %v3467 = vand.u32 %v3466, 4294901760
    %v3468 = vsub.f32 %v3466, %v3467
    %v3469 = vand.u32 %v3468, 4294901760
    %3470 = vmatpush.msra.mxu0 %v3469
    %v3471 = vand.u32 %v3272, 4294901760
    %v3472 = vsub.f32 %v3272, %v3471
    %v3473 = vand.u32 %v3472, 4294901760
    %v3474 = vsub.f32 %v3472, %v3473
    %v3475 = vand.u32 %v3474, 4294901760
    %3476 = vmatpush.msra.mxu0 %v3475
    %v3477 = vand.u32 %v3270, 4294901760
    %v3478 = vsub.f32 %v3270, %v3477
    %v3479 = vand.u32 %v3478, 4294901760
    %v3480 = vsub.f32 %v3478, %v3479
    %v3481 = vand.u32 %v3480, 4294901760
    %3482 = vmatpush.msra.mxu0 %v3481
    %v3483 = vand.u32 %v3267, 4294901760
    %3484 = vmatmul.f32.gmra.mxu0 %v3483
    %v3485 = vpop.f32.mrf.mxu0
    %v3486 = vadd.f32 %v3385, %v3485
    %3487 = vdwg.mxu0
    %v3488 = vand.u32 %v3300, 4294901760
    %v3489 = vsub.f32 %v3300, %v3488
    %3490 = vmatpush.msra.mxu0 %v3489
    %v3491 = vand.u32 %v3298, 4294901760
    %v3492 = vsub.f32 %v3298, %v3491
    %3493 = vmatpush.msra.mxu0 %v3492
    %v3494 = vand.u32 %v3296, 4294901760
    %v3495 = vsub.f32 %v3296, %v3494
    %3496 = vmatpush.msra.mxu0 %v3495
    %v3497 = vand.u32 %v3294, 4294901760
    %v3498 = vsub.f32 %v3294, %v3497
    %3499 = vmatpush.msra.mxu0 %v3498
    %v3500 = vand.u32 %v3292, 4294901760
    %v3501 = vsub.f32 %v3292, %v3500
    %3502 = vmatpush.msra.mxu0 %v3501
    %v3503 = vand.u32 %v3290, 4294901760
    %v3504 = vsub.f32 %v3290, %v3503
    %3505 = vmatpush.msra.mxu0 %v3504
    %v3506 = vand.u32 %v3288, 4294901760
    %v3507 = vsub.f32 %v3288, %v3506
    %3508 = vmatpush.msra.mxu0 %v3507
    %v3509 = vand.u32 %v3286, 4294901760
    %v3510 = vsub.f32 %v3286, %v3509
    %3511 = vmatpush.msra.mxu0 %v3510
    %v3512 = vand.u32 %v3284, 4294901760
    %v3513 = vsub.f32 %v3284, %v3512
    %3514 = vmatpush.msra.mxu0 %v3513
    %v3515 = vand.u32 %v3282, 4294901760
    %v3516 = vsub.f32 %v3282, %v3515
    %3517 = vmatpush.msra.mxu0 %v3516
    %v3518 = vand.u32 %v3280, 4294901760
    %v3519 = vsub.f32 %v3280, %v3518
    %3520 = vmatpush.msra.mxu0 %v3519
    %v3521 = vand.u32 %v3278, 4294901760
    %v3522 = vsub.f32 %v3278, %v3521
    %3523 = vmatpush.msra.mxu0 %v3522
    %v3524 = vand.u32 %v3276, 4294901760
    %v3525 = vsub.f32 %v3276, %v3524
    %3526 = vmatpush.msra.mxu0 %v3525
    %v3527 = vand.u32 %v3274, 4294901760
    %v3528 = vsub.f32 %v3274, %v3527
    %3529 = vmatpush.msra.mxu0 %v3528
    %v3530 = vand.u32 %v3272, 4294901760
    %v3531 = vsub.f32 %v3272, %v3530
    %3532 = vmatpush.msra.mxu0 %v3531
    %v3533 = vand.u32 %v3270, 4294901760
    %v3534 = vsub.f32 %v3270, %v3533
    %3535 = vmatpush.msra.mxu0 %v3534
    %v3536 = vand.u32 %v3267, 4294901760
    %v3537 = vsub.f32 %v3267, %v3536
    %3538 = vmatmul.f32.gmra.mxu0 %v3537
    %v3539 = vpop.f32.mrf.mxu0
    %v3540 = vadd.f32 %v3486, %v3539
    %3541 = vdwg.mxu0
    %v3542 = vand.u32 %v3300, 4294901760
    %3543 = vmatpush.msra.mxu0 %v3542
    %v3544 = vand.u32 %v3298, 4294901760
    %3545 = vmatpush.msra.mxu0 %v3544
    %v3546 = vand.u32 %v3296, 4294901760
    %3547 = vmatpush.msra.mxu0 %v3546
    %v3548 = vand.u32 %v3294, 4294901760
    %3549 = vmatpush.msra.mxu0 %v3548
    %v3550 = vand.u32 %v3292, 4294901760
    %3551 = vmatpush.msra.mxu0 %v3550
    %v3552 = vand.u32 %v3290, 4294901760
    %3553 = vmatpush.msra.mxu0 %v3552
    %v3554 = vand.u32 %v3288, 4294901760
    %3555 = vmatpush.msra.mxu0 %v3554
    %v3556 = vand.u32 %v3286, 4294901760
    %3557 = vmatpush.msra.mxu0 %v3556
    %v3558 = vand.u32 %v3284, 4294901760
    %3559 = vmatpush.msra.mxu0 %v3558
    %v3560 = vand.u32 %v3282, 4294901760
    %3561 = vmatpush.msra.mxu0 %v3560
    %v3562 = vand.u32 %v3280, 4294901760
    %3563 = vmatpush.msra.mxu0 %v3562
    %v3564 = vand.u32 %v3278, 4294901760
    %3565 = vmatpush.msra.mxu0 %v3564
    %v3566 = vand.u32 %v3276, 4294901760
    %3567 = vmatpush.msra.mxu0 %v3566
    %v3568 = vand.u32 %v3274, 4294901760
    %3569 = vmatpush.msra.mxu0 %v3568
    %v3570 = vand.u32 %v3272, 4294901760
    %3571 = vmatpush.msra.mxu0 %v3570
    %v3572 = vand.u32 %v3270, 4294901760
    %3573 = vmatpush.msra.mxu0 %v3572
    %v3574 = vand.u32 %v3267, 4294901760
    %v3575 = vsub.f32 %v3267, %v3574
    %v3576 = vand.u32 %v3575, 4294901760
    %3577 = vmatmul.f32.gmra.mxu0 %v3576
    %v3578 = vpop.f32.mrf.mxu0
    %v3579 = vadd.f32 %v3540, %v3578
    %3580 = vdwg.mxu0
    %v3581 = vand.u32 %v3300, 4294901760
    %v3582 = vsub.f32 %v3300, %v3581
    %v3583 = vand.u32 %v3582, 4294901760
    %3584 = vmatpush.msra.mxu0 %v3583
    %v3585 = vand.u32 %v3298, 4294901760
    %v3586 = vsub.f32 %v3298, %v3585
    %v3587 = vand.u32 %v3586, 4294901760
    %3588 = vmatpush.msra.mxu0 %v3587
    %v3589 = vand.u32 %v3296, 4294901760
    %v3590 = vsub.f32 %v3296, %v3589
    %v3591 = vand.u32 %v3590, 4294901760
    %3592 = vmatpush.msra.mxu0 %v3591
    %v3593 = vand.u32 %v3294, 4294901760
    %v3594 = vsub.f32 %v3294, %v3593
    %v3595 = vand.u32 %v3594, 4294901760
    %3596 = vmatpush.msra.mxu0 %v3595
    %v3597 = vand.u32 %v3292, 4294901760
    %v3598 = vsub.f32 %v3292, %v3597
    %v3599 = vand.u32 %v3598, 4294901760
    %3600 = vmatpush.msra.mxu0 %v3599
    %v3601 = vand.u32 %v3290, 4294901760
    %v3602 = vsub.f32 %v3290, %v3601
    %v3603 = vand.u32 %v3602, 4294901760
    %3604 = vmatpush.msra.mxu0 %v3603
    %v3605 = vand.u32 %v3288, 4294901760
    %v3606 = vsub.f32 %v3288, %v3605
    %v3607 = vand.u32 %v3606, 4294901760
    %3608 = vmatpush.msra.mxu0 %v3607
    %v3609 = vand.u32 %v3286, 4294901760
    %v3610 = vsub.f32 %v3286, %v3609
    %v3611 = vand.u32 %v3610, 4294901760
    %3612 = vmatpush.msra.mxu0 %v3611
    %v3613 = vand.u32 %v3284, 4294901760
    %v3614 = vsub.f32 %v3284, %v3613
    %v3615 = vand.u32 %v3614, 4294901760
    %3616 = vmatpush.msra.mxu0 %v3615
    %v3617 = vand.u32 %v3282, 4294901760
    %v3618 = vsub.f32 %v3282, %v3617
    %v3619 = vand.u32 %v3618, 4294901760
    %3620 = vmatpush.msra.mxu0 %v3619
    %v3621 = vand.u32 %v3280, 4294901760
    %v3622 = vsub.f32 %v3280, %v3621
    %v3623 = vand.u32 %v3622, 4294901760
    %3624 = vmatpush.msra.mxu0 %v3623
    %v3625 = vand.u32 %v3278, 4294901760
    %v3626 = vsub.f32 %v3278, %v3625
    %v3627 = vand.u32 %v3626, 4294901760
    %3628 = vmatpush.msra.mxu0 %v3627
    %v3629 = vand.u32 %v3276, 4294901760
    %v3630 = vsub.f32 %v3276, %v3629
    %v3631 = vand.u32 %v3630, 4294901760
    %3632 = vmatpush.msra.mxu0 %v3631
    %v3633 = vand.u32 %v3274, 4294901760
    %v3634 = vsub.f32 %v3274, %v3633
    %v3635 = vand.u32 %v3634, 4294901760
    %3636 = vmatpush.msra.mxu0 %v3635
    %v3637 = vand.u32 %v3272, 4294901760
    %v3638 = vsub.f32 %v3272, %v3637
    %v3639 = vand.u32 %v3638, 4294901760
    %3640 = vmatpush.msra.mxu0 %v3639
    %v3641 = vand.u32 %v3270, 4294901760
    %v3642 = vsub.f32 %v3270, %v3641
    %v3643 = vand.u32 %v3642, 4294901760
    %3644 = vmatpush.msra.mxu0 %v3643
    %v3645 = vand.u32 %v3267, 4294901760
    %3646 = vmatmul.f32.gmra.mxu0 %v3645
    %v3647 = vpop.f32.mrf.mxu0
    %v3648 = vadd.f32 %v3579, %v3647
    %3649 = vdwg.mxu0
    %v3650 = vand.u32 %v3300, 4294901760
    %3651 = vmatpush.msra.mxu0 %v3650
    %v3652 = vand.u32 %v3298, 4294901760
    %3653 = vmatpush.msra.mxu0 %v3652
    %v3654 = vand.u32 %v3296, 4294901760
    %3655 = vmatpush.msra.mxu0 %v3654
    %v3656 = vand.u32 %v3294, 4294901760
    %3657 = vmatpush.msra.mxu0 %v3656
    %v3658 = vand.u32 %v3292, 4294901760
    %3659 = vmatpush.msra.mxu0 %v3658
    %v3660 = vand.u32 %v3290, 4294901760
    %3661 = vmatpush.msra.mxu0 %v3660
    %v3662 = vand.u32 %v3288, 4294901760
    %3663 = vmatpush.msra.mxu0 %v3662
    %v3664 = vand.u32 %v3286, 4294901760
    %3665 = vmatpush.msra.mxu0 %v3664
    %v3666 = vand.u32 %v3284, 4294901760
    %3667 = vmatpush.msra.mxu0 %v3666
    %v3668 = vand.u32 %v3282, 4294901760
    %3669 = vmatpush.msra.mxu0 %v3668
    %v3670 = vand.u32 %v3280, 4294901760
    %3671 = vmatpush.msra.mxu0 %v3670
    %v3672 = vand.u32 %v3278, 4294901760
    %3673 = vmatpush.msra.mxu0 %v3672
    %v3674 = vand.u32 %v3276, 4294901760
    %3675 = vmatpush.msra.mxu0 %v3674
    %v3676 = vand.u32 %v3274, 4294901760
    %3677 = vmatpush.msra.mxu0 %v3676
    %v3678 = vand.u32 %v3272, 4294901760
    %3679 = vmatpush.msra.mxu0 %v3678
    %v3680 = vand.u32 %v3270, 4294901760
    %3681 = vmatpush.msra.mxu0 %v3680
    %v3682 = vand.u32 %v3267, 4294901760
    %3683 = vmatmul.f32.gmra.mxu0 %v3682
    %v3684 = vpop.f32.mrf.mxu0
    %v3685 = vadd.f32 %v3648, %v3684
    %3686 = vdwg.mxu0
    %v3687 = vand.u32 %v3332, 4294901760
    %3688 = vmatpush.msra.mxu0 %v3687
    %v3689 = vand.u32 %v3330, 4294901760
    %3690 = vmatpush.msra.mxu0 %v3689
    %v3691 = vand.u32 %v3328, 4294901760
    %3692 = vmatpush.msra.mxu0 %v3691
    %v3693 = vand.u32 %v3326, 4294901760
    %3694 = vmatpush.msra.mxu0 %v3693
    %v3695 = vand.u32 %v3324, 4294901760
    %3696 = vmatpush.msra.mxu0 %v3695
    %v3697 = vand.u32 %v3322, 4294901760
    %3698 = vmatpush.msra.mxu0 %v3697
    %v3699 = vand.u32 %v3320, 4294901760
    %3700 = vmatpush.msra.mxu0 %v3699
    %v3701 = vand.u32 %v3318, 4294901760
    %3702 = vmatpush.msra.mxu0 %v3701
    %v3703 = vand.u32 %v3316, 4294901760
    %3704 = vmatpush.msra.mxu0 %v3703
    %v3705 = vand.u32 %v3314, 4294901760
    %3706 = vmatpush.msra.mxu0 %v3705
    %v3707 = vand.u32 %v3312, 4294901760
    %3708 = vmatpush.msra.mxu0 %v3707
    %v3709 = vand.u32 %v3310, 4294901760
    %3710 = vmatpush.msra.mxu0 %v3709
    %v3711 = vand.u32 %v3308, 4294901760
    %3712 = vmatpush.msra.mxu0 %v3711
    %v3713 = vand.u32 %v3306, 4294901760
    %3714 = vmatpush.msra.mxu0 %v3713
    %v3715 = vand.u32 %v3304, 4294901760
    %3716 = vmatpush.msra.mxu0 %v3715
    %v3717 = vand.u32 %v3302, 4294901760
    %3718 = vmatpush.msra.mxu0 %v3717
    %v3719 = vand.u32 %v3268, 4294901760
    %v3720 = vsub.f32 %v3268, %v3719
    %v3721 = vand.u32 %v3720, 4294901760
    %v3722 = vsub.f32 %v3720, %v3721
    %v3723 = vand.u32 %v3722, 4294901760
    %3724 = vmatmul.f32.gmra.mxu0 %v3723
    %v3725 = vpop.f32.mrf.mxu0
    %v3726 = vadd.f32 %v3685, %v3725
    %3727 = vdwg.mxu0
    %v3728 = vand.u32 %v3332, 4294901760
    %v3729 = vsub.f32 %v3332, %v3728
    %v3730 = vand.u32 %v3729, 4294901760
    %v3731 = vsub.f32 %v3729, %v3730
    %v3732 = vand.u32 %v3731, 4294901760
    %3733 = vmatpush.msra.mxu0 %v3732
    %v3734 = vand.u32 %v3330, 4294901760
    %v3735 = vsub.f32 %v3330, %v3734
    %v3736 = vand.u32 %v3735, 4294901760
    %v3737 = vsub.f32 %v3735, %v3736
    %v3738 = vand.u32 %v3737, 4294901760
    %3739 = vmatpush.msra.mxu0 %v3738
    %v3740 = vand.u32 %v3328, 4294901760
    %v3741 = vsub.f32 %v3328, %v3740
    %v3742 = vand.u32 %v3741, 4294901760
    %v3743 = vsub.f32 %v3741, %v3742
    %v3744 = vand.u32 %v3743, 4294901760
    %3745 = vmatpush.msra.mxu0 %v3744
    %v3746 = vand.u32 %v3326, 4294901760
    %v3747 = vsub.f32 %v3326, %v3746
    %v3748 = vand.u32 %v3747, 4294901760
    %v3749 = vsub.f32 %v3747, %v3748
    %v3750 = vand.u32 %v3749, 4294901760
    %3751 = vmatpush.msra.mxu0 %v3750
    %v3752 = vand.u32 %v3324, 4294901760
    %v3753 = vsub.f32 %v3324, %v3752
    %v3754 = vand.u32 %v3753, 4294901760
    %v3755 = vsub.f32 %v3753, %v3754
    %v3756 = vand.u32 %v3755, 4294901760
    %3757 = vmatpush.msra.mxu0 %v3756
    %v3758 = vand.u32 %v3322, 4294901760
    %v3759 = vsub.f32 %v3322, %v3758
    %v3760 = vand.u32 %v3759, 4294901760
    %v3761 = vsub.f32 %v3759, %v3760
    %v3762 = vand.u32 %v3761, 4294901760
    %3763 = vmatpush.msra.mxu0 %v3762
    %v3764 = vand.u32 %v3320, 4294901760
    %v3765 = vsub.f32 %v3320, %v3764
    %v3766 = vand.u32 %v3765, 4294901760
    %v3767 = vsub.f32 %v3765, %v3766
    %v3768 = vand.u32 %v3767, 4294901760
    %3769 = vmatpush.msra.mxu0 %v3768
    %v3770 = vand.u32 %v3318, 4294901760
    %v3771 = vsub.f32 %v3318, %v3770
    %v3772 = vand.u32 %v3771, 4294901760
    %v3773 = vsub.f32 %v3771, %v3772
    %v3774 = vand.u32 %v3773, 4294901760
    %3775 = vmatpush.msra.mxu0 %v3774
    %v3776 = vand.u32 %v3316, 4294901760
    %v3777 = vsub.f32 %v3316, %v3776
    %v3778 = vand.u32 %v3777, 4294901760
    %v3779 = vsub.f32 %v3777, %v3778
    %v3780 = vand.u32 %v3779, 4294901760
    %3781 = vmatpush.msra.mxu0 %v3780
    %v3782 = vand.u32 %v3314, 4294901760
    %v3783 = vsub.f32 %v3314, %v3782
    %v3784 = vand.u32 %v3783, 4294901760
    %v3785 = vsub.f32 %v3783, %v3784
    %v3786 = vand.u32 %v3785, 4294901760
    %3787 = vmatpush.msra.mxu0 %v3786
    %v3788 = vand.u32 %v3312, 4294901760
    %v3789 = vsub.f32 %v3312, %v3788
    %v3790 = vand.u32 %v3789, 4294901760
    %v3791 = vsub.f32 %v3789, %v3790
    %v3792 = vand.u32 %v3791, 4294901760
    %3793 = vmatpush.msra.mxu0 %v3792
    %v3794 = vand.u32 %v3310, 4294901760
    %v3795 = vsub.f32 %v3310, %v3794
    %v3796 = vand.u32 %v3795, 4294901760
    %v3797 = vsub.f32 %v3795, %v3796
    %v3798 = vand.u32 %v3797, 4294901760
    %3799 = vmatpush.msra.mxu0 %v3798
    %v3800 = vand.u32 %v3308, 4294901760
    %v3801 = vsub.f32 %v3308, %v3800
    %v3802 = vand.u32 %v3801, 4294901760
    %v3803 = vsub.f32 %v3801, %v3802
    %v3804 = vand.u32 %v3803, 4294901760
    %3805 = vmatpush.msra.mxu0 %v3804
    %v3806 = vand.u32 %v3306, 4294901760
    %v3807 = vsub.f32 %v3306, %v3806
    %v3808 = vand.u32 %v3807, 4294901760
    %v3809 = vsub.f32 %v3807, %v3808
    %v3810 = vand.u32 %v3809, 4294901760
    %3811 = vmatpush.msra.mxu0 %v3810
    %v3812 = vand.u32 %v3304, 4294901760
    %v3813 = vsub.f32 %v3304, %v3812
    %v3814 = vand.u32 %v3813, 4294901760
    %v3815 = vsub.f32 %v3813, %v3814
    %v3816 = vand.u32 %v3815, 4294901760
    %3817 = vmatpush.msra.mxu0 %v3816
    %v3818 = vand.u32 %v3302, 4294901760
    %v3819 = vsub.f32 %v3302, %v3818
    %v3820 = vand.u32 %v3819, 4294901760
    %v3821 = vsub.f32 %v3819, %v3820
    %v3822 = vand.u32 %v3821, 4294901760
    %3823 = vmatpush.msra.mxu0 %v3822
    %v3824 = vand.u32 %v3268, 4294901760
    %3825 = vmatmul.f32.gmra.mxu0 %v3824
    %v3826 = vpop.f32.mrf.mxu0
    %v3827 = vadd.f32 %v3726, %v3826
    %3828 = vdwg.mxu0
    %v3829 = vand.u32 %v3332, 4294901760
    %v3830 = vsub.f32 %v3332, %v3829
    %3831 = vmatpush.msra.mxu0 %v3830
    %v3832 = vand.u32 %v3330, 4294901760
    %v3833 = vsub.f32 %v3330, %v3832
    %3834 = vmatpush.msra.mxu0 %v3833
    %v3835 = vand.u32 %v3328, 4294901760
    %v3836 = vsub.f32 %v3328, %v3835
    %3837 = vmatpush.msra.mxu0 %v3836
    %v3838 = vand.u32 %v3326, 4294901760
    %v3839 = vsub.f32 %v3326, %v3838
    %3840 = vmatpush.msra.mxu0 %v3839
    %v3841 = vand.u32 %v3324, 4294901760
    %v3842 = vsub.f32 %v3324, %v3841
    %3843 = vmatpush.msra.mxu0 %v3842
    %v3844 = vand.u32 %v3322, 4294901760
    %v3845 = vsub.f32 %v3322, %v3844
    %3846 = vmatpush.msra.mxu0 %v3845
    %v3847 = vand.u32 %v3320, 4294901760
    %v3848 = vsub.f32 %v3320, %v3847
    %3849 = vmatpush.msra.mxu0 %v3848
    %v3850 = vand.u32 %v3318, 4294901760
    %v3851 = vsub.f32 %v3318, %v3850
    %3852 = vmatpush.msra.mxu0 %v3851
    %v3853 = vand.u32 %v3316, 4294901760
    %v3854 = vsub.f32 %v3316, %v3853
    %3855 = vmatpush.msra.mxu0 %v3854
    %v3856 = vand.u32 %v3314, 4294901760
    %v3857 = vsub.f32 %v3314, %v3856
    %3858 = vmatpush.msra.mxu0 %v3857
    %v3859 = vand.u32 %v3312, 4294901760
    %v3860 = vsub.f32 %v3312, %v3859
    %3861 = vmatpush.msra.mxu0 %v3860
    %v3862 = vand.u32 %v3310, 4294901760
    %v3863 = vsub.f32 %v3310, %v3862
    %3864 = vmatpush.msra.mxu0 %v3863
    %v3865 = vand.u32 %v3308, 4294901760
    %v3866 = vsub.f32 %v3308, %v3865
    %3867 = vmatpush.msra.mxu0 %v3866
    %v3868 = vand.u32 %v3306, 4294901760
    %v3869 = vsub.f32 %v3306, %v3868
    %3870 = vmatpush.msra.mxu0 %v3869
    %v3871 = vand.u32 %v3304, 4294901760
    %v3872 = vsub.f32 %v3304, %v3871
    %3873 = vmatpush.msra.mxu0 %v3872
    %v3874 = vand.u32 %v3302, 4294901760
    %v3875 = vsub.f32 %v3302, %v3874
    %3876 = vmatpush.msra.mxu0 %v3875
    %v3877 = vand.u32 %v3268, 4294901760
    %v3878 = vsub.f32 %v3268, %v3877
    %3879 = vmatmul.f32.gmra.mxu0 %v3878
    %v3880 = vpop.f32.mrf.mxu0
    %v3881 = vadd.f32 %v3827, %v3880
    %3882 = vdwg.mxu0
    %v3883 = vand.u32 %v3332, 4294901760
    %3884 = vmatpush.msra.mxu0 %v3883
    %v3885 = vand.u32 %v3330, 4294901760
    %3886 = vmatpush.msra.mxu0 %v3885
    %v3887 = vand.u32 %v3328, 4294901760
    %3888 = vmatpush.msra.mxu0 %v3887
    %v3889 = vand.u32 %v3326, 4294901760
    %3890 = vmatpush.msra.mxu0 %v3889
    %v3891 = vand.u32 %v3324, 4294901760
    %3892 = vmatpush.msra.mxu0 %v3891
    %v3893 = vand.u32 %v3322, 4294901760
    %3894 = vmatpush.msra.mxu0 %v3893
    %v3895 = vand.u32 %v3320, 4294901760
    %3896 = vmatpush.msra.mxu0 %v3895
    %v3897 = vand.u32 %v3318, 4294901760
    %3898 = vmatpush.msra.mxu0 %v3897
    %v3899 = vand.u32 %v3316, 4294901760
    %3900 = vmatpush.msra.mxu0 %v3899
    %v3901 = vand.u32 %v3314, 4294901760
    %3902 = vmatpush.msra.mxu0 %v3901
    %v3903 = vand.u32 %v3312, 4294901760
    %3904 = vmatpush.msra.mxu0 %v3903
    %v3905 = vand.u32 %v3310, 4294901760
    %3906 = vmatpush.msra.mxu0 %v3905
    %v3907 = vand.u32 %v3308, 4294901760
    %3908 = vmatpush.msra.mxu0 %v3907
    %v3909 = vand.u32 %v3306, 4294901760
    %3910 = vmatpush.msra.mxu0 %v3909
    %v3911 = vand.u32 %v3304, 4294901760
    %3912 = vmatpush.msra.mxu0 %v3911
    %v3913 = vand.u32 %v3302, 4294901760
    %3914 = vmatpush.msra.mxu0 %v3913
    %v3915 = vand.u32 %v3268, 4294901760
    %v3916 = vsub.f32 %v3268, %v3915
    %v3917 = vand.u32 %v3916, 4294901760
    %3918 = vmatmul.f32.gmra.mxu0 %v3917
    %v3919 = vpop.f32.mrf.mxu0
    %v3920 = vadd.f32 %v3881, %v3919
    %3921 = vdwg.mxu0
    %v3922 = vand.u32 %v3332, 4294901760
    %v3923 = vsub.f32 %v3332, %v3922
    %v3924 = vand.u32 %v3923, 4294901760
    %3925 = vmatpush.msra.mxu0 %v3924
    %v3926 = vand.u32 %v3330, 4294901760
    %v3927 = vsub.f32 %v3330, %v3926
    %v3928 = vand.u32 %v3927, 4294901760
    %3929 = vmatpush.msra.mxu0 %v3928
    %v3930 = vand.u32 %v3328, 4294901760
    %v3931 = vsub.f32 %v3328, %v3930
    %v3932 = vand.u32 %v3931, 4294901760
    %3933 = vmatpush.msra.mxu0 %v3932
    %v3934 = vand.u32 %v3326, 4294901760
    %v3935 = vsub.f32 %v3326, %v3934
    %v3936 = vand.u32 %v3935, 4294901760
    %3937 = vmatpush.msra.mxu0 %v3936
    %v3938 = vand.u32 %v3324, 4294901760
    %v3939 = vsub.f32 %v3324, %v3938
    %v3940 = vand.u32 %v3939, 4294901760
    %3941 = vmatpush.msra.mxu0 %v3940
    %v3942 = vand.u32 %v3322, 4294901760
    %v3943 = vsub.f32 %v3322, %v3942
    %v3944 = vand.u32 %v3943, 4294901760
    %3945 = vmatpush.msra.mxu0 %v3944
    %v3946 = vand.u32 %v3320, 4294901760
    %v3947 = vsub.f32 %v3320, %v3946
    %v3948 = vand.u32 %v3947, 4294901760
    %3949 = vmatpush.msra.mxu0 %v3948
    %v3950 = vand.u32 %v3318, 4294901760
    %v3951 = vsub.f32 %v3318, %v3950
    %v3952 = vand.u32 %v3951, 4294901760
    %3953 = vmatpush.msra.mxu0 %v3952
    %v3954 = vand.u32 %v3316, 4294901760
    %v3955 = vsub.f32 %v3316, %v3954
    %v3956 = vand.u32 %v3955, 4294901760
    %3957 = vmatpush.msra.mxu0 %v3956
    %v3958 = vand.u32 %v3314, 4294901760
    %v3959 = vsub.f32 %v3314, %v3958
    %v3960 = vand.u32 %v3959, 4294901760
    %3961 = vmatpush.msra.mxu0 %v3960
    %v3962 = vand.u32 %v3312, 4294901760
    %v3963 = vsub.f32 %v3312, %v3962
    %v3964 = vand.u32 %v3963, 4294901760
    %3965 = vmatpush.msra.mxu0 %v3964
    %v3966 = vand.u32 %v3310, 4294901760
    %v3967 = vsub.f32 %v3310, %v3966
    %v3968 = vand.u32 %v3967, 4294901760
    %3969 = vmatpush.msra.mxu0 %v3968
    %v3970 = vand.u32 %v3308, 4294901760
    %v3971 = vsub.f32 %v3308, %v3970
    %v3972 = vand.u32 %v3971, 4294901760
    %3973 = vmatpush.msra.mxu0 %v3972
    %v3974 = vand.u32 %v3306, 4294901760
    %v3975 = vsub.f32 %v3306, %v3974
    %v3976 = vand.u32 %v3975, 4294901760
    %3977 = vmatpush.msra.mxu0 %v3976
    %v3978 = vand.u32 %v3304, 4294901760
    %v3979 = vsub.f32 %v3304, %v3978
    %v3980 = vand.u32 %v3979, 4294901760
    %3981 = vmatpush.msra.mxu0 %v3980
    %v3982 = vand.u32 %v3302, 4294901760
    %v3983 = vsub.f32 %v3302, %v3982
    %v3984 = vand.u32 %v3983, 4294901760
    %3985 = vmatpush.msra.mxu0 %v3984
    %v3986 = vand.u32 %v3268, 4294901760
    %3987 = vmatmul.f32.gmra.mxu0 %v3986
    %v3988 = vpop.f32.mrf.mxu0
    %v3989 = vadd.f32 %v3920, %v3988
    %3990 = vdwg.mxu0
    %v3991 = vand.u32 %v3332, 4294901760
    %3992 = vmatpush.msra.mxu0 %v3991
    %v3993 = vand.u32 %v3330, 4294901760
    %3994 = vmatpush.msra.mxu0 %v3993
    %v3995 = vand.u32 %v3328, 4294901760
    %3996 = vmatpush.msra.mxu0 %v3995
    %v3997 = vand.u32 %v3326, 4294901760
    %3998 = vmatpush.msra.mxu0 %v3997
    %v3999 = vand.u32 %v3324, 4294901760
    %4000 = vmatpush.msra.mxu0 %v3999
    %v4001 = vand.u32 %v3322, 4294901760
    %4002 = vmatpush.msra.mxu0 %v4001
    %v4003 = vand.u32 %v3320, 4294901760
    %4004 = vmatpush.msra.mxu0 %v4003
    %v4005 = vand.u32 %v3318, 4294901760
    %4006 = vmatpush.msra.mxu0 %v4005
    %v4007 = vand.u32 %v3316, 4294901760
    %4008 = vmatpush.msra.mxu0 %v4007
    %v4009 = vand.u32 %v3314, 4294901760
    %4010 = vmatpush.msra.mxu0 %v4009
    %v4011 = vand.u32 %v3312, 4294901760
    %4012 = vmatpush.msra.mxu0 %v4011
    %v4013 = vand.u32 %v3310, 4294901760
    %4014 = vmatpush.msra.mxu0 %v4013
    %v4015 = vand.u32 %v3308, 4294901760
    %4016 = vmatpush.msra.mxu0 %v4015
    %v4017 = vand.u32 %v3306, 4294901760
    %4018 = vmatpush.msra.mxu0 %v4017
    %v4019 = vand.u32 %v3304, 4294901760
    %4020 = vmatpush.msra.mxu0 %v4019
    %v4021 = vand.u32 %v3302, 4294901760
    %4022 = vmatpush.msra.mxu0 %v4021
    %v4023 = vand.u32 %v3268, 4294901760
    %4024 = vmatmul.f32.gmra.mxu0 %v4023
    %v4025 = vpop.f32.mrf.mxu0
    %v4026 = vadd.f32 %v3989, %v4025
    %4027 = vdwg.mxu0
    %4028 = vmatpush.msra.mxu0 0.0
    %4029 = vmatpush.msra.mxu0 0.0
    %4030 = vmatpush.msra.mxu0 0.0
    %4031 = vmatpush.msra.mxu0 0.0
    %4032 = vmatpush.msra.mxu0 0.0
    %4033 = vmatpush.msra.mxu0 0.0
    %4034 = vmatpush.msra.mxu0 0.0
    %4035 = vmatpush.msra.mxu0 0.0
    %4036 = vmatpush.msra.mxu0 0.0
    %4037 = vmatpush.msra.mxu0 0.0
    %4038 = vmatpush.msra.mxu0 0.0
    %4039 = vmatpush.msra.mxu0 0.0
    %v4040 = vand.u32 %v3340, 4294901760
    %4041 = vmatpush.msra.mxu0 %v4040
    %v4042 = vand.u32 %v3338, 4294901760
    %4043 = vmatpush.msra.mxu0 %v4042
    %v4044 = vand.u32 %v3336, 4294901760
    %4045 = vmatpush.msra.mxu0 %v4044
    %v4046 = vand.u32 %v3334, 4294901760
    %4047 = vmatpush.msra.mxu0 %v4046
    %v4048 = vand.u32 %v3344, 4294901760
    %v4049 = vsub.f32 %v3344, %v4048
    %v4050 = vand.u32 %v4049, 4294901760
    %v4051 = vsub.f32 %v4049, %v4050
    %v4052 = vand.u32 %v4051, 4294901760
    %4053 = vmatmul.f32.gmra.mxu0 %v4052
    %v4054 = vpop.f32.mrf.mxu0
    %v4055 = vadd.f32 %v4026, %v4054
    %4056 = vdwg.mxu0
    %4057 = vmatpush.msra.mxu0 0.0
    %4058 = vmatpush.msra.mxu0 0.0
    %4059 = vmatpush.msra.mxu0 0.0
    %4060 = vmatpush.msra.mxu0 0.0
    %4061 = vmatpush.msra.mxu0 0.0
    %4062 = vmatpush.msra.mxu0 0.0
    %4063 = vmatpush.msra.mxu0 0.0
    %4064 = vmatpush.msra.mxu0 0.0
    %4065 = vmatpush.msra.mxu0 0.0
    %4066 = vmatpush.msra.mxu0 0.0
    %4067 = vmatpush.msra.mxu0 0.0
    %4068 = vmatpush.msra.mxu0 0.0
    %v4069 = vand.u32 %v3340, 4294901760
    %v4070 = vsub.f32 %v3340, %v4069
    %v4071 = vand.u32 %v4070, 4294901760
    %v4072 = vsub.f32 %v4070, %v4071
    %v4073 = vand.u32 %v4072, 4294901760
    %4074 = vmatpush.msra.mxu0 %v4073
    %v4075 = vand.u32 %v3338, 4294901760
    %v4076 = vsub.f32 %v3338, %v4075
    %v4077 = vand.u32 %v4076, 4294901760
    %v4078 = vsub.f32 %v4076, %v4077
    %v4079 = vand.u32 %v4078, 4294901760
    %4080 = vmatpush.msra.mxu0 %v4079
    %v4081 = vand.u32 %v3336, 4294901760
    %v4082 = vsub.f32 %v3336, %v4081
    %v4083 = vand.u32 %v4082, 4294901760
    %v4084 = vsub.f32 %v4082, %v4083
    %v4085 = vand.u32 %v4084, 4294901760
    %4086 = vmatpush.msra.mxu0 %v4085
    %v4087 = vand.u32 %v3334, 4294901760
    %v4088 = vsub.f32 %v3334, %v4087
    %v4089 = vand.u32 %v4088, 4294901760
    %v4090 = vsub.f32 %v4088, %v4089
    %v4091 = vand.u32 %v4090, 4294901760
    %4092 = vmatpush.msra.mxu0 %v4091
    %v4093 = vand.u32 %v3344, 4294901760
    %4094 = vmatmul.f32.gmra.mxu0 %v4093
    %v4095 = vpop.f32.mrf.mxu0
    %v4096 = vadd.f32 %v4055, %v4095
    %4097 = vdwg.mxu0
    %4098 = vmatpush.msra.mxu0 0.0
    %4099 = vmatpush.msra.mxu0 0.0
    %4100 = vmatpush.msra.mxu0 0.0
    %4101 = vmatpush.msra.mxu0 0.0
    %4102 = vmatpush.msra.mxu0 0.0
    %4103 = vmatpush.msra.mxu0 0.0
    %4104 = vmatpush.msra.mxu0 0.0
    %4105 = vmatpush.msra.mxu0 0.0
    %4106 = vmatpush.msra.mxu0 0.0
    %4107 = vmatpush.msra.mxu0 0.0
    %4108 = vmatpush.msra.mxu0 0.0
    %4109 = vmatpush.msra.mxu0 0.0
    %v4110 = vand.u32 %v3340, 4294901760
    %v4111 = vsub.f32 %v3340, %v4110
    %4112 = vmatpush.msra.mxu0 %v4111
    %v4113 = vand.u32 %v3338, 4294901760
    %v4114 = vsub.f32 %v3338, %v4113
    %4115 = vmatpush.msra.mxu0 %v4114
    %v4116 = vand.u32 %v3336, 4294901760
    %v4117 = vsub.f32 %v3336, %v4116
    %4118 = vmatpush.msra.mxu0 %v4117
    %v4119 = vand.u32 %v3334, 4294901760
    %v4120 = vsub.f32 %v3334, %v4119
    %4121 = vmatpush.msra.mxu0 %v4120
    %v4122 = vand.u32 %v3344, 4294901760
    %v4123 = vsub.f32 %v3344, %v4122
    %4124 = vmatmul.f32.gmra.mxu0 %v4123
    %v4125 = vpop.f32.mrf.mxu0
    %v4126 = vadd.f32 %v4096, %v4125
    %4127 = vdwg.mxu0
    %4128 = vmatpush.msra.mxu0 0.0
    %4129 = vmatpush.msra.mxu0 0.0
    %4130 = vmatpush.msra.mxu0 0.0
    %4131 = vmatpush.msra.mxu0 0.0
    %4132 = vmatpush.msra.mxu0 0.0
    %4133 = vmatpush.msra.mxu0 0.0
    %4134 = vmatpush.msra.mxu0 0.0
    %4135 = vmatpush.msra.mxu0 0.0
    %4136 = vmatpush.msra.mxu0 0.0
    %4137 = vmatpush.msra.mxu0 0.0
    %4138 = vmatpush.msra.mxu0 0.0
    %4139 = vmatpush.msra.mxu0 0.0
    %v4140 = vand.u32 %v3340, 4294901760
    %4141 = vmatpush.msra.mxu0 %v4140
    %v4142 = vand.u32 %v3338, 4294901760
    %4143 = vmatpush.msra.mxu0 %v4142
    %v4144 = vand.u32 %v3336, 4294901760
    %4145 = vmatpush.msra.mxu0 %v4144
    %v4146 = vand.u32 %v3334, 4294901760
    %4147 = vmatpush.msra.mxu0 %v4146
    %v4148 = vand.u32 %v3344, 4294901760
    %v4149 = vsub.f32 %v3344, %v4148
    %v4150 = vand.u32 %v4149, 4294901760
    %4151 = vmatmul.f32.gmra.mxu0 %v4150
    %v4152 = vpop.f32.mrf.mxu0
    %v4153 = vadd.f32 %v4126, %v4152
    %4154 = vdwg.mxu0
    %4155 = vmatpush.msra.mxu0 0.0
    %4156 = vmatpush.msra.mxu0 0.0
    %4157 = vmatpush.msra.mxu0 0.0
    %4158 = vmatpush.msra.mxu0 0.0
    %4159 = vmatpush.msra.mxu0 0.0
    %4160 = vmatpush.msra.mxu0 0.0
    %4161 = vmatpush.msra.mxu0 0.0
    %4162 = vmatpush.msra.mxu0 0.0
    %4163 = vmatpush.msra.mxu0 0.0
    %4164 = vmatpush.msra.mxu0 0.0
    %4165 = vmatpush.msra.mxu0 0.0
    %4166 = vmatpush.msra.mxu0 0.0
    %v4167 = vand.u32 %v3340, 4294901760
    %v4168 = vsub.f32 %v3340, %v4167
    %v4169 = vand.u32 %v4168, 4294901760
    %4170 = vmatpush.msra.mxu0 %v4169
    %v4171 = vand.u32 %v3338, 4294901760
    %v4172 = vsub.f32 %v3338, %v4171
    %v4173 = vand.u32 %v4172, 4294901760
    %4174 = vmatpush.msra.mxu0 %v4173
    %v4175 = vand.u32 %v3336, 4294901760
    %v4176 = vsub.f32 %v3336, %v4175
    %v4177 = vand.u32 %v4176, 4294901760
    %4178 = vmatpush.msra.mxu0 %v4177
    %v4179 = vand.u32 %v3334, 4294901760
    %v4180 = vsub.f32 %v3334, %v4179
    %v4181 = vand.u32 %v4180, 4294901760
    %4182 = vmatpush.msra.mxu0 %v4181
    %v4183 = vand.u32 %v3344, 4294901760
    %4184 = vmatmul.f32.gmra.mxu0 %v4183
    %v4185 = vpop.f32.mrf.mxu0
    %v4186 = vadd.f32 %v4153, %v4185
    %4187 = vdwg.mxu0
    %4188 = vmatpush.msra.mxu0 0.0
    %4189 = vmatpush.msra.mxu0 0.0
    %4190 = vmatpush.msra.mxu0 0.0
    %4191 = vmatpush.msra.mxu0 0.0
    %4192 = vmatpush.msra.mxu0 0.0
    %4193 = vmatpush.msra.mxu0 0.0
    %4194 = vmatpush.msra.mxu0 0.0
    %4195 = vmatpush.msra.mxu0 0.0
    %4196 = vmatpush.msra.mxu0 0.0
    %4197 = vmatpush.msra.mxu0 0.0
    %4198 = vmatpush.msra.mxu0 0.0
    %4199 = vmatpush.msra.mxu0 0.0
    %v4200 = vand.u32 %v3340, 4294901760
    %4201 = vmatpush.msra.mxu0 %v4200
    %v4202 = vand.u32 %v3338, 4294901760
    %4203 = vmatpush.msra.mxu0 %v4202
    %v4204 = vand.u32 %v3336, 4294901760
    %4205 = vmatpush.msra.mxu0 %v4204
    %v4206 = vand.u32 %v3334, 4294901760
    %4207 = vmatpush.msra.mxu0 %v4206
    %v4208 = vand.u32 %v3344, 4294901760
    %4209 = vmatmul.f32.gmra.mxu0 %v4208
    %v4210 = vpop.f32.mrf.mxu0
    %v4211 = vadd.f32 %v4186, %v4210
    %4212 = vdwg.mxu0
    %v4213 = vand.u32 %v3301, 4294901760
    %4214 = vmatpush.msra.mxu0 %v4213
    %v4215 = vand.u32 %v3299, 4294901760
    %4216 = vmatpush.msra.mxu0 %v4215
    %v4217 = vand.u32 %v3297, 4294901760
    %4218 = vmatpush.msra.mxu0 %v4217
    %v4219 = vand.u32 %v3295, 4294901760
    %4220 = vmatpush.msra.mxu0 %v4219
    %v4221 = vand.u32 %v3293, 4294901760
    %4222 = vmatpush.msra.mxu0 %v4221
    %v4223 = vand.u32 %v3291, 4294901760
    %4224 = vmatpush.msra.mxu0 %v4223
    %v4225 = vand.u32 %v3289, 4294901760
    %4226 = vmatpush.msra.mxu0 %v4225
    %v4227 = vand.u32 %v3287, 4294901760
    %4228 = vmatpush.msra.mxu0 %v4227
    %v4229 = vand.u32 %v3285, 4294901760
    %4230 = vmatpush.msra.mxu0 %v4229
    %v4231 = vand.u32 %v3283, 4294901760
    %4232 = vmatpush.msra.mxu0 %v4231
    %v4233 = vand.u32 %v3281, 4294901760
    %4234 = vmatpush.msra.mxu0 %v4233
    %v4235 = vand.u32 %v3279, 4294901760
    %4236 = vmatpush.msra.mxu0 %v4235
    %v4237 = vand.u32 %v3277, 4294901760
    %4238 = vmatpush.msra.mxu0 %v4237
    %v4239 = vand.u32 %v3275, 4294901760
    %4240 = vmatpush.msra.mxu0 %v4239
    %v4241 = vand.u32 %v3273, 4294901760
    %4242 = vmatpush.msra.mxu0 %v4241
    %v4243 = vand.u32 %v3271, 4294901760
    %4244 = vmatpush.msra.mxu0 %v4243
    %v4245 = vand.u32 %v3267, 4294901760
    %v4246 = vsub.f32 %v3267, %v4245
    %v4247 = vand.u32 %v4246, 4294901760
    %v4248 = vsub.f32 %v4246, %v4247
    %v4249 = vand.u32 %v4248, 4294901760
    %4250 = vmatmul.f32.gmra.mxu0 %v4249
    %v4251 = vpop.f32.mrf.mxu0
    %v4252 = vadd.f32 0.0, %v4251
    %4253 = vdwg.mxu0
    %v4254 = vand.u32 %v3301, 4294901760
    %v4255 = vsub.f32 %v3301, %v4254
    %v4256 = vand.u32 %v4255, 4294901760
    %v4257 = vsub.f32 %v4255, %v4256
    %v4258 = vand.u32 %v4257, 4294901760
    %4259 = vmatpush.msra.mxu0 %v4258
    %v4260 = vand.u32 %v3299, 4294901760
    %v4261 = vsub.f32 %v3299, %v4260
    %v4262 = vand.u32 %v4261, 4294901760
    %v4263 = vsub.f32 %v4261, %v4262
    %v4264 = vand.u32 %v4263, 4294901760
    %4265 = vmatpush.msra.mxu0 %v4264
    %v4266 = vand.u32 %v3297, 4294901760
    %v4267 = vsub.f32 %v3297, %v4266
    %v4268 = vand.u32 %v4267, 4294901760
    %v4269 = vsub.f32 %v4267, %v4268
    %v4270 = vand.u32 %v4269, 4294901760
    %4271 = vmatpush.msra.mxu0 %v4270
    %v4272 = vand.u32 %v3295, 4294901760
    %v4273 = vsub.f32 %v3295, %v4272
    %v4274 = vand.u32 %v4273, 4294901760
    %v4275 = vsub.f32 %v4273, %v4274
    %v4276 = vand.u32 %v4275, 4294901760
    %4277 = vmatpush.msra.mxu0 %v4276
    %v4278 = vand.u32 %v3293, 4294901760
    %v4279 = vsub.f32 %v3293, %v4278
    %v4280 = vand.u32 %v4279, 4294901760
    %v4281 = vsub.f32 %v4279, %v4280
    %v4282 = vand.u32 %v4281, 4294901760
    %4283 = vmatpush.msra.mxu0 %v4282
    %v4284 = vand.u32 %v3291, 4294901760
    %v4285 = vsub.f32 %v3291, %v4284
    %v4286 = vand.u32 %v4285, 4294901760
    %v4287 = vsub.f32 %v4285, %v4286
    %v4288 = vand.u32 %v4287, 4294901760
    %4289 = vmatpush.msra.mxu0 %v4288
    %v4290 = vand.u32 %v3289, 4294901760
    %v4291 = vsub.f32 %v3289, %v4290
    %v4292 = vand.u32 %v4291, 4294901760
    %v4293 = vsub.f32 %v4291, %v4292
    %v4294 = vand.u32 %v4293, 4294901760
    %4295 = vmatpush.msra.mxu0 %v4294
    %v4296 = vand.u32 %v3287, 4294901760
    %v4297 = vsub.f32 %v3287, %v4296
    %v4298 = vand.u32 %v4297, 4294901760
    %v4299 = vsub.f32 %v4297, %v4298
    %v4300 = vand.u32 %v4299, 4294901760
    %4301 = vmatpush.msra.mxu0 %v4300
    %v4302 = vand.u32 %v3285, 4294901760
    %v4303 = vsub.f32 %v3285, %v4302
    %v4304 = vand.u32 %v4303, 4294901760
    %v4305 = vsub.f32 %v4303, %v4304
    %v4306 = vand.u32 %v4305, 4294901760
    %4307 = vmatpush.msra.mxu0 %v4306
    %v4308 = vand.u32 %v3283, 4294901760
    %v4309 = vsub.f32 %v3283, %v4308
    %v4310 = vand.u32 %v4309, 4294901760
    %v4311 = vsub.f32 %v4309, %v4310
    %v4312 = vand.u32 %v4311, 4294901760
    %4313 = vmatpush.msra.mxu0 %v4312
    %v4314 = vand.u32 %v3281, 4294901760
    %v4315 = vsub.f32 %v3281, %v4314
    %v4316 = vand.u32 %v4315, 4294901760
    %v4317 = vsub.f32 %v4315, %v4316
    %v4318 = vand.u32 %v4317, 4294901760
    %4319 = vmatpush.msra.mxu0 %v4318
    %v4320 = vand.u32 %v3279, 4294901760
    %v4321 = vsub.f32 %v3279, %v4320
    %v4322 = vand.u32 %v4321, 4294901760
    %v4323 = vsub.f32 %v4321, %v4322
    %v4324 = vand.u32 %v4323, 4294901760
    %4325 = vmatpush.msra.mxu0 %v4324
    %v4326 = vand.u32 %v3277, 4294901760
    %v4327 = vsub.f32 %v3277, %v4326
    %v4328 = vand.u32 %v4327, 4294901760
    %v4329 = vsub.f32 %v4327, %v4328
    %v4330 = vand.u32 %v4329, 4294901760
    %4331 = vmatpush.msra.mxu0 %v4330
    %v4332 = vand.u32 %v3275, 4294901760
    %v4333 = vsub.f32 %v3275, %v4332
    %v4334 = vand.u32 %v4333, 4294901760
    %v4335 = vsub.f32 %v4333, %v4334
    %v4336 = vand.u32 %v4335, 4294901760
    %4337 = vmatpush.msra.mxu0 %v4336
    %v4338 = vand.u32 %v3273, 4294901760
    %v4339 = vsub.f32 %v3273, %v4338
    %v4340 = vand.u32 %v4339, 4294901760
    %v4341 = vsub.f32 %v4339, %v4340
    %v4342 = vand.u32 %v4341, 4294901760
    %4343 = vmatpush.msra.mxu0 %v4342
    %v4344 = vand.u32 %v3271, 4294901760
    %v4345 = vsub.f32 %v3271, %v4344
    %v4346 = vand.u32 %v4345, 4294901760
    %v4347 = vsub.f32 %v4345, %v4346
    %v4348 = vand.u32 %v4347, 4294901760
    %4349 = vmatpush.msra.mxu0 %v4348
    %v4350 = vand.u32 %v3267, 4294901760
    %4351 = vmatmul.f32.gmra.mxu0 %v4350
    %v4352 = vpop.f32.mrf.mxu0
    %v4353 = vadd.f32 %v4252, %v4352
    %4354 = vdwg.mxu0
    %v4355 = vand.u32 %v3301, 4294901760
    %v4356 = vsub.f32 %v3301, %v4355
    %4357 = vmatpush.msra.mxu0 %v4356
    %v4358 = vand.u32 %v3299, 4294901760
    %v4359 = vsub.f32 %v3299, %v4358
    %4360 = vmatpush.msra.mxu0 %v4359
    %v4361 = vand.u32 %v3297, 4294901760
    %v4362 = vsub.f32 %v3297, %v4361
    %4363 = vmatpush.msra.mxu0 %v4362
    %v4364 = vand.u32 %v3295, 4294901760
    %v4365 = vsub.f32 %v3295, %v4364
    %4366 = vmatpush.msra.mxu0 %v4365
    %v4367 = vand.u32 %v3293, 4294901760
    %v4368 = vsub.f32 %v3293, %v4367
    %4369 = vmatpush.msra.mxu0 %v4368
    %v4370 = vand.u32 %v3291, 4294901760
    %v4371 = vsub.f32 %v3291, %v4370
    %4372 = vmatpush.msra.mxu0 %v4371
    %v4373 = vand.u32 %v3289, 4294901760
    %v4374 = vsub.f32 %v3289, %v4373
    %4375 = vmatpush.msra.mxu0 %v4374
    %v4376 = vand.u32 %v3287, 4294901760
    %v4377 = vsub.f32 %v3287, %v4376
    %4378 = vmatpush.msra.mxu0 %v4377
    %v4379 = vand.u32 %v3285, 4294901760
    %v4380 = vsub.f32 %v3285, %v4379
    %4381 = vmatpush.msra.mxu0 %v4380
    %v4382 = vand.u32 %v3283, 4294901760
    %v4383 = vsub.f32 %v3283, %v4382
    %4384 = vmatpush.msra.mxu0 %v4383
    %v4385 = vand.u32 %v3281, 4294901760
    %v4386 = vsub.f32 %v3281, %v4385
    %4387 = vmatpush.msra.mxu0 %v4386
    %v4388 = vand.u32 %v3279, 4294901760
    %v4389 = vsub.f32 %v3279, %v4388
    %4390 = vmatpush.msra.mxu0 %v4389
    %v4391 = vand.u32 %v3277, 4294901760
    %v4392 = vsub.f32 %v3277, %v4391
    %4393 = vmatpush.msra.mxu0 %v4392
    %v4394 = vand.u32 %v3275, 4294901760
    %v4395 = vsub.f32 %v3275, %v4394
    %4396 = vmatpush.msra.mxu0 %v4395
    %v4397 = vand.u32 %v3273, 4294901760
    %v4398 = vsub.f32 %v3273, %v4397
    %4399 = vmatpush.msra.mxu0 %v4398
    %v4400 = vand.u32 %v3271, 4294901760
    %v4401 = vsub.f32 %v3271, %v4400
    %4402 = vmatpush.msra.mxu0 %v4401
    %v4403 = vand.u32 %v3267, 4294901760
    %v4404 = vsub.f32 %v3267, %v4403
    %4405 = vmatmul.f32.gmra.mxu0 %v4404
    %v4406 = vpop.f32.mrf.mxu0
    %v4407 = vadd.f32 %v4353, %v4406
    %4408 = vdwg.mxu0
    %v4409 = vand.u32 %v3301, 4294901760
    %4410 = vmatpush.msra.mxu0 %v4409
    %v4411 = vand.u32 %v3299, 4294901760
    %4412 = vmatpush.msra.mxu0 %v4411
    %v4413 = vand.u32 %v3297, 4294901760
    %4414 = vmatpush.msra.mxu0 %v4413
    %v4415 = vand.u32 %v3295, 4294901760
    %4416 = vmatpush.msra.mxu0 %v4415
    %v4417 = vand.u32 %v3293, 4294901760
    %4418 = vmatpush.msra.mxu0 %v4417
    %v4419 = vand.u32 %v3291, 4294901760
    %4420 = vmatpush.msra.mxu0 %v4419
    %v4421 = vand.u32 %v3289, 4294901760
    %4422 = vmatpush.msra.mxu0 %v4421
    %v4423 = vand.u32 %v3287, 4294901760
    %4424 = vmatpush.msra.mxu0 %v4423
    %v4425 = vand.u32 %v3285, 4294901760
    %4426 = vmatpush.msra.mxu0 %v4425
    %v4427 = vand.u32 %v3283, 4294901760
    %4428 = vmatpush.msra.mxu0 %v4427
    %v4429 = vand.u32 %v3281, 4294901760
    %4430 = vmatpush.msra.mxu0 %v4429
    %v4431 = vand.u32 %v3279, 4294901760
    %4432 = vmatpush.msra.mxu0 %v4431
    %v4433 = vand.u32 %v3277, 4294901760
    %4434 = vmatpush.msra.mxu0 %v4433
    %v4435 = vand.u32 %v3275, 4294901760
    %4436 = vmatpush.msra.mxu0 %v4435
    %v4437 = vand.u32 %v3273, 4294901760
    %4438 = vmatpush.msra.mxu0 %v4437
    %v4439 = vand.u32 %v3271, 4294901760
    %4440 = vmatpush.msra.mxu0 %v4439
    %v4441 = vand.u32 %v3267, 4294901760
    %v4442 = vsub.f32 %v3267, %v4441
    %v4443 = vand.u32 %v4442, 4294901760
    %4444 = vmatmul.f32.gmra.mxu0 %v4443
    %v4445 = vpop.f32.mrf.mxu0
    %v4446 = vadd.f32 %v4407, %v4445
    %4447 = vdwg.mxu0
    %v4448 = vand.u32 %v3301, 4294901760
    %v4449 = vsub.f32 %v3301, %v4448
    %v4450 = vand.u32 %v4449, 4294901760
    %4451 = vmatpush.msra.mxu0 %v4450
    %v4452 = vand.u32 %v3299, 4294901760
    %v4453 = vsub.f32 %v3299, %v4452
    %v4454 = vand.u32 %v4453, 4294901760
    %4455 = vmatpush.msra.mxu0 %v4454
    %v4456 = vand.u32 %v3297, 4294901760
    %v4457 = vsub.f32 %v3297, %v4456
    %v4458 = vand.u32 %v4457, 4294901760
    %4459 = vmatpush.msra.mxu0 %v4458
    %v4460 = vand.u32 %v3295, 4294901760
    %v4461 = vsub.f32 %v3295, %v4460
    %v4462 = vand.u32 %v4461, 4294901760
    %4463 = vmatpush.msra.mxu0 %v4462
    %v4464 = vand.u32 %v3293, 4294901760
    %v4465 = vsub.f32 %v3293, %v4464
    %v4466 = vand.u32 %v4465, 4294901760
    %4467 = vmatpush.msra.mxu0 %v4466
    %v4468 = vand.u32 %v3291, 4294901760
    %v4469 = vsub.f32 %v3291, %v4468
    %v4470 = vand.u32 %v4469, 4294901760
    %4471 = vmatpush.msra.mxu0 %v4470
    %v4472 = vand.u32 %v3289, 4294901760
    %v4473 = vsub.f32 %v3289, %v4472
    %v4474 = vand.u32 %v4473, 4294901760
    %4475 = vmatpush.msra.mxu0 %v4474
    %v4476 = vand.u32 %v3287, 4294901760
    %v4477 = vsub.f32 %v3287, %v4476
    %v4478 = vand.u32 %v4477, 4294901760
    %4479 = vmatpush.msra.mxu0 %v4478
    %v4480 = vand.u32 %v3285, 4294901760
    %v4481 = vsub.f32 %v3285, %v4480
    %v4482 = vand.u32 %v4481, 4294901760
    %4483 = vmatpush.msra.mxu0 %v4482
    %v4484 = vand.u32 %v3283, 4294901760
    %v4485 = vsub.f32 %v3283, %v4484
    %v4486 = vand.u32 %v4485, 4294901760
    %4487 = vmatpush.msra.mxu0 %v4486
    %v4488 = vand.u32 %v3281, 4294901760
    %v4489 = vsub.f32 %v3281, %v4488
    %v4490 = vand.u32 %v4489, 4294901760
    %4491 = vmatpush.msra.mxu0 %v4490
    %v4492 = vand.u32 %v3279, 4294901760
    %v4493 = vsub.f32 %v3279, %v4492
    %v4494 = vand.u32 %v4493, 4294901760
    %4495 = vmatpush.msra.mxu0 %v4494
    %v4496 = vand.u32 %v3277, 4294901760
    %v4497 = vsub.f32 %v3277, %v4496
    %v4498 = vand.u32 %v4497, 4294901760
    %4499 = vmatpush.msra.mxu0 %v4498
    %v4500 = vand.u32 %v3275, 4294901760
    %v4501 = vsub.f32 %v3275, %v4500
    %v4502 = vand.u32 %v4501, 4294901760
    %4503 = vmatpush.msra.mxu0 %v4502
    %v4504 = vand.u32 %v3273, 4294901760
    %v4505 = vsub.f32 %v3273, %v4504
    %v4506 = vand.u32 %v4505, 4294901760
    %4507 = vmatpush.msra.mxu0 %v4506
    %v4508 = vand.u32 %v3271, 4294901760
    %v4509 = vsub.f32 %v3271, %v4508
    %v4510 = vand.u32 %v4509, 4294901760
    %4511 = vmatpush.msra.mxu0 %v4510
    %v4512 = vand.u32 %v3267, 4294901760
    %4513 = vmatmul.f32.gmra.mxu0 %v4512
    %v4514 = vpop.f32.mrf.mxu0
    %v4515 = vadd.f32 %v4446, %v4514
    %4516 = vdwg.mxu0
    %v4517 = vand.u32 %v3301, 4294901760
    %4518 = vmatpush.msra.mxu0 %v4517
    %v4519 = vand.u32 %v3299, 4294901760
    %4520 = vmatpush.msra.mxu0 %v4519
    %v4521 = vand.u32 %v3297, 4294901760
    %4522 = vmatpush.msra.mxu0 %v4521
    %v4523 = vand.u32 %v3295, 4294901760
    %4524 = vmatpush.msra.mxu0 %v4523
    %v4525 = vand.u32 %v3293, 4294901760
    %4526 = vmatpush.msra.mxu0 %v4525
    %v4527 = vand.u32 %v3291, 4294901760
    %4528 = vmatpush.msra.mxu0 %v4527
    %v4529 = vand.u32 %v3289, 4294901760
    %4530 = vmatpush.msra.mxu0 %v4529
    %v4531 = vand.u32 %v3287, 4294901760
    %4532 = vmatpush.msra.mxu0 %v4531
    %v4533 = vand.u32 %v3285, 4294901760
    %4534 = vmatpush.msra.mxu0 %v4533
    %v4535 = vand.u32 %v3283, 4294901760
    %4536 = vmatpush.msra.mxu0 %v4535
    %v4537 = vand.u32 %v3281, 4294901760
    %4538 = vmatpush.msra.mxu0 %v4537
    %v4539 = vand.u32 %v3279, 4294901760
    %4540 = vmatpush.msra.mxu0 %v4539
    %v4541 = vand.u32 %v3277, 4294901760
    %4542 = vmatpush.msra.mxu0 %v4541
    %v4543 = vand.u32 %v3275, 4294901760
    %4544 = vmatpush.msra.mxu0 %v4543
    %v4545 = vand.u32 %v3273, 4294901760
    %4546 = vmatpush.msra.mxu0 %v4545
    %v4547 = vand.u32 %v3271, 4294901760
    %4548 = vmatpush.msra.mxu0 %v4547
    %v4549 = vand.u32 %v3267, 4294901760
    %4550 = vmatmul.f32.gmra.mxu0 %v4549
    %v4551 = vpop.f32.mrf.mxu0
    %v4552 = vadd.f32 %v4515, %v4551
    %4553 = vdwg.mxu0
    %v4554 = vand.u32 %v3333, 4294901760
    %4555 = vmatpush.msra.mxu0 %v4554
    %v4556 = vand.u32 %v3331, 4294901760
    %4557 = vmatpush.msra.mxu0 %v4556
    %v4558 = vand.u32 %v3329, 4294901760
    %4559 = vmatpush.msra.mxu0 %v4558
    %v4560 = vand.u32 %v3327, 4294901760
    %4561 = vmatpush.msra.mxu0 %v4560
    %v4562 = vand.u32 %v3325, 4294901760
    %4563 = vmatpush.msra.mxu0 %v4562
    %v4564 = vand.u32 %v3323, 4294901760
    %4565 = vmatpush.msra.mxu0 %v4564
    %v4566 = vand.u32 %v3321, 4294901760
    %4567 = vmatpush.msra.mxu0 %v4566
    %v4568 = vand.u32 %v3319, 4294901760
    %4569 = vmatpush.msra.mxu0 %v4568
    %v4570 = vand.u32 %v3317, 4294901760
    %4571 = vmatpush.msra.mxu0 %v4570
    %v4572 = vand.u32 %v3315, 4294901760
    %4573 = vmatpush.msra.mxu0 %v4572
    %v4574 = vand.u32 %v3313, 4294901760
    %4575 = vmatpush.msra.mxu0 %v4574
    %v4576 = vand.u32 %v3311, 4294901760
    %4577 = vmatpush.msra.mxu0 %v4576
    %v4578 = vand.u32 %v3309, 4294901760
    %4579 = vmatpush.msra.mxu0 %v4578
    %v4580 = vand.u32 %v3307, 4294901760
    %4581 = vmatpush.msra.mxu0 %v4580
    %v4582 = vand.u32 %v3305, 4294901760
    %4583 = vmatpush.msra.mxu0 %v4582
    %v4584 = vand.u32 %v3303, 4294901760
    %4585 = vmatpush.msra.mxu0 %v4584
    %v4586 = vand.u32 %v3268, 4294901760
    %v4587 = vsub.f32 %v3268, %v4586
    %v4588 = vand.u32 %v4587, 4294901760
    %v4589 = vsub.f32 %v4587, %v4588
    %v4590 = vand.u32 %v4589, 4294901760
    %4591 = vmatmul.f32.gmra.mxu0 %v4590
    %v4592 = vpop.f32.mrf.mxu0
    %v4593 = vadd.f32 %v4552, %v4592
    %4594 = vdwg.mxu0
    %v4595 = vand.u32 %v3333, 4294901760
    %v4596 = vsub.f32 %v3333, %v4595
    %v4597 = vand.u32 %v4596, 4294901760
    %v4598 = vsub.f32 %v4596, %v4597
    %v4599 = vand.u32 %v4598, 4294901760
    %4600 = vmatpush.msra.mxu0 %v4599
    %v4601 = vand.u32 %v3331, 4294901760
    %v4602 = vsub.f32 %v3331, %v4601
    %v4603 = vand.u32 %v4602, 4294901760
    %v4604 = vsub.f32 %v4602, %v4603
    %v4605 = vand.u32 %v4604, 4294901760
    %4606 = vmatpush.msra.mxu0 %v4605
    %v4607 = vand.u32 %v3329, 4294901760
    %v4608 = vsub.f32 %v3329, %v4607
    %v4609 = vand.u32 %v4608, 4294901760
    %v4610 = vsub.f32 %v4608, %v4609
    %v4611 = vand.u32 %v4610, 4294901760
    %4612 = vmatpush.msra.mxu0 %v4611
    %v4613 = vand.u32 %v3327, 4294901760
    %v4614 = vsub.f32 %v3327, %v4613
    %v4615 = vand.u32 %v4614, 4294901760
    %v4616 = vsub.f32 %v4614, %v4615
    %v4617 = vand.u32 %v4616, 4294901760
    %4618 = vmatpush.msra.mxu0 %v4617
    %v4619 = vand.u32 %v3325, 4294901760
    %v4620 = vsub.f32 %v3325, %v4619
    %v4621 = vand.u32 %v4620, 4294901760
    %v4622 = vsub.f32 %v4620, %v4621
    %v4623 = vand.u32 %v4622, 4294901760
    %4624 = vmatpush.msra.mxu0 %v4623
    %v4625 = vand.u32 %v3323, 4294901760
    %v4626 = vsub.f32 %v3323, %v4625
    %v4627 = vand.u32 %v4626, 4294901760
    %v4628 = vsub.f32 %v4626, %v4627
    %v4629 = vand.u32 %v4628, 4294901760
    %4630 = vmatpush.msra.mxu0 %v4629
    %v4631 = vand.u32 %v3321, 4294901760
    %v4632 = vsub.f32 %v3321, %v4631
    %v4633 = vand.u32 %v4632, 4294901760
    %v4634 = vsub.f32 %v4632, %v4633
    %v4635 = vand.u32 %v4634, 4294901760
    %4636 = vmatpush.msra.mxu0 %v4635
    %v4637 = vand.u32 %v3319, 4294901760
    %v4638 = vsub.f32 %v3319, %v4637
    %v4639 = vand.u32 %v4638, 4294901760
    %v4640 = vsub.f32 %v4638, %v4639
    %v4641 = vand.u32 %v4640, 4294901760
    %4642 = vmatpush.msra.mxu0 %v4641
    %v4643 = vand.u32 %v3317, 4294901760
    %v4644 = vsub.f32 %v3317, %v4643
    %v4645 = vand.u32 %v4644, 4294901760
    %v4646 = vsub.f32 %v4644, %v4645
    %v4647 = vand.u32 %v4646, 4294901760
    %4648 = vmatpush.msra.mxu0 %v4647
    %v4649 = vand.u32 %v3315, 4294901760
    %v4650 = vsub.f32 %v3315, %v4649
    %v4651 = vand.u32 %v4650, 4294901760
    %v4652 = vsub.f32 %v4650, %v4651
    %v4653 = vand.u32 %v4652, 4294901760
    %4654 = vmatpush.msra.mxu0 %v4653
    %v4655 = vand.u32 %v3313, 4294901760
    %v4656 = vsub.f32 %v3313, %v4655
    %v4657 = vand.u32 %v4656, 4294901760
    %v4658 = vsub.f32 %v4656, %v4657
    %v4659 = vand.u32 %v4658, 4294901760
    %4660 = vmatpush.msra.mxu0 %v4659
    %v4661 = vand.u32 %v3311, 4294901760
    %v4662 = vsub.f32 %v3311, %v4661
    %v4663 = vand.u32 %v4662, 4294901760
    %v4664 = vsub.f32 %v4662, %v4663
    %v4665 = vand.u32 %v4664, 4294901760
    %4666 = vmatpush.msra.mxu0 %v4665
    %v4667 = vand.u32 %v3309, 4294901760
    %v4668 = vsub.f32 %v3309, %v4667
    %v4669 = vand.u32 %v4668, 4294901760
    %v4670 = vsub.f32 %v4668, %v4669
    %v4671 = vand.u32 %v4670, 4294901760
    %4672 = vmatpush.msra.mxu0 %v4671
    %v4673 = vand.u32 %v3307, 4294901760
    %v4674 = vsub.f32 %v3307, %v4673
    %v4675 = vand.u32 %v4674, 4294901760
    %v4676 = vsub.f32 %v4674, %v4675
    %v4677 = vand.u32 %v4676, 4294901760
    %4678 = vmatpush.msra.mxu0 %v4677
    %v4679 = vand.u32 %v3305, 4294901760
    %v4680 = vsub.f32 %v3305, %v4679
    %v4681 = vand.u32 %v4680, 4294901760
    %v4682 = vsub.f32 %v4680, %v4681
    %v4683 = vand.u32 %v4682, 4294901760
    %4684 = vmatpush.msra.mxu0 %v4683
    %v4685 = vand.u32 %v3303, 4294901760
    %v4686 = vsub.f32 %v3303, %v4685
    %v4687 = vand.u32 %v4686, 4294901760
    %v4688 = vsub.f32 %v4686, %v4687
    %v4689 = vand.u32 %v4688, 4294901760
    %4690 = vmatpush.msra.mxu0 %v4689
    %v4691 = vand.u32 %v3268, 4294901760
    %4692 = vmatmul.f32.gmra.mxu0 %v4691
    %v4693 = vpop.f32.mrf.mxu0
    %v4694 = vadd.f32 %v4593, %v4693
    %4695 = vdwg.mxu0
    %v4696 = vand.u32 %v3333, 4294901760
    %v4697 = vsub.f32 %v3333, %v4696
    %4698 = vmatpush.msra.mxu0 %v4697
    %v4699 = vand.u32 %v3331, 4294901760
    %v4700 = vsub.f32 %v3331, %v4699
    %4701 = vmatpush.msra.mxu0 %v4700
    %v4702 = vand.u32 %v3329, 4294901760
    %v4703 = vsub.f32 %v3329, %v4702
    %4704 = vmatpush.msra.mxu0 %v4703
    %v4705 = vand.u32 %v3327, 4294901760
    %v4706 = vsub.f32 %v3327, %v4705
    %4707 = vmatpush.msra.mxu0 %v4706
    %v4708 = vand.u32 %v3325, 4294901760
    %v4709 = vsub.f32 %v3325, %v4708
    %4710 = vmatpush.msra.mxu0 %v4709
    %v4711 = vand.u32 %v3323, 4294901760
    %v4712 = vsub.f32 %v3323, %v4711
    %4713 = vmatpush.msra.mxu0 %v4712
    %v4714 = vand.u32 %v3321, 4294901760
    %v4715 = vsub.f32 %v3321, %v4714
    %4716 = vmatpush.msra.mxu0 %v4715
    %v4717 = vand.u32 %v3319, 4294901760
    %v4718 = vsub.f32 %v3319, %v4717
    %4719 = vmatpush.msra.mxu0 %v4718
    %v4720 = vand.u32 %v3317, 4294901760
    %v4721 = vsub.f32 %v3317, %v4720
    %4722 = vmatpush.msra.mxu0 %v4721
    %v4723 = vand.u32 %v3315, 4294901760
    %v4724 = vsub.f32 %v3315, %v4723
    %4725 = vmatpush.msra.mxu0 %v4724
    %v4726 = vand.u32 %v3313, 4294901760
    %v4727 = vsub.f32 %v3313, %v4726
    %4728 = vmatpush.msra.mxu0 %v4727
    %v4729 = vand.u32 %v3311, 4294901760
    %v4730 = vsub.f32 %v3311, %v4729
    %4731 = vmatpush.msra.mxu0 %v4730
    %v4732 = vand.u32 %v3309, 4294901760
    %v4733 = vsub.f32 %v3309, %v4732
    %4734 = vmatpush.msra.mxu0 %v4733
    %v4735 = vand.u32 %v3307, 4294901760
    %v4736 = vsub.f32 %v3307, %v4735
    %4737 = vmatpush.msra.mxu0 %v4736
    %v4738 = vand.u32 %v3305, 4294901760
    %v4739 = vsub.f32 %v3305, %v4738
    %4740 = vmatpush.msra.mxu0 %v4739
    %v4741 = vand.u32 %v3303, 4294901760
    %v4742 = vsub.f32 %v3303, %v4741
    %4743 = vmatpush.msra.mxu0 %v4742
    %v4744 = vand.u32 %v3268, 4294901760
    %v4745 = vsub.f32 %v3268, %v4744
    %4746 = vmatmul.f32.gmra.mxu0 %v4745
    %v4747 = vpop.f32.mrf.mxu0
    %v4748 = vadd.f32 %v4694, %v4747
    %4749 = vdwg.mxu0
    %v4750 = vand.u32 %v3333, 4294901760
    %4751 = vmatpush.msra.mxu0 %v4750
    %v4752 = vand.u32 %v3331, 4294901760
    %4753 = vmatpush.msra.mxu0 %v4752
    %v4754 = vand.u32 %v3329, 4294901760
    %4755 = vmatpush.msra.mxu0 %v4754
    %v4756 = vand.u32 %v3327, 4294901760
    %4757 = vmatpush.msra.mxu0 %v4756
    %v4758 = vand.u32 %v3325, 4294901760
    %4759 = vmatpush.msra.mxu0 %v4758
    %v4760 = vand.u32 %v3323, 4294901760
    %4761 = vmatpush.msra.mxu0 %v4760
    %v4762 = vand.u32 %v3321, 4294901760
    %4763 = vmatpush.msra.mxu0 %v4762
    %v4764 = vand.u32 %v3319, 4294901760
    %4765 = vmatpush.msra.mxu0 %v4764
    %v4766 = vand.u32 %v3317, 4294901760
    %4767 = vmatpush.msra.mxu0 %v4766
    %v4768 = vand.u32 %v3315, 4294901760
    %4769 = vmatpush.msra.mxu0 %v4768
    %v4770 = vand.u32 %v3313, 4294901760
    %4771 = vmatpush.msra.mxu0 %v4770
    %v4772 = vand.u32 %v3311, 4294901760
    %4773 = vmatpush.msra.mxu0 %v4772
    %v4774 = vand.u32 %v3309, 4294901760
    %4775 = vmatpush.msra.mxu0 %v4774
    %v4776 = vand.u32 %v3307, 4294901760
    %4777 = vmatpush.msra.mxu0 %v4776
    %v4778 = vand.u32 %v3305, 4294901760
    %4779 = vmatpush.msra.mxu0 %v4778
    %v4780 = vand.u32 %v3303, 4294901760
    %4781 = vmatpush.msra.mxu0 %v4780
    %v4782 = vand.u32 %v3268, 4294901760
    %v4783 = vsub.f32 %v3268, %v4782
    %v4784 = vand.u32 %v4783, 4294901760
    %4785 = vmatmul.f32.gmra.mxu0 %v4784
    %v4786 = vpop.f32.mrf.mxu0
    %v4787 = vadd.f32 %v4748, %v4786
    %4788 = vdwg.mxu0
    %v4789 = vand.u32 %v3333, 4294901760
    %v4790 = vsub.f32 %v3333, %v4789
    %v4791 = vand.u32 %v4790, 4294901760
    %4792 = vmatpush.msra.mxu0 %v4791
    %v4793 = vand.u32 %v3331, 4294901760
    %v4794 = vsub.f32 %v3331, %v4793
    %v4795 = vand.u32 %v4794, 4294901760
    %4796 = vmatpush.msra.mxu0 %v4795
    %v4797 = vand.u32 %v3329, 4294901760
    %v4798 = vsub.f32 %v3329, %v4797
    %v4799 = vand.u32 %v4798, 4294901760
    %4800 = vmatpush.msra.mxu0 %v4799
    %v4801 = vand.u32 %v3327, 4294901760
    %v4802 = vsub.f32 %v3327, %v4801
    %v4803 = vand.u32 %v4802, 4294901760
    %4804 = vmatpush.msra.mxu0 %v4803
    %v4805 = vand.u32 %v3325, 4294901760
    %v4806 = vsub.f32 %v3325, %v4805
    %v4807 = vand.u32 %v4806, 4294901760
    %4808 = vmatpush.msra.mxu0 %v4807
    %v4809 = vand.u32 %v3323, 4294901760
    %v4810 = vsub.f32 %v3323, %v4809
    %v4811 = vand.u32 %v4810, 4294901760
    %4812 = vmatpush.msra.mxu0 %v4811
    %v4813 = vand.u32 %v3321, 4294901760
    %v4814 = vsub.f32 %v3321, %v4813
    %v4815 = vand.u32 %v4814, 4294901760
    %4816 = vmatpush.msra.mxu0 %v4815
    %v4817 = vand.u32 %v3319, 4294901760
    %v4818 = vsub.f32 %v3319, %v4817
    %v4819 = vand.u32 %v4818, 4294901760
    %4820 = vmatpush.msra.mxu0 %v4819
    %v4821 = vand.u32 %v3317, 4294901760
    %v4822 = vsub.f32 %v3317, %v4821
    %v4823 = vand.u32 %v4822, 4294901760
    %4824 = vmatpush.msra.mxu0 %v4823
    %v4825 = vand.u32 %v3315, 4294901760
    %v4826 = vsub.f32 %v3315, %v4825
    %v4827 = vand.u32 %v4826, 4294901760
    %4828 = vmatpush.msra.mxu0 %v4827
    %v4829 = vand.u32 %v3313, 4294901760
    %v4830 = vsub.f32 %v3313, %v4829
    %v4831 = vand.u32 %v4830, 4294901760
    %4832 = vmatpush.msra.mxu0 %v4831
    %v4833 = vand.u32 %v3311, 4294901760
    %v4834 = vsub.f32 %v3311, %v4833
    %v4835 = vand.u32 %v4834, 4294901760
    %4836 = vmatpush.msra.mxu0 %v4835
    %v4837 = vand.u32 %v3309, 4294901760
    %v4838 = vsub.f32 %v3309, %v4837
    %v4839 = vand.u32 %v4838, 4294901760
    %4840 = vmatpush.msra.mxu0 %v4839
    %v4841 = vand.u32 %v3307, 4294901760
    %v4842 = vsub.f32 %v3307, %v4841
    %v4843 = vand.u32 %v4842, 4294901760
    %4844 = vmatpush.msra.mxu0 %v4843
    %v4845 = vand.u32 %v3305, 4294901760
    %v4846 = vsub.f32 %v3305, %v4845
    %v4847 = vand.u32 %v4846, 4294901760
    %4848 = vmatpush.msra.mxu0 %v4847
    %v4849 = vand.u32 %v3303, 4294901760
    %v4850 = vsub.f32 %v3303, %v4849
    %v4851 = vand.u32 %v4850, 4294901760
    %4852 = vmatpush.msra.mxu0 %v4851
    %v4853 = vand.u32 %v3268, 4294901760
    %4854 = vmatmul.f32.gmra.mxu0 %v4853
    %v4855 = vpop.f32.mrf.mxu0
    %v4856 = vadd.f32 %v4787, %v4855
    %4857 = vdwg.mxu0
    %v4858 = vand.u32 %v3333, 4294901760
    %4859 = vmatpush.msra.mxu0 %v4858
    %v4860 = vand.u32 %v3331, 4294901760
    %4861 = vmatpush.msra.mxu0 %v4860
    %v4862 = vand.u32 %v3329, 4294901760
    %4863 = vmatpush.msra.mxu0 %v4862
    %v4864 = vand.u32 %v3327, 4294901760
    %4865 = vmatpush.msra.mxu0 %v4864
    %v4866 = vand.u32 %v3325, 4294901760
    %4867 = vmatpush.msra.mxu0 %v4866
    %v4868 = vand.u32 %v3323, 4294901760
    %4869 = vmatpush.msra.mxu0 %v4868
    %v4870 = vand.u32 %v3321, 4294901760
    %4871 = vmatpush.msra.mxu0 %v4870
    %v4872 = vand.u32 %v3319, 4294901760
    %4873 = vmatpush.msra.mxu0 %v4872
    %v4874 = vand.u32 %v3317, 4294901760
    %4875 = vmatpush.msra.mxu0 %v4874
    %v4876 = vand.u32 %v3315, 4294901760
    %4877 = vmatpush.msra.mxu0 %v4876
    %v4878 = vand.u32 %v3313, 4294901760
    %4879 = vmatpush.msra.mxu0 %v4878
    %v4880 = vand.u32 %v3311, 4294901760
    %4881 = vmatpush.msra.mxu0 %v4880
    %v4882 = vand.u32 %v3309, 4294901760
    %4883 = vmatpush.msra.mxu0 %v4882
    %v4884 = vand.u32 %v3307, 4294901760
    %4885 = vmatpush.msra.mxu0 %v4884
    %v4886 = vand.u32 %v3305, 4294901760
    %4887 = vmatpush.msra.mxu0 %v4886
    %v4888 = vand.u32 %v3303, 4294901760
    %4889 = vmatpush.msra.mxu0 %v4888
    %v4890 = vand.u32 %v3268, 4294901760
    %4891 = vmatmul.f32.gmra.mxu0 %v4890
    %v4892 = vpop.f32.mrf.mxu0
    %v4893 = vadd.f32 %v4856, %v4892
    %4894 = vdwg.mxu0
    %4895 = vmatpush.msra.mxu0 0.0
    %4896 = vmatpush.msra.mxu0 0.0
    %4897 = vmatpush.msra.mxu0 0.0
    %4898 = vmatpush.msra.mxu0 0.0
    %4899 = vmatpush.msra.mxu0 0.0
    %4900 = vmatpush.msra.mxu0 0.0
    %4901 = vmatpush.msra.mxu0 0.0
    %4902 = vmatpush.msra.mxu0 0.0
    %4903 = vmatpush.msra.mxu0 0.0
    %4904 = vmatpush.msra.mxu0 0.0
    %4905 = vmatpush.msra.mxu0 0.0
    %4906 = vmatpush.msra.mxu0 0.0
    %v4907 = vand.u32 %v3341, 4294901760
    %4908 = vmatpush.msra.mxu0 %v4907
    %v4909 = vand.u32 %v3339, 4294901760
    %4910 = vmatpush.msra.mxu0 %v4909
    %v4911 = vand.u32 %v3337, 4294901760
    %4912 = vmatpush.msra.mxu0 %v4911
    %v4913 = vand.u32 %v3335, 4294901760
    %4914 = vmatpush.msra.mxu0 %v4913
    %v4915 = vand.u32 %v3344, 4294901760
    %v4916 = vsub.f32 %v3344, %v4915
    %v4917 = vand.u32 %v4916, 4294901760
    %v4918 = vsub.f32 %v4916, %v4917
    %v4919 = vand.u32 %v4918, 4294901760
    %4920 = vmatmul.f32.gmra.mxu0 %v4919
    %v4921 = vpop.f32.mrf.mxu0
    %v4922 = vadd.f32 %v4893, %v4921
    %4923 = vdwg.mxu0
    %4924 = vmatpush.msra.mxu0 0.0
    %4925 = vmatpush.msra.mxu0 0.0
    %4926 = vmatpush.msra.mxu0 0.0
    %4927 = vmatpush.msra.mxu0 0.0
    %4928 = vmatpush.msra.mxu0 0.0
    %4929 = vmatpush.msra.mxu0 0.0
    %4930 = vmatpush.msra.mxu0 0.0
    %4931 = vmatpush.msra.mxu0 0.0
    %4932 = vmatpush.msra.mxu0 0.0
    %4933 = vmatpush.msra.mxu0 0.0
    %4934 = vmatpush.msra.mxu0 0.0
    %4935 = vmatpush.msra.mxu0 0.0
    %v4936 = vand.u32 %v3341, 4294901760
    %v4937 = vsub.f32 %v3341, %v4936
    %v4938 = vand.u32 %v4937, 4294901760
    %v4939 = vsub.f32 %v4937, %v4938
    %v4940 = vand.u32 %v4939, 4294901760
    %4941 = vmatpush.msra.mxu0 %v4940
    %v4942 = vand.u32 %v3339, 4294901760
    %v4943 = vsub.f32 %v3339, %v4942
    %v4944 = vand.u32 %v4943, 4294901760
    %v4945 = vsub.f32 %v4943, %v4944
    %v4946 = vand.u32 %v4945, 4294901760
    %4947 = vmatpush.msra.mxu0 %v4946
    %v4948 = vand.u32 %v3337, 4294901760
    %v4949 = vsub.f32 %v3337, %v4948
    %v4950 = vand.u32 %v4949, 4294901760
    %v4951 = vsub.f32 %v4949, %v4950
    %v4952 = vand.u32 %v4951, 4294901760
    %4953 = vmatpush.msra.mxu0 %v4952
    %v4954 = vand.u32 %v3335, 4294901760
    %v4955 = vsub.f32 %v3335, %v4954
    %v4956 = vand.u32 %v4955, 4294901760
    %v4957 = vsub.f32 %v4955, %v4956
    %v4958 = vand.u32 %v4957, 4294901760
    %4959 = vmatpush.msra.mxu0 %v4958
    %v4960 = vand.u32 %v3344, 4294901760
    %4961 = vmatmul.f32.gmra.mxu0 %v4960
    %v4962 = vpop.f32.mrf.mxu0
    %v4963 = vadd.f32 %v4922, %v4962
    %4964 = vdwg.mxu0
    %4965 = vmatpush.msra.mxu0 0.0
    %4966 = vmatpush.msra.mxu0 0.0
    %4967 = vmatpush.msra.mxu0 0.0
    %4968 = vmatpush.msra.mxu0 0.0
    %4969 = vmatpush.msra.mxu0 0.0
    %4970 = vmatpush.msra.mxu0 0.0
    %4971 = vmatpush.msra.mxu0 0.0
    %4972 = vmatpush.msra.mxu0 0.0
    %4973 = vmatpush.msra.mxu0 0.0
    %4974 = vmatpush.msra.mxu0 0.0
    %4975 = vmatpush.msra.mxu0 0.0
    %4976 = vmatpush.msra.mxu0 0.0
    %v4977 = vand.u32 %v3341, 4294901760
    %v4978 = vsub.f32 %v3341, %v4977
    %4979 = vmatpush.msra.mxu0 %v4978
    %v4980 = vand.u32 %v3339, 4294901760
    %v4981 = vsub.f32 %v3339, %v4980
    %4982 = vmatpush.msra.mxu0 %v4981
    %v4983 = vand.u32 %v3337, 4294901760
    %v4984 = vsub.f32 %v3337, %v4983
    %4985 = vmatpush.msra.mxu0 %v4984
    %v4986 = vand.u32 %v3335, 4294901760
    %v4987 = vsub.f32 %v3335, %v4986
    %4988 = vmatpush.msra.mxu0 %v4987
    %v4989 = vand.u32 %v3344, 4294901760
    %v4990 = vsub.f32 %v3344, %v4989
    %4991 = vmatmul.f32.gmra.mxu0 %v4990
    %v4992 = vpop.f32.mrf.mxu0
    %v4993 = vadd.f32 %v4963, %v4992
    %4994 = vdwg.mxu0
    %4995 = vmatpush.msra.mxu0 0.0
    %4996 = vmatpush.msra.mxu0 0.0
    %4997 = vmatpush.msra.mxu0 0.0
    %4998 = vmatpush.msra.mxu0 0.0
    %4999 = vmatpush.msra.mxu0 0.0
    %5000 = vmatpush.msra.mxu0 0.0
    %5001 = vmatpush.msra.mxu0 0.0
    %5002 = vmatpush.msra.mxu0 0.0
    %5003 = vmatpush.msra.mxu0 0.0
    %5004 = vmatpush.msra.mxu0 0.0
    %5005 = vmatpush.msra.mxu0 0.0
    %5006 = vmatpush.msra.mxu0 0.0
    %v5007 = vand.u32 %v3341, 4294901760
    %5008 = vmatpush.msra.mxu0 %v5007
    %v5009 = vand.u32 %v3339, 4294901760
    %5010 = vmatpush.msra.mxu0 %v5009
    %v5011 = vand.u32 %v3337, 4294901760
    %5012 = vmatpush.msra.mxu0 %v5011
    %v5013 = vand.u32 %v3335, 4294901760
    %5014 = vmatpush.msra.mxu0 %v5013
    %v5015 = vand.u32 %v3344, 4294901760
    %v5016 = vsub.f32 %v3344, %v5015
    %v5017 = vand.u32 %v5016, 4294901760
    %5018 = vmatmul.f32.gmra.mxu0 %v5017
    %v5019 = vpop.f32.mrf.mxu0
    %v5020 = vadd.f32 %v4993, %v5019
    %5021 = vdwg.mxu0
    %5022 = vmatpush.msra.mxu0 0.0
    %5023 = vmatpush.msra.mxu0 0.0
    %5024 = vmatpush.msra.mxu0 0.0
    %5025 = vmatpush.msra.mxu0 0.0
    %5026 = vmatpush.msra.mxu0 0.0
    %5027 = vmatpush.msra.mxu0 0.0
    %5028 = vmatpush.msra.mxu0 0.0
    %5029 = vmatpush.msra.mxu0 0.0
    %5030 = vmatpush.msra.mxu0 0.0
    %5031 = vmatpush.msra.mxu0 0.0
    %5032 = vmatpush.msra.mxu0 0.0
    %5033 = vmatpush.msra.mxu0 0.0
    %v5034 = vand.u32 %v3341, 4294901760
    %v5035 = vsub.f32 %v3341, %v5034
    %v5036 = vand.u32 %v5035, 4294901760
    %5037 = vmatpush.msra.mxu0 %v5036
    %v5038 = vand.u32 %v3339, 4294901760
    %v5039 = vsub.f32 %v3339, %v5038
    %v5040 = vand.u32 %v5039, 4294901760
    %5041 = vmatpush.msra.mxu0 %v5040
    %v5042 = vand.u32 %v3337, 4294901760
    %v5043 = vsub.f32 %v3337, %v5042
    %v5044 = vand.u32 %v5043, 4294901760
    %5045 = vmatpush.msra.mxu0 %v5044
    %v5046 = vand.u32 %v3335, 4294901760
    %v5047 = vsub.f32 %v3335, %v5046
    %v5048 = vand.u32 %v5047, 4294901760
    %5049 = vmatpush.msra.mxu0 %v5048
    %v5050 = vand.u32 %v3344, 4294901760
    %5051 = vmatmul.f32.gmra.mxu0 %v5050
    %v5052 = vpop.f32.mrf.mxu0
    %v5053 = vadd.f32 %v5020, %v5052
    %5054 = vdwg.mxu0
    %5055 = vmatpush.msra.mxu0 0.0
    %5056 = vmatpush.msra.mxu0 0.0
    %5057 = vmatpush.msra.mxu0 0.0
    %5058 = vmatpush.msra.mxu0 0.0
    %5059 = vmatpush.msra.mxu0 0.0
    %5060 = vmatpush.msra.mxu0 0.0
    %5061 = vmatpush.msra.mxu0 0.0
    %5062 = vmatpush.msra.mxu0 0.0
    %5063 = vmatpush.msra.mxu0 0.0
    %5064 = vmatpush.msra.mxu0 0.0
    %5065 = vmatpush.msra.mxu0 0.0
    %5066 = vmatpush.msra.mxu0 0.0
    %v5067 = vand.u32 %v3341, 4294901760
    %5068 = vmatpush.msra.mxu0 %v5067
    %v5069 = vand.u32 %v3339, 4294901760
    %5070 = vmatpush.msra.mxu0 %v5069
    %v5071 = vand.u32 %v3337, 4294901760
    %5072 = vmatpush.msra.mxu0 %v5071
    %v5073 = vand.u32 %v3335, 4294901760
    %5074 = vmatpush.msra.mxu0 %v5073
    %v5075 = vand.u32 %v3344, 4294901760
    %5076 = vmatmul.f32.gmra.mxu0 %v5075
    %v5077 = vpop.f32.mrf.mxu0
    %v5078 = vadd.f32 %v5053, %v5077
    %5079 = vdwg.mxu0
    %v5080 = vld [vmem:[%s5] sm:$0xff]
    %v5081 = vld [vmem:[%s5 + $0x8] sm:$0xff]
    %v5082 = vld [vmem:[%s5 + $0x10] sm:$0xff]
    %v5083 = vld [vmem:[%s5 + $0x18] sm:$0xff]
    %v5084 = vld [vmem:[%s5 + $0x20] sm:$0xff]
    %v5085 = vld [vmem:[%s5 + $0x28] sm:$0xff]
    %v5086 = vld [vmem:[%s5 + $0x30] sm:$0xff]
    %v5087 = vld [vmem:[%s5 + $0x38] sm:$0xff]
    %v5088 = vld [vmem:[%s5 + $0x40] sm:$0xff]
    %v5089 = vld [vmem:[%s5 + $0x48] sm:$0xff]
    %v5090 = vld [vmem:[%s5 + $0x50] sm:$0xff]
    %v5091 = vld [vmem:[%s5 + $0x58] sm:$0xff]
    %v5092 = vld [vmem:[%s5 + $0x60] sm:$0xff]
    %v5093 = vld [vmem:[%s5 + $0x68] sm:$0xff]
    %v5094 = vld [vmem:[%s5 + $0x70] sm:$0xff]
    %v5095 = vld [vmem:[%s5 + $0x78] sm:$0xff]
    %v5096 = vld [vmem:[%s5 + $0x80] sm:$0xff]
    %v5097 = vld [vmem:[%s5 + $0x88] sm:$0xff]
    %v5098 = vld [vmem:[%s5 + $0x90] sm:$0xff]
    %v5099 = vld [vmem:[%s5 + $0x98] sm:$0xff]
    %v5100 = vld [vmem:[%s5 + $0xa0] sm:$0xff]
    %v5101 = vld [vmem:[%s5 + $0xa8] sm:$0xff]
    %v5102 = vld [vmem:[%s5 + $0xb0] sm:$0xff]
    %v5103 = vld [vmem:[%s5 + $0xb8] sm:$0xff]
    %v5104 = vld [vmem:[%s5 + $0xc0] sm:$0xff]
    %v5105 = vld [vmem:[%s5 + $0xc8] sm:$0xff]
    %v5106 = vld [vmem:[%s5 + $0xd0] sm:$0xff]
    %v5107 = vld [vmem:[%s5 + $0xd8] sm:$0xff]
    %v5108 = vld [vmem:[%s5 + $0xe0] sm:$0xff]
    %v5109 = vld [vmem:[%s5 + $0xe8] sm:$0xff]
    %v5110 = vld [vmem:[%s5 + $0xf0] sm:$0xff]
    %v5111 = vld [vmem:[%s5 + $0xf8] sm:$0xff]
    %v5112 = vld [vmem:[%s5 + $0x100] sm:$0xff]
    %v5113 = vld [vmem:[%s5 + $0x108] sm:$0xff]
    %v5114 = vld [vmem:[%s5 + $0x110] sm:$0xff]
    %v5115 = vld [vmem:[%s5 + $0x118] sm:$0xff]
    %v5116 = vld [vmem:[%s5 + $0x120] sm:$0xff]
    %v5117 = vld [vmem:[%s5 + $0x128] sm:$0xff]
    %v5118 = vld [vmem:[%s5 + $0x130] sm:$0xff]
    %v5119 = vld [vmem:[%s5 + $0x138] sm:$0xff]
    %v5120 = vld [vmem:[%s5 + $0x140] sm:$0xff]
    %v5121 = vld [vmem:[%s5 + $0x148] sm:$0xff]
    %v5122 = vld [vmem:[%s5 + $0x150] sm:$0xff]
    %v5123 = vld [vmem:[%s5 + $0x158] sm:$0xff]
    %v5124 = vld [vmem:[%s5 + $0x160] sm:$0xff]
    %v5125 = vld [vmem:[%s5 + $0x168] sm:$0xff]
    %v5126 = vld [vmem:[%s5 + $0x170] sm:$0xff]
    %v5127 = vld [vmem:[%s5 + $0x178] sm:$0xff]
    %v5128 = vld [vmem:[%s5 + $0x180] sm:$0xff]
    %v5129 = vld [vmem:[%s5 + $0x188] sm:$0xff]
    %v5130 = vld [vmem:[%s5 + $0x190] sm:$0xff]
    %v5131 = vld [vmem:[%s5 + $0x198] sm:$0xff]
    %v5132 = vld [vmem:[%s5 + $0x1a0] sm:$0xff]
    %v5133 = vld [vmem:[%s5 + $0x1a8] sm:$0xff]
    %v5134 = vld [vmem:[%s5 + $0x1b0] sm:$0xff]
    %v5135 = vld [vmem:[%s5 + $0x1b8] sm:$0xff]
    %v5136 = vld [vmem:[%s5 + $0x1c0] sm:$0xff]
    %v5137 = vld [vmem:[%s5 + $0x1c8] sm:$0xff]
    %v5138 = vld [vmem:[%s5 + $0x1d0] sm:$0xff]
    %v5139 = vld [vmem:[%s5 + $0x1d8] sm:$0xff]
    %v5140 = vld [vmem:[%s5 + $0x1e0] sm:$0xff]
    %v5141 = vld [vmem:[%s5 + $0x1e8] sm:$0xff]
    %v5142 = vld [vmem:[%s5 + $0x1f0] sm:$0xff]
    %v5143 = vld [vmem:[%s5 + $0x1f8] sm:$0xff]
    %v5144 = vld [vmem:[%s5 + $0x200] sm:$0xff]
    %v5145 = vld [vmem:[%s5 + $0x208] sm:$0xff]
    %v5146 = vld [vmem:[%s5 + $0x210] sm:$0xff]
    %v5147 = vld [vmem:[%s5 + $0x218] sm:$0xff]
    %v5148 = vld [vmem:[%s5 + $0x220] sm:$0xff]
    %v5149 = vld [vmem:[%s5 + $0x228] sm:$0xff]
    %v5150 = vld [vmem:[%s5 + $0x230] sm:$0xff]
    %v5151 = vld [vmem:[%s5 + $0x238] sm:$0xff]
    %v5152 = vand.u32 %v5110, 4294901760
    %5153 = vmatpush.msra.mxu0 %v5152
    %v5154 = vand.u32 %v5108, 4294901760
    %5155 = vmatpush.msra.mxu0 %v5154
    %v5156 = vand.u32 %v5106, 4294901760
    %5157 = vmatpush.msra.mxu0 %v5156
    %v5158 = vand.u32 %v5104, 4294901760
    %5159 = vmatpush.msra.mxu0 %v5158
    %v5160 = vand.u32 %v5102, 4294901760
    %5161 = vmatpush.msra.mxu0 %v5160
    %v5162 = vand.u32 %v5100, 4294901760
    %5163 = vmatpush.msra.mxu0 %v5162
    %v5164 = vand.u32 %v5098, 4294901760
    %5165 = vmatpush.msra.mxu0 %v5164
    %v5166 = vand.u32 %v5096, 4294901760
    %5167 = vmatpush.msra.mxu0 %v5166
    %v5168 = vand.u32 %v5094, 4294901760
    %5169 = vmatpush.msra.mxu0 %v5168
    %v5170 = vand.u32 %v5092, 4294901760
    %5171 = vmatpush.msra.mxu0 %v5170
    %v5172 = vand.u32 %v5090, 4294901760
    %5173 = vmatpush.msra.mxu0 %v5172
    %v5174 = vand.u32 %v5088, 4294901760
    %5175 = vmatpush.msra.mxu0 %v5174
    %v5176 = vand.u32 %v5086, 4294901760
    %5177 = vmatpush.msra.mxu0 %v5176
    %v5178 = vand.u32 %v5084, 4294901760
    %5179 = vmatpush.msra.mxu0 %v5178
    %v5180 = vand.u32 %v5082, 4294901760
    %5181 = vmatpush.msra.mxu0 %v5180
    %v5182 = vand.u32 %v5080, 4294901760
    %5183 = vmatpush.msra.mxu0 %v5182
    %v5184 = vand.u32 %v3267, 4294901760
    %v5185 = vsub.f32 %v3267, %v5184
    %v5186 = vand.u32 %v5185, 4294901760
    %v5187 = vsub.f32 %v5185, %v5186
    %v5188 = vand.u32 %v5187, 4294901760
    %5189 = vmatmul.f32.gmra.mxu0 %v5188
    %v5190 = vpop.f32.mrf.mxu0
    %v5191 = vadd.f32 0.0, %v5190
    %5192 = vdwg.mxu0
    %v5193 = vand.u32 %v5110, 4294901760
    %v5194 = vsub.f32 %v5110, %v5193
    %v5195 = vand.u32 %v5194, 4294901760
    %v5196 = vsub.f32 %v5194, %v5195
    %v5197 = vand.u32 %v5196, 4294901760
    %5198 = vmatpush.msra.mxu0 %v5197
    %v5199 = vand.u32 %v5108, 4294901760
    %v5200 = vsub.f32 %v5108, %v5199
    %v5201 = vand.u32 %v5200, 4294901760
    %v5202 = vsub.f32 %v5200, %v5201
    %v5203 = vand.u32 %v5202, 4294901760
    %5204 = vmatpush.msra.mxu0 %v5203
    %v5205 = vand.u32 %v5106, 4294901760
    %v5206 = vsub.f32 %v5106, %v5205
    %v5207 = vand.u32 %v5206, 4294901760
    %v5208 = vsub.f32 %v5206, %v5207
    %v5209 = vand.u32 %v5208, 4294901760
    %5210 = vmatpush.msra.mxu0 %v5209
    %v5211 = vand.u32 %v5104, 4294901760
    %v5212 = vsub.f32 %v5104, %v5211
    %v5213 = vand.u32 %v5212, 4294901760
    %v5214 = vsub.f32 %v5212, %v5213
    %v5215 = vand.u32 %v5214, 4294901760
    %5216 = vmatpush.msra.mxu0 %v5215
    %v5217 = vand.u32 %v5102, 4294901760
    %v5218 = vsub.f32 %v5102, %v5217
    %v5219 = vand.u32 %v5218, 4294901760
    %v5220 = vsub.f32 %v5218, %v5219
    %v5221 = vand.u32 %v5220, 4294901760
    %5222 = vmatpush.msra.mxu0 %v5221
    %v5223 = vand.u32 %v5100, 4294901760
    %v5224 = vsub.f32 %v5100, %v5223
    %v5225 = vand.u32 %v5224, 4294901760
    %v5226 = vsub.f32 %v5224, %v5225
    %v5227 = vand.u32 %v5226, 4294901760
    %5228 = vmatpush.msra.mxu0 %v5227
    %v5229 = vand.u32 %v5098, 4294901760
    %v5230 = vsub.f32 %v5098, %v5229
    %v5231 = vand.u32 %v5230, 4294901760
    %v5232 = vsub.f32 %v5230, %v5231
    %v5233 = vand.u32 %v5232, 4294901760
    %5234 = vmatpush.msra.mxu0 %v5233
    %v5235 = vand.u32 %v5096, 4294901760
    %v5236 = vsub.f32 %v5096, %v5235
    %v5237 = vand.u32 %v5236, 4294901760
    %v5238 = vsub.f32 %v5236, %v5237
    %v5239 = vand.u32 %v5238, 4294901760
    %5240 = vmatpush.msra.mxu0 %v5239
    %v5241 = vand.u32 %v5094, 4294901760
    %v5242 = vsub.f32 %v5094, %v5241
    %v5243 = vand.u32 %v5242, 4294901760
    %v5244 = vsub.f32 %v5242, %v5243
    %v5245 = vand.u32 %v5244, 4294901760
    %5246 = vmatpush.msra.mxu0 %v5245
    %v5247 = vand.u32 %v5092, 4294901760
    %v5248 = vsub.f32 %v5092, %v5247
    %v5249 = vand.u32 %v5248, 4294901760
    %v5250 = vsub.f32 %v5248, %v5249
    %v5251 = vand.u32 %v5250, 4294901760
    %5252 = vmatpush.msra.mxu0 %v5251
    %v5253 = vand.u32 %v5090, 4294901760
    %v5254 = vsub.f32 %v5090, %v5253
    %v5255 = vand.u32 %v5254, 4294901760
    %v5256 = vsub.f32 %v5254, %v5255
    %v5257 = vand.u32 %v5256, 4294901760
    %5258 = vmatpush.msra.mxu0 %v5257
    %v5259 = vand.u32 %v5088, 4294901760
    %v5260 = vsub.f32 %v5088, %v5259
    %v5261 = vand.u32 %v5260, 4294901760
    %v5262 = vsub.f32 %v5260, %v5261
    %v5263 = vand.u32 %v5262, 4294901760
    %5264 = vmatpush.msra.mxu0 %v5263
    %v5265 = vand.u32 %v5086, 4294901760
    %v5266 = vsub.f32 %v5086, %v5265
    %v5267 = vand.u32 %v5266, 4294901760
    %v5268 = vsub.f32 %v5266, %v5267
    %v5269 = vand.u32 %v5268, 4294901760
    %5270 = vmatpush.msra.mxu0 %v5269
    %v5271 = vand.u32 %v5084, 4294901760
    %v5272 = vsub.f32 %v5084, %v5271
    %v5273 = vand.u32 %v5272, 4294901760
    %v5274 = vsub.f32 %v5272, %v5273
    %v5275 = vand.u32 %v5274, 4294901760
    %5276 = vmatpush.msra.mxu0 %v5275
    %v5277 = vand.u32 %v5082, 4294901760
    %v5278 = vsub.f32 %v5082, %v5277
    %v5279 = vand.u32 %v5278, 4294901760
    %v5280 = vsub.f32 %v5278, %v5279
    %v5281 = vand.u32 %v5280, 4294901760
    %5282 = vmatpush.msra.mxu0 %v5281
    %v5283 = vand.u32 %v5080, 4294901760
    %v5284 = vsub.f32 %v5080, %v5283
    %v5285 = vand.u32 %v5284, 4294901760
    %v5286 = vsub.f32 %v5284, %v5285
    %v5287 = vand.u32 %v5286, 4294901760
    %5288 = vmatpush.msra.mxu0 %v5287
    %v5289 = vand.u32 %v3267, 4294901760
    %5290 = vmatmul.f32.gmra.mxu0 %v5289
    %v5291 = vpop.f32.mrf.mxu0
    %v5292 = vadd.f32 %v5191, %v5291
    %5293 = vdwg.mxu0
    %v5294 = vand.u32 %v5110, 4294901760
    %v5295 = vsub.f32 %v5110, %v5294
    %5296 = vmatpush.msra.mxu0 %v5295
    %v5297 = vand.u32 %v5108, 4294901760
    %v5298 = vsub.f32 %v5108, %v5297
    %5299 = vmatpush.msra.mxu0 %v5298
    %v5300 = vand.u32 %v5106, 4294901760
    %v5301 = vsub.f32 %v5106, %v5300
    %5302 = vmatpush.msra.mxu0 %v5301
    %v5303 = vand.u32 %v5104, 4294901760
    %v5304 = vsub.f32 %v5104, %v5303
    %5305 = vmatpush.msra.mxu0 %v5304
    %v5306 = vand.u32 %v5102, 4294901760
    %v5307 = vsub.f32 %v5102, %v5306
    %5308 = vmatpush.msra.mxu0 %v5307
    %v5309 = vand.u32 %v5100, 4294901760
    %v5310 = vsub.f32 %v5100, %v5309
    %5311 = vmatpush.msra.mxu0 %v5310
    %v5312 = vand.u32 %v5098, 4294901760
    %v5313 = vsub.f32 %v5098, %v5312
    %5314 = vmatpush.msra.mxu0 %v5313
    %v5315 = vand.u32 %v5096, 4294901760
    %v5316 = vsub.f32 %v5096, %v5315
    %5317 = vmatpush.msra.mxu0 %v5316
    %v5318 = vand.u32 %v5094, 4294901760
    %v5319 = vsub.f32 %v5094, %v5318
    %5320 = vmatpush.msra.mxu0 %v5319
    %v5321 = vand.u32 %v5092, 4294901760
    %v5322 = vsub.f32 %v5092, %v5321
    %5323 = vmatpush.msra.mxu0 %v5322
    %v5324 = vand.u32 %v5090, 4294901760
    %v5325 = vsub.f32 %v5090, %v5324
    %5326 = vmatpush.msra.mxu0 %v5325
    %v5327 = vand.u32 %v5088, 4294901760
    %v5328 = vsub.f32 %v5088, %v5327
    %5329 = vmatpush.msra.mxu0 %v5328
    %v5330 = vand.u32 %v5086, 4294901760
    %v5331 = vsub.f32 %v5086, %v5330
    %5332 = vmatpush.msra.mxu0 %v5331
    %v5333 = vand.u32 %v5084, 4294901760
    %v5334 = vsub.f32 %v5084, %v5333
    %5335 = vmatpush.msra.mxu0 %v5334
    %v5336 = vand.u32 %v5082, 4294901760
    %v5337 = vsub.f32 %v5082, %v5336
    %5338 = vmatpush.msra.mxu0 %v5337
    %v5339 = vand.u32 %v5080, 4294901760
    %v5340 = vsub.f32 %v5080, %v5339
    %5341 = vmatpush.msra.mxu0 %v5340
    %v5342 = vand.u32 %v3267, 4294901760
    %v5343 = vsub.f32 %v3267, %v5342
    %5344 = vmatmul.f32.gmra.mxu0 %v5343
    %v5345 = vpop.f32.mrf.mxu0
    %v5346 = vadd.f32 %v5292, %v5345
    %5347 = vdwg.mxu0
    %v5348 = vand.u32 %v5110, 4294901760
    %5349 = vmatpush.msra.mxu0 %v5348
    %v5350 = vand.u32 %v5108, 4294901760
    %5351 = vmatpush.msra.mxu0 %v5350
    %v5352 = vand.u32 %v5106, 4294901760
    %5353 = vmatpush.msra.mxu0 %v5352
    %v5354 = vand.u32 %v5104, 4294901760
    %5355 = vmatpush.msra.mxu0 %v5354
    %v5356 = vand.u32 %v5102, 4294901760
    %5357 = vmatpush.msra.mxu0 %v5356
    %v5358 = vand.u32 %v5100, 4294901760
    %5359 = vmatpush.msra.mxu0 %v5358
    %v5360 = vand.u32 %v5098, 4294901760
    %5361 = vmatpush.msra.mxu0 %v5360
    %v5362 = vand.u32 %v5096, 4294901760
    %5363 = vmatpush.msra.mxu0 %v5362
    %v5364 = vand.u32 %v5094, 4294901760
    %5365 = vmatpush.msra.mxu0 %v5364
    %v5366 = vand.u32 %v5092, 4294901760
    %5367 = vmatpush.msra.mxu0 %v5366
    %v5368 = vand.u32 %v5090, 4294901760
    %5369 = vmatpush.msra.mxu0 %v5368
    %v5370 = vand.u32 %v5088, 4294901760
    %5371 = vmatpush.msra.mxu0 %v5370
    %v5372 = vand.u32 %v5086, 4294901760
    %5373 = vmatpush.msra.mxu0 %v5372
    %v5374 = vand.u32 %v5084, 4294901760
    %5375 = vmatpush.msra.mxu0 %v5374
    %v5376 = vand.u32 %v5082, 4294901760
    %5377 = vmatpush.msra.mxu0 %v5376
    %v5378 = vand.u32 %v5080, 4294901760
    %5379 = vmatpush.msra.mxu0 %v5378
    %v5380 = vand.u32 %v3267, 4294901760
    %v5381 = vsub.f32 %v3267, %v5380
    %v5382 = vand.u32 %v5381, 4294901760
    %5383 = vmatmul.f32.gmra.mxu0 %v5382
    %v5384 = vpop.f32.mrf.mxu0
    %v5385 = vadd.f32 %v5346, %v5384
    %5386 = vdwg.mxu0
    %v5387 = vand.u32 %v5110, 4294901760
    %v5388 = vsub.f32 %v5110, %v5387
    %v5389 = vand.u32 %v5388, 4294901760
    %5390 = vmatpush.msra.mxu0 %v5389
    %v5391 = vand.u32 %v5108, 4294901760
    %v5392 = vsub.f32 %v5108, %v5391
    %v5393 = vand.u32 %v5392, 4294901760
    %5394 = vmatpush.msra.mxu0 %v5393
    %v5395 = vand.u32 %v5106, 4294901760
    %v5396 = vsub.f32 %v5106, %v5395
    %v5397 = vand.u32 %v5396, 4294901760
    %5398 = vmatpush.msra.mxu0 %v5397
    %v5399 = vand.u32 %v5104, 4294901760
    %v5400 = vsub.f32 %v5104, %v5399
    %v5401 = vand.u32 %v5400, 4294901760
    %5402 = vmatpush.msra.mxu0 %v5401
    %v5403 = vand.u32 %v5102, 4294901760
    %v5404 = vsub.f32 %v5102, %v5403
    %v5405 = vand.u32 %v5404, 4294901760
    %5406 = vmatpush.msra.mxu0 %v5405
    %v5407 = vand.u32 %v5100, 4294901760
    %v5408 = vsub.f32 %v5100, %v5407
    %v5409 = vand.u32 %v5408, 4294901760
    %5410 = vmatpush.msra.mxu0 %v5409
    %v5411 = vand.u32 %v5098, 4294901760
    %v5412 = vsub.f32 %v5098, %v5411
    %v5413 = vand.u32 %v5412, 4294901760
    %5414 = vmatpush.msra.mxu0 %v5413
    %v5415 = vand.u32 %v5096, 4294901760
    %v5416 = vsub.f32 %v5096, %v5415
    %v5417 = vand.u32 %v5416, 4294901760
    %5418 = vmatpush.msra.mxu0 %v5417
    %v5419 = vand.u32 %v5094, 4294901760
    %v5420 = vsub.f32 %v5094, %v5419
    %v5421 = vand.u32 %v5420, 4294901760
    %5422 = vmatpush.msra.mxu0 %v5421
    %v5423 = vand.u32 %v5092, 4294901760
    %v5424 = vsub.f32 %v5092, %v5423
    %v5425 = vand.u32 %v5424, 4294901760
    %5426 = vmatpush.msra.mxu0 %v5425
    %v5427 = vand.u32 %v5090, 4294901760
    %v5428 = vsub.f32 %v5090, %v5427
    %v5429 = vand.u32 %v5428, 4294901760
    %5430 = vmatpush.msra.mxu0 %v5429
    %v5431 = vand.u32 %v5088, 4294901760
    %v5432 = vsub.f32 %v5088, %v5431
    %v5433 = vand.u32 %v5432, 4294901760
    %5434 = vmatpush.msra.mxu0 %v5433
    %v5435 = vand.u32 %v5086, 4294901760
    %v5436 = vsub.f32 %v5086, %v5435
    %v5437 = vand.u32 %v5436, 4294901760
    %5438 = vmatpush.msra.mxu0 %v5437
    %v5439 = vand.u32 %v5084, 4294901760
    %v5440 = vsub.f32 %v5084, %v5439
    %v5441 = vand.u32 %v5440, 4294901760
    %5442 = vmatpush.msra.mxu0 %v5441
    %v5443 = vand.u32 %v5082, 4294901760
    %v5444 = vsub.f32 %v5082, %v5443
    %v5445 = vand.u32 %v5444, 4294901760
    %5446 = vmatpush.msra.mxu0 %v5445
    %v5447 = vand.u32 %v5080, 4294901760
    %v5448 = vsub.f32 %v5080, %v5447
    %v5449 = vand.u32 %v5448, 4294901760
    %5450 = vmatpush.msra.mxu0 %v5449
    %v5451 = vand.u32 %v3267, 4294901760
    %5452 = vmatmul.f32.gmra.mxu0 %v5451
    %v5453 = vpop.f32.mrf.mxu0
    %v5454 = vadd.f32 %v5385, %v5453
    %5455 = vdwg.mxu0
    %v5456 = vand.u32 %v5110, 4294901760
    %5457 = vmatpush.msra.mxu0 %v5456
    %v5458 = vand.u32 %v5108, 4294901760
    %5459 = vmatpush.msra.mxu0 %v5458
    %v5460 = vand.u32 %v5106, 4294901760
    %5461 = vmatpush.msra.mxu0 %v5460
    %v5462 = vand.u32 %v5104, 4294901760
    %5463 = vmatpush.msra.mxu0 %v5462
    %v5464 = vand.u32 %v5102, 4294901760
    %5465 = vmatpush.msra.mxu0 %v5464
    %v5466 = vand.u32 %v5100, 4294901760
    %5467 = vmatpush.msra.mxu0 %v5466
    %v5468 = vand.u32 %v5098, 4294901760
    %5469 = vmatpush.msra.mxu0 %v5468
    %v5470 = vand.u32 %v5096, 4294901760
    %5471 = vmatpush.msra.mxu0 %v5470
    %v5472 = vand.u32 %v5094, 4294901760
    %5473 = vmatpush.msra.mxu0 %v5472
    %v5474 = vand.u32 %v5092, 4294901760
    %5475 = vmatpush.msra.mxu0 %v5474
    %v5476 = vand.u32 %v5090, 4294901760
    %5477 = vmatpush.msra.mxu0 %v5476
    %v5478 = vand.u32 %v5088, 4294901760
    %5479 = vmatpush.msra.mxu0 %v5478
    %v5480 = vand.u32 %v5086, 4294901760
    %5481 = vmatpush.msra.mxu0 %v5480
    %v5482 = vand.u32 %v5084, 4294901760
    %5483 = vmatpush.msra.mxu0 %v5482
    %v5484 = vand.u32 %v5082, 4294901760
    %5485 = vmatpush.msra.mxu0 %v5484
    %v5486 = vand.u32 %v5080, 4294901760
    %5487 = vmatpush.msra.mxu0 %v5486
    %v5488 = vand.u32 %v3267, 4294901760
    %5489 = vmatmul.f32.gmra.mxu0 %v5488
    %v5490 = vpop.f32.mrf.mxu0
    %v5491 = vadd.f32 %v5454, %v5490
    %5492 = vdwg.mxu0
    %v5493 = vand.u32 %v5142, 4294901760
    %5494 = vmatpush.msra.mxu0 %v5493
    %v5495 = vand.u32 %v5140, 4294901760
    %5496 = vmatpush.msra.mxu0 %v5495
    %v5497 = vand.u32 %v5138, 4294901760
    %5498 = vmatpush.msra.mxu0 %v5497
    %v5499 = vand.u32 %v5136, 4294901760
    %5500 = vmatpush.msra.mxu0 %v5499
    %v5501 = vand.u32 %v5134, 4294901760
    %5502 = vmatpush.msra.mxu0 %v5501
    %v5503 = vand.u32 %v5132, 4294901760
    %5504 = vmatpush.msra.mxu0 %v5503
    %v5505 = vand.u32 %v5130, 4294901760
    %5506 = vmatpush.msra.mxu0 %v5505
    %v5507 = vand.u32 %v5128, 4294901760
    %5508 = vmatpush.msra.mxu0 %v5507
    %v5509 = vand.u32 %v5126, 4294901760
    %5510 = vmatpush.msra.mxu0 %v5509
    %v5511 = vand.u32 %v5124, 4294901760
    %5512 = vmatpush.msra.mxu0 %v5511
    %v5513 = vand.u32 %v5122, 4294901760
    %5514 = vmatpush.msra.mxu0 %v5513
    %v5515 = vand.u32 %v5120, 4294901760
    %5516 = vmatpush.msra.mxu0 %v5515
    %v5517 = vand.u32 %v5118, 4294901760
    %5518 = vmatpush.msra.mxu0 %v5517
    %v5519 = vand.u32 %v5116, 4294901760
    %5520 = vmatpush.msra.mxu0 %v5519
    %v5521 = vand.u32 %v5114, 4294901760
    %5522 = vmatpush.msra.mxu0 %v5521
    %v5523 = vand.u32 %v5112, 4294901760
    %5524 = vmatpush.msra.mxu0 %v5523
    %v5525 = vand.u32 %v3268, 4294901760
    %v5526 = vsub.f32 %v3268, %v5525
    %v5527 = vand.u32 %v5526, 4294901760
    %v5528 = vsub.f32 %v5526, %v5527
    %v5529 = vand.u32 %v5528, 4294901760
    %5530 = vmatmul.f32.gmra.mxu0 %v5529
    %v5531 = vpop.f32.mrf.mxu0
    %v5532 = vadd.f32 %v5491, %v5531
    %5533 = vdwg.mxu0
    %v5534 = vand.u32 %v5142, 4294901760
    %v5535 = vsub.f32 %v5142, %v5534
    %v5536 = vand.u32 %v5535, 4294901760
    %v5537 = vsub.f32 %v5535, %v5536
    %v5538 = vand.u32 %v5537, 4294901760
    %5539 = vmatpush.msra.mxu0 %v5538
    %v5540 = vand.u32 %v5140, 4294901760
    %v5541 = vsub.f32 %v5140, %v5540
    %v5542 = vand.u32 %v5541, 4294901760
    %v5543 = vsub.f32 %v5541, %v5542
    %v5544 = vand.u32 %v5543, 4294901760
    %5545 = vmatpush.msra.mxu0 %v5544
    %v5546 = vand.u32 %v5138, 4294901760
    %v5547 = vsub.f32 %v5138, %v5546
    %v5548 = vand.u32 %v5547, 4294901760
    %v5549 = vsub.f32 %v5547, %v5548
    %v5550 = vand.u32 %v5549, 4294901760
    %5551 = vmatpush.msra.mxu0 %v5550
    %v5552 = vand.u32 %v5136, 4294901760
    %v5553 = vsub.f32 %v5136, %v5552
    %v5554 = vand.u32 %v5553, 4294901760
    %v5555 = vsub.f32 %v5553, %v5554
    %v5556 = vand.u32 %v5555, 4294901760
    %5557 = vmatpush.msra.mxu0 %v5556
    %v5558 = vand.u32 %v5134, 4294901760
    %v5559 = vsub.f32 %v5134, %v5558
    %v5560 = vand.u32 %v5559, 4294901760
    %v5561 = vsub.f32 %v5559, %v5560
    %v5562 = vand.u32 %v5561, 4294901760
    %5563 = vmatpush.msra.mxu0 %v5562
    %v5564 = vand.u32 %v5132, 4294901760
    %v5565 = vsub.f32 %v5132, %v5564
    %v5566 = vand.u32 %v5565, 4294901760
    %v5567 = vsub.f32 %v5565, %v5566
    %v5568 = vand.u32 %v5567, 4294901760
    %5569 = vmatpush.msra.mxu0 %v5568
    %v5570 = vand.u32 %v5130, 4294901760
    %v5571 = vsub.f32 %v5130, %v5570
    %v5572 = vand.u32 %v5571, 4294901760
    %v5573 = vsub.f32 %v5571, %v5572
    %v5574 = vand.u32 %v5573, 4294901760
    %5575 = vmatpush.msra.mxu0 %v5574
    %v5576 = vand.u32 %v5128, 4294901760
    %v5577 = vsub.f32 %v5128, %v5576
    %v5578 = vand.u32 %v5577, 4294901760
    %v5579 = vsub.f32 %v5577, %v5578
    %v5580 = vand.u32 %v5579, 4294901760
    %5581 = vmatpush.msra.mxu0 %v5580
    %v5582 = vand.u32 %v5126, 4294901760
    %v5583 = vsub.f32 %v5126, %v5582
    %v5584 = vand.u32 %v5583, 4294901760
    %v5585 = vsub.f32 %v5583, %v5584
    %v5586 = vand.u32 %v5585, 4294901760
    %5587 = vmatpush.msra.mxu0 %v5586
    %v5588 = vand.u32 %v5124, 4294901760
    %v5589 = vsub.f32 %v5124, %v5588
    %v5590 = vand.u32 %v5589, 4294901760
    %v5591 = vsub.f32 %v5589, %v5590
    %v5592 = vand.u32 %v5591, 4294901760
    %5593 = vmatpush.msra.mxu0 %v5592
    %v5594 = vand.u32 %v5122, 4294901760
    %v5595 = vsub.f32 %v5122, %v5594
    %v5596 = vand.u32 %v5595, 4294901760
    %v5597 = vsub.f32 %v5595, %v5596
    %v5598 = vand.u32 %v5597, 4294901760
    %5599 = vmatpush.msra.mxu0 %v5598
    %v5600 = vand.u32 %v5120, 4294901760
    %v5601 = vsub.f32 %v5120, %v5600
    %v5602 = vand.u32 %v5601, 4294901760
    %v5603 = vsub.f32 %v5601, %v5602
    %v5604 = vand.u32 %v5603, 4294901760
    %5605 = vmatpush.msra.mxu0 %v5604
    %v5606 = vand.u32 %v5118, 4294901760
    %v5607 = vsub.f32 %v5118, %v5606
    %v5608 = vand.u32 %v5607, 4294901760
    %v5609 = vsub.f32 %v5607, %v5608
    %v5610 = vand.u32 %v5609, 4294901760
    %5611 = vmatpush.msra.mxu0 %v5610
    %v5612 = vand.u32 %v5116, 4294901760
    %v5613 = vsub.f32 %v5116, %v5612
    %v5614 = vand.u32 %v5613, 4294901760
    %v5615 = vsub.f32 %v5613, %v5614
    %v5616 = vand.u32 %v5615, 4294901760
    %5617 = vmatpush.msra.mxu0 %v5616
    %v5618 = vand.u32 %v5114, 4294901760
    %v5619 = vsub.f32 %v5114, %v5618
    %v5620 = vand.u32 %v5619, 4294901760
    %v5621 = vsub.f32 %v5619, %v5620
    %v5622 = vand.u32 %v5621, 4294901760
    %5623 = vmatpush.msra.mxu0 %v5622
    %v5624 = vand.u32 %v5112, 4294901760
    %v5625 = vsub.f32 %v5112, %v5624
    %v5626 = vand.u32 %v5625, 4294901760
    %v5627 = vsub.f32 %v5625, %v5626
    %v5628 = vand.u32 %v5627, 4294901760
    %5629 = vmatpush.msra.mxu0 %v5628
    %v5630 = vand.u32 %v3268, 4294901760
    %5631 = vmatmul.f32.gmra.mxu0 %v5630
    %v5632 = vpop.f32.mrf.mxu0
    %v5633 = vadd.f32 %v5532, %v5632
    %5634 = vdwg.mxu0
    %v5635 = vand.u32 %v5142, 4294901760
    %v5636 = vsub.f32 %v5142, %v5635
    %5637 = vmatpush.msra.mxu0 %v5636
    %v5638 = vand.u32 %v5140, 4294901760
    %v5639 = vsub.f32 %v5140, %v5638
    %5640 = vmatpush.msra.mxu0 %v5639
    %v5641 = vand.u32 %v5138, 4294901760
    %v5642 = vsub.f32 %v5138, %v5641
    %5643 = vmatpush.msra.mxu0 %v5642
    %v5644 = vand.u32 %v5136, 4294901760
    %v5645 = vsub.f32 %v5136, %v5644
    %5646 = vmatpush.msra.mxu0 %v5645
    %v5647 = vand.u32 %v5134, 4294901760
    %v5648 = vsub.f32 %v5134, %v5647
    %5649 = vmatpush.msra.mxu0 %v5648
    %v5650 = vand.u32 %v5132, 4294901760
    %v5651 = vsub.f32 %v5132, %v5650
    %5652 = vmatpush.msra.mxu0 %v5651
    %v5653 = vand.u32 %v5130, 4294901760
    %v5654 = vsub.f32 %v5130, %v5653
    %5655 = vmatpush.msra.mxu0 %v5654
    %v5656 = vand.u32 %v5128, 4294901760
    %v5657 = vsub.f32 %v5128, %v5656
    %5658 = vmatpush.msra.mxu0 %v5657
    %v5659 = vand.u32 %v5126, 4294901760
    %v5660 = vsub.f32 %v5126, %v5659
    %5661 = vmatpush.msra.mxu0 %v5660
    %v5662 = vand.u32 %v5124, 4294901760
    %v5663 = vsub.f32 %v5124, %v5662
    %5664 = vmatpush.msra.mxu0 %v5663
    %v5665 = vand.u32 %v5122, 4294901760
    %v5666 = vsub.f32 %v5122, %v5665
    %5667 = vmatpush.msra.mxu0 %v5666
    %v5668 = vand.u32 %v5120, 4294901760
    %v5669 = vsub.f32 %v5120, %v5668
    %5670 = vmatpush.msra.mxu0 %v5669
    %v5671 = vand.u32 %v5118, 4294901760
    %v5672 = vsub.f32 %v5118, %v5671
    %5673 = vmatpush.msra.mxu0 %v5672
    %v5674 = vand.u32 %v5116, 4294901760
    %v5675 = vsub.f32 %v5116, %v5674
    %5676 = vmatpush.msra.mxu0 %v5675
    %v5677 = vand.u32 %v5114, 4294901760
    %v5678 = vsub.f32 %v5114, %v5677
    %5679 = vmatpush.msra.mxu0 %v5678
    %v5680 = vand.u32 %v5112, 4294901760
    %v5681 = vsub.f32 %v5112, %v5680
    %5682 = vmatpush.msra.mxu0 %v5681
    %v5683 = vand.u32 %v3268, 4294901760
    %v5684 = vsub.f32 %v3268, %v5683
    %5685 = vmatmul.f32.gmra.mxu0 %v5684
    %v5686 = vpop.f32.mrf.mxu0
    %v5687 = vadd.f32 %v5633, %v5686
    %5688 = vdwg.mxu0
    %v5689 = vand.u32 %v5142, 4294901760
    %5690 = vmatpush.msra.mxu0 %v5689
    %v5691 = vand.u32 %v5140, 4294901760
    %5692 = vmatpush.msra.mxu0 %v5691
    %v5693 = vand.u32 %v5138, 4294901760
    %5694 = vmatpush.msra.mxu0 %v5693
    %v5695 = vand.u32 %v5136, 4294901760
    %5696 = vmatpush.msra.mxu0 %v5695
    %v5697 = vand.u32 %v5134, 4294901760
    %5698 = vmatpush.msra.mxu0 %v5697
    %v5699 = vand.u32 %v5132, 4294901760
    %5700 = vmatpush.msra.mxu0 %v5699
    %v5701 = vand.u32 %v5130, 4294901760
    %5702 = vmatpush.msra.mxu0 %v5701
    %v5703 = vand.u32 %v5128, 4294901760
    %5704 = vmatpush.msra.mxu0 %v5703
    %v5705 = vand.u32 %v5126, 4294901760
    %5706 = vmatpush.msra.mxu0 %v5705
    %v5707 = vand.u32 %v5124, 4294901760
    %5708 = vmatpush.msra.mxu0 %v5707
    %v5709 = vand.u32 %v5122, 4294901760
    %5710 = vmatpush.msra.mxu0 %v5709
    %v5711 = vand.u32 %v5120, 4294901760
    %5712 = vmatpush.msra.mxu0 %v5711
    %v5713 = vand.u32 %v5118, 4294901760
    %5714 = vmatpush.msra.mxu0 %v5713
    %v5715 = vand.u32 %v5116, 4294901760
    %5716 = vmatpush.msra.mxu0 %v5715
    %v5717 = vand.u32 %v5114, 4294901760
    %5718 = vmatpush.msra.mxu0 %v5717
    %v5719 = vand.u32 %v5112, 4294901760
    %5720 = vmatpush.msra.mxu0 %v5719
    %v5721 = vand.u32 %v3268, 4294901760
    %v5722 = vsub.f32 %v3268, %v5721
    %v5723 = vand.u32 %v5722, 4294901760
    %5724 = vmatmul.f32.gmra.mxu0 %v5723
    %v5725 = vpop.f32.mrf.mxu0
    %v5726 = vadd.f32 %v5687, %v5725
    %5727 = vdwg.mxu0
    %v5728 = vand.u32 %v5142, 4294901760
    %v5729 = vsub.f32 %v5142, %v5728
    %v5730 = vand.u32 %v5729, 4294901760
    %5731 = vmatpush.msra.mxu0 %v5730
    %v5732 = vand.u32 %v5140, 4294901760
    %v5733 = vsub.f32 %v5140, %v5732
    %v5734 = vand.u32 %v5733, 4294901760
    %5735 = vmatpush.msra.mxu0 %v5734
    %v5736 = vand.u32 %v5138, 4294901760
    %v5737 = vsub.f32 %v5138, %v5736
    %v5738 = vand.u32 %v5737, 4294901760
    %5739 = vmatpush.msra.mxu0 %v5738
    %v5740 = vand.u32 %v5136, 4294901760
    %v5741 = vsub.f32 %v5136, %v5740
    %v5742 = vand.u32 %v5741, 4294901760
    %5743 = vmatpush.msra.mxu0 %v5742
    %v5744 = vand.u32 %v5134, 4294901760
    %v5745 = vsub.f32 %v5134, %v5744
    %v5746 = vand.u32 %v5745, 4294901760
    %5747 = vmatpush.msra.mxu0 %v5746
    %v5748 = vand.u32 %v5132, 4294901760
    %v5749 = vsub.f32 %v5132, %v5748
    %v5750 = vand.u32 %v5749, 4294901760
    %5751 = vmatpush.msra.mxu0 %v5750
    %v5752 = vand.u32 %v5130, 4294901760
    %v5753 = vsub.f32 %v5130, %v5752
    %v5754 = vand.u32 %v5753, 4294901760
    %5755 = vmatpush.msra.mxu0 %v5754
    %v5756 = vand.u32 %v5128, 4294901760
    %v5757 = vsub.f32 %v5128, %v5756
    %v5758 = vand.u32 %v5757, 4294901760
    %5759 = vmatpush.msra.mxu0 %v5758
    %v5760 = vand.u32 %v5126, 4294901760
    %v5761 = vsub.f32 %v5126, %v5760
    %v5762 = vand.u32 %v5761, 4294901760
    %5763 = vmatpush.msra.mxu0 %v5762
    %v5764 = vand.u32 %v5124, 4294901760
    %v5765 = vsub.f32 %v5124, %v5764
    %v5766 = vand.u32 %v5765, 4294901760
    %5767 = vmatpush.msra.mxu0 %v5766
    %v5768 = vand.u32 %v5122, 4294901760
    %v5769 = vsub.f32 %v5122, %v5768
    %v5770 = vand.u32 %v5769, 4294901760
    %5771 = vmatpush.msra.mxu0 %v5770
    %v5772 = vand.u32 %v5120, 4294901760
    %v5773 = vsub.f32 %v5120, %v5772
    %v5774 = vand.u32 %v5773, 4294901760
    %5775 = vmatpush.msra.mxu0 %v5774
    %v5776 = vand.u32 %v5118, 4294901760
    %v5777 = vsub.f32 %v5118, %v5776
    %v5778 = vand.u32 %v5777, 4294901760
    %5779 = vmatpush.msra.mxu0 %v5778
    %v5780 = vand.u32 %v5116, 4294901760
    %v5781 = vsub.f32 %v5116, %v5780
    %v5782 = vand.u32 %v5781, 4294901760
    %5783 = vmatpush.msra.mxu0 %v5782
    %v5784 = vand.u32 %v5114, 4294901760
    %v5785 = vsub.f32 %v5114, %v5784
    %v5786 = vand.u32 %v5785, 4294901760
    %5787 = vmatpush.msra.mxu0 %v5786
    %v5788 = vand.u32 %v5112, 4294901760
    %v5789 = vsub.f32 %v5112, %v5788
    %v5790 = vand.u32 %v5789, 4294901760
    %5791 = vmatpush.msra.mxu0 %v5790
    %v5792 = vand.u32 %v3268, 4294901760
    %5793 = vmatmul.f32.gmra.mxu0 %v5792
    %v5794 = vpop.f32.mrf.mxu0
    %v5795 = vadd.f32 %v5726, %v5794
    %5796 = vdwg.mxu0
    %v5797 = vand.u32 %v5142, 4294901760
    %5798 = vmatpush.msra.mxu0 %v5797
    %v5799 = vand.u32 %v5140, 4294901760
    %5800 = vmatpush.msra.mxu0 %v5799
    %v5801 = vand.u32 %v5138, 4294901760
    %5802 = vmatpush.msra.mxu0 %v5801
    %v5803 = vand.u32 %v5136, 4294901760
    %5804 = vmatpush.msra.mxu0 %v5803
    %v5805 = vand.u32 %v5134, 4294901760
    %5806 = vmatpush.msra.mxu0 %v5805
    %v5807 = vand.u32 %v5132, 4294901760
    %5808 = vmatpush.msra.mxu0 %v5807
    %v5809 = vand.u32 %v5130, 4294901760
    %5810 = vmatpush.msra.mxu0 %v5809
    %v5811 = vand.u32 %v5128, 4294901760
    %5812 = vmatpush.msra.mxu0 %v5811
    %v5813 = vand.u32 %v5126, 4294901760
    %5814 = vmatpush.msra.mxu0 %v5813
    %v5815 = vand.u32 %v5124, 4294901760
    %5816 = vmatpush.msra.mxu0 %v5815
    %v5817 = vand.u32 %v5122, 4294901760
    %5818 = vmatpush.msra.mxu0 %v5817
    %v5819 = vand.u32 %v5120, 4294901760
    %5820 = vmatpush.msra.mxu0 %v5819
    %v5821 = vand.u32 %v5118, 4294901760
    %5822 = vmatpush.msra.mxu0 %v5821
    %v5823 = vand.u32 %v5116, 4294901760
    %5824 = vmatpush.msra.mxu0 %v5823
    %v5825 = vand.u32 %v5114, 4294901760
    %5826 = vmatpush.msra.mxu0 %v5825
    %v5827 = vand.u32 %v5112, 4294901760
    %5828 = vmatpush.msra.mxu0 %v5827
    %v5829 = vand.u32 %v3268, 4294901760
    %5830 = vmatmul.f32.gmra.mxu0 %v5829
    %v5831 = vpop.f32.mrf.mxu0
    %v5832 = vadd.f32 %v5795, %v5831
    %5833 = vdwg.mxu0
    %5834 = vmatpush.msra.mxu0 0.0
    %5835 = vmatpush.msra.mxu0 0.0
    %5836 = vmatpush.msra.mxu0 0.0
    %5837 = vmatpush.msra.mxu0 0.0
    %5838 = vmatpush.msra.mxu0 0.0
    %5839 = vmatpush.msra.mxu0 0.0
    %5840 = vmatpush.msra.mxu0 0.0
    %5841 = vmatpush.msra.mxu0 0.0
    %5842 = vmatpush.msra.mxu0 0.0
    %5843 = vmatpush.msra.mxu0 0.0
    %5844 = vmatpush.msra.mxu0 0.0
    %5845 = vmatpush.msra.mxu0 0.0
    %v5846 = vand.u32 %v5150, 4294901760
    %5847 = vmatpush.msra.mxu0 %v5846
    %v5848 = vand.u32 %v5148, 4294901760
    %5849 = vmatpush.msra.mxu0 %v5848
    %v5850 = vand.u32 %v5146, 4294901760
    %5851 = vmatpush.msra.mxu0 %v5850
    %v5852 = vand.u32 %v5144, 4294901760
    %5853 = vmatpush.msra.mxu0 %v5852
    %v5854 = vand.u32 %v3344, 4294901760
    %v5855 = vsub.f32 %v3344, %v5854
    %v5856 = vand.u32 %v5855, 4294901760
    %v5857 = vsub.f32 %v5855, %v5856
    %v5858 = vand.u32 %v5857, 4294901760
    %5859 = vmatmul.f32.gmra.mxu0 %v5858
    %v5860 = vpop.f32.mrf.mxu0
    %v5861 = vadd.f32 %v5832, %v5860
    %5862 = vdwg.mxu0
    %5863 = vmatpush.msra.mxu0 0.0
    %5864 = vmatpush.msra.mxu0 0.0
    %5865 = vmatpush.msra.mxu0 0.0
    %5866 = vmatpush.msra.mxu0 0.0
    %5867 = vmatpush.msra.mxu0 0.0
    %5868 = vmatpush.msra.mxu0 0.0
    %5869 = vmatpush.msra.mxu0 0.0
    %5870 = vmatpush.msra.mxu0 0.0
    %5871 = vmatpush.msra.mxu0 0.0
    %5872 = vmatpush.msra.mxu0 0.0
    %5873 = vmatpush.msra.mxu0 0.0
    %5874 = vmatpush.msra.mxu0 0.0
    %v5875 = vand.u32 %v5150, 4294901760
    %v5876 = vsub.f32 %v5150, %v5875
    %v5877 = vand.u32 %v5876, 4294901760
    %v5878 = vsub.f32 %v5876, %v5877
    %v5879 = vand.u32 %v5878, 4294901760
    %5880 = vmatpush.msra.mxu0 %v5879
    %v5881 = vand.u32 %v5148, 4294901760
    %v5882 = vsub.f32 %v5148, %v5881
    %v5883 = vand.u32 %v5882, 4294901760
    %v5884 = vsub.f32 %v5882, %v5883
    %v5885 = vand.u32 %v5884, 4294901760
    %5886 = vmatpush.msra.mxu0 %v5885
    %v5887 = vand.u32 %v5146, 4294901760
    %v5888 = vsub.f32 %v5146, %v5887
    %v5889 = vand.u32 %v5888, 4294901760
    %v5890 = vsub.f32 %v5888, %v5889
    %v5891 = vand.u32 %v5890, 4294901760
    %5892 = vmatpush.msra.mxu0 %v5891
    %v5893 = vand.u32 %v5144, 4294901760
    %v5894 = vsub.f32 %v5144, %v5893
    %v5895 = vand.u32 %v5894, 4294901760
    %v5896 = vsub.f32 %v5894, %v5895
    %v5897 = vand.u32 %v5896, 4294901760
    %5898 = vmatpush.msra.mxu0 %v5897
    %v5899 = vand.u32 %v3344, 4294901760
    %5900 = vmatmul.f32.gmra.mxu0 %v5899
    %v5901 = vpop.f32.mrf.mxu0
    %v5902 = vadd.f32 %v5861, %v5901
    %5903 = vdwg.mxu0
    %5904 = vmatpush.msra.mxu0 0.0
    %5905 = vmatpush.msra.mxu0 0.0
    %5906 = vmatpush.msra.mxu0 0.0
    %5907 = vmatpush.msra.mxu0 0.0
    %5908 = vmatpush.msra.mxu0 0.0
    %5909 = vmatpush.msra.mxu0 0.0
    %5910 = vmatpush.msra.mxu0 0.0
    %5911 = vmatpush.msra.mxu0 0.0
    %5912 = vmatpush.msra.mxu0 0.0
    %5913 = vmatpush.msra.mxu0 0.0
    %5914 = vmatpush.msra.mxu0 0.0
    %5915 = vmatpush.msra.mxu0 0.0
    %v5916 = vand.u32 %v5150, 4294901760
    %v5917 = vsub.f32 %v5150, %v5916
    %5918 = vmatpush.msra.mxu0 %v5917
    %v5919 = vand.u32 %v5148, 4294901760
    %v5920 = vsub.f32 %v5148, %v5919
    %5921 = vmatpush.msra.mxu0 %v5920
    %v5922 = vand.u32 %v5146, 4294901760
    %v5923 = vsub.f32 %v5146, %v5922
    %5924 = vmatpush.msra.mxu0 %v5923
    %v5925 = vand.u32 %v5144, 4294901760
    %v5926 = vsub.f32 %v5144, %v5925
    %5927 = vmatpush.msra.mxu0 %v5926
    %v5928 = vand.u32 %v3344, 4294901760
    %v5929 = vsub.f32 %v3344, %v5928
    %5930 = vmatmul.f32.gmra.mxu0 %v5929
    %v5931 = vpop.f32.mrf.mxu0
    %v5932 = vadd.f32 %v5902, %v5931
    %5933 = vdwg.mxu0
    %5934 = vmatpush.msra.mxu0 0.0
    %5935 = vmatpush.msra.mxu0 0.0
    %5936 = vmatpush.msra.mxu0 0.0
    %5937 = vmatpush.msra.mxu0 0.0
    %5938 = vmatpush.msra.mxu0 0.0
    %5939 = vmatpush.msra.mxu0 0.0
    %5940 = vmatpush.msra.mxu0 0.0
    %5941 = vmatpush.msra.mxu0 0.0
    %5942 = vmatpush.msra.mxu0 0.0
    %5943 = vmatpush.msra.mxu0 0.0
    %5944 = vmatpush.msra.mxu0 0.0
    %5945 = vmatpush.msra.mxu0 0.0
    %v5946 = vand.u32 %v5150, 4294901760
    %5947 = vmatpush.msra.mxu0 %v5946
    %v5948 = vand.u32 %v5148, 4294901760
    %5949 = vmatpush.msra.mxu0 %v5948
    %v5950 = vand.u32 %v5146, 4294901760
    %5951 = vmatpush.msra.mxu0 %v5950
    %v5952 = vand.u32 %v5144, 4294901760
    %5953 = vmatpush.msra.mxu0 %v5952
    %v5954 = vand.u32 %v3344, 4294901760
    %v5955 = vsub.f32 %v3344, %v5954
    %v5956 = vand.u32 %v5955, 4294901760
    %5957 = vmatmul.f32.gmra.mxu0 %v5956
    %v5958 = vpop.f32.mrf.mxu0
    %v5959 = vadd.f32 %v5932, %v5958
    %5960 = vdwg.mxu0
    %5961 = vmatpush.msra.mxu0 0.0
    %5962 = vmatpush.msra.mxu0 0.0
    %5963 = vmatpush.msra.mxu0 0.0
    %5964 = vmatpush.msra.mxu0 0.0
    %5965 = vmatpush.msra.mxu0 0.0
    %5966 = vmatpush.msra.mxu0 0.0
    %5967 = vmatpush.msra.mxu0 0.0
    %5968 = vmatpush.msra.mxu0 0.0
    %5969 = vmatpush.msra.mxu0 0.0
    %5970 = vmatpush.msra.mxu0 0.0
    %5971 = vmatpush.msra.mxu0 0.0
    %5972 = vmatpush.msra.mxu0 0.0
    %v5973 = vand.u32 %v5150, 4294901760
    %v5974 = vsub.f32 %v5150, %v5973
    %v5975 = vand.u32 %v5974, 4294901760
    %5976 = vmatpush.msra.mxu0 %v5975
    %v5977 = vand.u32 %v5148, 4294901760
    %v5978 = vsub.f32 %v5148, %v5977
    %v5979 = vand.u32 %v5978, 4294901760
    %5980 = vmatpush.msra.mxu0 %v5979
    %v5981 = vand.u32 %v5146, 4294901760
    %v5982 = vsub.f32 %v5146, %v5981
    %v5983 = vand.u32 %v5982, 4294901760
    %5984 = vmatpush.msra.mxu0 %v5983
    %v5985 = vand.u32 %v5144, 4294901760
    %v5986 = vsub.f32 %v5144, %v5985
    %v5987 = vand.u32 %v5986, 4294901760
    %5988 = vmatpush.msra.mxu0 %v5987
    %v5989 = vand.u32 %v3344, 4294901760
    %5990 = vmatmul.f32.gmra.mxu0 %v5989
    %v5991 = vpop.f32.mrf.mxu0
    %v5992 = vadd.f32 %v5959, %v5991
    %5993 = vdwg.mxu0
    %5994 = vmatpush.msra.mxu0 0.0
    %5995 = vmatpush.msra.mxu0 0.0
    %5996 = vmatpush.msra.mxu0 0.0
    %5997 = vmatpush.msra.mxu0 0.0
    %5998 = vmatpush.msra.mxu0 0.0
    %5999 = vmatpush.msra.mxu0 0.0
    %6000 = vmatpush.msra.mxu0 0.0
    %6001 = vmatpush.msra.mxu0 0.0
    %6002 = vmatpush.msra.mxu0 0.0
    %6003 = vmatpush.msra.mxu0 0.0
    %6004 = vmatpush.msra.mxu0 0.0
    %6005 = vmatpush.msra.mxu0 0.0
    %v6006 = vand.u32 %v5150, 4294901760
    %6007 = vmatpush.msra.mxu0 %v6006
    %v6008 = vand.u32 %v5148, 4294901760
    %6009 = vmatpush.msra.mxu0 %v6008
    %v6010 = vand.u32 %v5146, 4294901760
    %6011 = vmatpush.msra.mxu0 %v6010
    %v6012 = vand.u32 %v5144, 4294901760
    %6013 = vmatpush.msra.mxu0 %v6012
    %v6014 = vand.u32 %v3344, 4294901760
    %6015 = vmatmul.f32.gmra.mxu0 %v6014
    %v6016 = vpop.f32.mrf.mxu0
    %v6017 = vadd.f32 %v5992, %v6016
    %6018 = vdwg.mxu0
    %v6019 = vand.u32 %v5111, 4294901760
    %6020 = vmatpush.msra.mxu0 %v6019
    %v6021 = vand.u32 %v5109, 4294901760
    %6022 = vmatpush.msra.mxu0 %v6021
    %v6023 = vand.u32 %v5107, 4294901760
    %6024 = vmatpush.msra.mxu0 %v6023
    %v6025 = vand.u32 %v5105, 4294901760
    %6026 = vmatpush.msra.mxu0 %v6025
    %v6027 = vand.u32 %v5103, 4294901760
    %6028 = vmatpush.msra.mxu0 %v6027
    %v6029 = vand.u32 %v5101, 4294901760
    %6030 = vmatpush.msra.mxu0 %v6029
    %v6031 = vand.u32 %v5099, 4294901760
    %6032 = vmatpush.msra.mxu0 %v6031
    %v6033 = vand.u32 %v5097, 4294901760
    %6034 = vmatpush.msra.mxu0 %v6033
    %v6035 = vand.u32 %v5095, 4294901760
    %6036 = vmatpush.msra.mxu0 %v6035
    %v6037 = vand.u32 %v5093, 4294901760
    %6038 = vmatpush.msra.mxu0 %v6037
    %v6039 = vand.u32 %v5091, 4294901760
    %6040 = vmatpush.msra.mxu0 %v6039
    %v6041 = vand.u32 %v5089, 4294901760
    %6042 = vmatpush.msra.mxu0 %v6041
    %v6043 = vand.u32 %v5087, 4294901760
    %6044 = vmatpush.msra.mxu0 %v6043
    %v6045 = vand.u32 %v5085, 4294901760
    %6046 = vmatpush.msra.mxu0 %v6045
    %v6047 = vand.u32 %v5083, 4294901760
    %6048 = vmatpush.msra.mxu0 %v6047
    %v6049 = vand.u32 %v5081, 4294901760
    %6050 = vmatpush.msra.mxu0 %v6049
    %v6051 = vand.u32 %v3267, 4294901760
    %v6052 = vsub.f32 %v3267, %v6051
    %v6053 = vand.u32 %v6052, 4294901760
    %v6054 = vsub.f32 %v6052, %v6053
    %v6055 = vand.u32 %v6054, 4294901760
    %6056 = vmatmul.f32.gmra.mxu0 %v6055
    %v6057 = vpop.f32.mrf.mxu0
    %v6058 = vadd.f32 0.0, %v6057
    %6059 = vdwg.mxu0
    %v6060 = vand.u32 %v5111, 4294901760
    %v6061 = vsub.f32 %v5111, %v6060
    %v6062 = vand.u32 %v6061, 4294901760
    %v6063 = vsub.f32 %v6061, %v6062
    %v6064 = vand.u32 %v6063, 4294901760
    %6065 = vmatpush.msra.mxu0 %v6064
    %v6066 = vand.u32 %v5109, 4294901760
    %v6067 = vsub.f32 %v5109, %v6066
    %v6068 = vand.u32 %v6067, 4294901760
    %v6069 = vsub.f32 %v6067, %v6068
    %v6070 = vand.u32 %v6069, 4294901760
    %6071 = vmatpush.msra.mxu0 %v6070
    %v6072 = vand.u32 %v5107, 4294901760
    %v6073 = vsub.f32 %v5107, %v6072
    %v6074 = vand.u32 %v6073, 4294901760
    %v6075 = vsub.f32 %v6073, %v6074
    %v6076 = vand.u32 %v6075, 4294901760
    %6077 = vmatpush.msra.mxu0 %v6076
    %v6078 = vand.u32 %v5105, 4294901760
    %v6079 = vsub.f32 %v5105, %v6078
    %v6080 = vand.u32 %v6079, 4294901760
    %v6081 = vsub.f32 %v6079, %v6080
    %v6082 = vand.u32 %v6081, 4294901760
    %6083 = vmatpush.msra.mxu0 %v6082
    %v6084 = vand.u32 %v5103, 4294901760
    %v6085 = vsub.f32 %v5103, %v6084
    %v6086 = vand.u32 %v6085, 4294901760
    %v6087 = vsub.f32 %v6085, %v6086
    %v6088 = vand.u32 %v6087, 4294901760
    %6089 = vmatpush.msra.mxu0 %v6088
    %v6090 = vand.u32 %v5101, 4294901760
    %v6091 = vsub.f32 %v5101, %v6090
    %v6092 = vand.u32 %v6091, 4294901760
    %v6093 = vsub.f32 %v6091, %v6092
    %v6094 = vand.u32 %v6093, 4294901760
    %6095 = vmatpush.msra.mxu0 %v6094
    %v6096 = vand.u32 %v5099, 4294901760
    %v6097 = vsub.f32 %v5099, %v6096
    %v6098 = vand.u32 %v6097, 4294901760
    %v6099 = vsub.f32 %v6097, %v6098
    %v6100 = vand.u32 %v6099, 4294901760
    %6101 = vmatpush.msra.mxu0 %v6100
    %v6102 = vand.u32 %v5097, 4294901760
    %v6103 = vsub.f32 %v5097, %v6102
    %v6104 = vand.u32 %v6103, 4294901760
    %v6105 = vsub.f32 %v6103, %v6104
    %v6106 = vand.u32 %v6105, 4294901760
    %6107 = vmatpush.msra.mxu0 %v6106
    %v6108 = vand.u32 %v5095, 4294901760
    %v6109 = vsub.f32 %v5095, %v6108
    %v6110 = vand.u32 %v6109, 4294901760
    %v6111 = vsub.f32 %v6109, %v6110
    %v6112 = vand.u32 %v6111, 4294901760
    %6113 = vmatpush.msra.mxu0 %v6112
    %v6114 = vand.u32 %v5093, 4294901760
    %v6115 = vsub.f32 %v5093, %v6114
    %v6116 = vand.u32 %v6115, 4294901760
    %v6117 = vsub.f32 %v6115, %v6116
    %v6118 = vand.u32 %v6117, 4294901760
    %6119 = vmatpush.msra.mxu0 %v6118
    %v6120 = vand.u32 %v5091, 4294901760
    %v6121 = vsub.f32 %v5091, %v6120
    %v6122 = vand.u32 %v6121, 4294901760
    %v6123 = vsub.f32 %v6121, %v6122
    %v6124 = vand.u32 %v6123, 4294901760
    %6125 = vmatpush.msra.mxu0 %v6124
    %v6126 = vand.u32 %v5089, 4294901760
    %v6127 = vsub.f32 %v5089, %v6126
    %v6128 = vand.u32 %v6127, 4294901760
    %v6129 = vsub.f32 %v6127, %v6128
    %v6130 = vand.u32 %v6129, 4294901760
    %6131 = vmatpush.msra.mxu0 %v6130
    %v6132 = vand.u32 %v5087, 4294901760
    %v6133 = vsub.f32 %v5087, %v6132
    %v6134 = vand.u32 %v6133, 4294901760
    %v6135 = vsub.f32 %v6133, %v6134
    %v6136 = vand.u32 %v6135, 4294901760
    %6137 = vmatpush.msra.mxu0 %v6136
    %v6138 = vand.u32 %v5085, 4294901760
    %v6139 = vsub.f32 %v5085, %v6138
    %v6140 = vand.u32 %v6139, 4294901760
    %v6141 = vsub.f32 %v6139, %v6140
    %v6142 = vand.u32 %v6141, 4294901760
    %6143 = vmatpush.msra.mxu0 %v6142
    %v6144 = vand.u32 %v5083, 4294901760
    %v6145 = vsub.f32 %v5083, %v6144
    %v6146 = vand.u32 %v6145, 4294901760
    %v6147 = vsub.f32 %v6145, %v6146
    %v6148 = vand.u32 %v6147, 4294901760
    %6149 = vmatpush.msra.mxu0 %v6148
    %v6150 = vand.u32 %v5081, 4294901760
    %v6151 = vsub.f32 %v5081, %v6150
    %v6152 = vand.u32 %v6151, 4294901760
    %v6153 = vsub.f32 %v6151, %v6152
    %v6154 = vand.u32 %v6153, 4294901760
    %6155 = vmatpush.msra.mxu0 %v6154
    %v6156 = vand.u32 %v3267, 4294901760
    %6157 = vmatmul.f32.gmra.mxu0 %v6156
    %v6158 = vpop.f32.mrf.mxu0
    %v6159 = vadd.f32 %v6058, %v6158
    %6160 = vdwg.mxu0
    %v6161 = vand.u32 %v5111, 4294901760
    %v6162 = vsub.f32 %v5111, %v6161
    %6163 = vmatpush.msra.mxu0 %v6162
    %v6164 = vand.u32 %v5109, 4294901760
    %v6165 = vsub.f32 %v5109, %v6164
    %6166 = vmatpush.msra.mxu0 %v6165
    %v6167 = vand.u32 %v5107, 4294901760
    %v6168 = vsub.f32 %v5107, %v6167
    %6169 = vmatpush.msra.mxu0 %v6168
    %v6170 = vand.u32 %v5105, 4294901760
    %v6171 = vsub.f32 %v5105, %v6170
    %6172 = vmatpush.msra.mxu0 %v6171
    %v6173 = vand.u32 %v5103, 4294901760
    %v6174 = vsub.f32 %v5103, %v6173
    %6175 = vmatpush.msra.mxu0 %v6174
    %v6176 = vand.u32 %v5101, 4294901760
    %v6177 = vsub.f32 %v5101, %v6176
    %6178 = vmatpush.msra.mxu0 %v6177
    %v6179 = vand.u32 %v5099, 4294901760
    %v6180 = vsub.f32 %v5099, %v6179
    %6181 = vmatpush.msra.mxu0 %v6180
    %v6182 = vand.u32 %v5097, 4294901760
    %v6183 = vsub.f32 %v5097, %v6182
    %6184 = vmatpush.msra.mxu0 %v6183
    %v6185 = vand.u32 %v5095, 4294901760
    %v6186 = vsub.f32 %v5095, %v6185
    %6187 = vmatpush.msra.mxu0 %v6186
    %v6188 = vand.u32 %v5093, 4294901760
    %v6189 = vsub.f32 %v5093, %v6188
    %6190 = vmatpush.msra.mxu0 %v6189
    %v6191 = vand.u32 %v5091, 4294901760
    %v6192 = vsub.f32 %v5091, %v6191
    %6193 = vmatpush.msra.mxu0 %v6192
    %v6194 = vand.u32 %v5089, 4294901760
    %v6195 = vsub.f32 %v5089, %v6194
    %6196 = vmatpush.msra.mxu0 %v6195
    %v6197 = vand.u32 %v5087, 4294901760
    %v6198 = vsub.f32 %v5087, %v6197
    %6199 = vmatpush.msra.mxu0 %v6198
    %v6200 = vand.u32 %v5085, 4294901760
    %v6201 = vsub.f32 %v5085, %v6200
    %6202 = vmatpush.msra.mxu0 %v6201
    %v6203 = vand.u32 %v5083, 4294901760
    %v6204 = vsub.f32 %v5083, %v6203
    %6205 = vmatpush.msra.mxu0 %v6204
    %v6206 = vand.u32 %v5081, 4294901760
    %v6207 = vsub.f32 %v5081, %v6206
    %6208 = vmatpush.msra.mxu0 %v6207
    %v6209 = vand.u32 %v3267, 4294901760
    %v6210 = vsub.f32 %v3267, %v6209
    %6211 = vmatmul.f32.gmra.mxu0 %v6210
    %v6212 = vpop.f32.mrf.mxu0
    %v6213 = vadd.f32 %v6159, %v6212
    %6214 = vdwg.mxu0
    %v6215 = vand.u32 %v5111, 4294901760
    %6216 = vmatpush.msra.mxu0 %v6215
    %v6217 = vand.u32 %v5109, 4294901760
    %6218 = vmatpush.msra.mxu0 %v6217
    %v6219 = vand.u32 %v5107, 4294901760
    %6220 = vmatpush.msra.mxu0 %v6219
    %v6221 = vand.u32 %v5105, 4294901760
    %6222 = vmatpush.msra.mxu0 %v6221
    %v6223 = vand.u32 %v5103, 4294901760
    %6224 = vmatpush.msra.mxu0 %v6223
    %v6225 = vand.u32 %v5101, 4294901760
    %6226 = vmatpush.msra.mxu0 %v6225
    %v6227 = vand.u32 %v5099, 4294901760
    %6228 = vmatpush.msra.mxu0 %v6227
    %v6229 = vand.u32 %v5097, 4294901760
    %6230 = vmatpush.msra.mxu0 %v6229
    %v6231 = vand.u32 %v5095, 4294901760
    %6232 = vmatpush.msra.mxu0 %v6231
    %v6233 = vand.u32 %v5093, 4294901760
    %6234 = vmatpush.msra.mxu0 %v6233
    %v6235 = vand.u32 %v5091, 4294901760
    %6236 = vmatpush.msra.mxu0 %v6235
    %v6237 = vand.u32 %v5089, 4294901760
    %6238 = vmatpush.msra.mxu0 %v6237
    %v6239 = vand.u32 %v5087, 4294901760
    %6240 = vmatpush.msra.mxu0 %v6239
    %v6241 = vand.u32 %v5085, 4294901760
    %6242 = vmatpush.msra.mxu0 %v6241
    %v6243 = vand.u32 %v5083, 4294901760
    %6244 = vmatpush.msra.mxu0 %v6243
    %v6245 = vand.u32 %v5081, 4294901760
    %6246 = vmatpush.msra.mxu0 %v6245
    %v6247 = vand.u32 %v3267, 4294901760
    %v6248 = vsub.f32 %v3267, %v6247
    %v6249 = vand.u32 %v6248, 4294901760
    %6250 = vmatmul.f32.gmra.mxu0 %v6249
    %v6251 = vpop.f32.mrf.mxu0
    %v6252 = vadd.f32 %v6213, %v6251
    %6253 = vdwg.mxu0
    %v6254 = vand.u32 %v5111, 4294901760
    %v6255 = vsub.f32 %v5111, %v6254
    %v6256 = vand.u32 %v6255, 4294901760
    %6257 = vmatpush.msra.mxu0 %v6256
    %v6258 = vand.u32 %v5109, 4294901760
    %v6259 = vsub.f32 %v5109, %v6258
    %v6260 = vand.u32 %v6259, 4294901760
    %6261 = vmatpush.msra.mxu0 %v6260
    %v6262 = vand.u32 %v5107, 4294901760
    %v6263 = vsub.f32 %v5107, %v6262
    %v6264 = vand.u32 %v6263, 4294901760
    %6265 = vmatpush.msra.mxu0 %v6264
    %v6266 = vand.u32 %v5105, 4294901760
    %v6267 = vsub.f32 %v5105, %v6266
    %v6268 = vand.u32 %v6267, 4294901760
    %6269 = vmatpush.msra.mxu0 %v6268
    %v6270 = vand.u32 %v5103, 4294901760
    %v6271 = vsub.f32 %v5103, %v6270
    %v6272 = vand.u32 %v6271, 4294901760
    %6273 = vmatpush.msra.mxu0 %v6272
    %v6274 = vand.u32 %v5101, 4294901760
    %v6275 = vsub.f32 %v5101, %v6274
    %v6276 = vand.u32 %v6275, 4294901760
    %6277 = vmatpush.msra.mxu0 %v6276
    %v6278 = vand.u32 %v5099, 4294901760
    %v6279 = vsub.f32 %v5099, %v6278
    %v6280 = vand.u32 %v6279, 4294901760
    %6281 = vmatpush.msra.mxu0 %v6280
    %v6282 = vand.u32 %v5097, 4294901760
    %v6283 = vsub.f32 %v5097, %v6282
    %v6284 = vand.u32 %v6283, 4294901760
    %6285 = vmatpush.msra.mxu0 %v6284
    %v6286 = vand.u32 %v5095, 4294901760
    %v6287 = vsub.f32 %v5095, %v6286
    %v6288 = vand.u32 %v6287, 4294901760
    %6289 = vmatpush.msra.mxu0 %v6288
    %v6290 = vand.u32 %v5093, 4294901760
    %v6291 = vsub.f32 %v5093, %v6290
    %v6292 = vand.u32 %v6291, 4294901760
    %6293 = vmatpush.msra.mxu0 %v6292
    %v6294 = vand.u32 %v5091, 4294901760
    %v6295 = vsub.f32 %v5091, %v6294
    %v6296 = vand.u32 %v6295, 4294901760
    %6297 = vmatpush.msra.mxu0 %v6296
    %v6298 = vand.u32 %v5089, 4294901760
    %v6299 = vsub.f32 %v5089, %v6298
    %v6300 = vand.u32 %v6299, 4294901760
    %6301 = vmatpush.msra.mxu0 %v6300
    %v6302 = vand.u32 %v5087, 4294901760
    %v6303 = vsub.f32 %v5087, %v6302
    %v6304 = vand.u32 %v6303, 4294901760
    %6305 = vmatpush.msra.mxu0 %v6304
    %v6306 = vand.u32 %v5085, 4294901760
    %v6307 = vsub.f32 %v5085, %v6306
    %v6308 = vand.u32 %v6307, 4294901760
    %6309 = vmatpush.msra.mxu0 %v6308
    %v6310 = vand.u32 %v5083, 4294901760
    %v6311 = vsub.f32 %v5083, %v6310
    %v6312 = vand.u32 %v6311, 4294901760
    %6313 = vmatpush.msra.mxu0 %v6312
    %v6314 = vand.u32 %v5081, 4294901760
    %v6315 = vsub.f32 %v5081, %v6314
    %v6316 = vand.u32 %v6315, 4294901760
    %6317 = vmatpush.msra.mxu0 %v6316
    %v6318 = vand.u32 %v3267, 4294901760
    %6319 = vmatmul.f32.gmra.mxu0 %v6318
    %v6320 = vpop.f32.mrf.mxu0
    %v6321 = vadd.f32 %v6252, %v6320
    %6322 = vdwg.mxu0
    %v6323 = vand.u32 %v5111, 4294901760
    %6324 = vmatpush.msra.mxu0 %v6323
    %v6325 = vand.u32 %v5109, 4294901760
    %6326 = vmatpush.msra.mxu0 %v6325
    %v6327 = vand.u32 %v5107, 4294901760
    %6328 = vmatpush.msra.mxu0 %v6327
    %v6329 = vand.u32 %v5105, 4294901760
    %6330 = vmatpush.msra.mxu0 %v6329
    %v6331 = vand.u32 %v5103, 4294901760
    %6332 = vmatpush.msra.mxu0 %v6331
    %v6333 = vand.u32 %v5101, 4294901760
    %6334 = vmatpush.msra.mxu0 %v6333
    %v6335 = vand.u32 %v5099, 4294901760
    %6336 = vmatpush.msra.mxu0 %v6335
    %v6337 = vand.u32 %v5097, 4294901760
    %6338 = vmatpush.msra.mxu0 %v6337
    %v6339 = vand.u32 %v5095, 4294901760
    %6340 = vmatpush.msra.mxu0 %v6339
    %v6341 = vand.u32 %v5093, 4294901760
    %6342 = vmatpush.msra.mxu0 %v6341
    %v6343 = vand.u32 %v5091, 4294901760
    %6344 = vmatpush.msra.mxu0 %v6343
    %v6345 = vand.u32 %v5089, 4294901760
    %6346 = vmatpush.msra.mxu0 %v6345
    %v6347 = vand.u32 %v5087, 4294901760
    %6348 = vmatpush.msra.mxu0 %v6347
    %v6349 = vand.u32 %v5085, 4294901760
    %6350 = vmatpush.msra.mxu0 %v6349
    %v6351 = vand.u32 %v5083, 4294901760
    %6352 = vmatpush.msra.mxu0 %v6351
    %v6353 = vand.u32 %v5081, 4294901760
    %6354 = vmatpush.msra.mxu0 %v6353
    %v6355 = vand.u32 %v3267, 4294901760
    %6356 = vmatmul.f32.gmra.mxu0 %v6355
    %v6357 = vpop.f32.mrf.mxu0
    %v6358 = vadd.f32 %v6321, %v6357
    %6359 = vdwg.mxu0
    %v6360 = vand.u32 %v5143, 4294901760
    %6361 = vmatpush.msra.mxu0 %v6360
    %v6362 = vand.u32 %v5141, 4294901760
    %6363 = vmatpush.msra.mxu0 %v6362
    %v6364 = vand.u32 %v5139, 4294901760
    %6365 = vmatpush.msra.mxu0 %v6364
    %v6366 = vand.u32 %v5137, 4294901760
    %6367 = vmatpush.msra.mxu0 %v6366
    %v6368 = vand.u32 %v5135, 4294901760
    %6369 = vmatpush.msra.mxu0 %v6368
    %v6370 = vand.u32 %v5133, 4294901760
    %6371 = vmatpush.msra.mxu0 %v6370
    %v6372 = vand.u32 %v5131, 4294901760
    %6373 = vmatpush.msra.mxu0 %v6372
    %v6374 = vand.u32 %v5129, 4294901760
    %6375 = vmatpush.msra.mxu0 %v6374
    %v6376 = vand.u32 %v5127, 4294901760
    %6377 = vmatpush.msra.mxu0 %v6376
    %v6378 = vand.u32 %v5125, 4294901760
    %6379 = vmatpush.msra.mxu0 %v6378
    %v6380 = vand.u32 %v5123, 4294901760
    %6381 = vmatpush.msra.mxu0 %v6380
    %v6382 = vand.u32 %v5121, 4294901760
    %6383 = vmatpush.msra.mxu0 %v6382
    %v6384 = vand.u32 %v5119, 4294901760
    %6385 = vmatpush.msra.mxu0 %v6384
    %v6386 = vand.u32 %v5117, 4294901760
    %6387 = vmatpush.msra.mxu0 %v6386
    %v6388 = vand.u32 %v5115, 4294901760
    %6389 = vmatpush.msra.mxu0 %v6388
    %v6390 = vand.u32 %v5113, 4294901760
    %6391 = vmatpush.msra.mxu0 %v6390
    %v6392 = vand.u32 %v3268, 4294901760
    %v6393 = vsub.f32 %v3268, %v6392
    %v6394 = vand.u32 %v6393, 4294901760
    %v6395 = vsub.f32 %v6393, %v6394
    %v6396 = vand.u32 %v6395, 4294901760
    %6397 = vmatmul.f32.gmra.mxu0 %v6396
    %v6398 = vpop.f32.mrf.mxu0
    %v6399 = vadd.f32 %v6358, %v6398
    %6400 = vdwg.mxu0
    %v6401 = vand.u32 %v5143, 4294901760
    %v6402 = vsub.f32 %v5143, %v6401
    %v6403 = vand.u32 %v6402, 4294901760
    %v6404 = vsub.f32 %v6402, %v6403
    %v6405 = vand.u32 %v6404, 4294901760
    %6406 = vmatpush.msra.mxu0 %v6405
    %v6407 = vand.u32 %v5141, 4294901760
    %v6408 = vsub.f32 %v5141, %v6407
    %v6409 = vand.u32 %v6408, 4294901760
    %v6410 = vsub.f32 %v6408, %v6409
    %v6411 = vand.u32 %v6410, 4294901760
    %6412 = vmatpush.msra.mxu0 %v6411
    %v6413 = vand.u32 %v5139, 4294901760
    %v6414 = vsub.f32 %v5139, %v6413
    %v6415 = vand.u32 %v6414, 4294901760
    %v6416 = vsub.f32 %v6414, %v6415
    %v6417 = vand.u32 %v6416, 4294901760
    %6418 = vmatpush.msra.mxu0 %v6417
    %v6419 = vand.u32 %v5137, 4294901760
    %v6420 = vsub.f32 %v5137, %v6419
    %v6421 = vand.u32 %v6420, 4294901760
    %v6422 = vsub.f32 %v6420, %v6421
    %v6423 = vand.u32 %v6422, 4294901760
    %6424 = vmatpush.msra.mxu0 %v6423
    %v6425 = vand.u32 %v5135, 4294901760
    %v6426 = vsub.f32 %v5135, %v6425
    %v6427 = vand.u32 %v6426, 4294901760
    %v6428 = vsub.f32 %v6426, %v6427
    %v6429 = vand.u32 %v6428, 4294901760
    %6430 = vmatpush.msra.mxu0 %v6429
    %v6431 = vand.u32 %v5133, 4294901760
    %v6432 = vsub.f32 %v5133, %v6431
    %v6433 = vand.u32 %v6432, 4294901760
    %v6434 = vsub.f32 %v6432, %v6433
    %v6435 = vand.u32 %v6434, 4294901760
    %6436 = vmatpush.msra.mxu0 %v6435
    %v6437 = vand.u32 %v5131, 4294901760
    %v6438 = vsub.f32 %v5131, %v6437
    %v6439 = vand.u32 %v6438, 4294901760
    %v6440 = vsub.f32 %v6438, %v6439
    %v6441 = vand.u32 %v6440, 4294901760
    %6442 = vmatpush.msra.mxu0 %v6441
    %v6443 = vand.u32 %v5129, 4294901760
    %v6444 = vsub.f32 %v5129, %v6443
    %v6445 = vand.u32 %v6444, 4294901760
    %v6446 = vsub.f32 %v6444, %v6445
    %v6447 = vand.u32 %v6446, 4294901760
    %6448 = vmatpush.msra.mxu0 %v6447
    %v6449 = vand.u32 %v5127, 4294901760
    %v6450 = vsub.f32 %v5127, %v6449
    %v6451 = vand.u32 %v6450, 4294901760
    %v6452 = vsub.f32 %v6450, %v6451
    %v6453 = vand.u32 %v6452, 4294901760
    %6454 = vmatpush.msra.mxu0 %v6453
    %v6455 = vand.u32 %v5125, 4294901760
    %v6456 = vsub.f32 %v5125, %v6455
    %v6457 = vand.u32 %v6456, 4294901760
    %v6458 = vsub.f32 %v6456, %v6457
    %v6459 = vand.u32 %v6458, 4294901760
    %6460 = vmatpush.msra.mxu0 %v6459
    %v6461 = vand.u32 %v5123, 4294901760
    %v6462 = vsub.f32 %v5123, %v6461
    %v6463 = vand.u32 %v6462, 4294901760
    %v6464 = vsub.f32 %v6462, %v6463
    %v6465 = vand.u32 %v6464, 4294901760
    %6466 = vmatpush.msra.mxu0 %v6465
    %v6467 = vand.u32 %v5121, 4294901760
    %v6468 = vsub.f32 %v5121, %v6467
    %v6469 = vand.u32 %v6468, 4294901760
    %v6470 = vsub.f32 %v6468, %v6469
    %v6471 = vand.u32 %v6470, 4294901760
    %6472 = vmatpush.msra.mxu0 %v6471
    %v6473 = vand.u32 %v5119, 4294901760
    %v6474 = vsub.f32 %v5119, %v6473
    %v6475 = vand.u32 %v6474, 4294901760
    %v6476 = vsub.f32 %v6474, %v6475
    %v6477 = vand.u32 %v6476, 4294901760
    %6478 = vmatpush.msra.mxu0 %v6477
    %v6479 = vand.u32 %v5117, 4294901760
    %v6480 = vsub.f32 %v5117, %v6479
    %v6481 = vand.u32 %v6480, 4294901760
    %v6482 = vsub.f32 %v6480, %v6481
    %v6483 = vand.u32 %v6482, 4294901760
    %6484 = vmatpush.msra.mxu0 %v6483
    %v6485 = vand.u32 %v5115, 4294901760
    %v6486 = vsub.f32 %v5115, %v6485
    %v6487 = vand.u32 %v6486, 4294901760
    %v6488 = vsub.f32 %v6486, %v6487
    %v6489 = vand.u32 %v6488, 4294901760
    %6490 = vmatpush.msra.mxu0 %v6489
    %v6491 = vand.u32 %v5113, 4294901760
    %v6492 = vsub.f32 %v5113, %v6491
    %v6493 = vand.u32 %v6492, 4294901760
    %v6494 = vsub.f32 %v6492, %v6493
    %v6495 = vand.u32 %v6494, 4294901760
    %6496 = vmatpush.msra.mxu0 %v6495
    %v6497 = vand.u32 %v3268, 4294901760
    %6498 = vmatmul.f32.gmra.mxu0 %v6497
    %v6499 = vpop.f32.mrf.mxu0
    %v6500 = vadd.f32 %v6399, %v6499
    %6501 = vdwg.mxu0
    %v6502 = vand.u32 %v5143, 4294901760
    %v6503 = vsub.f32 %v5143, %v6502
    %6504 = vmatpush.msra.mxu0 %v6503
    %v6505 = vand.u32 %v5141, 4294901760
    %v6506 = vsub.f32 %v5141, %v6505
    %6507 = vmatpush.msra.mxu0 %v6506
    %v6508 = vand.u32 %v5139, 4294901760
    %v6509 = vsub.f32 %v5139, %v6508
    %6510 = vmatpush.msra.mxu0 %v6509
    %v6511 = vand.u32 %v5137, 4294901760
    %v6512 = vsub.f32 %v5137, %v6511
    %6513 = vmatpush.msra.mxu0 %v6512
    %v6514 = vand.u32 %v5135, 4294901760
    %v6515 = vsub.f32 %v5135, %v6514
    %6516 = vmatpush.msra.mxu0 %v6515
    %v6517 = vand.u32 %v5133, 4294901760
    %v6518 = vsub.f32 %v5133, %v6517
    %6519 = vmatpush.msra.mxu0 %v6518
    %v6520 = vand.u32 %v5131, 4294901760
    %v6521 = vsub.f32 %v5131, %v6520
    %6522 = vmatpush.msra.mxu0 %v6521
    %v6523 = vand.u32 %v5129, 4294901760
    %v6524 = vsub.f32 %v5129, %v6523
    %6525 = vmatpush.msra.mxu0 %v6524
    %v6526 = vand.u32 %v5127, 4294901760
    %v6527 = vsub.f32 %v5127, %v6526
    %6528 = vmatpush.msra.mxu0 %v6527
    %v6529 = vand.u32 %v5125, 4294901760
    %v6530 = vsub.f32 %v5125, %v6529
    %6531 = vmatpush.msra.mxu0 %v6530
    %v6532 = vand.u32 %v5123, 4294901760
    %v6533 = vsub.f32 %v5123, %v6532
    %6534 = vmatpush.msra.mxu0 %v6533
    %v6535 = vand.u32 %v5121, 4294901760
    %v6536 = vsub.f32 %v5121, %v6535
    %6537 = vmatpush.msra.mxu0 %v6536
    %v6538 = vand.u32 %v5119, 4294901760
    %v6539 = vsub.f32 %v5119, %v6538
    %6540 = vmatpush.msra.mxu0 %v6539
    %v6541 = vand.u32 %v5117, 4294901760
    %v6542 = vsub.f32 %v5117, %v6541
    %6543 = vmatpush.msra.mxu0 %v6542
    %v6544 = vand.u32 %v5115, 4294901760
    %v6545 = vsub.f32 %v5115, %v6544
    %6546 = vmatpush.msra.mxu0 %v6545
    %v6547 = vand.u32 %v5113, 4294901760
    %v6548 = vsub.f32 %v5113, %v6547
    %6549 = vmatpush.msra.mxu0 %v6548
    %v6550 = vand.u32 %v3268, 4294901760
    %v6551 = vsub.f32 %v3268, %v6550
    %6552 = vmatmul.f32.gmra.mxu0 %v6551
    %v6553 = vpop.f32.mrf.mxu0
    %v6554 = vadd.f32 %v6500, %v6553
    %6555 = vdwg.mxu0
    %v6556 = vand.u32 %v5143, 4294901760
    %6557 = vmatpush.msra.mxu0 %v6556
    %v6558 = vand.u32 %v5141, 4294901760
    %6559 = vmatpush.msra.mxu0 %v6558
    %v6560 = vand.u32 %v5139, 4294901760
    %6561 = vmatpush.msra.mxu0 %v6560
    %v6562 = vand.u32 %v5137, 4294901760
    %6563 = vmatpush.msra.mxu0 %v6562
    %v6564 = vand.u32 %v5135, 4294901760
    %6565 = vmatpush.msra.mxu0 %v6564
    %v6566 = vand.u32 %v5133, 4294901760
    %6567 = vmatpush.msra.mxu0 %v6566
    %v6568 = vand.u32 %v5131, 4294901760
    %6569 = vmatpush.msra.mxu0 %v6568
    %v6570 = vand.u32 %v5129, 4294901760
    %6571 = vmatpush.msra.mxu0 %v6570
    %v6572 = vand.u32 %v5127, 4294901760
    %6573 = vmatpush.msra.mxu0 %v6572
    %v6574 = vand.u32 %v5125, 4294901760
    %6575 = vmatpush.msra.mxu0 %v6574
    %v6576 = vand.u32 %v5123, 4294901760
    %6577 = vmatpush.msra.mxu0 %v6576
    %v6578 = vand.u32 %v5121, 4294901760
    %6579 = vmatpush.msra.mxu0 %v6578
    %v6580 = vand.u32 %v5119, 4294901760
    %6581 = vmatpush.msra.mxu0 %v6580
    %v6582 = vand.u32 %v5117, 4294901760
    %6583 = vmatpush.msra.mxu0 %v6582
    %v6584 = vand.u32 %v5115, 4294901760
    %6585 = vmatpush.msra.mxu0 %v6584
    %v6586 = vand.u32 %v5113, 4294901760
    %6587 = vmatpush.msra.mxu0 %v6586
    %v6588 = vand.u32 %v3268, 4294901760
    %v6589 = vsub.f32 %v3268, %v6588
    %v6590 = vand.u32 %v6589, 4294901760
    %6591 = vmatmul.f32.gmra.mxu0 %v6590
    %v6592 = vpop.f32.mrf.mxu0
    %v6593 = vadd.f32 %v6554, %v6592
    %6594 = vdwg.mxu0
    %v6595 = vand.u32 %v5143, 4294901760
    %v6596 = vsub.f32 %v5143, %v6595
    %v6597 = vand.u32 %v6596, 4294901760
    %6598 = vmatpush.msra.mxu0 %v6597
    %v6599 = vand.u32 %v5141, 4294901760
    %v6600 = vsub.f32 %v5141, %v6599
    %v6601 = vand.u32 %v6600, 4294901760
    %6602 = vmatpush.msra.mxu0 %v6601
    %v6603 = vand.u32 %v5139, 4294901760
    %v6604 = vsub.f32 %v5139, %v6603
    %v6605 = vand.u32 %v6604, 4294901760
    %6606 = vmatpush.msra.mxu0 %v6605
    %v6607 = vand.u32 %v5137, 4294901760
    %v6608 = vsub.f32 %v5137, %v6607
    %v6609 = vand.u32 %v6608, 4294901760
    %6610 = vmatpush.msra.mxu0 %v6609
    %v6611 = vand.u32 %v5135, 4294901760
    %v6612 = vsub.f32 %v5135, %v6611
    %v6613 = vand.u32 %v6612, 4294901760
    %6614 = vmatpush.msra.mxu0 %v6613
    %v6615 = vand.u32 %v5133, 4294901760
    %v6616 = vsub.f32 %v5133, %v6615
    %v6617 = vand.u32 %v6616, 4294901760
    %6618 = vmatpush.msra.mxu0 %v6617
    %v6619 = vand.u32 %v5131, 4294901760
    %v6620 = vsub.f32 %v5131, %v6619
    %v6621 = vand.u32 %v6620, 4294901760
    %6622 = vmatpush.msra.mxu0 %v6621
    %v6623 = vand.u32 %v5129, 4294901760
    %v6624 = vsub.f32 %v5129, %v6623
    %v6625 = vand.u32 %v6624, 4294901760
    %6626 = vmatpush.msra.mxu0 %v6625
    %v6627 = vand.u32 %v5127, 4294901760
    %v6628 = vsub.f32 %v5127, %v6627
    %v6629 = vand.u32 %v6628, 4294901760
    %6630 = vmatpush.msra.mxu0 %v6629
    %v6631 = vand.u32 %v5125, 4294901760
    %v6632 = vsub.f32 %v5125, %v6631
    %v6633 = vand.u32 %v6632, 4294901760
    %6634 = vmatpush.msra.mxu0 %v6633
    %v6635 = vand.u32 %v5123, 4294901760
    %v6636 = vsub.f32 %v5123, %v6635
    %v6637 = vand.u32 %v6636, 4294901760
    %6638 = vmatpush.msra.mxu0 %v6637
    %v6639 = vand.u32 %v5121, 4294901760
    %v6640 = vsub.f32 %v5121, %v6639
    %v6641 = vand.u32 %v6640, 4294901760
    %6642 = vmatpush.msra.mxu0 %v6641
    %v6643 = vand.u32 %v5119, 4294901760
    %v6644 = vsub.f32 %v5119, %v6643
    %v6645 = vand.u32 %v6644, 4294901760
    %6646 = vmatpush.msra.mxu0 %v6645
    %v6647 = vand.u32 %v5117, 4294901760
    %v6648 = vsub.f32 %v5117, %v6647
    %v6649 = vand.u32 %v6648, 4294901760
    %6650 = vmatpush.msra.mxu0 %v6649
    %v6651 = vand.u32 %v5115, 4294901760
    %v6652 = vsub.f32 %v5115, %v6651
    %v6653 = vand.u32 %v6652, 4294901760
    %6654 = vmatpush.msra.mxu0 %v6653
    %v6655 = vand.u32 %v5113, 4294901760
    %v6656 = vsub.f32 %v5113, %v6655
    %v6657 = vand.u32 %v6656, 4294901760
    %6658 = vmatpush.msra.mxu0 %v6657
    %v6659 = vand.u32 %v3268, 4294901760
    %6660 = vmatmul.f32.gmra.mxu0 %v6659
    %v6661 = vpop.f32.mrf.mxu0
    %v6662 = vadd.f32 %v6593, %v6661
    %6663 = vdwg.mxu0
    %v6664 = vand.u32 %v5143, 4294901760
    %6665 = vmatpush.msra.mxu0 %v6664
    %v6666 = vand.u32 %v5141, 4294901760
    %6667 = vmatpush.msra.mxu0 %v6666
    %v6668 = vand.u32 %v5139, 4294901760
    %6669 = vmatpush.msra.mxu0 %v6668
    %v6670 = vand.u32 %v5137, 4294901760
    %6671 = vmatpush.msra.mxu0 %v6670
    %v6672 = vand.u32 %v5135, 4294901760
    %6673 = vmatpush.msra.mxu0 %v6672
    %v6674 = vand.u32 %v5133, 4294901760
    %6675 = vmatpush.msra.mxu0 %v6674
    %v6676 = vand.u32 %v5131, 4294901760
    %6677 = vmatpush.msra.mxu0 %v6676
    %v6678 = vand.u32 %v5129, 4294901760
    %6679 = vmatpush.msra.mxu0 %v6678
    %v6680 = vand.u32 %v5127, 4294901760
    %6681 = vmatpush.msra.mxu0 %v6680
    %v6682 = vand.u32 %v5125, 4294901760
    %6683 = vmatpush.msra.mxu0 %v6682
    %v6684 = vand.u32 %v5123, 4294901760
    %6685 = vmatpush.msra.mxu0 %v6684
    %v6686 = vand.u32 %v5121, 4294901760
    %6687 = vmatpush.msra.mxu0 %v6686
    %v6688 = vand.u32 %v5119, 4294901760
    %6689 = vmatpush.msra.mxu0 %v6688
    %v6690 = vand.u32 %v5117, 4294901760
    %6691 = vmatpush.msra.mxu0 %v6690
    %v6692 = vand.u32 %v5115, 4294901760
    %6693 = vmatpush.msra.mxu0 %v6692
    %v6694 = vand.u32 %v5113, 4294901760
    %6695 = vmatpush.msra.mxu0 %v6694
    %v6696 = vand.u32 %v3268, 4294901760
    %6697 = vmatmul.f32.gmra.mxu0 %v6696
    %v6698 = vpop.f32.mrf.mxu0
    %v6699 = vadd.f32 %v6662, %v6698
    %6700 = vdwg.mxu0
    %6701 = vmatpush.msra.mxu0 0.0
    %6702 = vmatpush.msra.mxu0 0.0
    %6703 = vmatpush.msra.mxu0 0.0
    %6704 = vmatpush.msra.mxu0 0.0
    %6705 = vmatpush.msra.mxu0 0.0
    %6706 = vmatpush.msra.mxu0 0.0
    %6707 = vmatpush.msra.mxu0 0.0
    %6708 = vmatpush.msra.mxu0 0.0
    %6709 = vmatpush.msra.mxu0 0.0
    %6710 = vmatpush.msra.mxu0 0.0
    %6711 = vmatpush.msra.mxu0 0.0
    %6712 = vmatpush.msra.mxu0 0.0
    %v6713 = vand.u32 %v5151, 4294901760
    %6714 = vmatpush.msra.mxu0 %v6713
    %v6715 = vand.u32 %v5149, 4294901760
    %6716 = vmatpush.msra.mxu0 %v6715
    %v6717 = vand.u32 %v5147, 4294901760
    %6718 = vmatpush.msra.mxu0 %v6717
    %v6719 = vand.u32 %v5145, 4294901760
    %6720 = vmatpush.msra.mxu0 %v6719
    %v6721 = vand.u32 %v3344, 4294901760
    %v6722 = vsub.f32 %v3344, %v6721
    %v6723 = vand.u32 %v6722, 4294901760
    %v6724 = vsub.f32 %v6722, %v6723
    %v6725 = vand.u32 %v6724, 4294901760
    %6726 = vmatmul.f32.gmra.mxu0 %v6725
    %v6727 = vpop.f32.mrf.mxu0
    %v6728 = vadd.f32 %v6699, %v6727
    %6729 = vdwg.mxu0
    %6730 = vmatpush.msra.mxu0 0.0
    %6731 = vmatpush.msra.mxu0 0.0
    %6732 = vmatpush.msra.mxu0 0.0
    %6733 = vmatpush.msra.mxu0 0.0
    %6734 = vmatpush.msra.mxu0 0.0
    %6735 = vmatpush.msra.mxu0 0.0
    %6736 = vmatpush.msra.mxu0 0.0
    %6737 = vmatpush.msra.mxu0 0.0
    %6738 = vmatpush.msra.mxu0 0.0
    %6739 = vmatpush.msra.mxu0 0.0
    %6740 = vmatpush.msra.mxu0 0.0
    %6741 = vmatpush.msra.mxu0 0.0
    %v6742 = vand.u32 %v5151, 4294901760
    %v6743 = vsub.f32 %v5151, %v6742
    %v6744 = vand.u32 %v6743, 4294901760
    %v6745 = vsub.f32 %v6743, %v6744
    %v6746 = vand.u32 %v6745, 4294901760
    %6747 = vmatpush.msra.mxu0 %v6746
    %v6748 = vand.u32 %v5149, 4294901760
    %v6749 = vsub.f32 %v5149, %v6748
    %v6750 = vand.u32 %v6749, 4294901760
    %v6751 = vsub.f32 %v6749, %v6750
    %v6752 = vand.u32 %v6751, 4294901760
    %6753 = vmatpush.msra.mxu0 %v6752
    %v6754 = vand.u32 %v5147, 4294901760
    %v6755 = vsub.f32 %v5147, %v6754
    %v6756 = vand.u32 %v6755, 4294901760
    %v6757 = vsub.f32 %v6755, %v6756
    %v6758 = vand.u32 %v6757, 4294901760
    %6759 = vmatpush.msra.mxu0 %v6758
    %v6760 = vand.u32 %v5145, 4294901760
    %v6761 = vsub.f32 %v5145, %v6760
    %v6762 = vand.u32 %v6761, 4294901760
    %v6763 = vsub.f32 %v6761, %v6762
    %v6764 = vand.u32 %v6763, 4294901760
    %6765 = vmatpush.msra.mxu0 %v6764
    %v6766 = vand.u32 %v3344, 4294901760
    %6767 = vmatmul.f32.gmra.mxu0 %v6766
    %v6768 = vpop.f32.mrf.mxu0
    %v6769 = vadd.f32 %v6728, %v6768
    %6770 = vdwg.mxu0
    %6771 = vmatpush.msra.mxu0 0.0
    %6772 = vmatpush.msra.mxu0 0.0
    %6773 = vmatpush.msra.mxu0 0.0
    %6774 = vmatpush.msra.mxu0 0.0
    %6775 = vmatpush.msra.mxu0 0.0
    %6776 = vmatpush.msra.mxu0 0.0
    %6777 = vmatpush.msra.mxu0 0.0
    %6778 = vmatpush.msra.mxu0 0.0
    %6779 = vmatpush.msra.mxu0 0.0
    %6780 = vmatpush.msra.mxu0 0.0
    %6781 = vmatpush.msra.mxu0 0.0
    %6782 = vmatpush.msra.mxu0 0.0
    %v6783 = vand.u32 %v5151, 4294901760
    %v6784 = vsub.f32 %v5151, %v6783
    %6785 = vmatpush.msra.mxu0 %v6784
    %v6786 = vand.u32 %v5149, 4294901760
    %v6787 = vsub.f32 %v5149, %v6786
    %6788 = vmatpush.msra.mxu0 %v6787
    %v6789 = vand.u32 %v5147, 4294901760
    %v6790 = vsub.f32 %v5147, %v6789
    %6791 = vmatpush.msra.mxu0 %v6790
    %v6792 = vand.u32 %v5145, 4294901760
    %v6793 = vsub.f32 %v5145, %v6792
    %6794 = vmatpush.msra.mxu0 %v6793
    %v6795 = vand.u32 %v3344, 4294901760
    %v6796 = vsub.f32 %v3344, %v6795
    %6797 = vmatmul.f32.gmra.mxu0 %v6796
    %v6798 = vpop.f32.mrf.mxu0
    %v6799 = vadd.f32 %v6769, %v6798
    %6800 = vdwg.mxu0
    %6801 = vmatpush.msra.mxu0 0.0
    %6802 = vmatpush.msra.mxu0 0.0
    %6803 = vmatpush.msra.mxu0 0.0
    %6804 = vmatpush.msra.mxu0 0.0
    %6805 = vmatpush.msra.mxu0 0.0
    %6806 = vmatpush.msra.mxu0 0.0
    %6807 = vmatpush.msra.mxu0 0.0
    %6808 = vmatpush.msra.mxu0 0.0
    %6809 = vmatpush.msra.mxu0 0.0
    %6810 = vmatpush.msra.mxu0 0.0
    %6811 = vmatpush.msra.mxu0 0.0
    %6812 = vmatpush.msra.mxu0 0.0
    %v6813 = vand.u32 %v5151, 4294901760
    %6814 = vmatpush.msra.mxu0 %v6813
    %v6815 = vand.u32 %v5149, 4294901760
    %6816 = vmatpush.msra.mxu0 %v6815
    %v6817 = vand.u32 %v5147, 4294901760
    %6818 = vmatpush.msra.mxu0 %v6817
    %v6819 = vand.u32 %v5145, 4294901760
    %6820 = vmatpush.msra.mxu0 %v6819
    %v6821 = vand.u32 %v3344, 4294901760
    %v6822 = vsub.f32 %v3344, %v6821
    %v6823 = vand.u32 %v6822, 4294901760
    %6824 = vmatmul.f32.gmra.mxu0 %v6823
    %v6825 = vpop.f32.mrf.mxu0
    %v6826 = vadd.f32 %v6799, %v6825
    %6827 = vdwg.mxu0
    %6828 = vmatpush.msra.mxu0 0.0
    %6829 = vmatpush.msra.mxu0 0.0
    %6830 = vmatpush.msra.mxu0 0.0
    %6831 = vmatpush.msra.mxu0 0.0
    %6832 = vmatpush.msra.mxu0 0.0
    %6833 = vmatpush.msra.mxu0 0.0
    %6834 = vmatpush.msra.mxu0 0.0
    %6835 = vmatpush.msra.mxu0 0.0
    %6836 = vmatpush.msra.mxu0 0.0
    %6837 = vmatpush.msra.mxu0 0.0
    %6838 = vmatpush.msra.mxu0 0.0
    %6839 = vmatpush.msra.mxu0 0.0
    %v6840 = vand.u32 %v5151, 4294901760
    %v6841 = vsub.f32 %v5151, %v6840
    %v6842 = vand.u32 %v6841, 4294901760
    %6843 = vmatpush.msra.mxu0 %v6842
    %v6844 = vand.u32 %v5149, 4294901760
    %v6845 = vsub.f32 %v5149, %v6844
    %v6846 = vand.u32 %v6845, 4294901760
    %6847 = vmatpush.msra.mxu0 %v6846
    %v6848 = vand.u32 %v5147, 4294901760
    %v6849 = vsub.f32 %v5147, %v6848
    %v6850 = vand.u32 %v6849, 4294901760
    %6851 = vmatpush.msra.mxu0 %v6850
    %v6852 = vand.u32 %v5145, 4294901760
    %v6853 = vsub.f32 %v5145, %v6852
    %v6854 = vand.u32 %v6853, 4294901760
    %6855 = vmatpush.msra.mxu0 %v6854
    %v6856 = vand.u32 %v3344, 4294901760
    %6857 = vmatmul.f32.gmra.mxu0 %v6856
    %v6858 = vpop.f32.mrf.mxu0
    %v6859 = vadd.f32 %v6826, %v6858
    %6860 = vdwg.mxu0
    %6861 = vmatpush.msra.mxu0 0.0
    %6862 = vmatpush.msra.mxu0 0.0
    %6863 = vmatpush.msra.mxu0 0.0
    %6864 = vmatpush.msra.mxu0 0.0
    %6865 = vmatpush.msra.mxu0 0.0
    %6866 = vmatpush.msra.mxu0 0.0
    %6867 = vmatpush.msra.mxu0 0.0
    %6868 = vmatpush.msra.mxu0 0.0
    %6869 = vmatpush.msra.mxu0 0.0
    %6870 = vmatpush.msra.mxu0 0.0
    %6871 = vmatpush.msra.mxu0 0.0
    %6872 = vmatpush.msra.mxu0 0.0
    %v6873 = vand.u32 %v5151, 4294901760
    %6874 = vmatpush.msra.mxu0 %v6873
    %v6875 = vand.u32 %v5149, 4294901760
    %6876 = vmatpush.msra.mxu0 %v6875
    %v6877 = vand.u32 %v5147, 4294901760
    %6878 = vmatpush.msra.mxu0 %v6877
    %v6879 = vand.u32 %v5145, 4294901760
    %6880 = vmatpush.msra.mxu0 %v6879
    %v6881 = vand.u32 %v3344, 4294901760
    %6882 = vmatmul.f32.gmra.mxu0 %v6881
    %v6883 = vpop.f32.mrf.mxu0
    %v6884 = vadd.f32 %v6859, %v6883
    %6885 = vdwg.mxu0
    %v6886 = vmax.f32 %v4211, %v6017
    %v6887 = vmax.f32 %v5078, %v6884
    %v6888 = vld [vmem:[%s6] sm:$0x3]
    %v6890 = vperm.slane %v6888, 0
    %v6891 = vperm.slane %v6888, 1
    %v6894 = vadd.f32 %v6886, %v6890
    %v6895 = vadd.f32 %v6887, %v6891
    %v6896 = vld [vmem:[%s7] sm:$0xff]
    %v6897 = vld [vmem:[%s7 + $0x8] sm:$0xff]
    %v6898 = vld [vmem:[%s7 + $0x10] sm:$0xff]
    %v6899 = vld [vmem:[%s7 + $0x18] sm:$0xff]
    %v6900 = vld [vmem:[%s7 + $0x20] sm:$0xff]
    %v6901 = vld [vmem:[%s7 + $0x28] sm:$0xff]
    %v6902 = vld [vmem:[%s7 + $0x30] sm:$0xff]
    %v6903 = vld [vmem:[%s7 + $0x38] sm:$0xff]
    %v6904 = vld [vmem:[%s7 + $0x40] sm:$0xff]
    %v6905 = vld [vmem:[%s7 + $0x48] sm:$0xff]
    %v6906 = vld [vmem:[%s7 + $0x50] sm:$0xff]
    %v6907 = vld [vmem:[%s7 + $0x58] sm:$0xff]
    %v6908 = vld [vmem:[%s7 + $0x60] sm:$0xff]
    %v6909 = vld [vmem:[%s7 + $0x68] sm:$0xff]
    %v6910 = vld [vmem:[%s7 + $0x70] sm:$0xff]
    %v6911 = vld [vmem:[%s7 + $0x78] sm:$0xff]
    %v6912 = vld [vmem:[%s7 + $0x80] sm:$0xff]
    %v6913 = vld [vmem:[%s7 + $0x88] sm:$0xff]
    %v6914 = vld [vmem:[%s7 + $0x90] sm:$0xff]
    %v6915 = vld [vmem:[%s7 + $0x98] sm:$0xff]
    %v6916 = vld [vmem:[%s8] sm:$0x1]
    %v6918 = vperm.slane %v6916, 0
    %v6921 = vsel %vm3342, %v6895, 0
    %v6923 = vand.u32 %v6911, 4294901760
    %6924 = vmatpush.msra.mxu0 %v6923
    %v6925 = vand.u32 %v6910, 4294901760
    %6926 = vmatpush.msra.mxu0 %v6925
    %v6927 = vand.u32 %v6909, 4294901760
    %6928 = vmatpush.msra.mxu0 %v6927
    %v6929 = vand.u32 %v6908, 4294901760
    %6930 = vmatpush.msra.mxu0 %v6929
    %v6931 = vand.u32 %v6907, 4294901760
    %6932 = vmatpush.msra.mxu0 %v6931
    %v6933 = vand.u32 %v6906, 4294901760
    %6934 = vmatpush.msra.mxu0 %v6933
    %v6935 = vand.u32 %v6905, 4294901760
    %6936 = vmatpush.msra.mxu0 %v6935
    %v6937 = vand.u32 %v6904, 4294901760
    %6938 = vmatpush.msra.mxu0 %v6937
    %v6939 = vand.u32 %v6903, 4294901760
    %6940 = vmatpush.msra.mxu0 %v6939
    %v6941 = vand.u32 %v6902, 4294901760
    %6942 = vmatpush.msra.mxu0 %v6941
    %v6943 = vand.u32 %v6901, 4294901760
    %6944 = vmatpush.msra.mxu0 %v6943
    %v6945 = vand.u32 %v6900, 4294901760
    %6946 = vmatpush.msra.mxu0 %v6945
    %v6947 = vand.u32 %v6899, 4294901760
    %6948 = vmatpush.msra.mxu0 %v6947
    %v6949 = vand.u32 %v6898, 4294901760
    %6950 = vmatpush.msra.mxu0 %v6949
    %v6951 = vand.u32 %v6897, 4294901760
    %6952 = vmatpush.msra.mxu0 %v6951
    %v6953 = vand.u32 %v6896, 4294901760
    %6954 = vmatpush.msra.mxu0 %v6953
    %v6955 = vand.u32 %v6894, 4294901760
    %v6956 = vsub.f32 %v6894, %v6955
    %v6957 = vand.u32 %v6956, 4294901760
    %v6958 = vsub.f32 %v6956, %v6957
    %v6959 = vand.u32 %v6958, 4294901760
    %6960 = vmatmul.f32.gmra.mxu0 %v6959
    %v6961 = vpop.f32.mrf.mxu0
    %v6962 = vadd.f32 %v6918, %v6961
    %6963 = vdwg.mxu0
    %v6964 = vand.u32 %v6911, 4294901760
    %v6965 = vsub.f32 %v6911, %v6964
    %v6966 = vand.u32 %v6965, 4294901760
    %v6967 = vsub.f32 %v6965, %v6966
    %v6968 = vand.u32 %v6967, 4294901760
    %6969 = vmatpush.msra.mxu0 %v6968
    %v6970 = vand.u32 %v6910, 4294901760
    %v6971 = vsub.f32 %v6910, %v6970
    %v6972 = vand.u32 %v6971, 4294901760
    %v6973 = vsub.f32 %v6971, %v6972
    %v6974 = vand.u32 %v6973, 4294901760
    %6975 = vmatpush.msra.mxu0 %v6974
    %v6976 = vand.u32 %v6909, 4294901760
    %v6977 = vsub.f32 %v6909, %v6976
    %v6978 = vand.u32 %v6977, 4294901760
    %v6979 = vsub.f32 %v6977, %v6978
    %v6980 = vand.u32 %v6979, 4294901760
    %6981 = vmatpush.msra.mxu0 %v6980
    %v6982 = vand.u32 %v6908, 4294901760
    %v6983 = vsub.f32 %v6908, %v6982
    %v6984 = vand.u32 %v6983, 4294901760
    %v6985 = vsub.f32 %v6983, %v6984
    %v6986 = vand.u32 %v6985, 4294901760
    %6987 = vmatpush.msra.mxu0 %v6986
    %v6988 = vand.u32 %v6907, 4294901760
    %v6989 = vsub.f32 %v6907, %v6988
    %v6990 = vand.u32 %v6989, 4294901760
    %v6991 = vsub.f32 %v6989, %v6990
    %v6992 = vand.u32 %v6991, 4294901760
    %6993 = vmatpush.msra.mxu0 %v6992
    %v6994 = vand.u32 %v6906, 4294901760
    %v6995 = vsub.f32 %v6906, %v6994
    %v6996 = vand.u32 %v6995, 4294901760
    %v6997 = vsub.f32 %v6995, %v6996
    %v6998 = vand.u32 %v6997, 4294901760
    %6999 = vmatpush.msra.mxu0 %v6998
    %v7000 = vand.u32 %v6905, 4294901760
    %v7001 = vsub.f32 %v6905, %v7000
    %v7002 = vand.u32 %v7001, 4294901760
    %v7003 = vsub.f32 %v7001, %v7002
    %v7004 = vand.u32 %v7003, 4294901760
    %7005 = vmatpush.msra.mxu0 %v7004
    %v7006 = vand.u32 %v6904, 4294901760
    %v7007 = vsub.f32 %v6904, %v7006
    %v7008 = vand.u32 %v7007, 4294901760
    %v7009 = vsub.f32 %v7007, %v7008
    %v7010 = vand.u32 %v7009, 4294901760
    %7011 = vmatpush.msra.mxu0 %v7010
    %v7012 = vand.u32 %v6903, 4294901760
    %v7013 = vsub.f32 %v6903, %v7012
    %v7014 = vand.u32 %v7013, 4294901760
    %v7015 = vsub.f32 %v7013, %v7014
    %v7016 = vand.u32 %v7015, 4294901760
    %7017 = vmatpush.msra.mxu0 %v7016
    %v7018 = vand.u32 %v6902, 4294901760
    %v7019 = vsub.f32 %v6902, %v7018
    %v7020 = vand.u32 %v7019, 4294901760
    %v7021 = vsub.f32 %v7019, %v7020
    %v7022 = vand.u32 %v7021, 4294901760
    %7023 = vmatpush.msra.mxu0 %v7022
    %v7024 = vand.u32 %v6901, 4294901760
    %v7025 = vsub.f32 %v6901, %v7024
    %v7026 = vand.u32 %v7025, 4294901760
    %v7027 = vsub.f32 %v7025, %v7026
    %v7028 = vand.u32 %v7027, 4294901760
    %7029 = vmatpush.msra.mxu0 %v7028
    %v7030 = vand.u32 %v6900, 4294901760
    %v7031 = vsub.f32 %v6900, %v7030
    %v7032 = vand.u32 %v7031, 4294901760
    %v7033 = vsub.f32 %v7031, %v7032
    %v7034 = vand.u32 %v7033, 4294901760
    %7035 = vmatpush.msra.mxu0 %v7034
    %v7036 = vand.u32 %v6899, 4294901760
    %v7037 = vsub.f32 %v6899, %v7036
    %v7038 = vand.u32 %v7037, 4294901760
    %v7039 = vsub.f32 %v7037, %v7038
    %v7040 = vand.u32 %v7039, 4294901760
    %7041 = vmatpush.msra.mxu0 %v7040
    %v7042 = vand.u32 %v6898, 4294901760
    %v7043 = vsub.f32 %v6898, %v7042
    %v7044 = vand.u32 %v7043, 4294901760
    %v7045 = vsub.f32 %v7043, %v7044
    %v7046 = vand.u32 %v7045, 4294901760
    %7047 = vmatpush.msra.mxu0 %v7046
    %v7048 = vand.u32 %v6897, 4294901760
    %v7049 = vsub.f32 %v6897, %v7048
    %v7050 = vand.u32 %v7049, 4294901760
    %v7051 = vsub.f32 %v7049, %v7050
    %v7052 = vand.u32 %v7051, 4294901760
    %7053 = vmatpush.msra.mxu0 %v7052
    %v7054 = vand.u32 %v6896, 4294901760
    %v7055 = vsub.f32 %v6896, %v7054
    %v7056 = vand.u32 %v7055, 4294901760
    %v7057 = vsub.f32 %v7055, %v7056
    %v7058 = vand.u32 %v7057, 4294901760
    %7059 = vmatpush.msra.mxu0 %v7058
    %v7060 = vand.u32 %v6894, 4294901760
    %7061 = vmatmul.f32.gmra.mxu0 %v7060
    %v7062 = vpop.f32.mrf.mxu0
    %v7063 = vadd.f32 %v6962, %v7062
    %7064 = vdwg.mxu0
    %v7065 = vand.u32 %v6911, 4294901760
    %v7066 = vsub.f32 %v6911, %v7065
    %7067 = vmatpush.msra.mxu0 %v7066
    %v7068 = vand.u32 %v6910, 4294901760
    %v7069 = vsub.f32 %v6910, %v7068
    %7070 = vmatpush.msra.mxu0 %v7069
    %v7071 = vand.u32 %v6909, 4294901760
    %v7072 = vsub.f32 %v6909, %v7071
    %7073 = vmatpush.msra.mxu0 %v7072
    %v7074 = vand.u32 %v6908, 4294901760
    %v7075 = vsub.f32 %v6908, %v7074
    %7076 = vmatpush.msra.mxu0 %v7075
    %v7077 = vand.u32 %v6907, 4294901760
    %v7078 = vsub.f32 %v6907, %v7077
    %7079 = vmatpush.msra.mxu0 %v7078
    %v7080 = vand.u32 %v6906, 4294901760
    %v7081 = vsub.f32 %v6906, %v7080
    %7082 = vmatpush.msra.mxu0 %v7081
    %v7083 = vand.u32 %v6905, 4294901760
    %v7084 = vsub.f32 %v6905, %v7083
    %7085 = vmatpush.msra.mxu0 %v7084
    %v7086 = vand.u32 %v6904, 4294901760
    %v7087 = vsub.f32 %v6904, %v7086
    %7088 = vmatpush.msra.mxu0 %v7087
    %v7089 = vand.u32 %v6903, 4294901760
    %v7090 = vsub.f32 %v6903, %v7089
    %7091 = vmatpush.msra.mxu0 %v7090
    %v7092 = vand.u32 %v6902, 4294901760
    %v7093 = vsub.f32 %v6902, %v7092
    %7094 = vmatpush.msra.mxu0 %v7093
    %v7095 = vand.u32 %v6901, 4294901760
    %v7096 = vsub.f32 %v6901, %v7095
    %7097 = vmatpush.msra.mxu0 %v7096
    %v7098 = vand.u32 %v6900, 4294901760
    %v7099 = vsub.f32 %v6900, %v7098
    %7100 = vmatpush.msra.mxu0 %v7099
    %v7101 = vand.u32 %v6899, 4294901760
    %v7102 = vsub.f32 %v6899, %v7101
    %7103 = vmatpush.msra.mxu0 %v7102
    %v7104 = vand.u32 %v6898, 4294901760
    %v7105 = vsub.f32 %v6898, %v7104
    %7106 = vmatpush.msra.mxu0 %v7105
    %v7107 = vand.u32 %v6897, 4294901760
    %v7108 = vsub.f32 %v6897, %v7107
    %7109 = vmatpush.msra.mxu0 %v7108
    %v7110 = vand.u32 %v6896, 4294901760
    %v7111 = vsub.f32 %v6896, %v7110
    %7112 = vmatpush.msra.mxu0 %v7111
    %v7113 = vand.u32 %v6894, 4294901760
    %v7114 = vsub.f32 %v6894, %v7113
    %7115 = vmatmul.f32.gmra.mxu0 %v7114
    %v7116 = vpop.f32.mrf.mxu0
    %v7117 = vadd.f32 %v7063, %v7116
    %7118 = vdwg.mxu0
    %v7119 = vand.u32 %v6911, 4294901760
    %7120 = vmatpush.msra.mxu0 %v7119
    %v7121 = vand.u32 %v6910, 4294901760
    %7122 = vmatpush.msra.mxu0 %v7121
    %v7123 = vand.u32 %v6909, 4294901760
    %7124 = vmatpush.msra.mxu0 %v7123
    %v7125 = vand.u32 %v6908, 4294901760
    %7126 = vmatpush.msra.mxu0 %v7125
    %v7127 = vand.u32 %v6907, 4294901760
    %7128 = vmatpush.msra.mxu0 %v7127
    %v7129 = vand.u32 %v6906, 4294901760
    %7130 = vmatpush.msra.mxu0 %v7129
    %v7131 = vand.u32 %v6905, 4294901760
    %7132 = vmatpush.msra.mxu0 %v7131
    %v7133 = vand.u32 %v6904, 4294901760
    %7134 = vmatpush.msra.mxu0 %v7133
    %v7135 = vand.u32 %v6903, 4294901760
    %7136 = vmatpush.msra.mxu0 %v7135
    %v7137 = vand.u32 %v6902, 4294901760
    %7138 = vmatpush.msra.mxu0 %v7137
    %v7139 = vand.u32 %v6901, 4294901760
    %7140 = vmatpush.msra.mxu0 %v7139
    %v7141 = vand.u32 %v6900, 4294901760
    %7142 = vmatpush.msra.mxu0 %v7141
    %v7143 = vand.u32 %v6899, 4294901760
    %7144 = vmatpush.msra.mxu0 %v7143
    %v7145 = vand.u32 %v6898, 4294901760
    %7146 = vmatpush.msra.mxu0 %v7145
    %v7147 = vand.u32 %v6897, 4294901760
    %7148 = vmatpush.msra.mxu0 %v7147
    %v7149 = vand.u32 %v6896, 4294901760
    %7150 = vmatpush.msra.mxu0 %v7149
    %v7151 = vand.u32 %v6894, 4294901760
    %v7152 = vsub.f32 %v6894, %v7151
    %v7153 = vand.u32 %v7152, 4294901760
    %7154 = vmatmul.f32.gmra.mxu0 %v7153
    %v7155 = vpop.f32.mrf.mxu0
    %v7156 = vadd.f32 %v7117, %v7155
    %7157 = vdwg.mxu0
    %v7158 = vand.u32 %v6911, 4294901760
    %v7159 = vsub.f32 %v6911, %v7158
    %v7160 = vand.u32 %v7159, 4294901760
    %7161 = vmatpush.msra.mxu0 %v7160
    %v7162 = vand.u32 %v6910, 4294901760
    %v7163 = vsub.f32 %v6910, %v7162
    %v7164 = vand.u32 %v7163, 4294901760
    %7165 = vmatpush.msra.mxu0 %v7164
    %v7166 = vand.u32 %v6909, 4294901760
    %v7167 = vsub.f32 %v6909, %v7166
    %v7168 = vand.u32 %v7167, 4294901760
    %7169 = vmatpush.msra.mxu0 %v7168
    %v7170 = vand.u32 %v6908, 4294901760
    %v7171 = vsub.f32 %v6908, %v7170
    %v7172 = vand.u32 %v7171, 4294901760
    %7173 = vmatpush.msra.mxu0 %v7172
    %v7174 = vand.u32 %v6907, 4294901760
    %v7175 = vsub.f32 %v6907, %v7174
    %v7176 = vand.u32 %v7175, 4294901760
    %7177 = vmatpush.msra.mxu0 %v7176
    %v7178 = vand.u32 %v6906, 4294901760
    %v7179 = vsub.f32 %v6906, %v7178
    %v7180 = vand.u32 %v7179, 4294901760
    %7181 = vmatpush.msra.mxu0 %v7180
    %v7182 = vand.u32 %v6905, 4294901760
    %v7183 = vsub.f32 %v6905, %v7182
    %v7184 = vand.u32 %v7183, 4294901760
    %7185 = vmatpush.msra.mxu0 %v7184
    %v7186 = vand.u32 %v6904, 4294901760
    %v7187 = vsub.f32 %v6904, %v7186
    %v7188 = vand.u32 %v7187, 4294901760
    %7189 = vmatpush.msra.mxu0 %v7188
    %v7190 = vand.u32 %v6903, 4294901760
    %v7191 = vsub.f32 %v6903, %v7190
    %v7192 = vand.u32 %v7191, 4294901760
    %7193 = vmatpush.msra.mxu0 %v7192
    %v7194 = vand.u32 %v6902, 4294901760
    %v7195 = vsub.f32 %v6902, %v7194
    %v7196 = vand.u32 %v7195, 4294901760
    %7197 = vmatpush.msra.mxu0 %v7196
    %v7198 = vand.u32 %v6901, 4294901760
    %v7199 = vsub.f32 %v6901, %v7198
    %v7200 = vand.u32 %v7199, 4294901760
    %7201 = vmatpush.msra.mxu0 %v7200
    %v7202 = vand.u32 %v6900, 4294901760
    %v7203 = vsub.f32 %v6900, %v7202
    %v7204 = vand.u32 %v7203, 4294901760
    %7205 = vmatpush.msra.mxu0 %v7204
    %v7206 = vand.u32 %v6899, 4294901760
    %v7207 = vsub.f32 %v6899, %v7206
    %v7208 = vand.u32 %v7207, 4294901760
    %7209 = vmatpush.msra.mxu0 %v7208
    %v7210 = vand.u32 %v6898, 4294901760
    %v7211 = vsub.f32 %v6898, %v7210
    %v7212 = vand.u32 %v7211, 4294901760
    %7213 = vmatpush.msra.mxu0 %v7212
    %v7214 = vand.u32 %v6897, 4294901760
    %v7215 = vsub.f32 %v6897, %v7214
    %v7216 = vand.u32 %v7215, 4294901760
    %7217 = vmatpush.msra.mxu0 %v7216
    %v7218 = vand.u32 %v6896, 4294901760
    %v7219 = vsub.f32 %v6896, %v7218
    %v7220 = vand.u32 %v7219, 4294901760
    %7221 = vmatpush.msra.mxu0 %v7220
    %v7222 = vand.u32 %v6894, 4294901760
    %7223 = vmatmul.f32.gmra.mxu0 %v7222
    %v7224 = vpop.f32.mrf.mxu0
    %v7225 = vadd.f32 %v7156, %v7224
    %7226 = vdwg.mxu0
    %v7227 = vand.u32 %v6911, 4294901760
    %7228 = vmatpush.msra.mxu0 %v7227
    %v7229 = vand.u32 %v6910, 4294901760
    %7230 = vmatpush.msra.mxu0 %v7229
    %v7231 = vand.u32 %v6909, 4294901760
    %7232 = vmatpush.msra.mxu0 %v7231
    %v7233 = vand.u32 %v6908, 4294901760
    %7234 = vmatpush.msra.mxu0 %v7233
    %v7235 = vand.u32 %v6907, 4294901760
    %7236 = vmatpush.msra.mxu0 %v7235
    %v7237 = vand.u32 %v6906, 4294901760
    %7238 = vmatpush.msra.mxu0 %v7237
    %v7239 = vand.u32 %v6905, 4294901760
    %7240 = vmatpush.msra.mxu0 %v7239
    %v7241 = vand.u32 %v6904, 4294901760
    %7242 = vmatpush.msra.mxu0 %v7241
    %v7243 = vand.u32 %v6903, 4294901760
    %7244 = vmatpush.msra.mxu0 %v7243
    %v7245 = vand.u32 %v6902, 4294901760
    %7246 = vmatpush.msra.mxu0 %v7245
    %v7247 = vand.u32 %v6901, 4294901760
    %7248 = vmatpush.msra.mxu0 %v7247
    %v7249 = vand.u32 %v6900, 4294901760
    %7250 = vmatpush.msra.mxu0 %v7249
    %v7251 = vand.u32 %v6899, 4294901760
    %7252 = vmatpush.msra.mxu0 %v7251
    %v7253 = vand.u32 %v6898, 4294901760
    %7254 = vmatpush.msra.mxu0 %v7253
    %v7255 = vand.u32 %v6897, 4294901760
    %7256 = vmatpush.msra.mxu0 %v7255
    %v7257 = vand.u32 %v6896, 4294901760
    %7258 = vmatpush.msra.mxu0 %v7257
    %v7259 = vand.u32 %v6894, 4294901760
    %7260 = vmatmul.f32.gmra.mxu0 %v7259
    %v7261 = vpop.f32.mrf.mxu0
    %v7262 = vadd.f32 %v7225, %v7261
    %7263 = vdwg.mxu0
    %7264 = vmatpush.msra.mxu0 0.0
    %7265 = vmatpush.msra.mxu0 0.0
    %7266 = vmatpush.msra.mxu0 0.0
    %7267 = vmatpush.msra.mxu0 0.0
    %7268 = vmatpush.msra.mxu0 0.0
    %7269 = vmatpush.msra.mxu0 0.0
    %7270 = vmatpush.msra.mxu0 0.0
    %7271 = vmatpush.msra.mxu0 0.0
    %7272 = vmatpush.msra.mxu0 0.0
    %7273 = vmatpush.msra.mxu0 0.0
    %7274 = vmatpush.msra.mxu0 0.0
    %7275 = vmatpush.msra.mxu0 0.0
    %v7276 = vand.u32 %v6915, 4294901760
    %7277 = vmatpush.msra.mxu0 %v7276
    %v7278 = vand.u32 %v6914, 4294901760
    %7279 = vmatpush.msra.mxu0 %v7278
    %v7280 = vand.u32 %v6913, 4294901760
    %7281 = vmatpush.msra.mxu0 %v7280
    %v7282 = vand.u32 %v6912, 4294901760
    %7283 = vmatpush.msra.mxu0 %v7282
    %v7284 = vand.u32 %v6921, 4294901760
    %v7285 = vsub.f32 %v6921, %v7284
    %v7286 = vand.u32 %v7285, 4294901760
    %v7287 = vsub.f32 %v7285, %v7286
    %v7288 = vand.u32 %v7287, 4294901760
    %7289 = vmatmul.f32.gmra.mxu0 %v7288
    %v7290 = vpop.f32.mrf.mxu0
    %v7291 = vadd.f32 %v7262, %v7290
    %7292 = vdwg.mxu0
    %7293 = vmatpush.msra.mxu0 0.0
    %7294 = vmatpush.msra.mxu0 0.0
    %7295 = vmatpush.msra.mxu0 0.0
    %7296 = vmatpush.msra.mxu0 0.0
    %7297 = vmatpush.msra.mxu0 0.0
    %7298 = vmatpush.msra.mxu0 0.0
    %7299 = vmatpush.msra.mxu0 0.0
    %7300 = vmatpush.msra.mxu0 0.0
    %7301 = vmatpush.msra.mxu0 0.0
    %7302 = vmatpush.msra.mxu0 0.0
    %7303 = vmatpush.msra.mxu0 0.0
    %7304 = vmatpush.msra.mxu0 0.0
    %v7305 = vand.u32 %v6915, 4294901760
    %v7306 = vsub.f32 %v6915, %v7305
    %v7307 = vand.u32 %v7306, 4294901760
    %v7308 = vsub.f32 %v7306, %v7307
    %v7309 = vand.u32 %v7308, 4294901760
    %7310 = vmatpush.msra.mxu0 %v7309
    %v7311 = vand.u32 %v6914, 4294901760
    %v7312 = vsub.f32 %v6914, %v7311
    %v7313 = vand.u32 %v7312, 4294901760
    %v7314 = vsub.f32 %v7312, %v7313
    %v7315 = vand.u32 %v7314, 4294901760
    %7316 = vmatpush.msra.mxu0 %v7315
    %v7317 = vand.u32 %v6913, 4294901760
    %v7318 = vsub.f32 %v6913, %v7317
    %v7319 = vand.u32 %v7318, 4294901760
    %v7320 = vsub.f32 %v7318, %v7319
    %v7321 = vand.u32 %v7320, 4294901760
    %7322 = vmatpush.msra.mxu0 %v7321
    %v7323 = vand.u32 %v6912, 4294901760
    %v7324 = vsub.f32 %v6912, %v7323
    %v7325 = vand.u32 %v7324, 4294901760
    %v7326 = vsub.f32 %v7324, %v7325
    %v7327 = vand.u32 %v7326, 4294901760
    %7328 = vmatpush.msra.mxu0 %v7327
    %v7329 = vand.u32 %v6921, 4294901760
    %7330 = vmatmul.f32.gmra.mxu0 %v7329
    %v7331 = vpop.f32.mrf.mxu0
    %v7332 = vadd.f32 %v7291, %v7331
    %7333 = vdwg.mxu0
    %7334 = vmatpush.msra.mxu0 0.0
    %7335 = vmatpush.msra.mxu0 0.0
    %7336 = vmatpush.msra.mxu0 0.0
    %7337 = vmatpush.msra.mxu0 0.0
    %7338 = vmatpush.msra.mxu0 0.0
    %7339 = vmatpush.msra.mxu0 0.0
    %7340 = vmatpush.msra.mxu0 0.0
    %7341 = vmatpush.msra.mxu0 0.0
    %7342 = vmatpush.msra.mxu0 0.0
    %7343 = vmatpush.msra.mxu0 0.0
    %7344 = vmatpush.msra.mxu0 0.0
    %7345 = vmatpush.msra.mxu0 0.0
    %v7346 = vand.u32 %v6915, 4294901760
    %v7347 = vsub.f32 %v6915, %v7346
    %7348 = vmatpush.msra.mxu0 %v7347
    %v7349 = vand.u32 %v6914, 4294901760
    %v7350 = vsub.f32 %v6914, %v7349
    %7351 = vmatpush.msra.mxu0 %v7350
    %v7352 = vand.u32 %v6913, 4294901760
    %v7353 = vsub.f32 %v6913, %v7352
    %7354 = vmatpush.msra.mxu0 %v7353
    %v7355 = vand.u32 %v6912, 4294901760
    %v7356 = vsub.f32 %v6912, %v7355
    %7357 = vmatpush.msra.mxu0 %v7356
    %v7358 = vand.u32 %v6921, 4294901760
    %v7359 = vsub.f32 %v6921, %v7358
    %7360 = vmatmul.f32.gmra.mxu0 %v7359
    %v7361 = vpop.f32.mrf.mxu0
    %v7362 = vadd.f32 %v7332, %v7361
    %7363 = vdwg.mxu0
    %7364 = vmatpush.msra.mxu0 0.0
    %7365 = vmatpush.msra.mxu0 0.0
    %7366 = vmatpush.msra.mxu0 0.0
    %7367 = vmatpush.msra.mxu0 0.0
    %7368 = vmatpush.msra.mxu0 0.0
    %7369 = vmatpush.msra.mxu0 0.0
    %7370 = vmatpush.msra.mxu0 0.0
    %7371 = vmatpush.msra.mxu0 0.0
    %7372 = vmatpush.msra.mxu0 0.0
    %7373 = vmatpush.msra.mxu0 0.0
    %7374 = vmatpush.msra.mxu0 0.0
    %7375 = vmatpush.msra.mxu0 0.0
    %v7376 = vand.u32 %v6915, 4294901760
    %7377 = vmatpush.msra.mxu0 %v7376
    %v7378 = vand.u32 %v6914, 4294901760
    %7379 = vmatpush.msra.mxu0 %v7378
    %v7380 = vand.u32 %v6913, 4294901760
    %7381 = vmatpush.msra.mxu0 %v7380
    %v7382 = vand.u32 %v6912, 4294901760
    %7383 = vmatpush.msra.mxu0 %v7382
    %v7384 = vand.u32 %v6921, 4294901760
    %v7385 = vsub.f32 %v6921, %v7384
    %v7386 = vand.u32 %v7385, 4294901760
    %7387 = vmatmul.f32.gmra.mxu0 %v7386
    %v7388 = vpop.f32.mrf.mxu0
    %v7389 = vadd.f32 %v7362, %v7388
    %7390 = vdwg.mxu0
    %7391 = vmatpush.msra.mxu0 0.0
    %7392 = vmatpush.msra.mxu0 0.0
    %7393 = vmatpush.msra.mxu0 0.0
    %7394 = vmatpush.msra.mxu0 0.0
    %7395 = vmatpush.msra.mxu0 0.0
    %7396 = vmatpush.msra.mxu0 0.0
    %7397 = vmatpush.msra.mxu0 0.0
    %7398 = vmatpush.msra.mxu0 0.0
    %7399 = vmatpush.msra.mxu0 0.0
    %7400 = vmatpush.msra.mxu0 0.0
    %7401 = vmatpush.msra.mxu0 0.0
    %7402 = vmatpush.msra.mxu0 0.0
    %v7403 = vand.u32 %v6915, 4294901760
    %v7404 = vsub.f32 %v6915, %v7403
    %v7405 = vand.u32 %v7404, 4294901760
    %7406 = vmatpush.msra.mxu0 %v7405
    %v7407 = vand.u32 %v6914, 4294901760
    %v7408 = vsub.f32 %v6914, %v7407
    %v7409 = vand.u32 %v7408, 4294901760
    %7410 = vmatpush.msra.mxu0 %v7409
    %v7411 = vand.u32 %v6913, 4294901760
    %v7412 = vsub.f32 %v6913, %v7411
    %v7413 = vand.u32 %v7412, 4294901760
    %7414 = vmatpush.msra.mxu0 %v7413
    %v7415 = vand.u32 %v6912, 4294901760
    %v7416 = vsub.f32 %v6912, %v7415
    %v7417 = vand.u32 %v7416, 4294901760
    %7418 = vmatpush.msra.mxu0 %v7417
    %v7419 = vand.u32 %v6921, 4294901760
    %7420 = vmatmul.f32.gmra.mxu0 %v7419
    %v7421 = vpop.f32.mrf.mxu0
    %v7422 = vadd.f32 %v7389, %v7421
    %7423 = vdwg.mxu0
    %7424 = vmatpush.msra.mxu0 0.0
    %7425 = vmatpush.msra.mxu0 0.0
    %7426 = vmatpush.msra.mxu0 0.0
    %7427 = vmatpush.msra.mxu0 0.0
    %7428 = vmatpush.msra.mxu0 0.0
    %7429 = vmatpush.msra.mxu0 0.0
    %7430 = vmatpush.msra.mxu0 0.0
    %7431 = vmatpush.msra.mxu0 0.0
    %7432 = vmatpush.msra.mxu0 0.0
    %7433 = vmatpush.msra.mxu0 0.0
    %7434 = vmatpush.msra.mxu0 0.0
    %7435 = vmatpush.msra.mxu0 0.0
    %v7436 = vand.u32 %v6915, 4294901760
    %7437 = vmatpush.msra.mxu0 %v7436
    %v7438 = vand.u32 %v6914, 4294901760
    %7439 = vmatpush.msra.mxu0 %v7438
    %v7440 = vand.u32 %v6913, 4294901760
    %7441 = vmatpush.msra.mxu0 %v7440
    %v7442 = vand.u32 %v6912, 4294901760
    %7443 = vmatpush.msra.mxu0 %v7442
    %v7444 = vand.u32 %v6921, 4294901760
    %7445 = vmatmul.f32.gmra.mxu0 %v7444
    %v7446 = vpop.f32.mrf.mxu0
    %v7447 = vadd.f32 %v7422, %v7446
    %7448 = vdwg.mxu0
    %v7449 = vmax.f32 %v7447, 0.0
    %v7450 = vld [vmem:[%s9] sm:$0xff]
    %v7451 = vld [vmem:[%s9 + $0x8] sm:$0xff]
    %v7452 = vld [vmem:[%s9 + $0x10] sm:$0xff]
    %v7453 = vld [vmem:[%s9 + $0x18] sm:$0xff]
    %v7454 = vld [vmem:[%s9 + $0x20] sm:$0xff]
    %v7455 = vld [vmem:[%s9 + $0x28] sm:$0xff]
    %v7456 = vld [vmem:[%s9 + $0x30] sm:$0xff]
    %v7457 = vld [vmem:[%s10] sm:$0x1]
    %v7459 = vperm.slane %v7457, 0
    %vm7461 = vcmask 457728
    %v7463 = vsel %vm7461, %v7449, 0
    %7465 = vmatpush.msra.mxu0 0.0
    %7466 = vmatpush.msra.mxu0 0.0
    %7467 = vmatpush.msra.mxu0 0.0
    %7468 = vmatpush.msra.mxu0 0.0
    %7469 = vmatpush.msra.mxu0 0.0
    %7470 = vmatpush.msra.mxu0 0.0
    %7471 = vmatpush.msra.mxu0 0.0
    %7472 = vmatpush.msra.mxu0 0.0
    %7473 = vmatpush.msra.mxu0 0.0
    %v7474 = vand.u32 %v7456, 4294901760
    %7475 = vmatpush.msra.mxu0 %v7474
    %v7476 = vand.u32 %v7455, 4294901760
    %7477 = vmatpush.msra.mxu0 %v7476
    %v7478 = vand.u32 %v7454, 4294901760
    %7479 = vmatpush.msra.mxu0 %v7478
    %v7480 = vand.u32 %v7453, 4294901760
    %7481 = vmatpush.msra.mxu0 %v7480
    %v7482 = vand.u32 %v7452, 4294901760
    %7483 = vmatpush.msra.mxu0 %v7482
    %v7484 = vand.u32 %v7451, 4294901760
    %7485 = vmatpush.msra.mxu0 %v7484
    %v7486 = vand.u32 %v7450, 4294901760
    %7487 = vmatpush.msra.mxu0 %v7486
    %v7488 = vand.u32 %v7463, 4294901760
    %v7489 = vsub.f32 %v7463, %v7488
    %v7490 = vand.u32 %v7489, 4294901760
    %v7491 = vsub.f32 %v7489, %v7490
    %v7492 = vand.u32 %v7491, 4294901760
    %7493 = vmatmul.f32.gmra.mxu0 %v7492
    %v7494 = vpop.f32.mrf.mxu0
    %v7495 = vadd.f32 %v7459, %v7494
    %7496 = vdwg.mxu0
    %7497 = vmatpush.msra.mxu0 0.0
    %7498 = vmatpush.msra.mxu0 0.0
    %7499 = vmatpush.msra.mxu0 0.0
    %7500 = vmatpush.msra.mxu0 0.0
    %7501 = vmatpush.msra.mxu0 0.0
    %7502 = vmatpush.msra.mxu0 0.0
    %7503 = vmatpush.msra.mxu0 0.0
    %7504 = vmatpush.msra.mxu0 0.0
    %7505 = vmatpush.msra.mxu0 0.0
    %v7506 = vand.u32 %v7456, 4294901760
    %v7507 = vsub.f32 %v7456, %v7506
    %v7508 = vand.u32 %v7507, 4294901760
    %v7509 = vsub.f32 %v7507, %v7508
    %v7510 = vand.u32 %v7509, 4294901760
    %7511 = vmatpush.msra.mxu0 %v7510
    %v7512 = vand.u32 %v7455, 4294901760
    %v7513 = vsub.f32 %v7455, %v7512
    %v7514 = vand.u32 %v7513, 4294901760
    %v7515 = vsub.f32 %v7513, %v7514
    %v7516 = vand.u32 %v7515, 4294901760
    %7517 = vmatpush.msra.mxu0 %v7516
    %v7518 = vand.u32 %v7454, 4294901760
    %v7519 = vsub.f32 %v7454, %v7518
    %v7520 = vand.u32 %v7519, 4294901760
    %v7521 = vsub.f32 %v7519, %v7520
    %v7522 = vand.u32 %v7521, 4294901760
    %7523 = vmatpush.msra.mxu0 %v7522
    %v7524 = vand.u32 %v7453, 4294901760
    %v7525 = vsub.f32 %v7453, %v7524
    %v7526 = vand.u32 %v7525, 4294901760
    %v7527 = vsub.f32 %v7525, %v7526
    %v7528 = vand.u32 %v7527, 4294901760
    %7529 = vmatpush.msra.mxu0 %v7528
    %v7530 = vand.u32 %v7452, 4294901760
    %v7531 = vsub.f32 %v7452, %v7530
    %v7532 = vand.u32 %v7531, 4294901760
    %v7533 = vsub.f32 %v7531, %v7532
    %v7534 = vand.u32 %v7533, 4294901760
    %7535 = vmatpush.msra.mxu0 %v7534
    %v7536 = vand.u32 %v7451, 4294901760
    %v7537 = vsub.f32 %v7451, %v7536
    %v7538 = vand.u32 %v7537, 4294901760
    %v7539 = vsub.f32 %v7537, %v7538
    %v7540 = vand.u32 %v7539, 4294901760
    %7541 = vmatpush.msra.mxu0 %v7540
    %v7542 = vand.u32 %v7450, 4294901760
    %v7543 = vsub.f32 %v7450, %v7542
    %v7544 = vand.u32 %v7543, 4294901760
    %v7545 = vsub.f32 %v7543, %v7544
    %v7546 = vand.u32 %v7545, 4294901760
    %7547 = vmatpush.msra.mxu0 %v7546
    %v7548 = vand.u32 %v7463, 4294901760
    %7549 = vmatmul.f32.gmra.mxu0 %v7548
    %v7550 = vpop.f32.mrf.mxu0
    %v7551 = vadd.f32 %v7495, %v7550
    %7552 = vdwg.mxu0
    %7553 = vmatpush.msra.mxu0 0.0
    %7554 = vmatpush.msra.mxu0 0.0
    %7555 = vmatpush.msra.mxu0 0.0
    %7556 = vmatpush.msra.mxu0 0.0
    %7557 = vmatpush.msra.mxu0 0.0
    %7558 = vmatpush.msra.mxu0 0.0
    %7559 = vmatpush.msra.mxu0 0.0
    %7560 = vmatpush.msra.mxu0 0.0
    %7561 = vmatpush.msra.mxu0 0.0
    %v7562 = vand.u32 %v7456, 4294901760
    %v7563 = vsub.f32 %v7456, %v7562
    %7564 = vmatpush.msra.mxu0 %v7563
    %v7565 = vand.u32 %v7455, 4294901760
    %v7566 = vsub.f32 %v7455, %v7565
    %7567 = vmatpush.msra.mxu0 %v7566
    %v7568 = vand.u32 %v7454, 4294901760
    %v7569 = vsub.f32 %v7454, %v7568
    %7570 = vmatpush.msra.mxu0 %v7569
    %v7571 = vand.u32 %v7453, 4294901760
    %v7572 = vsub.f32 %v7453, %v7571
    %7573 = vmatpush.msra.mxu0 %v7572
    %v7574 = vand.u32 %v7452, 4294901760
    %v7575 = vsub.f32 %v7452, %v7574
    %7576 = vmatpush.msra.mxu0 %v7575
    %v7577 = vand.u32 %v7451, 4294901760
    %v7578 = vsub.f32 %v7451, %v7577
    %7579 = vmatpush.msra.mxu0 %v7578
    %v7580 = vand.u32 %v7450, 4294901760
    %v7581 = vsub.f32 %v7450, %v7580
    %7582 = vmatpush.msra.mxu0 %v7581
    %v7583 = vand.u32 %v7463, 4294901760
    %v7584 = vsub.f32 %v7463, %v7583
    %7585 = vmatmul.f32.gmra.mxu0 %v7584
    %v7586 = vpop.f32.mrf.mxu0
    %v7587 = vadd.f32 %v7551, %v7586
    %7588 = vdwg.mxu0
    %7589 = vmatpush.msra.mxu0 0.0
    %7590 = vmatpush.msra.mxu0 0.0
    %7591 = vmatpush.msra.mxu0 0.0
    %7592 = vmatpush.msra.mxu0 0.0
    %7593 = vmatpush.msra.mxu0 0.0
    %7594 = vmatpush.msra.mxu0 0.0
    %7595 = vmatpush.msra.mxu0 0.0
    %7596 = vmatpush.msra.mxu0 0.0
    %7597 = vmatpush.msra.mxu0 0.0
    %v7598 = vand.u32 %v7456, 4294901760
    %7599 = vmatpush.msra.mxu0 %v7598
    %v7600 = vand.u32 %v7455, 4294901760
    %7601 = vmatpush.msra.mxu0 %v7600
    %v7602 = vand.u32 %v7454, 4294901760
    %7603 = vmatpush.msra.mxu0 %v7602
    %v7604 = vand.u32 %v7453, 4294901760
    %7605 = vmatpush.msra.mxu0 %v7604
    %v7606 = vand.u32 %v7452, 4294901760
    %7607 = vmatpush.msra.mxu0 %v7606
    %v7608 = vand.u32 %v7451, 4294901760
    %7609 = vmatpush.msra.mxu0 %v7608
    %v7610 = vand.u32 %v7450, 4294901760
    %7611 = vmatpush.msra.mxu0 %v7610
    %v7612 = vand.u32 %v7463, 4294901760
    %v7613 = vsub.f32 %v7463, %v7612
    %v7614 = vand.u32 %v7613, 4294901760
    %7615 = vmatmul.f32.gmra.mxu0 %v7614
    %v7616 = vpop.f32.mrf.mxu0
    %v7617 = vadd.f32 %v7587, %v7616
    %7618 = vdwg.mxu0
    %7619 = vmatpush.msra.mxu0 0.0
    %7620 = vmatpush.msra.mxu0 0.0
    %7621 = vmatpush.msra.mxu0 0.0
    %7622 = vmatpush.msra.mxu0 0.0
    %7623 = vmatpush.msra.mxu0 0.0
    %7624 = vmatpush.msra.mxu0 0.0
    %7625 = vmatpush.msra.mxu0 0.0
    %7626 = vmatpush.msra.mxu0 0.0
    %7627 = vmatpush.msra.mxu0 0.0
    %v7628 = vand.u32 %v7456, 4294901760
    %v7629 = vsub.f32 %v7456, %v7628
    %v7630 = vand.u32 %v7629, 4294901760
    %7631 = vmatpush.msra.mxu0 %v7630
    %v7632 = vand.u32 %v7455, 4294901760
    %v7633 = vsub.f32 %v7455, %v7632
    %v7634 = vand.u32 %v7633, 4294901760
    %7635 = vmatpush.msra.mxu0 %v7634
    %v7636 = vand.u32 %v7454, 4294901760
    %v7637 = vsub.f32 %v7454, %v7636
    %v7638 = vand.u32 %v7637, 4294901760
    %7639 = vmatpush.msra.mxu0 %v7638
    %v7640 = vand.u32 %v7453, 4294901760
    %v7641 = vsub.f32 %v7453, %v7640
    %v7642 = vand.u32 %v7641, 4294901760
    %7643 = vmatpush.msra.mxu0 %v7642
    %v7644 = vand.u32 %v7452, 4294901760
    %v7645 = vsub.f32 %v7452, %v7644
    %v7646 = vand.u32 %v7645, 4294901760
    %7647 = vmatpush.msra.mxu0 %v7646
    %v7648 = vand.u32 %v7451, 4294901760
    %v7649 = vsub.f32 %v7451, %v7648
    %v7650 = vand.u32 %v7649, 4294901760
    %7651 = vmatpush.msra.mxu0 %v7650
    %v7652 = vand.u32 %v7450, 4294901760
    %v7653 = vsub.f32 %v7450, %v7652
    %v7654 = vand.u32 %v7653, 4294901760
    %7655 = vmatpush.msra.mxu0 %v7654
    %v7656 = vand.u32 %v7463, 4294901760
    %7657 = vmatmul.f32.gmra.mxu0 %v7656
    %v7658 = vpop.f32.mrf.mxu0
    %v7659 = vadd.f32 %v7617, %v7658
    %7660 = vdwg.mxu0
    %7661 = vmatpush.msra.mxu0 0.0
    %7662 = vmatpush.msra.mxu0 0.0
    %7663 = vmatpush.msra.mxu0 0.0
    %7664 = vmatpush.msra.mxu0 0.0
    %7665 = vmatpush.msra.mxu0 0.0
    %7666 = vmatpush.msra.mxu0 0.0
    %7667 = vmatpush.msra.mxu0 0.0
    %7668 = vmatpush.msra.mxu0 0.0
    %7669 = vmatpush.msra.mxu0 0.0
    %v7670 = vand.u32 %v7456, 4294901760
    %7671 = vmatpush.msra.mxu0 %v7670
    %v7672 = vand.u32 %v7455, 4294901760
    %7673 = vmatpush.msra.mxu0 %v7672
    %v7674 = vand.u32 %v7454, 4294901760
    %7675 = vmatpush.msra.mxu0 %v7674
    %v7676 = vand.u32 %v7453, 4294901760
    %7677 = vmatpush.msra.mxu0 %v7676
    %v7678 = vand.u32 %v7452, 4294901760
    %7679 = vmatpush.msra.mxu0 %v7678
    %v7680 = vand.u32 %v7451, 4294901760
    %7681 = vmatpush.msra.mxu0 %v7680
    %v7682 = vand.u32 %v7450, 4294901760
    %7683 = vmatpush.msra.mxu0 %v7682
    %v7684 = vand.u32 %v7463, 4294901760
    %7685 = vmatmul.f32.gmra.mxu0 %v7684
    %v7686 = vpop.f32.mrf.mxu0
    %v7687 = vadd.f32 %v7659, %v7686
    %7688 = vdwg.mxu0
    %v7689 = vsub.f32 0.0, %v7687
    %v7690 = vmul.f32 %v7689, 1.442695
    %v7691 = vpow.pop %v7690
    %v7692 = vadd.f32 %v7691, 1.0
    %v7693 = vrcp.pop %v7692
    %v7694 = vmul.f32 %v7692, %v7693
    %v7695 = vsub.f32 1.0, %v7694
    %v7696 = vmul.f32 %v7693, %v7695
    %v7697 = vadd.f32 %v7693, %v7696
    %vm7698 = vweird.f32 %v7692
    %vm7699 = vweird.f32 %v7693
    %vm7700 = vmor %vm7698, %vm7699
    %v7701 = vsel %vm7700, %v7693, %v7697
    %v7702 = vand.u32 2147483647, %v7692
    %vm7703 = vcmp.eq.f32.partialorder %v7702, 8.507059e+37
    %v7704 = vand.u32 %v7692, 2147483648
    %v7705 = vor.u32 1.1754944e-38, %v7704
    %v7706 = vsel %vm7703, %v7705, %v7701
    %v7707 = vmul.f32 1.0, %v7706
    %7708 = vst [vmem:[#allocation2] sm:$0xff] %v7707
    // Predicated region
    $region46: #{tpu_custom_call.1} parent=1 // pred_check
      _
    $region47: #{tpu_custom_call.1} parent=1 // pred_check_branch
      %7710 = sbr.rel (0) target = $region49
    $region48: #{tpu_custom_call.1} parent=1 // pred_region
      %7712 = vsyncadd [#allocation3], 0
      %s7714 = sshll.u32 [#allocation2], 4
      %s7715 = int_to_ptr.vmem [resolvable:$true] %s7714
      %s7716 = sshll.u32 %s11, 4
      %s7717 = int_to_ptr.hbm [resolvable:$true] %s7716
      %7719 = dma.vmem_to_hbm [thread:$0]  %s7715, 128, %s7717, [#allocation3]
    $region49: #{tpu_custom_call.1} parent=1 // pred_fallthru
      _
    // Predicated region
    $region50: #{tpu_custom_call.1} parent=1 // pred_check
      _
    $region51: #{tpu_custom_call.1} parent=1 // pred_check_branch
      %7721 = sbr.rel (0) target = $region53
    $region52: #{tpu_custom_call.1} parent=1 // pred_region
      %7723 = dma.done [#allocation3], 128
    $region53: #{tpu_custom_call.1} parent=1 // pred_fallthru
      _
    %7724 = vsyncpa [#allocation3], 1

</llo_original>
